<compile_context>
chip_gen: v6e
topology: v6e:2x2x1
jax: 0.10.0
libtpu: 0.0.40
codegen_flags: <defaults>
</compile_context>

<pallas_src>
import functools

import jax
import jax.numpy as jnp
from jax.experimental import pallas as pl
from jax.experimental.pallas import tpu as pltpu


# ----------------------------------------------------------------------------
# Fused GRU-stack kernel (PyTorch gate semantics, gate order r,z,n):
#   r = sigmoid(W_ir x + b_ir + W_hr h + b_hr)
#   z = sigmoid(W_iz x + b_iz + W_hz h + b_hz)
#   n = tanh   (W_in x + b_in + r * (W_hn h + b_hn))
#   h = (1 - z) * n + z * h
# ----------------------------------------------------------------------------
def _make_sirna_kernel(T, Bf, H, n_layers):
    """Returns a kernel operating on time-major folded-batch 2D slabs."""

    def kernel(emb_ref, *refs):
        # refs = 8*n_layers GRU weight refs, then out_ref, then 2 VMEM scratch.
        gru_refs = refs[:8 * n_layers]
        out_ref = refs[8 * n_layers]
        act = (refs[8 * n_layers + 1], refs[8 * n_layers + 2])

        def cell(gi, h, w_hh, b_hh):
            gh = jnp.dot(h, w_hh, preferred_element_type=jnp.float32) + b_hh
            r = jax.nn.sigmoid(gi[:, 0:H] + gh[:, 0:H])
            z = jax.nn.sigmoid(gi[:, H:2 * H] + gh[:, H:2 * H])
            n = jnp.tanh(gi[:, 2 * H:3 * H] + r * gh[:, 2 * H:3 * H])
            return (1.0 - z) * n + z * h

        def weights(layer, direction):
            base = 8 * layer + 4 * direction
            return (gru_refs[base][...], gru_refs[base + 1][...],
                    gru_refs[base + 2][...], gru_refs[base + 3][...])

        x_cur = emb_ref[...]                                  # (T*Bf, in_dim)

        # ----- hidden layers: full bidirectional pass, outputs stay in VMEM
        for layer in range(n_layers - 1):
            out_scr = act[layer % 2]
            # forward direction (input projection hoisted out of the time loop)
            w_ih, w_hh, b_ih, b_hh = weights(layer, 0)
            gi = jnp.dot(x_cur, w_ih, preferred_element_type=jnp.float32) + b_ih
            h = jnp.zeros((Bf, H), jnp.float32)
            for t in range(T):
                h = cell(gi[t * Bf:(t + 1) * Bf], h, w_hh, b_hh)
                out_scr[t * Bf:(t + 1) * Bf, 0:H] = h
            # backward direction
            w_ih, w_hh, b_ih, b_hh = weights(layer, 1)
            gi = jnp.dot(x_cur, w_ih, preferred_element_type=jnp.float32) + b_ih
            h = jnp.zeros((Bf, H), jnp.float32)
            for s in range(T):
                t = T - 1 - s
                h = cell(gi[t * Bf:(t + 1) * Bf], h, w_hh, b_hh)
                out_scr[t * Bf:(t + 1) * Bf, H:2 * H] = h
            x_cur = out_scr[...]                              # (T*Bf, 2H)

        # ----- final layer: only position T-1 of its output is ever used
        w_ih, w_hh, b_ih, b_hh = weights(n_layers - 1, 0)
        gi = jnp.dot(x_cur, w_ih, preferred_element_type=jnp.float32) + b_ih
        h_f = jnp.zeros((Bf, H), jnp.float32)
        for t in range(T):
            h_f = cell(gi[t * Bf:(t + 1) * Bf], h_f, w_hh, b_hh)
        # backward output at position T-1 == one backward step from zero state
        w_ih, w_hh, b_ih, b_hh = weights(n_layers - 1, 1)
        x_last = x_cur[(T - 1) * Bf:T * Bf, :]
        gi_b = jnp.dot(x_last, w_ih, preferred_element_type=jnp.float32) + b_ih
        h_b = cell(gi_b, jnp.zeros((Bf, H), jnp.float32), w_hh, b_hh)

        out_ref[...] = jnp.concatenate([h_f, h_b], axis=-1)   # (Bf, 2H)

    return kernel


# ----------------------------------------------------------------------------
# Parameters (deterministic synthetic init; shapes pre-transposed for the MXU)
# ----------------------------------------------------------------------------
def init_params(key, vocab_size, embed_dim, hidden_dim, n_layers):
    k = key

    def nxt():
        nonlocal k
        k, sub = jax.random.split(k)
        return sub

    params = {}
    emb = jax.random.normal(nxt(), (vocab_size, embed_dim), jnp.float32) * 0.1
    emb = emb.at[0].set(0.0)                                  # padding_idx=0
    params["embedding"] = emb

    scale = 1.0 / float(hidden_dim) ** 0.5
    layers = []
    for layer in range(n_layers):
        in_dim = embed_dim if layer == 0 else 2 * hidden_dim
        lp = {}
        for d in ("fwd", "bwd"):
            lp[d] = dict(
                # Stored pre-transposed: (in,3H) / (H,3H) -> natural (M,K)x(K,N)
                w_ih=jax.random.uniform(nxt(), (in_dim, 3 * hidden_dim),
                                        jnp.float32, -scale, scale),
                w_hh=jax.random.uniform(nxt(), (hidden_dim, 3 * hidden_dim),
                                        jnp.float32, -scale, scale),
                b_ih=jax.random.uniform(nxt(), (1, 3 * hidden_dim),
                                        jnp.float32, -scale, scale),
                b_hh=jax.random.uniform(nxt(), (1, 3 * hidden_dim),
                                        jnp.float32, -scale, scale),
            )
        layers.append(lp)
    params["gru"] = layers

    params["fc_w"] = jax.random.uniform(nxt(), (4 * hidden_dim, 1),
                                        jnp.float32, -scale, scale)
    params["fc_b"] = jax.random.uniform(nxt(), (1,), jnp.float32, -scale, scale)
    return params


# ----------------------------------------------------------------------------
# Forward pass (mirrors SiRNAModel.forward, eval mode)
# ----------------------------------------------------------------------------
def sirna_forward(params, x):
    """x: (num_seqs, B, T) int32 token ids -> (B,) f32."""
    num_seqs, B, T = x.shape
    emb_table = params["embedding"]                           # (V, E)
    E = emb_table.shape[1]
    H = params["gru"][0]["fwd"]["w_hh"].shape[0]              # w_hh is (H, 3H)
    n_layers = len(params["gru"])
    Bf = num_seqs * B

    # Embedding gather (glue) + fold (seq, batch) into one batch axis, time-major.
    emb = emb_table[x]                                        # (S, B, T, E)
    emb = jnp.transpose(emb, (2, 0, 1, 3))                    # (T, S, B, E)
    emb2d = emb.reshape(T * Bf, E).astype(jnp.float32)        # row = t*Bf + s*B + b

    # Flatten GRU weights in (layer, direction) order.
    w_list = []
    for lp in params["gru"]:
        for d in ("fwd", "bwd"):
            p = lp[d]
            w_list += [p["w_ih"], p["w_hh"], p["b_ih"], p["b_hh"]]

    kernel = _make_sirna_kernel(T, Bf, H, n_layers)
    vmem = pl.BlockSpec(memory_space=pltpu.MemorySpace.VMEM)

    last = pl.pallas_call(
        kernel,
        out_shape=jax.ShapeDtypeStruct((Bf, 2 * H), jnp.float32),
        in_specs=[vmem] * (1 + len(w_list)),
        out_specs=vmem,
        scratch_shapes=[pltpu.VMEM((T * Bf, 2 * H), jnp.float32),
                        pltpu.VMEM((T * Bf, 2 * H), jnp.float32)],
    )(emb2d, *w_list)                                         # (Bf, 2H)

    # TODO(synk): nn.Dropout(0.5) is stochastic in train mode; eval-mode identity here.
    # Per-sequence last-step features, concatenated along features (PyTorch cat dim=1),
    # then the tiny Linear(4H -> 1) left to XLA (per perf review).
    feat = jnp.concatenate([last[s * B:(s + 1) * B] for s in range(num_seqs)],
                           axis=-1)                           # (B, num_seqs*2H)
    out = jnp.dot(feat, params["fc_w"]) + params["fc_b"]      # (B, 1)
    return jnp.squeeze(out)                                   # (B,)


if __name__ == "__main__":
    vocab_size = 16
    embed_dim = 32
    hidden_dim = 32
    n_layers = 3
    num_seqs, B, T = 2, 4, 8

    key = jax.random.PRNGKey(0)
    pkey, xkey = jax.random.split(key)
    params = init_params(pkey, vocab_size, embed_dim, hidden_dim, n_layers)
    x = jax.random.randint(xkey, (num_seqs, B, T), 0, vocab_size, jnp.int32)

    y = jax.jit(functools.partial(sirna_forward, params))(x)
    jax.block_until_ready(y)
    assert y.shape == (B,), y.shape
    print("KERNEL_OK")
</pallas_src>

<mosaic_0001>
module attributes {stable_mosaic.version = 11 : i64} {
  func.func @kernel(%arg0: memref<64x32xf32, #tpu.memory_space<vmem>>, %arg1: memref<32x96xf32, #tpu.memory_space<vmem>>, %arg2: memref<32x96xf32, #tpu.memory_space<vmem>>, %arg3: memref<1x96xf32, #tpu.memory_space<vmem>>, %arg4: memref<1x96xf32, #tpu.memory_space<vmem>>, %arg5: memref<32x96xf32, #tpu.memory_space<vmem>>, %arg6: memref<32x96xf32, #tpu.memory_space<vmem>>, %arg7: memref<1x96xf32, #tpu.memory_space<vmem>>, %arg8: memref<1x96xf32, #tpu.memory_space<vmem>>, %arg9: memref<64x96xf32, #tpu.memory_space<vmem>>, %arg10: memref<32x96xf32, #tpu.memory_space<vmem>>, %arg11: memref<1x96xf32, #tpu.memory_space<vmem>>, %arg12: memref<1x96xf32, #tpu.memory_space<vmem>>, %arg13: memref<64x96xf32, #tpu.memory_space<vmem>>, %arg14: memref<32x96xf32, #tpu.memory_space<vmem>>, %arg15: memref<1x96xf32, #tpu.memory_space<vmem>>, %arg16: memref<1x96xf32, #tpu.memory_space<vmem>>, %arg17: memref<64x96xf32, #tpu.memory_space<vmem>>, %arg18: memref<32x96xf32, #tpu.memory_space<vmem>>, %arg19: memref<1x96xf32, #tpu.memory_space<vmem>>, %arg20: memref<1x96xf32, #tpu.memory_space<vmem>>, %arg21: memref<64x96xf32, #tpu.memory_space<vmem>>, %arg22: memref<32x96xf32, #tpu.memory_space<vmem>>, %arg23: memref<1x96xf32, #tpu.memory_space<vmem>>, %arg24: memref<1x96xf32, #tpu.memory_space<vmem>>, %arg25: memref<8x64xf32, #tpu.memory_space<vmem>>, %arg26: memref<64x64xf32, #tpu.memory_space<vmem>>, %arg27: memref<64x64xf32, #tpu.memory_space<vmem>>) attributes {dimension_semantics = [], scalar_prefetch = 0 : i64, scratch_operands = 2 : i64, tpu.core_type = #tpu.core_type<tc>} {
    %c0 = arith.constant 0 : index
    %c0_0 = arith.constant 0 : index
    %0 = vector.load %arg0[%c0, %c0_0] : memref<64x32xf32, #tpu.memory_space<vmem>>, vector<64x32xf32>
    %c0_1 = arith.constant 0 : index
    %c0_2 = arith.constant 0 : index
    %1 = vector.load %arg1[%c0_1, %c0_2] : memref<32x96xf32, #tpu.memory_space<vmem>>, vector<32x96xf32>
    %c0_3 = arith.constant 0 : index
    %c0_4 = arith.constant 0 : index
    %2 = vector.load %arg2[%c0_3, %c0_4] : memref<32x96xf32, #tpu.memory_space<vmem>>, vector<32x96xf32>
    %c0_5 = arith.constant 0 : index
    %c0_6 = arith.constant 0 : index
    %3 = vector.load %arg3[%c0_5, %c0_6] : memref<1x96xf32, #tpu.memory_space<vmem>>, vector<1x96xf32>
    %c0_7 = arith.constant 0 : index
    %c0_8 = arith.constant 0 : index
    %4 = vector.load %arg4[%c0_7, %c0_8] : memref<1x96xf32, #tpu.memory_space<vmem>>, vector<1x96xf32>
    %cst = arith.constant dense<0.000000e+00> : vector<64x96xf32>
    %5 = tpu.matmul %0, %1, %cst {dimension_numbers = #tpu.dot_dimension_numbers<[1], [0], [0], [1], [0, 0, 1, 1], [], []>} : vector<64x32xf32>, vector<32x96xf32>, vector<64x96xf32> -> vector<64x96xf32>
    %6 = vector.broadcast %3 : vector<1x96xf32> to vector<64x96xf32>
    %7 = arith.addf %5, %6 : vector<64x96xf32>
    %cst_9 = arith.constant 0.000000e+00 : f32
    %8 = vector.broadcast %cst_9 : f32 to vector<8x32xf32>
    %9 = vector.extract_strided_slice %7 {offsets = [0, 0], sizes = [8, 96], strides = [1, 1]} : vector<64x96xf32> to vector<8x96xf32>
    %cst_10 = arith.constant dense<0.000000e+00> : vector<8x96xf32>
    %10 = tpu.matmul %8, %2, %cst_10 {dimension_numbers = #tpu.dot_dimension_numbers<[1], [0], [0], [1], [0, 0, 1, 1], [], []>} : vector<8x32xf32>, vector<32x96xf32>, vector<8x96xf32> -> vector<8x96xf32>
    %11 = vector.broadcast %4 : vector<1x96xf32> to vector<8x96xf32>
    %12 = arith.addf %10, %11 : vector<8x96xf32>
    %13 = vector.extract_strided_slice %9 {offsets = [0, 0], sizes = [8, 32], strides = [1, 1]} : vector<8x96xf32> to vector<8x32xf32>
    %14 = vector.extract_strided_slice %12 {offsets = [0, 0], sizes = [8, 32], strides = [1, 1]} : vector<8x96xf32> to vector<8x32xf32>
    %15 = arith.addf %13, %14 : vector<8x32xf32>
    %16 = arith.negf %15 : vector<8x32xf32>
    %17 = math.exp %16 : vector<8x32xf32>
    %cst_11 = arith.constant 1.000000e+00 : f32
    %18 = vector.broadcast %cst_11 : f32 to vector<8x32xf32>
    %19 = arith.addf %18, %17 : vector<8x32xf32>
    %20 = arith.divf %18, %19 : vector<8x32xf32>
    %21 = vector.extract_strided_slice %9 {offsets = [0, 32], sizes = [8, 32], strides = [1, 1]} : vector<8x96xf32> to vector<8x32xf32>
    %22 = vector.extract_strided_slice %12 {offsets = [0, 32], sizes = [8, 32], strides = [1, 1]} : vector<8x96xf32> to vector<8x32xf32>
    %23 = arith.addf %21, %22 : vector<8x32xf32>
    %24 = arith.negf %23 : vector<8x32xf32>
    %25 = math.exp %24 : vector<8x32xf32>
    %cst_12 = arith.constant 1.000000e+00 : f32
    %26 = vector.broadcast %cst_12 : f32 to vector<8x32xf32>
    %27 = arith.addf %26, %25 : vector<8x32xf32>
    %28 = arith.divf %26, %27 : vector<8x32xf32>
    %29 = vector.extract_strided_slice %9 {offsets = [0, 64], sizes = [8, 32], strides = [1, 1]} : vector<8x96xf32> to vector<8x32xf32>
    %30 = vector.extract_strided_slice %12 {offsets = [0, 64], sizes = [8, 32], strides = [1, 1]} : vector<8x96xf32> to vector<8x32xf32>
    %31 = arith.mulf %20, %30 : vector<8x32xf32>
    %32 = arith.addf %29, %31 : vector<8x32xf32>
    %33 = math.tanh %32 : vector<8x32xf32>
    %cst_13 = arith.constant 1.000000e+00 : f32
    %34 = vector.broadcast %cst_13 : f32 to vector<8x32xf32>
    %35 = arith.subf %34, %28 : vector<8x32xf32>
    %36 = arith.mulf %35, %33 : vector<8x32xf32>
    %37 = arith.mulf %28, %8 : vector<8x32xf32>
    %38 = arith.addf %36, %37 : vector<8x32xf32>
    %c0_14 = arith.constant 0 : index
    %c0_15 = arith.constant 0 : index
    %39 = vector.load %arg26[%c0_14, %c0_15] : memref<64x64xf32, #tpu.memory_space<vmem>>, vector<8x32xf32>
    tpu.vector_store %arg26[%c0_14, %c0_15], %38 {strides = array<i32>} : memref<64x64xf32, #tpu.memory_space<vmem>>, vector<8x32xf32>,
    %40 = vector.extract_strided_slice %7 {offsets = [8, 0], sizes = [8, 96], strides = [1, 1]} : vector<64x96xf32> to vector<8x96xf32>
    %cst_16 = arith.constant dense<0.000000e+00> : vector<8x96xf32>
    %41 = tpu.matmul %38, %2, %cst_16 {dimension_numbers = #tpu.dot_dimension_numbers<[1], [0], [0], [1], [0, 0, 1, 1], [], []>} : vector<8x32xf32>, vector<32x96xf32>, vector<8x96xf32> -> vector<8x96xf32>
    %42 = vector.broadcast %4 : vector<1x96xf32> to vector<8x96xf32>
    %43 = arith.addf %41, %42 : vector<8x96xf32>
    %44 = vector.extract_strided_slice %40 {offsets = [0, 0], sizes = [8, 32], strides = [1, 1]} : vector<8x96xf32> to vector<8x32xf32>
    %45 = vector.extract_strided_slice %43 {offsets = [0, 0], sizes = [8, 32], strides = [1, 1]} : vector<8x96xf32> to vector<8x32xf32>
    %46 = arith.addf %44, %45 : vector<8x32xf32>
    %47 = arith.negf %46 : vector<8x32xf32>
    %48 = math.exp %47 : vector<8x32xf32>
    %cst_17 = arith.constant 1.000000e+00 : f32
    %49 = vector.broadcast %cst_17 : f32 to vector<8x32xf32>
    %50 = arith.addf %49, %48 : vector<8x32xf32>
    %51 = arith.divf %49, %50 : vector<8x32xf32>
    %52 = vector.extract_strided_slice %40 {offsets = [0, 32], sizes = [8, 32], strides = [1, 1]} : vector<8x96xf32> to vector<8x32xf32>
    %53 = vector.extract_strided_slice %43 {offsets = [0, 32], sizes = [8, 32], strides = [1, 1]} : vector<8x96xf32> to vector<8x32xf32>
    %54 = arith.addf %52, %53 : vector<8x32xf32>
    %55 = arith.negf %54 : vector<8x32xf32>
    %56 = math.exp %55 : vector<8x32xf32>
    %cst_18 = arith.constant 1.000000e+00 : f32
    %57 = vector.broadcast %cst_18 : f32 to vector<8x32xf32>
    %58 = arith.addf %57, %56 : vector<8x32xf32>
    %59 = arith.divf %57, %58 : vector<8x32xf32>
    %60 = vector.extract_strided_slice %40 {offsets = [0, 64], sizes = [8, 32], strides = [1, 1]} : vector<8x96xf32> to vector<8x32xf32>
    %61 = vector.extract_strided_slice %43 {offsets = [0, 64], sizes = [8, 32], strides = [1, 1]} : vector<8x96xf32> to vector<8x32xf32>
    %62 = arith.mulf %51, %61 : vector<8x32xf32>
    %63 = arith.addf %60, %62 : vector<8x32xf32>
    %64 = math.tanh %63 : vector<8x32xf32>
    %cst_19 = arith.constant 1.000000e+00 : f32
    %65 = vector.broadcast %cst_19 : f32 to vector<8x32xf32>
    %66 = arith.subf %65, %59 : vector<8x32xf32>
    %67 = arith.mulf %66, %64 : vector<8x32xf32>
    %68 = arith.mulf %59, %38 : vector<8x32xf32>
    %69 = arith.addf %67, %68 : vector<8x32xf32>
    %c8 = arith.constant 8 : index
    %c0_20 = arith.constant 0 : index
    %70 = vector.load %arg26[%c8, %c0_20] : memref<64x64xf32, #tpu.memory_space<vmem>>, vector<8x32xf32>
    tpu.vector_store %arg26[%c8, %c0_20], %69 {strides = array<i32>} : memref<64x64xf32, #tpu.memory_space<vmem>>, vector<8x32xf32>,
    %71 = vector.extract_strided_slice %7 {offsets = [16, 0], sizes = [8, 96], strides = [1, 1]} : vector<64x96xf32> to vector<8x96xf32>
    %cst_21 = arith.constant dense<0.000000e+00> : vector<8x96xf32>
    %72 = tpu.matmul %69, %2, %cst_21 {dimension_numbers = #tpu.dot_dimension_numbers<[1], [0], [0], [1], [0, 0, 1, 1], [], []>} : vector<8x32xf32>, vector<32x96xf32>, vector<8x96xf32> -> vector<8x96xf32>
    %73 = vector.broadcast %4 : vector<1x96xf32> to vector<8x96xf32>
    %74 = arith.addf %72, %73 : vector<8x96xf32>
    %75 = vector.extract_strided_slice %71 {offsets = [0, 0], sizes = [8, 32], strides = [1, 1]} : vector<8x96xf32> to vector<8x32xf32>
    %76 = vector.extract_strided_slice %74 {offsets = [0, 0], sizes = [8, 32], strides = [1, 1]} : vector<8x96xf32> to vector<8x32xf32>
    %77 = arith.addf %75, %76 : vector<8x32xf32>
    %78 = arith.negf %77 : vector<8x32xf32>
    %79 = math.exp %78 : vector<8x32xf32>
    %cst_22 = arith.constant 1.000000e+00 : f32
    %80 = vector.broadcast %cst_22 : f32 to vector<8x32xf32>
    %81 = arith.addf %80, %79 : vector<8x32xf32>
    %82 = arith.divf %80, %81 : vector<8x32xf32>
    %83 = vector.extract_strided_slice %71 {offsets = [0, 32], sizes = [8, 32], strides = [1, 1]} : vector<8x96xf32> to vector<8x32xf32>
    %84 = vector.extract_strided_slice %74 {offsets = [0, 32], sizes = [8, 32], strides = [1, 1]} : vector<8x96xf32> to vector<8x32xf32>
    %85 = arith.addf %83, %84 : vector<8x32xf32>
    %86 = arith.negf %85 : vector<8x32xf32>
    %87 = math.exp %86 : vector<8x32xf32>
    %cst_23 = arith.constant 1.000000e+00 : f32
    %88 = vector.broadcast %cst_23 : f32 to vector<8x32xf32>
    %89 = arith.addf %88, %87 : vector<8x32xf32>
    %90 = arith.divf %88, %89 : vector<8x32xf32>
    %91 = vector.extract_strided_slice %71 {offsets = [0, 64], sizes = [8, 32], strides = [1, 1]} : vector<8x96xf32> to vector<8x32xf32>
    %92 = vector.extract_strided_slice %74 {offsets = [0, 64], sizes = [8, 32], strides = [1, 1]} : vector<8x96xf32> to vector<8x32xf32>
    %93 = arith.mulf %82, %92 : vector<8x32xf32>
    %94 = arith.addf %91, %93 : vector<8x32xf32>
    %95 = math.tanh %94 : vector<8x32xf32>
    %cst_24 = arith.constant 1.000000e+00 : f32
    %96 = vector.broadcast %cst_24 : f32 to vector<8x32xf32>
    %97 = arith.subf %96, %90 : vector<8x32xf32>
    %98 = arith.mulf %97, %95 : vector<8x32xf32>
    %99 = arith.mulf %90, %69 : vector<8x32xf32>
    %100 = arith.addf %98, %99 : vector<8x32xf32>
    %c16 = arith.constant 16 : index
    %c0_25 = arith.constant 0 : index
    %101 = vector.load %arg26[%c16, %c0_25] : memref<64x64xf32, #tpu.memory_space<vmem>>, vector<8x32xf32>
    tpu.vector_store %arg26[%c16, %c0_25], %100 {strides = array<i32>} : memref<64x64xf32, #tpu.memory_space<vmem>>, vector<8x32xf32>,
    %102 = vector.extract_strided_slice %7 {offsets = [24, 0], sizes = [8, 96], strides = [1, 1]} : vector<64x96xf32> to vector<8x96xf32>
    %cst_26 = arith.constant dense<0.000000e+00> : vector<8x96xf32>
    %103 = tpu.matmul %100, %2, %cst_26 {dimension_numbers = #tpu.dot_dimension_numbers<[1], [0], [0], [1], [0, 0, 1, 1], [], []>} : vector<8x32xf32>, vector<32x96xf32>, vector<8x96xf32> -> vector<8x96xf32>
    %104 = vector.broadcast %4 : vector<1x96xf32> to vector<8x96xf32>
    %105 = arith.addf %103, %104 : vector<8x96xf32>
    %106 = vector.extract_strided_slice %102 {offsets = [0, 0], sizes = [8, 32], strides = [1, 1]} : vector<8x96xf32> to vector<8x32xf32>
    %107 = vector.extract_strided_slice %105 {offsets = [0, 0], sizes = [8, 32], strides = [1, 1]} : vector<8x96xf32> to vector<8x32xf32>
    %108 = arith.addf %106, %107 : vector<8x32xf32>
    %109 = arith.negf %108 : vector<8x32xf32>
    %110 = math.exp %109 : vector<8x32xf32>
    %cst_27 = arith.constant 1.000000e+00 : f32
    %111 = vector.broadcast %cst_27 : f32 to vector<8x32xf32>
    %112 = arith.addf %111, %110 : vector<8x32xf32>
    %113 = arith.divf %111, %112 : vector<8x32xf32>
    %114 = vector.extract_strided_slice %102 {offsets = [0, 32], sizes = [8, 32], strides = [1, 1]} : vector<8x96xf32> to vector<8x32xf32>
    %115 = vector.extract_strided_slice %105 {offsets = [0, 32], sizes = [8, 32], strides = [1, 1]} : vector<8x96xf32> to vector<8x32xf32>
    %116 = arith.addf %114, %115 : vector<8x32xf32>
    %117 = arith.negf %116 : vector<8x32xf32>
    %118 = math.exp %117 : vector<8x32xf32>
    %cst_28 = arith.constant 1.000000e+00 : f32
    %119 = vector.broadcast %cst_28 : f32 to vector<8x32xf32>
    %120 = arith.addf %119, %118 : vector<8x32xf32>
    %121 = arith.divf %119, %120 : vector<8x32xf32>
    %122 = vector.extract_strided_slice %102 {offsets = [0, 64], sizes = [8, 32], strides = [1, 1]} : vector<8x96xf32> to vector<8x32xf32>
    %123 = vector.extract_strided_slice %105 {offsets = [0, 64], sizes = [8, 32], strides = [1, 1]} : vector<8x96xf32> to vector<8x32xf32>
    %124 = arith.mulf %113, %123 : vector<8x32xf32>
    %125 = arith.addf %122, %124 : vector<8x32xf32>
    %126 = math.tanh %125 : vector<8x32xf32>
    %cst_29 = arith.constant 1.000000e+00 : f32
    %127 = vector.broadcast %cst_29 : f32 to vector<8x32xf32>
    %128 = arith.subf %127, %121 : vector<8x32xf32>
    %129 = arith.mulf %128, %126 : vector<8x32xf32>
    %130 = arith.mulf %121, %100 : vector<8x32xf32>
    %131 = arith.addf %129, %130 : vector<8x32xf32>
    %c24 = arith.constant 24 : index
    %c0_30 = arith.constant 0 : index
    %132 = vector.load %arg26[%c24, %c0_30] : memref<64x64xf32, #tpu.memory_space<vmem>>, vector<8x32xf32>
    tpu.vector_store %arg26[%c24, %c0_30], %131 {strides = array<i32>} : memref<64x64xf32, #tpu.memory_space<vmem>>, vector<8x32xf32>,
    %133 = vector.extract_strided_slice %7 {offsets = [32, 0], sizes = [8, 96], strides = [1, 1]} : vector<64x96xf32> to vector<8x96xf32>
    %cst_31 = arith.constant dense<0.000000e+00> : vector<8x96xf32>
    %134 = tpu.matmul %131, %2, %cst_31 {dimension_numbers = #tpu.dot_dimension_numbers<[1], [0], [0], [1], [0, 0, 1, 1], [], []>} : vector<8x32xf32>, vector<32x96xf32>, vector<8x96xf32> -> vector<8x96xf32>
    %135 = vector.broadcast %4 : vector<1x96xf32> to vector<8x96xf32>
    %136 = arith.addf %134, %135 : vector<8x96xf32>
    %137 = vector.extract_strided_slice %133 {offsets = [0, 0], sizes = [8, 32], strides = [1, 1]} : vector<8x96xf32> to vector<8x32xf32>
    %138 = vector.extract_strided_slice %136 {offsets = [0, 0], sizes = [8, 32], strides = [1, 1]} : vector<8x96xf32> to vector<8x32xf32>
    %139 = arith.addf %137, %138 : vector<8x32xf32>
    %140 = arith.negf %139 : vector<8x32xf32>
    %141 = math.exp %140 : vector<8x32xf32>
    %cst_32 = arith.constant 1.000000e+00 : f32
    %142 = vector.broadcast %cst_32 : f32 to vector<8x32xf32>
    %143 = arith.addf %142, %141 : vector<8x32xf32>
    %144 = arith.divf %142, %143 : vector<8x32xf32>
    %145 = vector.extract_strided_slice %133 {offsets = [0, 32], sizes = [8, 32], strides = [1, 1]} : vector<8x96xf32> to vector<8x32xf32>
    %146 = vector.extract_strided_slice %136 {offsets = [0, 32], sizes = [8, 32], strides = [1, 1]} : vector<8x96xf32> to vector<8x32xf32>
    %147 = arith.addf %145, %146 : vector<8x32xf32>
    %148 = arith.negf %147 : vector<8x32xf32>
    %149 = math.exp %148 : vector<8x32xf32>
    %cst_33 = arith.constant 1.000000e+00 : f32
    %150 = vector.broadcast %cst_33 : f32 to vector<8x32xf32>
    %151 = arith.addf %150, %149 : vector<8x32xf32>
    %152 = arith.divf %150, %151 : vector<8x32xf32>
    %153 = vector.extract_strided_slice %133 {offsets = [0, 64], sizes = [8, 32], strides = [1, 1]} : vector<8x96xf32> to vector<8x32xf32>
    %154 = vector.extract_strided_slice %136 {offsets = [0, 64], sizes = [8, 32], strides = [1, 1]} : vector<8x96xf32> to vector<8x32xf32>
    %155 = arith.mulf %144, %154 : vector<8x32xf32>
    %156 = arith.addf %153, %155 : vector<8x32xf32>
    %157 = math.tanh %156 : vector<8x32xf32>
    %cst_34 = arith.constant 1.000000e+00 : f32
    %158 = vector.broadcast %cst_34 : f32 to vector<8x32xf32>
    %159 = arith.subf %158, %152 : vector<8x32xf32>
    %160 = arith.mulf %159, %157 : vector<8x32xf32>
    %161 = arith.mulf %152, %131 : vector<8x32xf32>
    %162 = arith.addf %160, %161 : vector<8x32xf32>
    %c32 = arith.constant 32 : index
    %c0_35 = arith.constant 0 : index
    %163 = vector.load %arg26[%c32, %c0_35] : memref<64x64xf32, #tpu.memory_space<vmem>>, vector<8x32xf32>
    tpu.vector_store %arg26[%c32, %c0_35], %162 {strides = array<i32>} : memref<64x64xf32, #tpu.memory_space<vmem>>, vector<8x32xf32>,
    %164 = vector.extract_strided_slice %7 {offsets = [40, 0], sizes = [8, 96], strides = [1, 1]} : vector<64x96xf32> to vector<8x96xf32>
    %cst_36 = arith.constant dense<0.000000e+00> : vector<8x96xf32>
    %165 = tpu.matmul %162, %2, %cst_36 {dimension_numbers = #tpu.dot_dimension_numbers<[1], [0], [0], [1], [0, 0, 1, 1], [], []>} : vector<8x32xf32>, vector<32x96xf32>, vector<8x96xf32> -> vector<8x96xf32>
    %166 = vector.broadcast %4 : vector<1x96xf32> to vector<8x96xf32>
    %167 = arith.addf %165, %166 : vector<8x96xf32>
    %168 = vector.extract_strided_slice %164 {offsets = [0, 0], sizes = [8, 32], strides = [1, 1]} : vector<8x96xf32> to vector<8x32xf32>
    %169 = vector.extract_strided_slice %167 {offsets = [0, 0], sizes = [8, 32], strides = [1, 1]} : vector<8x96xf32> to vector<8x32xf32>
    %170 = arith.addf %168, %169 : vector<8x32xf32>
    %171 = arith.negf %170 : vector<8x32xf32>
    %172 = math.exp %171 : vector<8x32xf32>
    %cst_37 = arith.constant 1.000000e+00 : f32
    %173 = vector.broadcast %cst_37 : f32 to vector<8x32xf32>
    %174 = arith.addf %173, %172 : vector<8x32xf32>
    %175 = arith.divf %173, %174 : vector<8x32xf32>
    %176 = vector.extract_strided_slice %164 {offsets = [0, 32], sizes = [8, 32], strides = [1, 1]} : vector<8x96xf32> to vector<8x32xf32>
    %177 = vector.extract_strided_slice %167 {offsets = [0, 32], sizes = [8, 32], strides = [1, 1]} : vector<8x96xf32> to vector<8x32xf32>
    %178 = arith.addf %176, %177 : vector<8x32xf32>
    %179 = arith.negf %178 : vector<8x32xf32>
    %180 = math.exp %179 : vector<8x32xf32>
    %cst_38 = arith.constant 1.000000e+00 : f32
    %181 = vector.broadcast %cst_38 : f32 to vector<8x32xf32>
    %182 = arith.addf %181, %180 : vector<8x32xf32>
    %183 = arith.divf %181, %182 : vector<8x32xf32>
    %184 = vector.extract_strided_slice %164 {offsets = [0, 64], sizes = [8, 32], strides = [1, 1]} : vector<8x96xf32> to vector<8x32xf32>
    %185 = vector.extract_strided_slice %167 {offsets = [0, 64], sizes = [8, 32], strides = [1, 1]} : vector<8x96xf32> to vector<8x32xf32>
    %186 = arith.mulf %175, %185 : vector<8x32xf32>
    %187 = arith.addf %184, %186 : vector<8x32xf32>
    %188 = math.tanh %187 : vector<8x32xf32>
    %cst_39 = arith.constant 1.000000e+00 : f32
    %189 = vector.broadcast %cst_39 : f32 to vector<8x32xf32>
    %190 = arith.subf %189, %183 : vector<8x32xf32>
    %191 = arith.mulf %190, %188 : vector<8x32xf32>
    %192 = arith.mulf %183, %162 : vector<8x32xf32>
    %193 = arith.addf %191, %192 : vector<8x32xf32>
    %c40 = arith.constant 40 : index
    %c0_40 = arith.constant 0 : index
    %194 = vector.load %arg26[%c40, %c0_40] : memref<64x64xf32, #tpu.memory_space<vmem>>, vector<8x32xf32>
    tpu.vector_store %arg26[%c40, %c0_40], %193 {strides = array<i32>} : memref<64x64xf32, #tpu.memory_space<vmem>>, vector<8x32xf32>,
    %195 = vector.extract_strided_slice %7 {offsets = [48, 0], sizes = [8, 96], strides = [1, 1]} : vector<64x96xf32> to vector<8x96xf32>
    %cst_41 = arith.constant dense<0.000000e+00> : vector<8x96xf32>
    %196 = tpu.matmul %193, %2, %cst_41 {dimension_numbers = #tpu.dot_dimension_numbers<[1], [0], [0], [1], [0, 0, 1, 1], [], []>} : vector<8x32xf32>, vector<32x96xf32>, vector<8x96xf32> -> vector<8x96xf32>
    %197 = vector.broadcast %4 : vector<1x96xf32> to vector<8x96xf32>
    %198 = arith.addf %196, %197 : vector<8x96xf32>
    %199 = vector.extract_strided_slice %195 {offsets = [0, 0], sizes = [8, 32], strides = [1, 1]} : vector<8x96xf32> to vector<8x32xf32>
    %200 = vector.extract_strided_slice %198 {offsets = [0, 0], sizes = [8, 32], strides = [1, 1]} : vector<8x96xf32> to vector<8x32xf32>
    %201 = arith.addf %199, %200 : vector<8x32xf32>
    %202 = arith.negf %201 : vector<8x32xf32>
    %203 = math.exp %202 : vector<8x32xf32>
    %cst_42 = arith.constant 1.000000e+00 : f32
    %204 = vector.broadcast %cst_42 : f32 to vector<8x32xf32>
    %205 = arith.addf %204, %203 : vector<8x32xf32>
    %206 = arith.divf %204, %205 : vector<8x32xf32>
    %207 = vector.extract_strided_slice %195 {offsets = [0, 32], sizes = [8, 32], strides = [1, 1]} : vector<8x96xf32> to vector<8x32xf32>
    %208 = vector.extract_strided_slice %198 {offsets = [0, 32], sizes = [8, 32], strides = [1, 1]} : vector<8x96xf32> to vector<8x32xf32>
    %209 = arith.addf %207, %208 : vector<8x32xf32>
    %210 = arith.negf %209 : vector<8x32xf32>
    %211 = math.exp %210 : vector<8x32xf32>
    %cst_43 = arith.constant 1.000000e+00 : f32
    %212 = vector.broadcast %cst_43 : f32 to vector<8x32xf32>
    %213 = arith.addf %212, %211 : vector<8x32xf32>
    %214 = arith.divf %212, %213 : vector<8x32xf32>
    %215 = vector.extract_strided_slice %195 {offsets = [0, 64], sizes = [8, 32], strides = [1, 1]} : vector<8x96xf32> to vector<8x32xf32>
    %216 = vector.extract_strided_slice %198 {offsets = [0, 64], sizes = [8, 32], strides = [1, 1]} : vector<8x96xf32> to vector<8x32xf32>
    %217 = arith.mulf %206, %216 : vector<8x32xf32>
    %218 = arith.addf %215, %217 : vector<8x32xf32>
    %219 = math.tanh %218 : vector<8x32xf32>
    %cst_44 = arith.constant 1.000000e+00 : f32
    %220 = vector.broadcast %cst_44 : f32 to vector<8x32xf32>
    %221 = arith.subf %220, %214 : vector<8x32xf32>
    %222 = arith.mulf %221, %219 : vector<8x32xf32>
    %223 = arith.mulf %214, %193 : vector<8x32xf32>
    %224 = arith.addf %222, %223 : vector<8x32xf32>
    %c48 = arith.constant 48 : index
    %c0_45 = arith.constant 0 : index
    %225 = vector.load %arg26[%c48, %c0_45] : memref<64x64xf32, #tpu.memory_space<vmem>>, vector<8x32xf32>
    tpu.vector_store %arg26[%c48, %c0_45], %224 {strides = array<i32>} : memref<64x64xf32, #tpu.memory_space<vmem>>, vector<8x32xf32>,
    %226 = vector.extract_strided_slice %7 {offsets = [56, 0], sizes = [8, 96], strides = [1, 1]} : vector<64x96xf32> to vector<8x96xf32>
    %cst_46 = arith.constant dense<0.000000e+00> : vector<8x96xf32>
    %227 = tpu.matmul %224, %2, %cst_46 {dimension_numbers = #tpu.dot_dimension_numbers<[1], [0], [0], [1], [0, 0, 1, 1], [], []>} : vector<8x32xf32>, vector<32x96xf32>, vector<8x96xf32> -> vector<8x96xf32>
    %228 = vector.broadcast %4 : vector<1x96xf32> to vector<8x96xf32>
    %229 = arith.addf %227, %228 : vector<8x96xf32>
    %230 = vector.extract_strided_slice %226 {offsets = [0, 0], sizes = [8, 32], strides = [1, 1]} : vector<8x96xf32> to vector<8x32xf32>
    %231 = vector.extract_strided_slice %229 {offsets = [0, 0], sizes = [8, 32], strides = [1, 1]} : vector<8x96xf32> to vector<8x32xf32>
    %232 = arith.addf %230, %231 : vector<8x32xf32>
    %233 = arith.negf %232 : vector<8x32xf32>
    %234 = math.exp %233 : vector<8x32xf32>
    %cst_47 = arith.constant 1.000000e+00 : f32
    %235 = vector.broadcast %cst_47 : f32 to vector<8x32xf32>
    %236 = arith.addf %235, %234 : vector<8x32xf32>
    %237 = arith.divf %235, %236 : vector<8x32xf32>
    %238 = vector.extract_strided_slice %226 {offsets = [0, 32], sizes = [8, 32], strides = [1, 1]} : vector<8x96xf32> to vector<8x32xf32>
    %239 = vector.extract_strided_slice %229 {offsets = [0, 32], sizes = [8, 32], strides = [1, 1]} : vector<8x96xf32> to vector<8x32xf32>
    %240 = arith.addf %238, %239 : vector<8x32xf32>
    %241 = arith.negf %240 : vector<8x32xf32>
    %242 = math.exp %241 : vector<8x32xf32>
    %cst_48 = arith.constant 1.000000e+00 : f32
    %243 = vector.broadcast %cst_48 : f32 to vector<8x32xf32>
    %244 = arith.addf %243, %242 : vector<8x32xf32>
    %245 = arith.divf %243, %244 : vector<8x32xf32>
    %246 = vector.extract_strided_slice %226 {offsets = [0, 64], sizes = [8, 32], strides = [1, 1]} : vector<8x96xf32> to vector<8x32xf32>
    %247 = vector.extract_strided_slice %229 {offsets = [0, 64], sizes = [8, 32], strides = [1, 1]} : vector<8x96xf32> to vector<8x32xf32>
    %248 = arith.mulf %237, %247 : vector<8x32xf32>
    %249 = arith.addf %246, %248 : vector<8x32xf32>
    %250 = math.tanh %249 : vector<8x32xf32>
    %cst_49 = arith.constant 1.000000e+00 : f32
    %251 = vector.broadcast %cst_49 : f32 to vector<8x32xf32>
    %252 = arith.subf %251, %245 : vector<8x32xf32>
    %253 = arith.mulf %252, %250 : vector<8x32xf32>
    %254 = arith.mulf %245, %224 : vector<8x32xf32>
    %255 = arith.addf %253, %254 : vector<8x32xf32>
    %c56 = arith.constant 56 : index
    %c0_50 = arith.constant 0 : index
    %256 = vector.load %arg26[%c56, %c0_50] : memref<64x64xf32, #tpu.memory_space<vmem>>, vector<8x32xf32>
    tpu.vector_store %arg26[%c56, %c0_50], %255 {strides = array<i32>} : memref<64x64xf32, #tpu.memory_space<vmem>>, vector<8x32xf32>,
    %c0_51 = arith.constant 0 : index
    %c0_52 = arith.constant 0 : index
    %257 = vector.load %arg5[%c0_51, %c0_52] : memref<32x96xf32, #tpu.memory_space<vmem>>, vector<32x96xf32>
    %c0_53 = arith.constant 0 : index
    %c0_54 = arith.constant 0 : index
    %258 = vector.load %arg6[%c0_53, %c0_54] : memref<32x96xf32, #tpu.memory_space<vmem>>, vector<32x96xf32>
    %c0_55 = arith.constant 0 : index
    %c0_56 = arith.constant 0 : index
    %259 = vector.load %arg7[%c0_55, %c0_56] : memref<1x96xf32, #tpu.memory_space<vmem>>, vector<1x96xf32>
    %c0_57 = arith.constant 0 : index
    %c0_58 = arith.constant 0 : index
    %260 = vector.load %arg8[%c0_57, %c0_58] : memref<1x96xf32, #tpu.memory_space<vmem>>, vector<1x96xf32>
    %cst_59 = arith.constant dense<0.000000e+00> : vector<64x96xf32>
    %261 = tpu.matmul %0, %257, %cst_59 {dimension_numbers = #tpu.dot_dimension_numbers<[1], [0], [0], [1], [0, 0, 1, 1], [], []>} : vector<64x32xf32>, vector<32x96xf32>, vector<64x96xf32> -> vector<64x96xf32>
    %262 = vector.broadcast %259 : vector<1x96xf32> to vector<64x96xf32>
    %263 = arith.addf %261, %262 : vector<64x96xf32>
    %cst_60 = arith.constant 0.000000e+00 : f32
    %264 = vector.broadcast %cst_60 : f32 to vector<8x32xf32>
    %265 = vector.extract_strided_slice %263 {offsets = [56, 0], sizes = [8, 96], strides = [1, 1]} : vector<64x96xf32> to vector<8x96xf32>
    %cst_61 = arith.constant dense<0.000000e+00> : vector<8x96xf32>
    %266 = tpu.matmul %264, %258, %cst_61 {dimension_numbers = #tpu.dot_dimension_numbers<[1], [0], [0], [1], [0, 0, 1, 1], [], []>} : vector<8x32xf32>, vector<32x96xf32>, vector<8x96xf32> -> vector<8x96xf32>
    %267 = vector.broadcast %260 : vector<1x96xf32> to vector<8x96xf32>
    %268 = arith.addf %266, %267 : vector<8x96xf32>
    %269 = vector.extract_strided_slice %265 {offsets = [0, 0], sizes = [8, 32], strides = [1, 1]} : vector<8x96xf32> to vector<8x32xf32>
    %270 = vector.extract_strided_slice %268 {offsets = [0, 0], sizes = [8, 32], strides = [1, 1]} : vector<8x96xf32> to vector<8x32xf32>
    %271 = arith.addf %269, %270 : vector<8x32xf32>
    %272 = arith.negf %271 : vector<8x32xf32>
    %273 = math.exp %272 : vector<8x32xf32>
    %cst_62 = arith.constant 1.000000e+00 : f32
    %274 = vector.broadcast %cst_62 : f32 to vector<8x32xf32>
    %275 = arith.addf %274, %273 : vector<8x32xf32>
    %276 = arith.divf %274, %275 : vector<8x32xf32>
    %277 = vector.extract_strided_slice %265 {offsets = [0, 32], sizes = [8, 32], strides = [1, 1]} : vector<8x96xf32> to vector<8x32xf32>
    %278 = vector.extract_strided_slice %268 {offsets = [0, 32], sizes = [8, 32], strides = [1, 1]} : vector<8x96xf32> to vector<8x32xf32>
    %279 = arith.addf %277, %278 : vector<8x32xf32>
    %280 = arith.negf %279 : vector<8x32xf32>
    %281 = math.exp %280 : vector<8x32xf32>
    %cst_63 = arith.constant 1.000000e+00 : f32
    %282 = vector.broadcast %cst_63 : f32 to vector<8x32xf32>
    %283 = arith.addf %282, %281 : vector<8x32xf32>
    %284 = arith.divf %282, %283 : vector<8x32xf32>
    %285 = vector.extract_strided_slice %265 {offsets = [0, 64], sizes = [8, 32], strides = [1, 1]} : vector<8x96xf32> to vector<8x32xf32>
    %286 = vector.extract_strided_slice %268 {offsets = [0, 64], sizes = [8, 32], strides = [1, 1]} : vector<8x96xf32> to vector<8x32xf32>
    %287 = arith.mulf %276, %286 : vector<8x32xf32>
    %288 = arith.addf %285, %287 : vector<8x32xf32>
    %289 = math.tanh %288 : vector<8x32xf32>
    %cst_64 = arith.constant 1.000000e+00 : f32
    %290 = vector.broadcast %cst_64 : f32 to vector<8x32xf32>
    %291 = arith.subf %290, %284 : vector<8x32xf32>
    %292 = arith.mulf %291, %289 : vector<8x32xf32>
    %293 = arith.mulf %284, %264 : vector<8x32xf32>
    %294 = arith.addf %292, %293 : vector<8x32xf32>
    %c56_65 = arith.constant 56 : index
    %c32_66 = arith.constant 32 : index
    %295 = vector.load %arg26[%c56_65, %c32_66] : memref<64x64xf32, #tpu.memory_space<vmem>>, vector<8x32xf32>
    tpu.vector_store %arg26[%c56_65, %c32_66], %294 {strides = array<i32>} : memref<64x64xf32, #tpu.memory_space<vmem>>, vector<8x32xf32>,
    %296 = vector.extract_strided_slice %263 {offsets = [48, 0], sizes = [8, 96], strides = [1, 1]} : vector<64x96xf32> to vector<8x96xf32>
    %cst_67 = arith.constant dense<0.000000e+00> : vector<8x96xf32>
    %297 = tpu.matmul %294, %258, %cst_67 {dimension_numbers = #tpu.dot_dimension_numbers<[1], [0], [0], [1], [0, 0, 1, 1], [], []>} : vector<8x32xf32>, vector<32x96xf32>, vector<8x96xf32> -> vector<8x96xf32>
    %298 = vector.broadcast %260 : vector<1x96xf32> to vector<8x96xf32>
    %299 = arith.addf %297, %298 : vector<8x96xf32>
    %300 = vector.extract_strided_slice %296 {offsets = [0, 0], sizes = [8, 32], strides = [1, 1]} : vector<8x96xf32> to vector<8x32xf32>
    %301 = vector.extract_strided_slice %299 {offsets = [0, 0], sizes = [8, 32], strides = [1, 1]} : vector<8x96xf32> to vector<8x32xf32>
    %302 = arith.addf %300, %301 : vector<8x32xf32>
    %303 = arith.negf %302 : vector<8x32xf32>
    %304 = math.exp %303 : vector<8x32xf32>
    %cst_68 = arith.constant 1.000000e+00 : f32
    %305 = vector.broadcast %cst_68 : f32 to vector<8x32xf32>
    %306 = arith.addf %305, %304 : vector<8x32xf32>
    %307 = arith.divf %305, %306 : vector<8x32xf32>
    %308 = vector.extract_strided_slice %296 {offsets = [0, 32], sizes = [8, 32], strides = [1, 1]} : vector<8x96xf32> to vector<8x32xf32>
    %309 = vector.extract_strided_slice %299 {offsets = [0, 32], sizes = [8, 32], strides = [1, 1]} : vector<8x96xf32> to vector<8x32xf32>
    %310 = arith.addf %308, %309 : vector<8x32xf32>
    %311 = arith.negf %310 : vector<8x32xf32>
    %312 = math.exp %311 : vector<8x32xf32>
    %cst_69 = arith.constant 1.000000e+00 : f32
    %313 = vector.broadcast %cst_69 : f32 to vector<8x32xf32>
    %314 = arith.addf %313, %312 : vector<8x32xf32>
    %315 = arith.divf %313, %314 : vector<8x32xf32>
    %316 = vector.extract_strided_slice %296 {offsets = [0, 64], sizes = [8, 32], strides = [1, 1]} : vector<8x96xf32> to vector<8x32xf32>
    %317 = vector.extract_strided_slice %299 {offsets = [0, 64], sizes = [8, 32], strides = [1, 1]} : vector<8x96xf32> to vector<8x32xf32>
    %318 = arith.mulf %307, %317 : vector<8x32xf32>
    %319 = arith.addf %316, %318 : vector<8x32xf32>
    %320 = math.tanh %319 : vector<8x32xf32>
    %cst_70 = arith.constant 1.000000e+00 : f32
    %321 = vector.broadcast %cst_70 : f32 to vector<8x32xf32>
    %322 = arith.subf %321, %315 : vector<8x32xf32>
    %323 = arith.mulf %322, %320 : vector<8x32xf32>
    %324 = arith.mulf %315, %294 : vector<8x32xf32>
    %325 = arith.addf %323, %324 : vector<8x32xf32>
    %c48_71 = arith.constant 48 : index
    %c32_72 = arith.constant 32 : index
    %326 = vector.load %arg26[%c48_71, %c32_72] : memref<64x64xf32, #tpu.memory_space<vmem>>, vector<8x32xf32>
    tpu.vector_store %arg26[%c48_71, %c32_72], %325 {strides = array<i32>} : memref<64x64xf32, #tpu.memory_space<vmem>>, vector<8x32xf32>,
    %327 = vector.extract_strided_slice %263 {offsets = [40, 0], sizes = [8, 96], strides = [1, 1]} : vector<64x96xf32> to vector<8x96xf32>
    %cst_73 = arith.constant dense<0.000000e+00> : vector<8x96xf32>
    %328 = tpu.matmul %325, %258, %cst_73 {dimension_numbers = #tpu.dot_dimension_numbers<[1], [0], [0], [1], [0, 0, 1, 1], [], []>} : vector<8x32xf32>, vector<32x96xf32>, vector<8x96xf32> -> vector<8x96xf32>
    %329 = vector.broadcast %260 : vector<1x96xf32> to vector<8x96xf32>
    %330 = arith.addf %328, %329 : vector<8x96xf32>
    %331 = vector.extract_strided_slice %327 {offsets = [0, 0], sizes = [8, 32], strides = [1, 1]} : vector<8x96xf32> to vector<8x32xf32>
    %332 = vector.extract_strided_slice %330 {offsets = [0, 0], sizes = [8, 32], strides = [1, 1]} : vector<8x96xf32> to vector<8x32xf32>
    %333 = arith.addf %331, %332 : vector<8x32xf32>
    %334 = arith.negf %333 : vector<8x32xf32>
    %335 = math.exp %334 : vector<8x32xf32>
    %cst_74 = arith.constant 1.000000e+00 : f32
    %336 = vector.broadcast %cst_74 : f32 to vector<8x32xf32>
    %337 = arith.addf %336, %335 : vector<8x32xf32>
    %338 = arith.divf %336, %337 : vector<8x32xf32>
    %339 = vector.extract_strided_slice %327 {offsets = [0, 32], sizes = [8, 32], strides = [1, 1]} : vector<8x96xf32> to vector<8x32xf32>
    %340 = vector.extract_strided_slice %330 {offsets = [0, 32], sizes = [8, 32], strides = [1, 1]} : vector<8x96xf32> to vector<8x32xf32>
    %341 = arith.addf %339, %340 : vector<8x32xf32>
    %342 = arith.negf %341 : vector<8x32xf32>
    %343 = math.exp %342 : vector<8x32xf32>
    %cst_75 = arith.constant 1.000000e+00 : f32
    %344 = vector.broadcast %cst_75 : f32 to vector<8x32xf32>
    %345 = arith.addf %344, %343 : vector<8x32xf32>
    %346 = arith.divf %344, %345 : vector<8x32xf32>
    %347 = vector.extract_strided_slice %327 {offsets = [0, 64], sizes = [8, 32], strides = [1, 1]} : vector<8x96xf32> to vector<8x32xf32>
    %348 = vector.extract_strided_slice %330 {offsets = [0, 64], sizes = [8, 32], strides = [1, 1]} : vector<8x96xf32> to vector<8x32xf32>
    %349 = arith.mulf %338, %348 : vector<8x32xf32>
    %350 = arith.addf %347, %349 : vector<8x32xf32>
    %351 = math.tanh %350 : vector<8x32xf32>
    %cst_76 = arith.constant 1.000000e+00 : f32
    %352 = vector.broadcast %cst_76 : f32 to vector<8x32xf32>
    %353 = arith.subf %352, %346 : vector<8x32xf32>
    %354 = arith.mulf %353, %351 : vector<8x32xf32>
    %355 = arith.mulf %346, %325 : vector<8x32xf32>
    %356 = arith.addf %354, %355 : vector<8x32xf32>
    %c40_77 = arith.constant 40 : index
    %c32_78 = arith.constant 32 : index
    %357 = vector.load %arg26[%c40_77, %c32_78] : memref<64x64xf32, #tpu.memory_space<vmem>>, vector<8x32xf32>
    tpu.vector_store %arg26[%c40_77, %c32_78], %356 {strides = array<i32>} : memref<64x64xf32, #tpu.memory_space<vmem>>, vector<8x32xf32>,
    %358 = vector.extract_strided_slice %263 {offsets = [32, 0], sizes = [8, 96], strides = [1, 1]} : vector<64x96xf32> to vector<8x96xf32>
    %cst_79 = arith.constant dense<0.000000e+00> : vector<8x96xf32>
    %359 = tpu.matmul %356, %258, %cst_79 {dimension_numbers = #tpu.dot_dimension_numbers<[1], [0], [0], [1], [0, 0, 1, 1], [], []>} : vector<8x32xf32>, vector<32x96xf32>, vector<8x96xf32> -> vector<8x96xf32>
    %360 = vector.broadcast %260 : vector<1x96xf32> to vector<8x96xf32>
    %361 = arith.addf %359, %360 : vector<8x96xf32>
    %362 = vector.extract_strided_slice %358 {offsets = [0, 0], sizes = [8, 32], strides = [1, 1]} : vector<8x96xf32> to vector<8x32xf32>
    %363 = vector.extract_strided_slice %361 {offsets = [0, 0], sizes = [8, 32], strides = [1, 1]} : vector<8x96xf32> to vector<8x32xf32>
    %364 = arith.addf %362, %363 : vector<8x32xf32>
    %365 = arith.negf %364 : vector<8x32xf32>
    %366 = math.exp %365 : vector<8x32xf32>
    %cst_80 = arith.constant 1.000000e+00 : f32
    %367 = vector.broadcast %cst_80 : f32 to vector<8x32xf32>
    %368 = arith.addf %367, %366 : vector<8x32xf32>
    %369 = arith.divf %367, %368 : vector<8x32xf32>
    %370 = vector.extract_strided_slice %358 {offsets = [0, 32], sizes = [8, 32], strides = [1, 1]} : vector<8x96xf32> to vector<8x32xf32>
    %371 = vector.extract_strided_slice %361 {offsets = [0, 32], sizes = [8, 32], strides = [1, 1]} : vector<8x96xf32> to vector<8x32xf32>
    %372 = arith.addf %370, %371 : vector<8x32xf32>
    %373 = arith.negf %372 : vector<8x32xf32>
    %374 = math.exp %373 : vector<8x32xf32>
    %cst_81 = arith.constant 1.000000e+00 : f32
    %375 = vector.broadcast %cst_81 : f32 to vector<8x32xf32>
    %376 = arith.addf %375, %374 : vector<8x32xf32>
    %377 = arith.divf %375, %376 : vector<8x32xf32>
    %378 = vector.extract_strided_slice %358 {offsets = [0, 64], sizes = [8, 32], strides = [1, 1]} : vector<8x96xf32> to vector<8x32xf32>
    %379 = vector.extract_strided_slice %361 {offsets = [0, 64], sizes = [8, 32], strides = [1, 1]} : vector<8x96xf32> to vector<8x32xf32>
    %380 = arith.mulf %369, %379 : vector<8x32xf32>
    %381 = arith.addf %378, %380 : vector<8x32xf32>
    %382 = math.tanh %381 : vector<8x32xf32>
    %cst_82 = arith.constant 1.000000e+00 : f32
    %383 = vector.broadcast %cst_82 : f32 to vector<8x32xf32>
    %384 = arith.subf %383, %377 : vector<8x32xf32>
    %385 = arith.mulf %384, %382 : vector<8x32xf32>
    %386 = arith.mulf %377, %356 : vector<8x32xf32>
    %387 = arith.addf %385, %386 : vector<8x32xf32>
    %c32_83 = arith.constant 32 : index
    %c32_84 = arith.constant 32 : index
    %388 = vector.load %arg26[%c32_83, %c32_84] : memref<64x64xf32, #tpu.memory_space<vmem>>, vector<8x32xf32>
    tpu.vector_store %arg26[%c32_83, %c32_84], %387 {strides = array<i32>} : memref<64x64xf32, #tpu.memory_space<vmem>>, vector<8x32xf32>,
    %389 = vector.extract_strided_slice %263 {offsets = [24, 0], sizes = [8, 96], strides = [1, 1]} : vector<64x96xf32> to vector<8x96xf32>
    %cst_85 = arith.constant dense<0.000000e+00> : vector<8x96xf32>
    %390 = tpu.matmul %387, %258, %cst_85 {dimension_numbers = #tpu.dot_dimension_numbers<[1], [0], [0], [1], [0, 0, 1, 1], [], []>} : vector<8x32xf32>, vector<32x96xf32>, vector<8x96xf32> -> vector<8x96xf32>
    %391 = vector.broadcast %260 : vector<1x96xf32> to vector<8x96xf32>
    %392 = arith.addf %390, %391 : vector<8x96xf32>
    %393 = vector.extract_strided_slice %389 {offsets = [0, 0], sizes = [8, 32], strides = [1, 1]} : vector<8x96xf32> to vector<8x32xf32>
    %394 = vector.extract_strided_slice %392 {offsets = [0, 0], sizes = [8, 32], strides = [1, 1]} : vector<8x96xf32> to vector<8x32xf32>
    %395 = arith.addf %393, %394 : vector<8x32xf32>
    %396 = arith.negf %395 : vector<8x32xf32>
    %397 = math.exp %396 : vector<8x32xf32>
    %cst_86 = arith.constant 1.000000e+00 : f32
    %398 = vector.broadcast %cst_86 : f32 to vector<8x32xf32>
    %399 = arith.addf %398, %397 : vector<8x32xf32>
    %400 = arith.divf %398, %399 : vector<8x32xf32>
    %401 = vector.extract_strided_slice %389 {offsets = [0, 32], sizes = [8, 32], strides = [1, 1]} : vector<8x96xf32> to vector<8x32xf32>
    %402 = vector.extract_strided_slice %392 {offsets = [0, 32], sizes = [8, 32], strides = [1, 1]} : vector<8x96xf32> to vector<8x32xf32>
    %403 = arith.addf %401, %402 : vector<8x32xf32>
    %404 = arith.negf %403 : vector<8x32xf32>
    %405 = math.exp %404 : vector<8x32xf32>
    %cst_87 = arith.constant 1.000000e+00 : f32
    %406 = vector.broadcast %cst_87 : f32 to vector<8x32xf32>
    %407 = arith.addf %406, %405 : vector<8x32xf32>
    %408 = arith.divf %406, %407 : vector<8x32xf32>
    %409 = vector.extract_strided_slice %389 {offsets = [0, 64], sizes = [8, 32], strides = [1, 1]} : vector<8x96xf32> to vector<8x32xf32>
    %410 = vector.extract_strided_slice %392 {offsets = [0, 64], sizes = [8, 32], strides = [1, 1]} : vector<8x96xf32> to vector<8x32xf32>
    %411 = arith.mulf %400, %410 : vector<8x32xf32>
    %412 = arith.addf %409, %411 : vector<8x32xf32>
    %413 = math.tanh %412 : vector<8x32xf32>
    %cst_88 = arith.constant 1.000000e+00 : f32
    %414 = vector.broadcast %cst_88 : f32 to vector<8x32xf32>
    %415 = arith.subf %414, %408 : vector<8x32xf32>
    %416 = arith.mulf %415, %413 : vector<8x32xf32>
    %417 = arith.mulf %408, %387 : vector<8x32xf32>
    %418 = arith.addf %416, %417 : vector<8x32xf32>
    %c24_89 = arith.constant 24 : index
    %c32_90 = arith.constant 32 : index
    %419 = vector.load %arg26[%c24_89, %c32_90] : memref<64x64xf32, #tpu.memory_space<vmem>>, vector<8x32xf32>
    tpu.vector_store %arg26[%c24_89, %c32_90], %418 {strides = array<i32>} : memref<64x64xf32, #tpu.memory_space<vmem>>, vector<8x32xf32>,
    %420 = vector.extract_strided_slice %263 {offsets = [16, 0], sizes = [8, 96], strides = [1, 1]} : vector<64x96xf32> to vector<8x96xf32>
    %cst_91 = arith.constant dense<0.000000e+00> : vector<8x96xf32>
    %421 = tpu.matmul %418, %258, %cst_91 {dimension_numbers = #tpu.dot_dimension_numbers<[1], [0], [0], [1], [0, 0, 1, 1], [], []>} : vector<8x32xf32>, vector<32x96xf32>, vector<8x96xf32> -> vector<8x96xf32>
    %422 = vector.broadcast %260 : vector<1x96xf32> to vector<8x96xf32>
    %423 = arith.addf %421, %422 : vector<8x96xf32>
    %424 = vector.extract_strided_slice %420 {offsets = [0, 0], sizes = [8, 32], strides = [1, 1]} : vector<8x96xf32> to vector<8x32xf32>
    %425 = vector.extract_strided_slice %423 {offsets = [0, 0], sizes = [8, 32], strides = [1, 1]} : vector<8x96xf32> to vector<8x32xf32>
    %426 = arith.addf %424, %425 : vector<8x32xf32>
    %427 = arith.negf %426 : vector<8x32xf32>
    %428 = math.exp %427 : vector<8x32xf32>
    %cst_92 = arith.constant 1.000000e+00 : f32
    %429 = vector.broadcast %cst_92 : f32 to vector<8x32xf32>
    %430 = arith.addf %429, %428 : vector<8x32xf32>
    %431 = arith.divf %429, %430 : vector<8x32xf32>
    %432 = vector.extract_strided_slice %420 {offsets = [0, 32], sizes = [8, 32], strides = [1, 1]} : vector<8x96xf32> to vector<8x32xf32>
    %433 = vector.extract_strided_slice %423 {offsets = [0, 32], sizes = [8, 32], strides = [1, 1]} : vector<8x96xf32> to vector<8x32xf32>
    %434 = arith.addf %432, %433 : vector<8x32xf32>
    %435 = arith.negf %434 : vector<8x32xf32>
    %436 = math.exp %435 : vector<8x32xf32>
    %cst_93 = arith.constant 1.000000e+00 : f32
    %437 = vector.broadcast %cst_93 : f32 to vector<8x32xf32>
    %438 = arith.addf %437, %436 : vector<8x32xf32>
    %439 = arith.divf %437, %438 : vector<8x32xf32>
    %440 = vector.extract_strided_slice %420 {offsets = [0, 64], sizes = [8, 32], strides = [1, 1]} : vector<8x96xf32> to vector<8x32xf32>
    %441 = vector.extract_strided_slice %423 {offsets = [0, 64], sizes = [8, 32], strides = [1, 1]} : vector<8x96xf32> to vector<8x32xf32>
    %442 = arith.mulf %431, %441 : vector<8x32xf32>
    %443 = arith.addf %440, %442 : vector<8x32xf32>
    %444 = math.tanh %443 : vector<8x32xf32>
    %cst_94 = arith.constant 1.000000e+00 : f32
    %445 = vector.broadcast %cst_94 : f32 to vector<8x32xf32>
    %446 = arith.subf %445, %439 : vector<8x32xf32>
    %447 = arith.mulf %446, %444 : vector<8x32xf32>
    %448 = arith.mulf %439, %418 : vector<8x32xf32>
    %449 = arith.addf %447, %448 : vector<8x32xf32>
    %c16_95 = arith.constant 16 : index
    %c32_96 = arith.constant 32 : index
    %450 = vector.load %arg26[%c16_95, %c32_96] : memref<64x64xf32, #tpu.memory_space<vmem>>, vector<8x32xf32>
    tpu.vector_store %arg26[%c16_95, %c32_96], %449 {strides = array<i32>} : memref<64x64xf32, #tpu.memory_space<vmem>>, vector<8x32xf32>,
    %451 = vector.extract_strided_slice %263 {offsets = [8, 0], sizes = [8, 96], strides = [1, 1]} : vector<64x96xf32> to vector<8x96xf32>
    %cst_97 = arith.constant dense<0.000000e+00> : vector<8x96xf32>
    %452 = tpu.matmul %449, %258, %cst_97 {dimension_numbers = #tpu.dot_dimension_numbers<[1], [0], [0], [1], [0, 0, 1, 1], [], []>} : vector<8x32xf32>, vector<32x96xf32>, vector<8x96xf32> -> vector<8x96xf32>
    %453 = vector.broadcast %260 : vector<1x96xf32> to vector<8x96xf32>
    %454 = arith.addf %452, %453 : vector<8x96xf32>
    %455 = vector.extract_strided_slice %451 {offsets = [0, 0], sizes = [8, 32], strides = [1, 1]} : vector<8x96xf32> to vector<8x32xf32>
    %456 = vector.extract_strided_slice %454 {offsets = [0, 0], sizes = [8, 32], strides = [1, 1]} : vector<8x96xf32> to vector<8x32xf32>
    %457 = arith.addf %455, %456 : vector<8x32xf32>
    %458 = arith.negf %457 : vector<8x32xf32>
    %459 = math.exp %458 : vector<8x32xf32>
    %cst_98 = arith.constant 1.000000e+00 : f32
    %460 = vector.broadcast %cst_98 : f32 to vector<8x32xf32>
    %461 = arith.addf %460, %459 : vector<8x32xf32>
    %462 = arith.divf %460, %461 : vector<8x32xf32>
    %463 = vector.extract_strided_slice %451 {offsets = [0, 32], sizes = [8, 32], strides = [1, 1]} : vector<8x96xf32> to vector<8x32xf32>
    %464 = vector.extract_strided_slice %454 {offsets = [0, 32], sizes = [8, 32], strides = [1, 1]} : vector<8x96xf32> to vector<8x32xf32>
    %465 = arith.addf %463, %464 : vector<8x32xf32>
    %466 = arith.negf %465 : vector<8x32xf32>
    %467 = math.exp %466 : vector<8x32xf32>
    %cst_99 = arith.constant 1.000000e+00 : f32
    %468 = vector.broadcast %cst_99 : f32 to vector<8x32xf32>
    %469 = arith.addf %468, %467 : vector<8x32xf32>
    %470 = arith.divf %468, %469 : vector<8x32xf32>
    %471 = vector.extract_strided_slice %451 {offsets = [0, 64], sizes = [8, 32], strides = [1, 1]} : vector<8x96xf32> to vector<8x32xf32>
    %472 = vector.extract_strided_slice %454 {offsets = [0, 64], sizes = [8, 32], strides = [1, 1]} : vector<8x96xf32> to vector<8x32xf32>
    %473 = arith.mulf %462, %472 : vector<8x32xf32>
    %474 = arith.addf %471, %473 : vector<8x32xf32>
    %475 = math.tanh %474 : vector<8x32xf32>
    %cst_100 = arith.constant 1.000000e+00 : f32
    %476 = vector.broadcast %cst_100 : f32 to vector<8x32xf32>
    %477 = arith.subf %476, %470 : vector<8x32xf32>
    %478 = arith.mulf %477, %475 : vector<8x32xf32>
    %479 = arith.mulf %470, %449 : vector<8x32xf32>
    %480 = arith.addf %478, %479 : vector<8x32xf32>
    %c8_101 = arith.constant 8 : index
    %c32_102 = arith.constant 32 : index
    %481 = vector.load %arg26[%c8_101, %c32_102] : memref<64x64xf32, #tpu.memory_space<vmem>>, vector<8x32xf32>
    tpu.vector_store %arg26[%c8_101, %c32_102], %480 {strides = array<i32>} : memref<64x64xf32, #tpu.memory_space<vmem>>, vector<8x32xf32>,
    %482 = vector.extract_strided_slice %263 {offsets = [0, 0], sizes = [8, 96], strides = [1, 1]} : vector<64x96xf32> to vector<8x96xf32>
    %cst_103 = arith.constant dense<0.000000e+00> : vector<8x96xf32>
    %483 = tpu.matmul %480, %258, %cst_103 {dimension_numbers = #tpu.dot_dimension_numbers<[1], [0], [0], [1], [0, 0, 1, 1], [], []>} : vector<8x32xf32>, vector<32x96xf32>, vector<8x96xf32> -> vector<8x96xf32>
    %484 = vector.broadcast %260 : vector<1x96xf32> to vector<8x96xf32>
    %485 = arith.addf %483, %484 : vector<8x96xf32>
    %486 = vector.extract_strided_slice %482 {offsets = [0, 0], sizes = [8, 32], strides = [1, 1]} : vector<8x96xf32> to vector<8x32xf32>
    %487 = vector.extract_strided_slice %485 {offsets = [0, 0], sizes = [8, 32], strides = [1, 1]} : vector<8x96xf32> to vector<8x32xf32>
    %488 = arith.addf %486, %487 : vector<8x32xf32>
    %489 = arith.negf %488 : vector<8x32xf32>
    %490 = math.exp %489 : vector<8x32xf32>
    %cst_104 = arith.constant 1.000000e+00 : f32
    %491 = vector.broadcast %cst_104 : f32 to vector<8x32xf32>
    %492 = arith.addf %491, %490 : vector<8x32xf32>
    %493 = arith.divf %491, %492 : vector<8x32xf32>
    %494 = vector.extract_strided_slice %482 {offsets = [0, 32], sizes = [8, 32], strides = [1, 1]} : vector<8x96xf32> to vector<8x32xf32>
    %495 = vector.extract_strided_slice %485 {offsets = [0, 32], sizes = [8, 32], strides = [1, 1]} : vector<8x96xf32> to vector<8x32xf32>
    %496 = arith.addf %494, %495 : vector<8x32xf32>
    %497 = arith.negf %496 : vector<8x32xf32>
    %498 = math.exp %497 : vector<8x32xf32>
    %cst_105 = arith.constant 1.000000e+00 : f32
    %499 = vector.broadcast %cst_105 : f32 to vector<8x32xf32>
    %500 = arith.addf %499, %498 : vector<8x32xf32>
    %501 = arith.divf %499, %500 : vector<8x32xf32>
    %502 = vector.extract_strided_slice %482 {offsets = [0, 64], sizes = [8, 32], strides = [1, 1]} : vector<8x96xf32> to vector<8x32xf32>
    %503 = vector.extract_strided_slice %485 {offsets = [0, 64], sizes = [8, 32], strides = [1, 1]} : vector<8x96xf32> to vector<8x32xf32>
    %504 = arith.mulf %493, %503 : vector<8x32xf32>
    %505 = arith.addf %502, %504 : vector<8x32xf32>
    %506 = math.tanh %505 : vector<8x32xf32>
    %cst_106 = arith.constant 1.000000e+00 : f32
    %507 = vector.broadcast %cst_106 : f32 to vector<8x32xf32>
    %508 = arith.subf %507, %501 : vector<8x32xf32>
    %509 = arith.mulf %508, %506 : vector<8x32xf32>
    %510 = arith.mulf %501, %480 : vector<8x32xf32>
    %511 = arith.addf %509, %510 : vector<8x32xf32>
    %c0_107 = arith.constant 0 : index
    %c32_108 = arith.constant 32 : index
    %512 = vector.load %arg26[%c0_107, %c32_108] : memref<64x64xf32, #tpu.memory_space<vmem>>, vector<8x32xf32>
    tpu.vector_store %arg26[%c0_107, %c32_108], %511 {strides = array<i32>} : memref<64x64xf32, #tpu.memory_space<vmem>>, vector<8x32xf32>,
    %c0_109 = arith.constant 0 : index
    %c0_110 = arith.constant 0 : index
    %513 = vector.load %arg26[%c0_109, %c0_110] : memref<64x64xf32, #tpu.memory_space<vmem>>, vector<64x64xf32>
    %c0_111 = arith.constant 0 : index
    %c0_112 = arith.constant 0 : index
    %514 = vector.load %arg9[%c0_111, %c0_112] : memref<64x96xf32, #tpu.memory_space<vmem>>, vector<64x96xf32>
    %c0_113 = arith.constant 0 : index
    %c0_114 = arith.constant 0 : index
    %515 = vector.load %arg10[%c0_113, %c0_114] : memref<32x96xf32, #tpu.memory_space<vmem>>, vector<32x96xf32>
    %c0_115 = arith.constant 0 : index
    %c0_116 = arith.constant 0 : index
    %516 = vector.load %arg11[%c0_115, %c0_116] : memref<1x96xf32, #tpu.memory_space<vmem>>, vector<1x96xf32>
    %c0_117 = arith.constant 0 : index
    %c0_118 = arith.constant 0 : index
    %517 = vector.load %arg12[%c0_117, %c0_118] : memref<1x96xf32, #tpu.memory_space<vmem>>, vector<1x96xf32>
    %cst_119 = arith.constant dense<0.000000e+00> : vector<64x96xf32>
    %518 = tpu.matmul %513, %514, %cst_119 {dimension_numbers = #tpu.dot_dimension_numbers<[1], [0], [0], [1], [0, 0, 1, 1], [], []>} : vector<64x64xf32>, vector<64x96xf32>, vector<64x96xf32> -> vector<64x96xf32>
    %519 = vector.broadcast %516 : vector<1x96xf32> to vector<64x96xf32>
    %520 = arith.addf %518, %519 : vector<64x96xf32>
    %cst_120 = arith.constant 0.000000e+00 : f32
    %521 = vector.broadcast %cst_120 : f32 to vector<8x32xf32>
    %522 = vector.extract_strided_slice %520 {offsets = [0, 0], sizes = [8, 96], strides = [1, 1]} : vector<64x96xf32> to vector<8x96xf32>
    %cst_121 = arith.constant dense<0.000000e+00> : vector<8x96xf32>
    %523 = tpu.matmul %521, %515, %cst_121 {dimension_numbers = #tpu.dot_dimension_numbers<[1], [0], [0], [1], [0, 0, 1, 1], [], []>} : vector<8x32xf32>, vector<32x96xf32>, vector<8x96xf32> -> vector<8x96xf32>
    %524 = vector.broadcast %517 : vector<1x96xf32> to vector<8x96xf32>
    %525 = arith.addf %523, %524 : vector<8x96xf32>
    %526 = vector.extract_strided_slice %522 {offsets = [0, 0], sizes = [8, 32], strides = [1, 1]} : vector<8x96xf32> to vector<8x32xf32>
    %527 = vector.extract_strided_slice %525 {offsets = [0, 0], sizes = [8, 32], strides = [1, 1]} : vector<8x96xf32> to vector<8x32xf32>
    %528 = arith.addf %526, %527 : vector<8x32xf32>
    %529 = arith.negf %528 : vector<8x32xf32>
    %530 = math.exp %529 : vector<8x32xf32>
    %cst_122 = arith.constant 1.000000e+00 : f32
    %531 = vector.broadcast %cst_122 : f32 to vector<8x32xf32>
    %532 = arith.addf %531, %530 : vector<8x32xf32>
    %533 = arith.divf %531, %532 : vector<8x32xf32>
    %534 = vector.extract_strided_slice %522 {offsets = [0, 32], sizes = [8, 32], strides = [1, 1]} : vector<8x96xf32> to vector<8x32xf32>
    %535 = vector.extract_strided_slice %525 {offsets = [0, 32], sizes = [8, 32], strides = [1, 1]} : vector<8x96xf32> to vector<8x32xf32>
    %536 = arith.addf %534, %535 : vector<8x32xf32>
    %537 = arith.negf %536 : vector<8x32xf32>
    %538 = math.exp %537 : vector<8x32xf32>
    %cst_123 = arith.constant 1.000000e+00 : f32
    %539 = vector.broadcast %cst_123 : f32 to vector<8x32xf32>
    %540 = arith.addf %539, %538 : vector<8x32xf32>
    %541 = arith.divf %539, %540 : vector<8x32xf32>
    %542 = vector.extract_strided_slice %522 {offsets = [0, 64], sizes = [8, 32], strides = [1, 1]} : vector<8x96xf32> to vector<8x32xf32>
    %543 = vector.extract_strided_slice %525 {offsets = [0, 64], sizes = [8, 32], strides = [1, 1]} : vector<8x96xf32> to vector<8x32xf32>
    %544 = arith.mulf %533, %543 : vector<8x32xf32>
    %545 = arith.addf %542, %544 : vector<8x32xf32>
    %546 = math.tanh %545 : vector<8x32xf32>
    %cst_124 = arith.constant 1.000000e+00 : f32
    %547 = vector.broadcast %cst_124 : f32 to vector<8x32xf32>
    %548 = arith.subf %547, %541 : vector<8x32xf32>
    %549 = arith.mulf %548, %546 : vector<8x32xf32>
    %550 = arith.mulf %541, %521 : vector<8x32xf32>
    %551 = arith.addf %549, %550 : vector<8x32xf32>
    %c0_125 = arith.constant 0 : index
    %c0_126 = arith.constant 0 : index
    %552 = vector.load %arg27[%c0_125, %c0_126] : memref<64x64xf32, #tpu.memory_space<vmem>>, vector<8x32xf32>
    tpu.vector_store %arg27[%c0_125, %c0_126], %551 {strides = array<i32>} : memref<64x64xf32, #tpu.memory_space<vmem>>, vector<8x32xf32>,
    %553 = vector.extract_strided_slice %520 {offsets = [8, 0], sizes = [8, 96], strides = [1, 1]} : vector<64x96xf32> to vector<8x96xf32>
    %cst_127 = arith.constant dense<0.000000e+00> : vector<8x96xf32>
    %554 = tpu.matmul %551, %515, %cst_127 {dimension_numbers = #tpu.dot_dimension_numbers<[1], [0], [0], [1], [0, 0, 1, 1], [], []>} : vector<8x32xf32>, vector<32x96xf32>, vector<8x96xf32> -> vector<8x96xf32>
    %555 = vector.broadcast %517 : vector<1x96xf32> to vector<8x96xf32>
    %556 = arith.addf %554, %555 : vector<8x96xf32>
    %557 = vector.extract_strided_slice %553 {offsets = [0, 0], sizes = [8, 32], strides = [1, 1]} : vector<8x96xf32> to vector<8x32xf32>
    %558 = vector.extract_strided_slice %556 {offsets = [0, 0], sizes = [8, 32], strides = [1, 1]} : vector<8x96xf32> to vector<8x32xf32>
    %559 = arith.addf %557, %558 : vector<8x32xf32>
    %560 = arith.negf %559 : vector<8x32xf32>
    %561 = math.exp %560 : vector<8x32xf32>
    %cst_128 = arith.constant 1.000000e+00 : f32
    %562 = vector.broadcast %cst_128 : f32 to vector<8x32xf32>
    %563 = arith.addf %562, %561 : vector<8x32xf32>
    %564 = arith.divf %562, %563 : vector<8x32xf32>
    %565 = vector.extract_strided_slice %553 {offsets = [0, 32], sizes = [8, 32], strides = [1, 1]} : vector<8x96xf32> to vector<8x32xf32>
    %566 = vector.extract_strided_slice %556 {offsets = [0, 32], sizes = [8, 32], strides = [1, 1]} : vector<8x96xf32> to vector<8x32xf32>
    %567 = arith.addf %565, %566 : vector<8x32xf32>
    %568 = arith.negf %567 : vector<8x32xf32>
    %569 = math.exp %568 : vector<8x32xf32>
    %cst_129 = arith.constant 1.000000e+00 : f32
    %570 = vector.broadcast %cst_129 : f32 to vector<8x32xf32>
    %571 = arith.addf %570, %569 : vector<8x32xf32>
    %572 = arith.divf %570, %571 : vector<8x32xf32>
    %573 = vector.extract_strided_slice %553 {offsets = [0, 64], sizes = [8, 32], strides = [1, 1]} : vector<8x96xf32> to vector<8x32xf32>
    %574 = vector.extract_strided_slice %556 {offsets = [0, 64], sizes = [8, 32], strides = [1, 1]} : vector<8x96xf32> to vector<8x32xf32>
    %575 = arith.mulf %564, %574 : vector<8x32xf32>
    %576 = arith.addf %573, %575 : vector<8x32xf32>
    %577 = math.tanh %576 : vector<8x32xf32>
    %cst_130 = arith.constant 1.000000e+00 : f32
    %578 = vector.broadcast %cst_130 : f32 to vector<8x32xf32>
    %579 = arith.subf %578, %572 : vector<8x32xf32>
    %580 = arith.mulf %579, %577 : vector<8x32xf32>
    %581 = arith.mulf %572, %551 : vector<8x32xf32>
    %582 = arith.addf %580, %581 : vector<8x32xf32>
    %c8_131 = arith.constant 8 : index
    %c0_132 = arith.constant 0 : index
    %583 = vector.load %arg27[%c8_131, %c0_132] : memref<64x64xf32, #tpu.memory_space<vmem>>, vector<8x32xf32>
    tpu.vector_store %arg27[%c8_131, %c0_132], %582 {strides = array<i32>} : memref<64x64xf32, #tpu.memory_space<vmem>>, vector<8x32xf32>,
    %584 = vector.extract_strided_slice %520 {offsets = [16, 0], sizes = [8, 96], strides = [1, 1]} : vector<64x96xf32> to vector<8x96xf32>
    %cst_133 = arith.constant dense<0.000000e+00> : vector<8x96xf32>
    %585 = tpu.matmul %582, %515, %cst_133 {dimension_numbers = #tpu.dot_dimension_numbers<[1], [0], [0], [1], [0, 0, 1, 1], [], []>} : vector<8x32xf32>, vector<32x96xf32>, vector<8x96xf32> -> vector<8x96xf32>
    %586 = vector.broadcast %517 : vector<1x96xf32> to vector<8x96xf32>
    %587 = arith.addf %585, %586 : vector<8x96xf32>
    %588 = vector.extract_strided_slice %584 {offsets = [0, 0], sizes = [8, 32], strides = [1, 1]} : vector<8x96xf32> to vector<8x32xf32>
    %589 = vector.extract_strided_slice %587 {offsets = [0, 0], sizes = [8, 32], strides = [1, 1]} : vector<8x96xf32> to vector<8x32xf32>
    %590 = arith.addf %588, %589 : vector<8x32xf32>
    %591 = arith.negf %590 : vector<8x32xf32>
    %592 = math.exp %591 : vector<8x32xf32>
    %cst_134 = arith.constant 1.000000e+00 : f32
    %593 = vector.broadcast %cst_134 : f32 to vector<8x32xf32>
    %594 = arith.addf %593, %592 : vector<8x32xf32>
    %595 = arith.divf %593, %594 : vector<8x32xf32>
    %596 = vector.extract_strided_slice %584 {offsets = [0, 32], sizes = [8, 32], strides = [1, 1]} : vector<8x96xf32> to vector<8x32xf32>
    %597 = vector.extract_strided_slice %587 {offsets = [0, 32], sizes = [8, 32], strides = [1, 1]} : vector<8x96xf32> to vector<8x32xf32>
    %598 = arith.addf %596, %597 : vector<8x32xf32>
    %599 = arith.negf %598 : vector<8x32xf32>
    %600 = math.exp %599 : vector<8x32xf32>
    %cst_135 = arith.constant 1.000000e+00 : f32
    %601 = vector.broadcast %cst_135 : f32 to vector<8x32xf32>
    %602 = arith.addf %601, %600 : vector<8x32xf32>
    %603 = arith.divf %601, %602 : vector<8x32xf32>
    %604 = vector.extract_strided_slice %584 {offsets = [0, 64], sizes = [8, 32], strides = [1, 1]} : vector<8x96xf32> to vector<8x32xf32>
    %605 = vector.extract_strided_slice %587 {offsets = [0, 64], sizes = [8, 32], strides = [1, 1]} : vector<8x96xf32> to vector<8x32xf32>
    %606 = arith.mulf %595, %605 : vector<8x32xf32>
    %607 = arith.addf %604, %606 : vector<8x32xf32>
    %608 = math.tanh %607 : vector<8x32xf32>
    %cst_136 = arith.constant 1.000000e+00 : f32
    %609 = vector.broadcast %cst_136 : f32 to vector<8x32xf32>
    %610 = arith.subf %609, %603 : vector<8x32xf32>
    %611 = arith.mulf %610, %608 : vector<8x32xf32>
    %612 = arith.mulf %603, %582 : vector<8x32xf32>
    %613 = arith.addf %611, %612 : vector<8x32xf32>
    %c16_137 = arith.constant 16 : index
    %c0_138 = arith.constant 0 : index
    %614 = vector.load %arg27[%c16_137, %c0_138] : memref<64x64xf32, #tpu.memory_space<vmem>>, vector<8x32xf32>
    tpu.vector_store %arg27[%c16_137, %c0_138], %613 {strides = array<i32>} : memref<64x64xf32, #tpu.memory_space<vmem>>, vector<8x32xf32>,
    %615 = vector.extract_strided_slice %520 {offsets = [24, 0], sizes = [8, 96], strides = [1, 1]} : vector<64x96xf32> to vector<8x96xf32>
    %cst_139 = arith.constant dense<0.000000e+00> : vector<8x96xf32>
    %616 = tpu.matmul %613, %515, %cst_139 {dimension_numbers = #tpu.dot_dimension_numbers<[1], [0], [0], [1], [0, 0, 1, 1], [], []>} : vector<8x32xf32>, vector<32x96xf32>, vector<8x96xf32> -> vector<8x96xf32>
    %617 = vector.broadcast %517 : vector<1x96xf32> to vector<8x96xf32>
    %618 = arith.addf %616, %617 : vector<8x96xf32>
    %619 = vector.extract_strided_slice %615 {offsets = [0, 0], sizes = [8, 32], strides = [1, 1]} : vector<8x96xf32> to vector<8x32xf32>
    %620 = vector.extract_strided_slice %618 {offsets = [0, 0], sizes = [8, 32], strides = [1, 1]} : vector<8x96xf32> to vector<8x32xf32>
    %621 = arith.addf %619, %620 : vector<8x32xf32>
    %622 = arith.negf %621 : vector<8x32xf32>
    %623 = math.exp %622 : vector<8x32xf32>
    %cst_140 = arith.constant 1.000000e+00 : f32
    %624 = vector.broadcast %cst_140 : f32 to vector<8x32xf32>
    %625 = arith.addf %624, %623 : vector<8x32xf32>
    %626 = arith.divf %624, %625 : vector<8x32xf32>
    %627 = vector.extract_strided_slice %615 {offsets = [0, 32], sizes = [8, 32], strides = [1, 1]} : vector<8x96xf32> to vector<8x32xf32>
    %628 = vector.extract_strided_slice %618 {offsets = [0, 32], sizes = [8, 32], strides = [1, 1]} : vector<8x96xf32> to vector<8x32xf32>
    %629 = arith.addf %627, %628 : vector<8x32xf32>
    %630 = arith.negf %629 : vector<8x32xf32>
    %631 = math.exp %630 : vector<8x32xf32>
    %cst_141 = arith.constant 1.000000e+00 : f32
    %632 = vector.broadcast %cst_141 : f32 to vector<8x32xf32>
    %633 = arith.addf %632, %631 : vector<8x32xf32>
    %634 = arith.divf %632, %633 : vector<8x32xf32>
    %635 = vector.extract_strided_slice %615 {offsets = [0, 64], sizes = [8, 32], strides = [1, 1]} : vector<8x96xf32> to vector<8x32xf32>
    %636 = vector.extract_strided_slice %618 {offsets = [0, 64], sizes = [8, 32], strides = [1, 1]} : vector<8x96xf32> to vector<8x32xf32>
    %637 = arith.mulf %626, %636 : vector<8x32xf32>
    %638 = arith.addf %635, %637 : vector<8x32xf32>
    %639 = math.tanh %638 : vector<8x32xf32>
    %cst_142 = arith.constant 1.000000e+00 : f32
    %640 = vector.broadcast %cst_142 : f32 to vector<8x32xf32>
    %641 = arith.subf %640, %634 : vector<8x32xf32>
    %642 = arith.mulf %641, %639 : vector<8x32xf32>
    %643 = arith.mulf %634, %613 : vector<8x32xf32>
    %644 = arith.addf %642, %643 : vector<8x32xf32>
    %c24_143 = arith.constant 24 : index
    %c0_144 = arith.constant 0 : index
    %645 = vector.load %arg27[%c24_143, %c0_144] : memref<64x64xf32, #tpu.memory_space<vmem>>, vector<8x32xf32>
    tpu.vector_store %arg27[%c24_143, %c0_144], %644 {strides = array<i32>} : memref<64x64xf32, #tpu.memory_space<vmem>>, vector<8x32xf32>,
    %646 = vector.extract_strided_slice %520 {offsets = [32, 0], sizes = [8, 96], strides = [1, 1]} : vector<64x96xf32> to vector<8x96xf32>
    %cst_145 = arith.constant dense<0.000000e+00> : vector<8x96xf32>
    %647 = tpu.matmul %644, %515, %cst_145 {dimension_numbers = #tpu.dot_dimension_numbers<[1], [0], [0], [1], [0, 0, 1, 1], [], []>} : vector<8x32xf32>, vector<32x96xf32>, vector<8x96xf32> -> vector<8x96xf32>
    %648 = vector.broadcast %517 : vector<1x96xf32> to vector<8x96xf32>
    %649 = arith.addf %647, %648 : vector<8x96xf32>
    %650 = vector.extract_strided_slice %646 {offsets = [0, 0], sizes = [8, 32], strides = [1, 1]} : vector<8x96xf32> to vector<8x32xf32>
    %651 = vector.extract_strided_slice %649 {offsets = [0, 0], sizes = [8, 32], strides = [1, 1]} : vector<8x96xf32> to vector<8x32xf32>
    %652 = arith.addf %650, %651 : vector<8x32xf32>
    %653 = arith.negf %652 : vector<8x32xf32>
    %654 = math.exp %653 : vector<8x32xf32>
    %cst_146 = arith.constant 1.000000e+00 : f32
    %655 = vector.broadcast %cst_146 : f32 to vector<8x32xf32>
    %656 = arith.addf %655, %654 : vector<8x32xf32>
    %657 = arith.divf %655, %656 : vector<8x32xf32>
    %658 = vector.extract_strided_slice %646 {offsets = [0, 32], sizes = [8, 32], strides = [1, 1]} : vector<8x96xf32> to vector<8x32xf32>
    %659 = vector.extract_strided_slice %649 {offsets = [0, 32], sizes = [8, 32], strides = [1, 1]} : vector<8x96xf32> to vector<8x32xf32>
    %660 = arith.addf %658, %659 : vector<8x32xf32>
    %661 = arith.negf %660 : vector<8x32xf32>
    %662 = math.exp %661 : vector<8x32xf32>
    %cst_147 = arith.constant 1.000000e+00 : f32
    %663 = vector.broadcast %cst_147 : f32 to vector<8x32xf32>
    %664 = arith.addf %663, %662 : vector<8x32xf32>
    %665 = arith.divf %663, %664 : vector<8x32xf32>
    %666 = vector.extract_strided_slice %646 {offsets = [0, 64], sizes = [8, 32], strides = [1, 1]} : vector<8x96xf32> to vector<8x32xf32>
    %667 = vector.extract_strided_slice %649 {offsets = [0, 64], sizes = [8, 32], strides = [1, 1]} : vector<8x96xf32> to vector<8x32xf32>
    %668 = arith.mulf %657, %667 : vector<8x32xf32>
    %669 = arith.addf %666, %668 : vector<8x32xf32>
    %670 = math.tanh %669 : vector<8x32xf32>
    %cst_148 = arith.constant 1.000000e+00 : f32
    %671 = vector.broadcast %cst_148 : f32 to vector<8x32xf32>
    %672 = arith.subf %671, %665 : vector<8x32xf32>
    %673 = arith.mulf %672, %670 : vector<8x32xf32>
    %674 = arith.mulf %665, %644 : vector<8x32xf32>
    %675 = arith.addf %673, %674 : vector<8x32xf32>
    %c32_149 = arith.constant 32 : index
    %c0_150 = arith.constant 0 : index
    %676 = vector.load %arg27[%c32_149, %c0_150] : memref<64x64xf32, #tpu.memory_space<vmem>>, vector<8x32xf32>
    tpu.vector_store %arg27[%c32_149, %c0_150], %675 {strides = array<i32>} : memref<64x64xf32, #tpu.memory_space<vmem>>, vector<8x32xf32>,
    %677 = vector.extract_strided_slice %520 {offsets = [40, 0], sizes = [8, 96], strides = [1, 1]} : vector<64x96xf32> to vector<8x96xf32>
    %cst_151 = arith.constant dense<0.000000e+00> : vector<8x96xf32>
    %678 = tpu.matmul %675, %515, %cst_151 {dimension_numbers = #tpu.dot_dimension_numbers<[1], [0], [0], [1], [0, 0, 1, 1], [], []>} : vector<8x32xf32>, vector<32x96xf32>, vector<8x96xf32> -> vector<8x96xf32>
    %679 = vector.broadcast %517 : vector<1x96xf32> to vector<8x96xf32>
    %680 = arith.addf %678, %679 : vector<8x96xf32>
    %681 = vector.extract_strided_slice %677 {offsets = [0, 0], sizes = [8, 32], strides = [1, 1]} : vector<8x96xf32> to vector<8x32xf32>
    %682 = vector.extract_strided_slice %680 {offsets = [0, 0], sizes = [8, 32], strides = [1, 1]} : vector<8x96xf32> to vector<8x32xf32>
    %683 = arith.addf %681, %682 : vector<8x32xf32>
    %684 = arith.negf %683 : vector<8x32xf32>
    %685 = math.exp %684 : vector<8x32xf32>
    %cst_152 = arith.constant 1.000000e+00 : f32
    %686 = vector.broadcast %cst_152 : f32 to vector<8x32xf32>
    %687 = arith.addf %686, %685 : vector<8x32xf32>
    %688 = arith.divf %686, %687 : vector<8x32xf32>
    %689 = vector.extract_strided_slice %677 {offsets = [0, 32], sizes = [8, 32], strides = [1, 1]} : vector<8x96xf32> to vector<8x32xf32>
    %690 = vector.extract_strided_slice %680 {offsets = [0, 32], sizes = [8, 32], strides = [1, 1]} : vector<8x96xf32> to vector<8x32xf32>
    %691 = arith.addf %689, %690 : vector<8x32xf32>
    %692 = arith.negf %691 : vector<8x32xf32>
    %693 = math.exp %692 : vector<8x32xf32>
    %cst_153 = arith.constant 1.000000e+00 : f32
    %694 = vector.broadcast %cst_153 : f32 to vector<8x32xf32>
    %695 = arith.addf %694, %693 : vector<8x32xf32>
    %696 = arith.divf %694, %695 : vector<8x32xf32>
    %697 = vector.extract_strided_slice %677 {offsets = [0, 64], sizes = [8, 32], strides = [1, 1]} : vector<8x96xf32> to vector<8x32xf32>
    %698 = vector.extract_strided_slice %680 {offsets = [0, 64], sizes = [8, 32], strides = [1, 1]} : vector<8x96xf32> to vector<8x32xf32>
    %699 = arith.mulf %688, %698 : vector<8x32xf32>
    %700 = arith.addf %697, %699 : vector<8x32xf32>
    %701 = math.tanh %700 : vector<8x32xf32>
    %cst_154 = arith.constant 1.000000e+00 : f32
    %702 = vector.broadcast %cst_154 : f32 to vector<8x32xf32>
    %703 = arith.subf %702, %696 : vector<8x32xf32>
    %704 = arith.mulf %703, %701 : vector<8x32xf32>
    %705 = arith.mulf %696, %675 : vector<8x32xf32>
    %706 = arith.addf %704, %705 : vector<8x32xf32>
    %c40_155 = arith.constant 40 : index
    %c0_156 = arith.constant 0 : index
    %707 = vector.load %arg27[%c40_155, %c0_156] : memref<64x64xf32, #tpu.memory_space<vmem>>, vector<8x32xf32>
    tpu.vector_store %arg27[%c40_155, %c0_156], %706 {strides = array<i32>} : memref<64x64xf32, #tpu.memory_space<vmem>>, vector<8x32xf32>,
    %708 = vector.extract_strided_slice %520 {offsets = [48, 0], sizes = [8, 96], strides = [1, 1]} : vector<64x96xf32> to vector<8x96xf32>
    %cst_157 = arith.constant dense<0.000000e+00> : vector<8x96xf32>
    %709 = tpu.matmul %706, %515, %cst_157 {dimension_numbers = #tpu.dot_dimension_numbers<[1], [0], [0], [1], [0, 0, 1, 1], [], []>} : vector<8x32xf32>, vector<32x96xf32>, vector<8x96xf32> -> vector<8x96xf32>
    %710 = vector.broadcast %517 : vector<1x96xf32> to vector<8x96xf32>
    %711 = arith.addf %709, %710 : vector<8x96xf32>
    %712 = vector.extract_strided_slice %708 {offsets = [0, 0], sizes = [8, 32], strides = [1, 1]} : vector<8x96xf32> to vector<8x32xf32>
    %713 = vector.extract_strided_slice %711 {offsets = [0, 0], sizes = [8, 32], strides = [1, 1]} : vector<8x96xf32> to vector<8x32xf32>
    %714 = arith.addf %712, %713 : vector<8x32xf32>
    %715 = arith.negf %714 : vector<8x32xf32>
    %716 = math.exp %715 : vector<8x32xf32>
    %cst_158 = arith.constant 1.000000e+00 : f32
    %717 = vector.broadcast %cst_158 : f32 to vector<8x32xf32>
    %718 = arith.addf %717, %716 : vector<8x32xf32>
    %719 = arith.divf %717, %718 : vector<8x32xf32>
    %720 = vector.extract_strided_slice %708 {offsets = [0, 32], sizes = [8, 32], strides = [1, 1]} : vector<8x96xf32> to vector<8x32xf32>
    %721 = vector.extract_strided_slice %711 {offsets = [0, 32], sizes = [8, 32], strides = [1, 1]} : vector<8x96xf32> to vector<8x32xf32>
    %722 = arith.addf %720, %721 : vector<8x32xf32>
    %723 = arith.negf %722 : vector<8x32xf32>
    %724 = math.exp %723 : vector<8x32xf32>
    %cst_159 = arith.constant 1.000000e+00 : f32
    %725 = vector.broadcast %cst_159 : f32 to vector<8x32xf32>
    %726 = arith.addf %725, %724 : vector<8x32xf32>
    %727 = arith.divf %725, %726 : vector<8x32xf32>
    %728 = vector.extract_strided_slice %708 {offsets = [0, 64], sizes = [8, 32], strides = [1, 1]} : vector<8x96xf32> to vector<8x32xf32>
    %729 = vector.extract_strided_slice %711 {offsets = [0, 64], sizes = [8, 32], strides = [1, 1]} : vector<8x96xf32> to vector<8x32xf32>
    %730 = arith.mulf %719, %729 : vector<8x32xf32>
    %731 = arith.addf %728, %730 : vector<8x32xf32>
    %732 = math.tanh %731 : vector<8x32xf32>
    %cst_160 = arith.constant 1.000000e+00 : f32
    %733 = vector.broadcast %cst_160 : f32 to vector<8x32xf32>
    %734 = arith.subf %733, %727 : vector<8x32xf32>
    %735 = arith.mulf %734, %732 : vector<8x32xf32>
    %736 = arith.mulf %727, %706 : vector<8x32xf32>
    %737 = arith.addf %735, %736 : vector<8x32xf32>
    %c48_161 = arith.constant 48 : index
    %c0_162 = arith.constant 0 : index
    %738 = vector.load %arg27[%c48_161, %c0_162] : memref<64x64xf32, #tpu.memory_space<vmem>>, vector<8x32xf32>
    tpu.vector_store %arg27[%c48_161, %c0_162], %737 {strides = array<i32>} : memref<64x64xf32, #tpu.memory_space<vmem>>, vector<8x32xf32>,
    %739 = vector.extract_strided_slice %520 {offsets = [56, 0], sizes = [8, 96], strides = [1, 1]} : vector<64x96xf32> to vector<8x96xf32>
    %cst_163 = arith.constant dense<0.000000e+00> : vector<8x96xf32>
    %740 = tpu.matmul %737, %515, %cst_163 {dimension_numbers = #tpu.dot_dimension_numbers<[1], [0], [0], [1], [0, 0, 1, 1], [], []>} : vector<8x32xf32>, vector<32x96xf32>, vector<8x96xf32> -> vector<8x96xf32>
    %741 = vector.broadcast %517 : vector<1x96xf32> to vector<8x96xf32>
    %742 = arith.addf %740, %741 : vector<8x96xf32>
    %743 = vector.extract_strided_slice %739 {offsets = [0, 0], sizes = [8, 32], strides = [1, 1]} : vector<8x96xf32> to vector<8x32xf32>
    %744 = vector.extract_strided_slice %742 {offsets = [0, 0], sizes = [8, 32], strides = [1, 1]} : vector<8x96xf32> to vector<8x32xf32>
    %745 = arith.addf %743, %744 : vector<8x32xf32>
    %746 = arith.negf %745 : vector<8x32xf32>
    %747 = math.exp %746 : vector<8x32xf32>
    %cst_164 = arith.constant 1.000000e+00 : f32
    %748 = vector.broadcast %cst_164 : f32 to vector<8x32xf32>
    %749 = arith.addf %748, %747 : vector<8x32xf32>
    %750 = arith.divf %748, %749 : vector<8x32xf32>
    %751 = vector.extract_strided_slice %739 {offsets = [0, 32], sizes = [8, 32], strides = [1, 1]} : vector<8x96xf32> to vector<8x32xf32>
    %752 = vector.extract_strided_slice %742 {offsets = [0, 32], sizes = [8, 32], strides = [1, 1]} : vector<8x96xf32> to vector<8x32xf32>
    %753 = arith.addf %751, %752 : vector<8x32xf32>
    %754 = arith.negf %753 : vector<8x32xf32>
    %755 = math.exp %754 : vector<8x32xf32>
    %cst_165 = arith.constant 1.000000e+00 : f32
    %756 = vector.broadcast %cst_165 : f32 to vector<8x32xf32>
    %757 = arith.addf %756, %755 : vector<8x32xf32>
    %758 = arith.divf %756, %757 : vector<8x32xf32>
    %759 = vector.extract_strided_slice %739 {offsets = [0, 64], sizes = [8, 32], strides = [1, 1]} : vector<8x96xf32> to vector<8x32xf32>
    %760 = vector.extract_strided_slice %742 {offsets = [0, 64], sizes = [8, 32], strides = [1, 1]} : vector<8x96xf32> to vector<8x32xf32>
    %761 = arith.mulf %750, %760 : vector<8x32xf32>
    %762 = arith.addf %759, %761 : vector<8x32xf32>
    %763 = math.tanh %762 : vector<8x32xf32>
    %cst_166 = arith.constant 1.000000e+00 : f32
    %764 = vector.broadcast %cst_166 : f32 to vector<8x32xf32>
    %765 = arith.subf %764, %758 : vector<8x32xf32>
    %766 = arith.mulf %765, %763 : vector<8x32xf32>
    %767 = arith.mulf %758, %737 : vector<8x32xf32>
    %768 = arith.addf %766, %767 : vector<8x32xf32>
    %c56_167 = arith.constant 56 : index
    %c0_168 = arith.constant 0 : index
    %769 = vector.load %arg27[%c56_167, %c0_168] : memref<64x64xf32, #tpu.memory_space<vmem>>, vector<8x32xf32>
    tpu.vector_store %arg27[%c56_167, %c0_168], %768 {strides = array<i32>} : memref<64x64xf32, #tpu.memory_space<vmem>>, vector<8x32xf32>,
    %c0_169 = arith.constant 0 : index
    %c0_170 = arith.constant 0 : index
    %770 = vector.load %arg13[%c0_169, %c0_170] : memref<64x96xf32, #tpu.memory_space<vmem>>, vector<64x96xf32>
    %c0_171 = arith.constant 0 : index
    %c0_172 = arith.constant 0 : index
    %771 = vector.load %arg14[%c0_171, %c0_172] : memref<32x96xf32, #tpu.memory_space<vmem>>, vector<32x96xf32>
    %c0_173 = arith.constant 0 : index
    %c0_174 = arith.constant 0 : index
    %772 = vector.load %arg15[%c0_173, %c0_174] : memref<1x96xf32, #tpu.memory_space<vmem>>, vector<1x96xf32>
    %c0_175 = arith.constant 0 : index
    %c0_176 = arith.constant 0 : index
    %773 = vector.load %arg16[%c0_175, %c0_176] : memref<1x96xf32, #tpu.memory_space<vmem>>, vector<1x96xf32>
    %cst_177 = arith.constant dense<0.000000e+00> : vector<64x96xf32>
    %774 = tpu.matmul %513, %770, %cst_177 {dimension_numbers = #tpu.dot_dimension_numbers<[1], [0], [0], [1], [0, 0, 1, 1], [], []>} : vector<64x64xf32>, vector<64x96xf32>, vector<64x96xf32> -> vector<64x96xf32>
    %775 = vector.broadcast %772 : vector<1x96xf32> to vector<64x96xf32>
    %776 = arith.addf %774, %775 : vector<64x96xf32>
    %cst_178 = arith.constant 0.000000e+00 : f32
    %777 = vector.broadcast %cst_178 : f32 to vector<8x32xf32>
    %778 = vector.extract_strided_slice %776 {offsets = [56, 0], sizes = [8, 96], strides = [1, 1]} : vector<64x96xf32> to vector<8x96xf32>
    %cst_179 = arith.constant dense<0.000000e+00> : vector<8x96xf32>
    %779 = tpu.matmul %777, %771, %cst_179 {dimension_numbers = #tpu.dot_dimension_numbers<[1], [0], [0], [1], [0, 0, 1, 1], [], []>} : vector<8x32xf32>, vector<32x96xf32>, vector<8x96xf32> -> vector<8x96xf32>
    %780 = vector.broadcast %773 : vector<1x96xf32> to vector<8x96xf32>
    %781 = arith.addf %779, %780 : vector<8x96xf32>
    %782 = vector.extract_strided_slice %778 {offsets = [0, 0], sizes = [8, 32], strides = [1, 1]} : vector<8x96xf32> to vector<8x32xf32>
    %783 = vector.extract_strided_slice %781 {offsets = [0, 0], sizes = [8, 32], strides = [1, 1]} : vector<8x96xf32> to vector<8x32xf32>
    %784 = arith.addf %782, %783 : vector<8x32xf32>
    %785 = arith.negf %784 : vector<8x32xf32>
    %786 = math.exp %785 : vector<8x32xf32>
    %cst_180 = arith.constant 1.000000e+00 : f32
    %787 = vector.broadcast %cst_180 : f32 to vector<8x32xf32>
    %788 = arith.addf %787, %786 : vector<8x32xf32>
    %789 = arith.divf %787, %788 : vector<8x32xf32>
    %790 = vector.extract_strided_slice %778 {offsets = [0, 32], sizes = [8, 32], strides = [1, 1]} : vector<8x96xf32> to vector<8x32xf32>
    %791 = vector.extract_strided_slice %781 {offsets = [0, 32], sizes = [8, 32], strides = [1, 1]} : vector<8x96xf32> to vector<8x32xf32>
    %792 = arith.addf %790, %791 : vector<8x32xf32>
    %793 = arith.negf %792 : vector<8x32xf32>
    %794 = math.exp %793 : vector<8x32xf32>
    %cst_181 = arith.constant 1.000000e+00 : f32
    %795 = vector.broadcast %cst_181 : f32 to vector<8x32xf32>
    %796 = arith.addf %795, %794 : vector<8x32xf32>
    %797 = arith.divf %795, %796 : vector<8x32xf32>
    %798 = vector.extract_strided_slice %778 {offsets = [0, 64], sizes = [8, 32], strides = [1, 1]} : vector<8x96xf32> to vector<8x32xf32>
    %799 = vector.extract_strided_slice %781 {offsets = [0, 64], sizes = [8, 32], strides = [1, 1]} : vector<8x96xf32> to vector<8x32xf32>
    %800 = arith.mulf %789, %799 : vector<8x32xf32>
    %801 = arith.addf %798, %800 : vector<8x32xf32>
    %802 = math.tanh %801 : vector<8x32xf32>
    %cst_182 = arith.constant 1.000000e+00 : f32
    %803 = vector.broadcast %cst_182 : f32 to vector<8x32xf32>
    %804 = arith.subf %803, %797 : vector<8x32xf32>
    %805 = arith.mulf %804, %802 : vector<8x32xf32>
    %806 = arith.mulf %797, %777 : vector<8x32xf32>
    %807 = arith.addf %805, %806 : vector<8x32xf32>
    %c56_183 = arith.constant 56 : index
    %c32_184 = arith.constant 32 : index
    %808 = vector.load %arg27[%c56_183, %c32_184] : memref<64x64xf32, #tpu.memory_space<vmem>>, vector<8x32xf32>
    tpu.vector_store %arg27[%c56_183, %c32_184], %807 {strides = array<i32>} : memref<64x64xf32, #tpu.memory_space<vmem>>, vector<8x32xf32>,
    %809 = vector.extract_strided_slice %776 {offsets = [48, 0], sizes = [8, 96], strides = [1, 1]} : vector<64x96xf32> to vector<8x96xf32>
    %cst_185 = arith.constant dense<0.000000e+00> : vector<8x96xf32>
    %810 = tpu.matmul %807, %771, %cst_185 {dimension_numbers = #tpu.dot_dimension_numbers<[1], [0], [0], [1], [0, 0, 1, 1], [], []>} : vector<8x32xf32>, vector<32x96xf32>, vector<8x96xf32> -> vector<8x96xf32>
    %811 = vector.broadcast %773 : vector<1x96xf32> to vector<8x96xf32>
    %812 = arith.addf %810, %811 : vector<8x96xf32>
    %813 = vector.extract_strided_slice %809 {offsets = [0, 0], sizes = [8, 32], strides = [1, 1]} : vector<8x96xf32> to vector<8x32xf32>
    %814 = vector.extract_strided_slice %812 {offsets = [0, 0], sizes = [8, 32], strides = [1, 1]} : vector<8x96xf32> to vector<8x32xf32>
    %815 = arith.addf %813, %814 : vector<8x32xf32>
    %816 = arith.negf %815 : vector<8x32xf32>
    %817 = math.exp %816 : vector<8x32xf32>
    %cst_186 = arith.constant 1.000000e+00 : f32
    %818 = vector.broadcast %cst_186 : f32 to vector<8x32xf32>
    %819 = arith.addf %818, %817 : vector<8x32xf32>
    %820 = arith.divf %818, %819 : vector<8x32xf32>
    %821 = vector.extract_strided_slice %809 {offsets = [0, 32], sizes = [8, 32], strides = [1, 1]} : vector<8x96xf32> to vector<8x32xf32>
    %822 = vector.extract_strided_slice %812 {offsets = [0, 32], sizes = [8, 32], strides = [1, 1]} : vector<8x96xf32> to vector<8x32xf32>
    %823 = arith.addf %821, %822 : vector<8x32xf32>
    %824 = arith.negf %823 : vector<8x32xf32>
    %825 = math.exp %824 : vector<8x32xf32>
    %cst_187 = arith.constant 1.000000e+00 : f32
    %826 = vector.broadcast %cst_187 : f32 to vector<8x32xf32>
    %827 = arith.addf %826, %825 : vector<8x32xf32>
    %828 = arith.divf %826, %827 : vector<8x32xf32>
    %829 = vector.extract_strided_slice %809 {offsets = [0, 64], sizes = [8, 32], strides = [1, 1]} : vector<8x96xf32> to vector<8x32xf32>
    %830 = vector.extract_strided_slice %812 {offsets = [0, 64], sizes = [8, 32], strides = [1, 1]} : vector<8x96xf32> to vector<8x32xf32>
    %831 = arith.mulf %820, %830 : vector<8x32xf32>
    %832 = arith.addf %829, %831 : vector<8x32xf32>
    %833 = math.tanh %832 : vector<8x32xf32>
    %cst_188 = arith.constant 1.000000e+00 : f32
    %834 = vector.broadcast %cst_188 : f32 to vector<8x32xf32>
    %835 = arith.subf %834, %828 : vector<8x32xf32>
    %836 = arith.mulf %835, %833 : vector<8x32xf32>
    %837 = arith.mulf %828, %807 : vector<8x32xf32>
    %838 = arith.addf %836, %837 : vector<8x32xf32>
    %c48_189 = arith.constant 48 : index
    %c32_190 = arith.constant 32 : index
    %839 = vector.load %arg27[%c48_189, %c32_190] : memref<64x64xf32, #tpu.memory_space<vmem>>, vector<8x32xf32>
    tpu.vector_store %arg27[%c48_189, %c32_190], %838 {strides = array<i32>} : memref<64x64xf32, #tpu.memory_space<vmem>>, vector<8x32xf32>,
    %840 = vector.extract_strided_slice %776 {offsets = [40, 0], sizes = [8, 96], strides = [1, 1]} : vector<64x96xf32> to vector<8x96xf32>
    %cst_191 = arith.constant dense<0.000000e+00> : vector<8x96xf32>
    %841 = tpu.matmul %838, %771, %cst_191 {dimension_numbers = #tpu.dot_dimension_numbers<[1], [0], [0], [1], [0, 0, 1, 1], [], []>} : vector<8x32xf32>, vector<32x96xf32>, vector<8x96xf32> -> vector<8x96xf32>
    %842 = vector.broadcast %773 : vector<1x96xf32> to vector<8x96xf32>
    %843 = arith.addf %841, %842 : vector<8x96xf32>
    %844 = vector.extract_strided_slice %840 {offsets = [0, 0], sizes = [8, 32], strides = [1, 1]} : vector<8x96xf32> to vector<8x32xf32>
    %845 = vector.extract_strided_slice %843 {offsets = [0, 0], sizes = [8, 32], strides = [1, 1]} : vector<8x96xf32> to vector<8x32xf32>
    %846 = arith.addf %844, %845 : vector<8x32xf32>
    %847 = arith.negf %846 : vector<8x32xf32>
    %848 = math.exp %847 : vector<8x32xf32>
    %cst_192 = arith.constant 1.000000e+00 : f32
    %849 = vector.broadcast %cst_192 : f32 to vector<8x32xf32>
    %850 = arith.addf %849, %848 : vector<8x32xf32>
    %851 = arith.divf %849, %850 : vector<8x32xf32>
    %852 = vector.extract_strided_slice %840 {offsets = [0, 32], sizes = [8, 32], strides = [1, 1]} : vector<8x96xf32> to vector<8x32xf32>
    %853 = vector.extract_strided_slice %843 {offsets = [0, 32], sizes = [8, 32], strides = [1, 1]} : vector<8x96xf32> to vector<8x32xf32>
    %854 = arith.addf %852, %853 : vector<8x32xf32>
    %855 = arith.negf %854 : vector<8x32xf32>
    %856 = math.exp %855 : vector<8x32xf32>
    %cst_193 = arith.constant 1.000000e+00 : f32
    %857 = vector.broadcast %cst_193 : f32 to vector<8x32xf32>
    %858 = arith.addf %857, %856 : vector<8x32xf32>
    %859 = arith.divf %857, %858 : vector<8x32xf32>
    %860 = vector.extract_strided_slice %840 {offsets = [0, 64], sizes = [8, 32], strides = [1, 1]} : vector<8x96xf32> to vector<8x32xf32>
    %861 = vector.extract_strided_slice %843 {offsets = [0, 64], sizes = [8, 32], strides = [1, 1]} : vector<8x96xf32> to vector<8x32xf32>
    %862 = arith.mulf %851, %861 : vector<8x32xf32>
    %863 = arith.addf %860, %862 : vector<8x32xf32>
    %864 = math.tanh %863 : vector<8x32xf32>
    %cst_194 = arith.constant 1.000000e+00 : f32
    %865 = vector.broadcast %cst_194 : f32 to vector<8x32xf32>
    %866 = arith.subf %865, %859 : vector<8x32xf32>
    %867 = arith.mulf %866, %864 : vector<8x32xf32>
    %868 = arith.mulf %859, %838 : vector<8x32xf32>
    %869 = arith.addf %867, %868 : vector<8x32xf32>
    %c40_195 = arith.constant 40 : index
    %c32_196 = arith.constant 32 : index
    %870 = vector.load %arg27[%c40_195, %c32_196] : memref<64x64xf32, #tpu.memory_space<vmem>>, vector<8x32xf32>
    tpu.vector_store %arg27[%c40_195, %c32_196], %869 {strides = array<i32>} : memref<64x64xf32, #tpu.memory_space<vmem>>, vector<8x32xf32>,
    %871 = vector.extract_strided_slice %776 {offsets = [32, 0], sizes = [8, 96], strides = [1, 1]} : vector<64x96xf32> to vector<8x96xf32>
    %cst_197 = arith.constant dense<0.000000e+00> : vector<8x96xf32>
    %872 = tpu.matmul %869, %771, %cst_197 {dimension_numbers = #tpu.dot_dimension_numbers<[1], [0], [0], [1], [0, 0, 1, 1], [], []>} : vector<8x32xf32>, vector<32x96xf32>, vector<8x96xf32> -> vector<8x96xf32>
    %873 = vector.broadcast %773 : vector<1x96xf32> to vector<8x96xf32>
    %874 = arith.addf %872, %873 : vector<8x96xf32>
    %875 = vector.extract_strided_slice %871 {offsets = [0, 0], sizes = [8, 32], strides = [1, 1]} : vector<8x96xf32> to vector<8x32xf32>
    %876 = vector.extract_strided_slice %874 {offsets = [0, 0], sizes = [8, 32], strides = [1, 1]} : vector<8x96xf32> to vector<8x32xf32>
    %877 = arith.addf %875, %876 : vector<8x32xf32>
    %878 = arith.negf %877 : vector<8x32xf32>
    %879 = math.exp %878 : vector<8x32xf32>
    %cst_198 = arith.constant 1.000000e+00 : f32
    %880 = vector.broadcast %cst_198 : f32 to vector<8x32xf32>
    %881 = arith.addf %880, %879 : vector<8x32xf32>
    %882 = arith.divf %880, %881 : vector<8x32xf32>
    %883 = vector.extract_strided_slice %871 {offsets = [0, 32], sizes = [8, 32], strides = [1, 1]} : vector<8x96xf32> to vector<8x32xf32>
    %884 = vector.extract_strided_slice %874 {offsets = [0, 32], sizes = [8, 32], strides = [1, 1]} : vector<8x96xf32> to vector<8x32xf32>
    %885 = arith.addf %883, %884 : vector<8x32xf32>
    %886 = arith.negf %885 : vector<8x32xf32>
    %887 = math.exp %886 : vector<8x32xf32>
    %cst_199 = arith.constant 1.000000e+00 : f32
    %888 = vector.broadcast %cst_199 : f32 to vector<8x32xf32>
    %889 = arith.addf %888, %887 : vector<8x32xf32>
    %890 = arith.divf %888, %889 : vector<8x32xf32>
    %891 = vector.extract_strided_slice %871 {offsets = [0, 64], sizes = [8, 32], strides = [1, 1]} : vector<8x96xf32> to vector<8x32xf32>
    %892 = vector.extract_strided_slice %874 {offsets = [0, 64], sizes = [8, 32], strides = [1, 1]} : vector<8x96xf32> to vector<8x32xf32>
    %893 = arith.mulf %882, %892 : vector<8x32xf32>
    %894 = arith.addf %891, %893 : vector<8x32xf32>
    %895 = math.tanh %894 : vector<8x32xf32>
    %cst_200 = arith.constant 1.000000e+00 : f32
    %896 = vector.broadcast %cst_200 : f32 to vector<8x32xf32>
    %897 = arith.subf %896, %890 : vector<8x32xf32>
    %898 = arith.mulf %897, %895 : vector<8x32xf32>
    %899 = arith.mulf %890, %869 : vector<8x32xf32>
    %900 = arith.addf %898, %899 : vector<8x32xf32>
    %c32_201 = arith.constant 32 : index
    %c32_202 = arith.constant 32 : index
    %901 = vector.load %arg27[%c32_201, %c32_202] : memref<64x64xf32, #tpu.memory_space<vmem>>, vector<8x32xf32>
    tpu.vector_store %arg27[%c32_201, %c32_202], %900 {strides = array<i32>} : memref<64x64xf32, #tpu.memory_space<vmem>>, vector<8x32xf32>,
    %902 = vector.extract_strided_slice %776 {offsets = [24, 0], sizes = [8, 96], strides = [1, 1]} : vector<64x96xf32> to vector<8x96xf32>
    %cst_203 = arith.constant dense<0.000000e+00> : vector<8x96xf32>
    %903 = tpu.matmul %900, %771, %cst_203 {dimension_numbers = #tpu.dot_dimension_numbers<[1], [0], [0], [1], [0, 0, 1, 1], [], []>} : vector<8x32xf32>, vector<32x96xf32>, vector<8x96xf32> -> vector<8x96xf32>
    %904 = vector.broadcast %773 : vector<1x96xf32> to vector<8x96xf32>
    %905 = arith.addf %903, %904 : vector<8x96xf32>
    %906 = vector.extract_strided_slice %902 {offsets = [0, 0], sizes = [8, 32], strides = [1, 1]} : vector<8x96xf32> to vector<8x32xf32>
    %907 = vector.extract_strided_slice %905 {offsets = [0, 0], sizes = [8, 32], strides = [1, 1]} : vector<8x96xf32> to vector<8x32xf32>
    %908 = arith.addf %906, %907 : vector<8x32xf32>
    %909 = arith.negf %908 : vector<8x32xf32>
    %910 = math.exp %909 : vector<8x32xf32>
    %cst_204 = arith.constant 1.000000e+00 : f32
    %911 = vector.broadcast %cst_204 : f32 to vector<8x32xf32>
    %912 = arith.addf %911, %910 : vector<8x32xf32>
    %913 = arith.divf %911, %912 : vector<8x32xf32>
    %914 = vector.extract_strided_slice %902 {offsets = [0, 32], sizes = [8, 32], strides = [1, 1]} : vector<8x96xf32> to vector<8x32xf32>
    %915 = vector.extract_strided_slice %905 {offsets = [0, 32], sizes = [8, 32], strides = [1, 1]} : vector<8x96xf32> to vector<8x32xf32>
    %916 = arith.addf %914, %915 : vector<8x32xf32>
    %917 = arith.negf %916 : vector<8x32xf32>
    %918 = math.exp %917 : vector<8x32xf32>
    %cst_205 = arith.constant 1.000000e+00 : f32
    %919 = vector.broadcast %cst_205 : f32 to vector<8x32xf32>
    %920 = arith.addf %919, %918 : vector<8x32xf32>
    %921 = arith.divf %919, %920 : vector<8x32xf32>
    %922 = vector.extract_strided_slice %902 {offsets = [0, 64], sizes = [8, 32], strides = [1, 1]} : vector<8x96xf32> to vector<8x32xf32>
    %923 = vector.extract_strided_slice %905 {offsets = [0, 64], sizes = [8, 32], strides = [1, 1]} : vector<8x96xf32> to vector<8x32xf32>
    %924 = arith.mulf %913, %923 : vector<8x32xf32>
    %925 = arith.addf %922, %924 : vector<8x32xf32>
    %926 = math.tanh %925 : vector<8x32xf32>
    %cst_206 = arith.constant 1.000000e+00 : f32
    %927 = vector.broadcast %cst_206 : f32 to vector<8x32xf32>
    %928 = arith.subf %927, %921 : vector<8x32xf32>
    %929 = arith.mulf %928, %926 : vector<8x32xf32>
    %930 = arith.mulf %921, %900 : vector<8x32xf32>
    %931 = arith.addf %929, %930 : vector<8x32xf32>
    %c24_207 = arith.constant 24 : index
    %c32_208 = arith.constant 32 : index
    %932 = vector.load %arg27[%c24_207, %c32_208] : memref<64x64xf32, #tpu.memory_space<vmem>>, vector<8x32xf32>
    tpu.vector_store %arg27[%c24_207, %c32_208], %931 {strides = array<i32>} : memref<64x64xf32, #tpu.memory_space<vmem>>, vector<8x32xf32>,
    %933 = vector.extract_strided_slice %776 {offsets = [16, 0], sizes = [8, 96], strides = [1, 1]} : vector<64x96xf32> to vector<8x96xf32>
    %cst_209 = arith.constant dense<0.000000e+00> : vector<8x96xf32>
    %934 = tpu.matmul %931, %771, %cst_209 {dimension_numbers = #tpu.dot_dimension_numbers<[1], [0], [0], [1], [0, 0, 1, 1], [], []>} : vector<8x32xf32>, vector<32x96xf32>, vector<8x96xf32> -> vector<8x96xf32>
    %935 = vector.broadcast %773 : vector<1x96xf32> to vector<8x96xf32>
    %936 = arith.addf %934, %935 : vector<8x96xf32>
    %937 = vector.extract_strided_slice %933 {offsets = [0, 0], sizes = [8, 32], strides = [1, 1]} : vector<8x96xf32> to vector<8x32xf32>
    %938 = vector.extract_strided_slice %936 {offsets = [0, 0], sizes = [8, 32], strides = [1, 1]} : vector<8x96xf32> to vector<8x32xf32>
    %939 = arith.addf %937, %938 : vector<8x32xf32>
    %940 = arith.negf %939 : vector<8x32xf32>
    %941 = math.exp %940 : vector<8x32xf32>
    %cst_210 = arith.constant 1.000000e+00 : f32
    %942 = vector.broadcast %cst_210 : f32 to vector<8x32xf32>
    %943 = arith.addf %942, %941 : vector<8x32xf32>
    %944 = arith.divf %942, %943 : vector<8x32xf32>
    %945 = vector.extract_strided_slice %933 {offsets = [0, 32], sizes = [8, 32], strides = [1, 1]} : vector<8x96xf32> to vector<8x32xf32>
    %946 = vector.extract_strided_slice %936 {offsets = [0, 32], sizes = [8, 32], strides = [1, 1]} : vector<8x96xf32> to vector<8x32xf32>
    %947 = arith.addf %945, %946 : vector<8x32xf32>
    %948 = arith.negf %947 : vector<8x32xf32>
    %949 = math.exp %948 : vector<8x32xf32>
    %cst_211 = arith.constant 1.000000e+00 : f32
    %950 = vector.broadcast %cst_211 : f32 to vector<8x32xf32>
    %951 = arith.addf %950, %949 : vector<8x32xf32>
    %952 = arith.divf %950, %951 : vector<8x32xf32>
    %953 = vector.extract_strided_slice %933 {offsets = [0, 64], sizes = [8, 32], strides = [1, 1]} : vector<8x96xf32> to vector<8x32xf32>
    %954 = vector.extract_strided_slice %936 {offsets = [0, 64], sizes = [8, 32], strides = [1, 1]} : vector<8x96xf32> to vector<8x32xf32>
    %955 = arith.mulf %944, %954 : vector<8x32xf32>
    %956 = arith.addf %953, %955 : vector<8x32xf32>
    %957 = math.tanh %956 : vector<8x32xf32>
    %cst_212 = arith.constant 1.000000e+00 : f32
    %958 = vector.broadcast %cst_212 : f32 to vector<8x32xf32>
    %959 = arith.subf %958, %952 : vector<8x32xf32>
    %960 = arith.mulf %959, %957 : vector<8x32xf32>
    %961 = arith.mulf %952, %931 : vector<8x32xf32>
    %962 = arith.addf %960, %961 : vector<8x32xf32>
    %c16_213 = arith.constant 16 : index
    %c32_214 = arith.constant 32 : index
    %963 = vector.load %arg27[%c16_213, %c32_214] : memref<64x64xf32, #tpu.memory_space<vmem>>, vector<8x32xf32>
    tpu.vector_store %arg27[%c16_213, %c32_214], %962 {strides = array<i32>} : memref<64x64xf32, #tpu.memory_space<vmem>>, vector<8x32xf32>,
    %964 = vector.extract_strided_slice %776 {offsets = [8, 0], sizes = [8, 96], strides = [1, 1]} : vector<64x96xf32> to vector<8x96xf32>
    %cst_215 = arith.constant dense<0.000000e+00> : vector<8x96xf32>
    %965 = tpu.matmul %962, %771, %cst_215 {dimension_numbers = #tpu.dot_dimension_numbers<[1], [0], [0], [1], [0, 0, 1, 1], [], []>} : vector<8x32xf32>, vector<32x96xf32>, vector<8x96xf32> -> vector<8x96xf32>
    %966 = vector.broadcast %773 : vector<1x96xf32> to vector<8x96xf32>
    %967 = arith.addf %965, %966 : vector<8x96xf32>
    %968 = vector.extract_strided_slice %964 {offsets = [0, 0], sizes = [8, 32], strides = [1, 1]} : vector<8x96xf32> to vector<8x32xf32>
    %969 = vector.extract_strided_slice %967 {offsets = [0, 0], sizes = [8, 32], strides = [1, 1]} : vector<8x96xf32> to vector<8x32xf32>
    %970 = arith.addf %968, %969 : vector<8x32xf32>
    %971 = arith.negf %970 : vector<8x32xf32>
    %972 = math.exp %971 : vector<8x32xf32>
    %cst_216 = arith.constant 1.000000e+00 : f32
    %973 = vector.broadcast %cst_216 : f32 to vector<8x32xf32>
    %974 = arith.addf %973, %972 : vector<8x32xf32>
    %975 = arith.divf %973, %974 : vector<8x32xf32>
    %976 = vector.extract_strided_slice %964 {offsets = [0, 32], sizes = [8, 32], strides = [1, 1]} : vector<8x96xf32> to vector<8x32xf32>
    %977 = vector.extract_strided_slice %967 {offsets = [0, 32], sizes = [8, 32], strides = [1, 1]} : vector<8x96xf32> to vector<8x32xf32>
    %978 = arith.addf %976, %977 : vector<8x32xf32>
    %979 = arith.negf %978 : vector<8x32xf32>
    %980 = math.exp %979 : vector<8x32xf32>
    %cst_217 = arith.constant 1.000000e+00 : f32
    %981 = vector.broadcast %cst_217 : f32 to vector<8x32xf32>
    %982 = arith.addf %981, %980 : vector<8x32xf32>
    %983 = arith.divf %981, %982 : vector<8x32xf32>
    %984 = vector.extract_strided_slice %964 {offsets = [0, 64], sizes = [8, 32], strides = [1, 1]} : vector<8x96xf32> to vector<8x32xf32>
    %985 = vector.extract_strided_slice %967 {offsets = [0, 64], sizes = [8, 32], strides = [1, 1]} : vector<8x96xf32> to vector<8x32xf32>
    %986 = arith.mulf %975, %985 : vector<8x32xf32>
    %987 = arith.addf %984, %986 : vector<8x32xf32>
    %988 = math.tanh %987 : vector<8x32xf32>
    %cst_218 = arith.constant 1.000000e+00 : f32
    %989 = vector.broadcast %cst_218 : f32 to vector<8x32xf32>
    %990 = arith.subf %989, %983 : vector<8x32xf32>
    %991 = arith.mulf %990, %988 : vector<8x32xf32>
    %992 = arith.mulf %983, %962 : vector<8x32xf32>
    %993 = arith.addf %991, %992 : vector<8x32xf32>
    %c8_219 = arith.constant 8 : index
    %c32_220 = arith.constant 32 : index
    %994 = vector.load %arg27[%c8_219, %c32_220] : memref<64x64xf32, #tpu.memory_space<vmem>>, vector<8x32xf32>
    tpu.vector_store %arg27[%c8_219, %c32_220], %993 {strides = array<i32>} : memref<64x64xf32, #tpu.memory_space<vmem>>, vector<8x32xf32>,
    %995 = vector.extract_strided_slice %776 {offsets = [0, 0], sizes = [8, 96], strides = [1, 1]} : vector<64x96xf32> to vector<8x96xf32>
    %cst_221 = arith.constant dense<0.000000e+00> : vector<8x96xf32>
    %996 = tpu.matmul %993, %771, %cst_221 {dimension_numbers = #tpu.dot_dimension_numbers<[1], [0], [0], [1], [0, 0, 1, 1], [], []>} : vector<8x32xf32>, vector<32x96xf32>, vector<8x96xf32> -> vector<8x96xf32>
    %997 = vector.broadcast %773 : vector<1x96xf32> to vector<8x96xf32>
    %998 = arith.addf %996, %997 : vector<8x96xf32>
    %999 = vector.extract_strided_slice %995 {offsets = [0, 0], sizes = [8, 32], strides = [1, 1]} : vector<8x96xf32> to vector<8x32xf32>
    %1000 = vector.extract_strided_slice %998 {offsets = [0, 0], sizes = [8, 32], strides = [1, 1]} : vector<8x96xf32> to vector<8x32xf32>
    %1001 = arith.addf %999, %1000 : vector<8x32xf32>
    %1002 = arith.negf %1001 : vector<8x32xf32>
    %1003 = math.exp %1002 : vector<8x32xf32>
    %cst_222 = arith.constant 1.000000e+00 : f32
    %1004 = vector.broadcast %cst_222 : f32 to vector<8x32xf32>
    %1005 = arith.addf %1004, %1003 : vector<8x32xf32>
    %1006 = arith.divf %1004, %1005 : vector<8x32xf32>
    %1007 = vector.extract_strided_slice %995 {offsets = [0, 32], sizes = [8, 32], strides = [1, 1]} : vector<8x96xf32> to vector<8x32xf32>
    %1008 = vector.extract_strided_slice %998 {offsets = [0, 32], sizes = [8, 32], strides = [1, 1]} : vector<8x96xf32> to vector<8x32xf32>
    %1009 = arith.addf %1007, %1008 : vector<8x32xf32>
    %1010 = arith.negf %1009 : vector<8x32xf32>
    %1011 = math.exp %1010 : vector<8x32xf32>
    %cst_223 = arith.constant 1.000000e+00 : f32
    %1012 = vector.broadcast %cst_223 : f32 to vector<8x32xf32>
    %1013 = arith.addf %1012, %1011 : vector<8x32xf32>
    %1014 = arith.divf %1012, %1013 : vector<8x32xf32>
    %1015 = vector.extract_strided_slice %995 {offsets = [0, 64], sizes = [8, 32], strides = [1, 1]} : vector<8x96xf32> to vector<8x32xf32>
    %1016 = vector.extract_strided_slice %998 {offsets = [0, 64], sizes = [8, 32], strides = [1, 1]} : vector<8x96xf32> to vector<8x32xf32>
    %1017 = arith.mulf %1006, %1016 : vector<8x32xf32>
    %1018 = arith.addf %1015, %1017 : vector<8x32xf32>
    %1019 = math.tanh %1018 : vector<8x32xf32>
    %cst_224 = arith.constant 1.000000e+00 : f32
    %1020 = vector.broadcast %cst_224 : f32 to vector<8x32xf32>
    %1021 = arith.subf %1020, %1014 : vector<8x32xf32>
    %1022 = arith.mulf %1021, %1019 : vector<8x32xf32>
    %1023 = arith.mulf %1014, %993 : vector<8x32xf32>
    %1024 = arith.addf %1022, %1023 : vector<8x32xf32>
    %c0_225 = arith.constant 0 : index
    %c32_226 = arith.constant 32 : index
    %1025 = vector.load %arg27[%c0_225, %c32_226] : memref<64x64xf32, #tpu.memory_space<vmem>>, vector<8x32xf32>
    tpu.vector_store %arg27[%c0_225, %c32_226], %1024 {strides = array<i32>} : memref<64x64xf32, #tpu.memory_space<vmem>>, vector<8x32xf32>,
    %c0_227 = arith.constant 0 : index
    %c0_228 = arith.constant 0 : index
    %1026 = vector.load %arg27[%c0_227, %c0_228] : memref<64x64xf32, #tpu.memory_space<vmem>>, vector<64x64xf32>
    %c0_229 = arith.constant 0 : index
    %c0_230 = arith.constant 0 : index
    %1027 = vector.load %arg17[%c0_229, %c0_230] : memref<64x96xf32, #tpu.memory_space<vmem>>, vector<64x96xf32>
    %c0_231 = arith.constant 0 : index
    %c0_232 = arith.constant 0 : index
    %1028 = vector.load %arg18[%c0_231, %c0_232] : memref<32x96xf32, #tpu.memory_space<vmem>>, vector<32x96xf32>
    %c0_233 = arith.constant 0 : index
    %c0_234 = arith.constant 0 : index
    %1029 = vector.load %arg19[%c0_233, %c0_234] : memref<1x96xf32, #tpu.memory_space<vmem>>, vector<1x96xf32>
    %c0_235 = arith.constant 0 : index
    %c0_236 = arith.constant 0 : index
    %1030 = vector.load %arg20[%c0_235, %c0_236] : memref<1x96xf32, #tpu.memory_space<vmem>>, vector<1x96xf32>
    %cst_237 = arith.constant dense<0.000000e+00> : vector<64x96xf32>
    %1031 = tpu.matmul %1026, %1027, %cst_237 {dimension_numbers = #tpu.dot_dimension_numbers<[1], [0], [0], [1], [0, 0, 1, 1], [], []>} : vector<64x64xf32>, vector<64x96xf32>, vector<64x96xf32> -> vector<64x96xf32>
    %1032 = vector.broadcast %1029 : vector<1x96xf32> to vector<64x96xf32>
    %1033 = arith.addf %1031, %1032 : vector<64x96xf32>
    %cst_238 = arith.constant 0.000000e+00 : f32
    %1034 = vector.broadcast %cst_238 : f32 to vector<8x32xf32>
    %1035 = vector.extract_strided_slice %1033 {offsets = [0, 0], sizes = [8, 96], strides = [1, 1]} : vector<64x96xf32> to vector<8x96xf32>
    %cst_239 = arith.constant dense<0.000000e+00> : vector<8x96xf32>
    %1036 = tpu.matmul %1034, %1028, %cst_239 {dimension_numbers = #tpu.dot_dimension_numbers<[1], [0], [0], [1], [0, 0, 1, 1], [], []>} : vector<8x32xf32>, vector<32x96xf32>, vector<8x96xf32> -> vector<8x96xf32>
    %1037 = vector.broadcast %1030 : vector<1x96xf32> to vector<8x96xf32>
    %1038 = arith.addf %1036, %1037 : vector<8x96xf32>
    %1039 = vector.extract_strided_slice %1035 {offsets = [0, 0], sizes = [8, 32], strides = [1, 1]} : vector<8x96xf32> to vector<8x32xf32>
    %1040 = vector.extract_strided_slice %1038 {offsets = [0, 0], sizes = [8, 32], strides = [1, 1]} : vector<8x96xf32> to vector<8x32xf32>
    %1041 = arith.addf %1039, %1040 : vector<8x32xf32>
    %1042 = arith.negf %1041 : vector<8x32xf32>
    %1043 = math.exp %1042 : vector<8x32xf32>
    %cst_240 = arith.constant 1.000000e+00 : f32
    %1044 = vector.broadcast %cst_240 : f32 to vector<8x32xf32>
    %1045 = arith.addf %1044, %1043 : vector<8x32xf32>
    %1046 = arith.divf %1044, %1045 : vector<8x32xf32>
    %1047 = vector.extract_strided_slice %1035 {offsets = [0, 32], sizes = [8, 32], strides = [1, 1]} : vector<8x96xf32> to vector<8x32xf32>
    %1048 = vector.extract_strided_slice %1038 {offsets = [0, 32], sizes = [8, 32], strides = [1, 1]} : vector<8x96xf32> to vector<8x32xf32>
    %1049 = arith.addf %1047, %1048 : vector<8x32xf32>
    %1050 = arith.negf %1049 : vector<8x32xf32>
    %1051 = math.exp %1050 : vector<8x32xf32>
    %cst_241 = arith.constant 1.000000e+00 : f32
    %1052 = vector.broadcast %cst_241 : f32 to vector<8x32xf32>
    %1053 = arith.addf %1052, %1051 : vector<8x32xf32>
    %1054 = arith.divf %1052, %1053 : vector<8x32xf32>
    %1055 = vector.extract_strided_slice %1035 {offsets = [0, 64], sizes = [8, 32], strides = [1, 1]} : vector<8x96xf32> to vector<8x32xf32>
    %1056 = vector.extract_strided_slice %1038 {offsets = [0, 64], sizes = [8, 32], strides = [1, 1]} : vector<8x96xf32> to vector<8x32xf32>
    %1057 = arith.mulf %1046, %1056 : vector<8x32xf32>
    %1058 = arith.addf %1055, %1057 : vector<8x32xf32>
    %1059 = math.tanh %1058 : vector<8x32xf32>
    %cst_242 = arith.constant 1.000000e+00 : f32
    %1060 = vector.broadcast %cst_242 : f32 to vector<8x32xf32>
    %1061 = arith.subf %1060, %1054 : vector<8x32xf32>
    %1062 = arith.mulf %1061, %1059 : vector<8x32xf32>
    %1063 = arith.mulf %1054, %1034 : vector<8x32xf32>
    %1064 = arith.addf %1062, %1063 : vector<8x32xf32>
    %1065 = vector.extract_strided_slice %1033 {offsets = [8, 0], sizes = [8, 96], strides = [1, 1]} : vector<64x96xf32> to vector<8x96xf32>
    %cst_243 = arith.constant dense<0.000000e+00> : vector<8x96xf32>
    %1066 = tpu.matmul %1064, %1028, %cst_243 {dimension_numbers = #tpu.dot_dimension_numbers<[1], [0], [0], [1], [0, 0, 1, 1], [], []>} : vector<8x32xf32>, vector<32x96xf32>, vector<8x96xf32> -> vector<8x96xf32>
    %1067 = vector.broadcast %1030 : vector<1x96xf32> to vector<8x96xf32>
    %1068 = arith.addf %1066, %1067 : vector<8x96xf32>
    %1069 = vector.extract_strided_slice %1065 {offsets = [0, 0], sizes = [8, 32], strides = [1, 1]} : vector<8x96xf32> to vector<8x32xf32>
    %1070 = vector.extract_strided_slice %1068 {offsets = [0, 0], sizes = [8, 32], strides = [1, 1]} : vector<8x96xf32> to vector<8x32xf32>
    %1071 = arith.addf %1069, %1070 : vector<8x32xf32>
    %1072 = arith.negf %1071 : vector<8x32xf32>
    %1073 = math.exp %1072 : vector<8x32xf32>
    %cst_244 = arith.constant 1.000000e+00 : f32
    %1074 = vector.broadcast %cst_244 : f32 to vector<8x32xf32>
    %1075 = arith.addf %1074, %1073 : vector<8x32xf32>
    %1076 = arith.divf %1074, %1075 : vector<8x32xf32>
    %1077 = vector.extract_strided_slice %1065 {offsets = [0, 32], sizes = [8, 32], strides = [1, 1]} : vector<8x96xf32> to vector<8x32xf32>
    %1078 = vector.extract_strided_slice %1068 {offsets = [0, 32], sizes = [8, 32], strides = [1, 1]} : vector<8x96xf32> to vector<8x32xf32>
    %1079 = arith.addf %1077, %1078 : vector<8x32xf32>
    %1080 = arith.negf %1079 : vector<8x32xf32>
    %1081 = math.exp %1080 : vector<8x32xf32>
    %cst_245 = arith.constant 1.000000e+00 : f32
    %1082 = vector.broadcast %cst_245 : f32 to vector<8x32xf32>
    %1083 = arith.addf %1082, %1081 : vector<8x32xf32>
    %1084 = arith.divf %1082, %1083 : vector<8x32xf32>
    %1085 = vector.extract_strided_slice %1065 {offsets = [0, 64], sizes = [8, 32], strides = [1, 1]} : vector<8x96xf32> to vector<8x32xf32>
    %1086 = vector.extract_strided_slice %1068 {offsets = [0, 64], sizes = [8, 32], strides = [1, 1]} : vector<8x96xf32> to vector<8x32xf32>
    %1087 = arith.mulf %1076, %1086 : vector<8x32xf32>
    %1088 = arith.addf %1085, %1087 : vector<8x32xf32>
    %1089 = math.tanh %1088 : vector<8x32xf32>
    %cst_246 = arith.constant 1.000000e+00 : f32
    %1090 = vector.broadcast %cst_246 : f32 to vector<8x32xf32>
    %1091 = arith.subf %1090, %1084 : vector<8x32xf32>
    %1092 = arith.mulf %1091, %1089 : vector<8x32xf32>
    %1093 = arith.mulf %1084, %1064 : vector<8x32xf32>
    %1094 = arith.addf %1092, %1093 : vector<8x32xf32>
    %1095 = vector.extract_strided_slice %1033 {offsets = [16, 0], sizes = [8, 96], strides = [1, 1]} : vector<64x96xf32> to vector<8x96xf32>
    %cst_247 = arith.constant dense<0.000000e+00> : vector<8x96xf32>
    %1096 = tpu.matmul %1094, %1028, %cst_247 {dimension_numbers = #tpu.dot_dimension_numbers<[1], [0], [0], [1], [0, 0, 1, 1], [], []>} : vector<8x32xf32>, vector<32x96xf32>, vector<8x96xf32> -> vector<8x96xf32>
    %1097 = vector.broadcast %1030 : vector<1x96xf32> to vector<8x96xf32>
    %1098 = arith.addf %1096, %1097 : vector<8x96xf32>
    %1099 = vector.extract_strided_slice %1095 {offsets = [0, 0], sizes = [8, 32], strides = [1, 1]} : vector<8x96xf32> to vector<8x32xf32>
    %1100 = vector.extract_strided_slice %1098 {offsets = [0, 0], sizes = [8, 32], strides = [1, 1]} : vector<8x96xf32> to vector<8x32xf32>
    %1101 = arith.addf %1099, %1100 : vector<8x32xf32>
    %1102 = arith.negf %1101 : vector<8x32xf32>
    %1103 = math.exp %1102 : vector<8x32xf32>
    %cst_248 = arith.constant 1.000000e+00 : f32
    %1104 = vector.broadcast %cst_248 : f32 to vector<8x32xf32>
    %1105 = arith.addf %1104, %1103 : vector<8x32xf32>
    %1106 = arith.divf %1104, %1105 : vector<8x32xf32>
    %1107 = vector.extract_strided_slice %1095 {offsets = [0, 32], sizes = [8, 32], strides = [1, 1]} : vector<8x96xf32> to vector<8x32xf32>
    %1108 = vector.extract_strided_slice %1098 {offsets = [0, 32], sizes = [8, 32], strides = [1, 1]} : vector<8x96xf32> to vector<8x32xf32>
    %1109 = arith.addf %1107, %1108 : vector<8x32xf32>
    %1110 = arith.negf %1109 : vector<8x32xf32>
    %1111 = math.exp %1110 : vector<8x32xf32>
    %cst_249 = arith.constant 1.000000e+00 : f32
    %1112 = vector.broadcast %cst_249 : f32 to vector<8x32xf32>
    %1113 = arith.addf %1112, %1111 : vector<8x32xf32>
    %1114 = arith.divf %1112, %1113 : vector<8x32xf32>
    %1115 = vector.extract_strided_slice %1095 {offsets = [0, 64], sizes = [8, 32], strides = [1, 1]} : vector<8x96xf32> to vector<8x32xf32>
    %1116 = vector.extract_strided_slice %1098 {offsets = [0, 64], sizes = [8, 32], strides = [1, 1]} : vector<8x96xf32> to vector<8x32xf32>
    %1117 = arith.mulf %1106, %1116 : vector<8x32xf32>
    %1118 = arith.addf %1115, %1117 : vector<8x32xf32>
    %1119 = math.tanh %1118 : vector<8x32xf32>
    %cst_250 = arith.constant 1.000000e+00 : f32
    %1120 = vector.broadcast %cst_250 : f32 to vector<8x32xf32>
    %1121 = arith.subf %1120, %1114 : vector<8x32xf32>
    %1122 = arith.mulf %1121, %1119 : vector<8x32xf32>
    %1123 = arith.mulf %1114, %1094 : vector<8x32xf32>
    %1124 = arith.addf %1122, %1123 : vector<8x32xf32>
    %1125 = vector.extract_strided_slice %1033 {offsets = [24, 0], sizes = [8, 96], strides = [1, 1]} : vector<64x96xf32> to vector<8x96xf32>
    %cst_251 = arith.constant dense<0.000000e+00> : vector<8x96xf32>
    %1126 = tpu.matmul %1124, %1028, %cst_251 {dimension_numbers = #tpu.dot_dimension_numbers<[1], [0], [0], [1], [0, 0, 1, 1], [], []>} : vector<8x32xf32>, vector<32x96xf32>, vector<8x96xf32> -> vector<8x96xf32>
    %1127 = vector.broadcast %1030 : vector<1x96xf32> to vector<8x96xf32>
    %1128 = arith.addf %1126, %1127 : vector<8x96xf32>
    %1129 = vector.extract_strided_slice %1125 {offsets = [0, 0], sizes = [8, 32], strides = [1, 1]} : vector<8x96xf32> to vector<8x32xf32>
    %1130 = vector.extract_strided_slice %1128 {offsets = [0, 0], sizes = [8, 32], strides = [1, 1]} : vector<8x96xf32> to vector<8x32xf32>
    %1131 = arith.addf %1129, %1130 : vector<8x32xf32>
    %1132 = arith.negf %1131 : vector<8x32xf32>
    %1133 = math.exp %1132 : vector<8x32xf32>
    %cst_252 = arith.constant 1.000000e+00 : f32
    %1134 = vector.broadcast %cst_252 : f32 to vector<8x32xf32>
    %1135 = arith.addf %1134, %1133 : vector<8x32xf32>
    %1136 = arith.divf %1134, %1135 : vector<8x32xf32>
    %1137 = vector.extract_strided_slice %1125 {offsets = [0, 32], sizes = [8, 32], strides = [1, 1]} : vector<8x96xf32> to vector<8x32xf32>
    %1138 = vector.extract_strided_slice %1128 {offsets = [0, 32], sizes = [8, 32], strides = [1, 1]} : vector<8x96xf32> to vector<8x32xf32>
    %1139 = arith.addf %1137, %1138 : vector<8x32xf32>
    %1140 = arith.negf %1139 : vector<8x32xf32>
    %1141 = math.exp %1140 : vector<8x32xf32>
    %cst_253 = arith.constant 1.000000e+00 : f32
    %1142 = vector.broadcast %cst_253 : f32 to vector<8x32xf32>
    %1143 = arith.addf %1142, %1141 : vector<8x32xf32>
    %1144 = arith.divf %1142, %1143 : vector<8x32xf32>
    %1145 = vector.extract_strided_slice %1125 {offsets = [0, 64], sizes = [8, 32], strides = [1, 1]} : vector<8x96xf32> to vector<8x32xf32>
    %1146 = vector.extract_strided_slice %1128 {offsets = [0, 64], sizes = [8, 32], strides = [1, 1]} : vector<8x96xf32> to vector<8x32xf32>
    %1147 = arith.mulf %1136, %1146 : vector<8x32xf32>
    %1148 = arith.addf %1145, %1147 : vector<8x32xf32>
    %1149 = math.tanh %1148 : vector<8x32xf32>
    %cst_254 = arith.constant 1.000000e+00 : f32
    %1150 = vector.broadcast %cst_254 : f32 to vector<8x32xf32>
    %1151 = arith.subf %1150, %1144 : vector<8x32xf32>
    %1152 = arith.mulf %1151, %1149 : vector<8x32xf32>
    %1153 = arith.mulf %1144, %1124 : vector<8x32xf32>
    %1154 = arith.addf %1152, %1153 : vector<8x32xf32>
    %1155 = vector.extract_strided_slice %1033 {offsets = [32, 0], sizes = [8, 96], strides = [1, 1]} : vector<64x96xf32> to vector<8x96xf32>
    %cst_255 = arith.constant dense<0.000000e+00> : vector<8x96xf32>
    %1156 = tpu.matmul %1154, %1028, %cst_255 {dimension_numbers = #tpu.dot_dimension_numbers<[1], [0], [0], [1], [0, 0, 1, 1], [], []>} : vector<8x32xf32>, vector<32x96xf32>, vector<8x96xf32> -> vector<8x96xf32>
    %1157 = vector.broadcast %1030 : vector<1x96xf32> to vector<8x96xf32>
    %1158 = arith.addf %1156, %1157 : vector<8x96xf32>
    %1159 = vector.extract_strided_slice %1155 {offsets = [0, 0], sizes = [8, 32], strides = [1, 1]} : vector<8x96xf32> to vector<8x32xf32>
    %1160 = vector.extract_strided_slice %1158 {offsets = [0, 0], sizes = [8, 32], strides = [1, 1]} : vector<8x96xf32> to vector<8x32xf32>
    %1161 = arith.addf %1159, %1160 : vector<8x32xf32>
    %1162 = arith.negf %1161 : vector<8x32xf32>
    %1163 = math.exp %1162 : vector<8x32xf32>
    %cst_256 = arith.constant 1.000000e+00 : f32
    %1164 = vector.broadcast %cst_256 : f32 to vector<8x32xf32>
    %1165 = arith.addf %1164, %1163 : vector<8x32xf32>
    %1166 = arith.divf %1164, %1165 : vector<8x32xf32>
    %1167 = vector.extract_strided_slice %1155 {offsets = [0, 32], sizes = [8, 32], strides = [1, 1]} : vector<8x96xf32> to vector<8x32xf32>
    %1168 = vector.extract_strided_slice %1158 {offsets = [0, 32], sizes = [8, 32], strides = [1, 1]} : vector<8x96xf32> to vector<8x32xf32>
    %1169 = arith.addf %1167, %1168 : vector<8x32xf32>
    %1170 = arith.negf %1169 : vector<8x32xf32>
    %1171 = math.exp %1170 : vector<8x32xf32>
    %cst_257 = arith.constant 1.000000e+00 : f32
    %1172 = vector.broadcast %cst_257 : f32 to vector<8x32xf32>
    %1173 = arith.addf %1172, %1171 : vector<8x32xf32>
    %1174 = arith.divf %1172, %1173 : vector<8x32xf32>
    %1175 = vector.extract_strided_slice %1155 {offsets = [0, 64], sizes = [8, 32], strides = [1, 1]} : vector<8x96xf32> to vector<8x32xf32>
    %1176 = vector.extract_strided_slice %1158 {offsets = [0, 64], sizes = [8, 32], strides = [1, 1]} : vector<8x96xf32> to vector<8x32xf32>
    %1177 = arith.mulf %1166, %1176 : vector<8x32xf32>
    %1178 = arith.addf %1175, %1177 : vector<8x32xf32>
    %1179 = math.tanh %1178 : vector<8x32xf32>
    %cst_258 = arith.constant 1.000000e+00 : f32
    %1180 = vector.broadcast %cst_258 : f32 to vector<8x32xf32>
    %1181 = arith.subf %1180, %1174 : vector<8x32xf32>
    %1182 = arith.mulf %1181, %1179 : vector<8x32xf32>
    %1183 = arith.mulf %1174, %1154 : vector<8x32xf32>
    %1184 = arith.addf %1182, %1183 : vector<8x32xf32>
    %1185 = vector.extract_strided_slice %1033 {offsets = [40, 0], sizes = [8, 96], strides = [1, 1]} : vector<64x96xf32> to vector<8x96xf32>
    %cst_259 = arith.constant dense<0.000000e+00> : vector<8x96xf32>
    %1186 = tpu.matmul %1184, %1028, %cst_259 {dimension_numbers = #tpu.dot_dimension_numbers<[1], [0], [0], [1], [0, 0, 1, 1], [], []>} : vector<8x32xf32>, vector<32x96xf32>, vector<8x96xf32> -> vector<8x96xf32>
    %1187 = vector.broadcast %1030 : vector<1x96xf32> to vector<8x96xf32>
    %1188 = arith.addf %1186, %1187 : vector<8x96xf32>
    %1189 = vector.extract_strided_slice %1185 {offsets = [0, 0], sizes = [8, 32], strides = [1, 1]} : vector<8x96xf32> to vector<8x32xf32>
    %1190 = vector.extract_strided_slice %1188 {offsets = [0, 0], sizes = [8, 32], strides = [1, 1]} : vector<8x96xf32> to vector<8x32xf32>
    %1191 = arith.addf %1189, %1190 : vector<8x32xf32>
    %1192 = arith.negf %1191 : vector<8x32xf32>
    %1193 = math.exp %1192 : vector<8x32xf32>
    %cst_260 = arith.constant 1.000000e+00 : f32
    %1194 = vector.broadcast %cst_260 : f32 to vector<8x32xf32>
    %1195 = arith.addf %1194, %1193 : vector<8x32xf32>
    %1196 = arith.divf %1194, %1195 : vector<8x32xf32>
    %1197 = vector.extract_strided_slice %1185 {offsets = [0, 32], sizes = [8, 32], strides = [1, 1]} : vector<8x96xf32> to vector<8x32xf32>
    %1198 = vector.extract_strided_slice %1188 {offsets = [0, 32], sizes = [8, 32], strides = [1, 1]} : vector<8x96xf32> to vector<8x32xf32>
    %1199 = arith.addf %1197, %1198 : vector<8x32xf32>
    %1200 = arith.negf %1199 : vector<8x32xf32>
    %1201 = math.exp %1200 : vector<8x32xf32>
    %cst_261 = arith.constant 1.000000e+00 : f32
    %1202 = vector.broadcast %cst_261 : f32 to vector<8x32xf32>
    %1203 = arith.addf %1202, %1201 : vector<8x32xf32>
    %1204 = arith.divf %1202, %1203 : vector<8x32xf32>
    %1205 = vector.extract_strided_slice %1185 {offsets = [0, 64], sizes = [8, 32], strides = [1, 1]} : vector<8x96xf32> to vector<8x32xf32>
    %1206 = vector.extract_strided_slice %1188 {offsets = [0, 64], sizes = [8, 32], strides = [1, 1]} : vector<8x96xf32> to vector<8x32xf32>
    %1207 = arith.mulf %1196, %1206 : vector<8x32xf32>
    %1208 = arith.addf %1205, %1207 : vector<8x32xf32>
    %1209 = math.tanh %1208 : vector<8x32xf32>
    %cst_262 = arith.constant 1.000000e+00 : f32
    %1210 = vector.broadcast %cst_262 : f32 to vector<8x32xf32>
    %1211 = arith.subf %1210, %1204 : vector<8x32xf32>
    %1212 = arith.mulf %1211, %1209 : vector<8x32xf32>
    %1213 = arith.mulf %1204, %1184 : vector<8x32xf32>
    %1214 = arith.addf %1212, %1213 : vector<8x32xf32>
    %1215 = vector.extract_strided_slice %1033 {offsets = [48, 0], sizes = [8, 96], strides = [1, 1]} : vector<64x96xf32> to vector<8x96xf32>
    %cst_263 = arith.constant dense<0.000000e+00> : vector<8x96xf32>
    %1216 = tpu.matmul %1214, %1028, %cst_263 {dimension_numbers = #tpu.dot_dimension_numbers<[1], [0], [0], [1], [0, 0, 1, 1], [], []>} : vector<8x32xf32>, vector<32x96xf32>, vector<8x96xf32> -> vector<8x96xf32>
    %1217 = vector.broadcast %1030 : vector<1x96xf32> to vector<8x96xf32>
    %1218 = arith.addf %1216, %1217 : vector<8x96xf32>
    %1219 = vector.extract_strided_slice %1215 {offsets = [0, 0], sizes = [8, 32], strides = [1, 1]} : vector<8x96xf32> to vector<8x32xf32>
    %1220 = vector.extract_strided_slice %1218 {offsets = [0, 0], sizes = [8, 32], strides = [1, 1]} : vector<8x96xf32> to vector<8x32xf32>
    %1221 = arith.addf %1219, %1220 : vector<8x32xf32>
    %1222 = arith.negf %1221 : vector<8x32xf32>
    %1223 = math.exp %1222 : vector<8x32xf32>
    %cst_264 = arith.constant 1.000000e+00 : f32
    %1224 = vector.broadcast %cst_264 : f32 to vector<8x32xf32>
    %1225 = arith.addf %1224, %1223 : vector<8x32xf32>
    %1226 = arith.divf %1224, %1225 : vector<8x32xf32>
    %1227 = vector.extract_strided_slice %1215 {offsets = [0, 32], sizes = [8, 32], strides = [1, 1]} : vector<8x96xf32> to vector<8x32xf32>
    %1228 = vector.extract_strided_slice %1218 {offsets = [0, 32], sizes = [8, 32], strides = [1, 1]} : vector<8x96xf32> to vector<8x32xf32>
    %1229 = arith.addf %1227, %1228 : vector<8x32xf32>
    %1230 = arith.negf %1229 : vector<8x32xf32>
    %1231 = math.exp %1230 : vector<8x32xf32>
    %cst_265 = arith.constant 1.000000e+00 : f32
    %1232 = vector.broadcast %cst_265 : f32 to vector<8x32xf32>
    %1233 = arith.addf %1232, %1231 : vector<8x32xf32>
    %1234 = arith.divf %1232, %1233 : vector<8x32xf32>
    %1235 = vector.extract_strided_slice %1215 {offsets = [0, 64], sizes = [8, 32], strides = [1, 1]} : vector<8x96xf32> to vector<8x32xf32>
    %1236 = vector.extract_strided_slice %1218 {offsets = [0, 64], sizes = [8, 32], strides = [1, 1]} : vector<8x96xf32> to vector<8x32xf32>
    %1237 = arith.mulf %1226, %1236 : vector<8x32xf32>
    %1238 = arith.addf %1235, %1237 : vector<8x32xf32>
    %1239 = math.tanh %1238 : vector<8x32xf32>
    %cst_266 = arith.constant 1.000000e+00 : f32
    %1240 = vector.broadcast %cst_266 : f32 to vector<8x32xf32>
    %1241 = arith.subf %1240, %1234 : vector<8x32xf32>
    %1242 = arith.mulf %1241, %1239 : vector<8x32xf32>
    %1243 = arith.mulf %1234, %1214 : vector<8x32xf32>
    %1244 = arith.addf %1242, %1243 : vector<8x32xf32>
    %1245 = vector.extract_strided_slice %1033 {offsets = [56, 0], sizes = [8, 96], strides = [1, 1]} : vector<64x96xf32> to vector<8x96xf32>
    %cst_267 = arith.constant dense<0.000000e+00> : vector<8x96xf32>
    %1246 = tpu.matmul %1244, %1028, %cst_267 {dimension_numbers = #tpu.dot_dimension_numbers<[1], [0], [0], [1], [0, 0, 1, 1], [], []>} : vector<8x32xf32>, vector<32x96xf32>, vector<8x96xf32> -> vector<8x96xf32>
    %1247 = vector.broadcast %1030 : vector<1x96xf32> to vector<8x96xf32>
    %1248 = arith.addf %1246, %1247 : vector<8x96xf32>
    %1249 = vector.extract_strided_slice %1245 {offsets = [0, 0], sizes = [8, 32], strides = [1, 1]} : vector<8x96xf32> to vector<8x32xf32>
    %1250 = vector.extract_strided_slice %1248 {offsets = [0, 0], sizes = [8, 32], strides = [1, 1]} : vector<8x96xf32> to vector<8x32xf32>
    %1251 = arith.addf %1249, %1250 : vector<8x32xf32>
    %1252 = arith.negf %1251 : vector<8x32xf32>
    %1253 = math.exp %1252 : vector<8x32xf32>
    %cst_268 = arith.constant 1.000000e+00 : f32
    %1254 = vector.broadcast %cst_268 : f32 to vector<8x32xf32>
    %1255 = arith.addf %1254, %1253 : vector<8x32xf32>
    %1256 = arith.divf %1254, %1255 : vector<8x32xf32>
    %1257 = vector.extract_strided_slice %1245 {offsets = [0, 32], sizes = [8, 32], strides = [1, 1]} : vector<8x96xf32> to vector<8x32xf32>
    %1258 = vector.extract_strided_slice %1248 {offsets = [0, 32], sizes = [8, 32], strides = [1, 1]} : vector<8x96xf32> to vector<8x32xf32>
    %1259 = arith.addf %1257, %1258 : vector<8x32xf32>
    %1260 = arith.negf %1259 : vector<8x32xf32>
    %1261 = math.exp %1260 : vector<8x32xf32>
    %cst_269 = arith.constant 1.000000e+00 : f32
    %1262 = vector.broadcast %cst_269 : f32 to vector<8x32xf32>
    %1263 = arith.addf %1262, %1261 : vector<8x32xf32>
    %1264 = arith.divf %1262, %1263 : vector<8x32xf32>
    %1265 = vector.extract_strided_slice %1245 {offsets = [0, 64], sizes = [8, 32], strides = [1, 1]} : vector<8x96xf32> to vector<8x32xf32>
    %1266 = vector.extract_strided_slice %1248 {offsets = [0, 64], sizes = [8, 32], strides = [1, 1]} : vector<8x96xf32> to vector<8x32xf32>
    %1267 = arith.mulf %1256, %1266 : vector<8x32xf32>
    %1268 = arith.addf %1265, %1267 : vector<8x32xf32>
    %1269 = math.tanh %1268 : vector<8x32xf32>
    %cst_270 = arith.constant 1.000000e+00 : f32
    %1270 = vector.broadcast %cst_270 : f32 to vector<8x32xf32>
    %1271 = arith.subf %1270, %1264 : vector<8x32xf32>
    %1272 = arith.mulf %1271, %1269 : vector<8x32xf32>
    %1273 = arith.mulf %1264, %1244 : vector<8x32xf32>
    %1274 = arith.addf %1272, %1273 : vector<8x32xf32>
    %c0_271 = arith.constant 0 : index
    %c0_272 = arith.constant 0 : index
    %1275 = vector.load %arg21[%c0_271, %c0_272] : memref<64x96xf32, #tpu.memory_space<vmem>>, vector<64x96xf32>
    %c0_273 = arith.constant 0 : index
    %c0_274 = arith.constant 0 : index
    %1276 = vector.load %arg22[%c0_273, %c0_274] : memref<32x96xf32, #tpu.memory_space<vmem>>, vector<32x96xf32>
    %c0_275 = arith.constant 0 : index
    %c0_276 = arith.constant 0 : index
    %1277 = vector.load %arg23[%c0_275, %c0_276] : memref<1x96xf32, #tpu.memory_space<vmem>>, vector<1x96xf32>
    %c0_277 = arith.constant 0 : index
    %c0_278 = arith.constant 0 : index
    %1278 = vector.load %arg24[%c0_277, %c0_278] : memref<1x96xf32, #tpu.memory_space<vmem>>, vector<1x96xf32>
    %1279 = vector.extract_strided_slice %1026 {offsets = [56, 0], sizes = [8, 64], strides = [1, 1]} : vector<64x64xf32> to vector<8x64xf32>
    %cst_279 = arith.constant dense<0.000000e+00> : vector<8x96xf32>
    %1280 = tpu.matmul %1279, %1275, %cst_279 {dimension_numbers = #tpu.dot_dimension_numbers<[1], [0], [0], [1], [0, 0, 1, 1], [], []>} : vector<8x64xf32>, vector<64x96xf32>, vector<8x96xf32> -> vector<8x96xf32>
    %1281 = vector.broadcast %1277 : vector<1x96xf32> to vector<8x96xf32>
    %1282 = arith.addf %1280, %1281 : vector<8x96xf32>
    %cst_280 = arith.constant 0.000000e+00 : f32
    %1283 = vector.broadcast %cst_280 : f32 to vector<8x32xf32>
    %cst_281 = arith.constant dense<0.000000e+00> : vector<8x96xf32>
    %1284 = tpu.matmul %1283, %1276, %cst_281 {dimension_numbers = #tpu.dot_dimension_numbers<[1], [0], [0], [1], [0, 0, 1, 1], [], []>} : vector<8x32xf32>, vector<32x96xf32>, vector<8x96xf32> -> vector<8x96xf32>
    %1285 = vector.broadcast %1278 : vector<1x96xf32> to vector<8x96xf32>
    %1286 = arith.addf %1284, %1285 : vector<8x96xf32>
    %1287 = vector.extract_strided_slice %1282 {offsets = [0, 0], sizes = [8, 32], strides = [1, 1]} : vector<8x96xf32> to vector<8x32xf32>
    %1288 = vector.extract_strided_slice %1286 {offsets = [0, 0], sizes = [8, 32], strides = [1, 1]} : vector<8x96xf32> to vector<8x32xf32>
    %1289 = arith.addf %1287, %1288 : vector<8x32xf32>
    %1290 = arith.negf %1289 : vector<8x32xf32>
    %1291 = math.exp %1290 : vector<8x32xf32>
    %cst_282 = arith.constant 1.000000e+00 : f32
    %1292 = vector.broadcast %cst_282 : f32 to vector<8x32xf32>
    %1293 = arith.addf %1292, %1291 : vector<8x32xf32>
    %1294 = arith.divf %1292, %1293 : vector<8x32xf32>
    %1295 = vector.extract_strided_slice %1282 {offsets = [0, 32], sizes = [8, 32], strides = [1, 1]} : vector<8x96xf32> to vector<8x32xf32>
    %1296 = vector.extract_strided_slice %1286 {offsets = [0, 32], sizes = [8, 32], strides = [1, 1]} : vector<8x96xf32> to vector<8x32xf32>
    %1297 = arith.addf %1295, %1296 : vector<8x32xf32>
    %1298 = arith.negf %1297 : vector<8x32xf32>
    %1299 = math.exp %1298 : vector<8x32xf32>
    %cst_283 = arith.constant 1.000000e+00 : f32
    %1300 = vector.broadcast %cst_283 : f32 to vector<8x32xf32>
    %1301 = arith.addf %1300, %1299 : vector<8x32xf32>
    %1302 = arith.divf %1300, %1301 : vector<8x32xf32>
    %1303 = vector.extract_strided_slice %1282 {offsets = [0, 64], sizes = [8, 32], strides = [1, 1]} : vector<8x96xf32> to vector<8x32xf32>
    %1304 = vector.extract_strided_slice %1286 {offsets = [0, 64], sizes = [8, 32], strides = [1, 1]} : vector<8x96xf32> to vector<8x32xf32>
    %1305 = arith.mulf %1294, %1304 : vector<8x32xf32>
    %1306 = arith.addf %1303, %1305 : vector<8x32xf32>
    %1307 = math.tanh %1306 : vector<8x32xf32>
    %cst_284 = arith.constant 1.000000e+00 : f32
    %1308 = vector.broadcast %cst_284 : f32 to vector<8x32xf32>
    %1309 = arith.subf %1308, %1302 : vector<8x32xf32>
    %1310 = arith.mulf %1309, %1307 : vector<8x32xf32>
    %1311 = arith.mulf %1302, %1283 : vector<8x32xf32>
    %1312 = arith.addf %1310, %1311 : vector<8x32xf32>
    %1313 = tpu.concatenate %1274, %1312 in 1 : vector<8x32xf32>, vector<8x32xf32> -> vector<8x64xf32>
    %c0_285 = arith.constant 0 : index
    %c0_286 = arith.constant 0 : index
    %1314 = vector.load %arg25[%c0_285, %c0_286] : memref<8x64xf32, #tpu.memory_space<vmem>>, vector<8x64xf32>
    tpu.vector_store %arg25[%c0_285, %c0_286], %1313 {strides = array<i32>} : memref<8x64xf32, #tpu.memory_space<vmem>>, vector<8x64xf32>,
    return
  }
}

</mosaic_0001>

<llo_original>
// kernel: sirna_forward.1
$region0: #{sirna_forward.1}
  #allocation0 [shape = 'u32[]', space=smem, size = 0x4, offset = 0x4, fixed_abs, tag = 'smem constant byte address 0x4 - core index']
  #allocation1 [shape = 'u32[144,128]{1,0:T(1,128)}', space=vmem, size = 0x12000, scoped, tag = 'internal scratch']
  #allocation2 [shape = 'f32[64,64]{1,0:T(8,128)}', space=vmem, size = 0x8000, scoped, tag = 'scratch operand']
  #allocation3 [shape = 'f32[64,64]{1,0:T(8,128)}', space=vmem, size = 0x8000, scoped, tag = 'scratch operand']
  %s0 = inlined_call_operand.vmem [shape: f32[64,32], index: 0, kind: input, shape index: {}]
  %s1 = inlined_call_operand.vmem [shape: f32[32,96], index: 1, kind: input, shape index: {}]
  %s2 = inlined_call_operand.vmem [shape: f32[32,96], index: 2, kind: input, shape index: {}]
  %s3 = inlined_call_operand.vmem [shape: f32[1,96], index: 3, kind: input, shape index: {}]
  %s4 = inlined_call_operand.vmem [shape: f32[1,96], index: 4, kind: input, shape index: {}]
  %s5 = inlined_call_operand.vmem [shape: f32[32,96], index: 5, kind: input, shape index: {}]
  %s6 = inlined_call_operand.vmem [shape: f32[32,96], index: 6, kind: input, shape index: {}]
  %s7 = inlined_call_operand.vmem [shape: f32[1,96], index: 7, kind: input, shape index: {}]
  %s8 = inlined_call_operand.vmem [shape: f32[1,96], index: 8, kind: input, shape index: {}]
  %s9 = inlined_call_operand.vmem [shape: f32[64,96], index: 9, kind: input, shape index: {}]
  %s10 = inlined_call_operand.vmem [shape: f32[32,96], index: 10, kind: input, shape index: {}]
  %s11 = inlined_call_operand.vmem [shape: f32[1,96], index: 11, kind: input, shape index: {}]
  %s12 = inlined_call_operand.vmem [shape: f32[1,96], index: 12, kind: input, shape index: {}]
  %s13 = inlined_call_operand.vmem [shape: f32[64,96], index: 13, kind: input, shape index: {}]
  %s14 = inlined_call_operand.vmem [shape: f32[32,96], index: 14, kind: input, shape index: {}]
  %s15 = inlined_call_operand.vmem [shape: f32[1,96], index: 15, kind: input, shape index: {}]
  %s16 = inlined_call_operand.vmem [shape: f32[1,96], index: 16, kind: input, shape index: {}]
  %s17 = inlined_call_operand.vmem [shape: f32[64,96], index: 17, kind: input, shape index: {}]
  %s18 = inlined_call_operand.vmem [shape: f32[32,96], index: 18, kind: input, shape index: {}]
  %s19 = inlined_call_operand.vmem [shape: f32[1,96], index: 19, kind: input, shape index: {}]
  %s20 = inlined_call_operand.vmem [shape: f32[1,96], index: 20, kind: input, shape index: {}]
  %s21 = inlined_call_operand.vmem [shape: f32[64,96], index: 21, kind: input, shape index: {}]
  %s22 = inlined_call_operand.vmem [shape: f32[32,96], index: 22, kind: input, shape index: {}]
  %s23 = inlined_call_operand.vmem [shape: f32[1,96], index: 23, kind: input, shape index: {}]
  %s24 = inlined_call_operand.vmem [shape: f32[1,96], index: 24, kind: input, shape index: {}]
  %s25 = inlined_call_operand.vmem [shape: f32[8,64], index: 25, kind: output, shape index: {}]
  %s26 = sld [smem:[#allocation0]]
  $region110: #{sirna_forward.1} parent=0
    _
  %s28 = ssub.s32 1, %s26
  %s29 = scalar_select 0, %s28, %s26
  // Predicated region
  $region2: #{sirna_forward.1} parent=0 // pred_check
    _
  $region3: #{sirna_forward.1} parent=0 // pred_check_branch
    %31 = sbr.rel (0) target = $region5
  $region4: #{sirna_forward.1} parent=0 // pred_region
    _
  $region5: #{sirna_forward.1} parent=0 // pred_fallthru
    _
  // Predicated region
  $region6: #{sirna_forward.1} parent=0 // pred_check
    _
  $region7: #{sirna_forward.1} parent=0 // pred_check_branch
    %33 = sbr.rel (0) target = $region9
  $region8: #{sirna_forward.1} parent=0 // pred_region
    _
  $region9: #{sirna_forward.1} parent=0 // pred_fallthru
    _
  // Predicated region
  $region10: #{sirna_forward.1} parent=0 // pred_check
    _
  $region11: #{sirna_forward.1} parent=0 // pred_check_branch
    %35 = sbr.rel (0) target = $region13
  $region12: #{sirna_forward.1} parent=0 // pred_region
    _
  $region13: #{sirna_forward.1} parent=0 // pred_fallthru
    _
  // Predicated region
  $region14: #{sirna_forward.1} parent=0 // pred_check
    _
  $region15: #{sirna_forward.1} parent=0 // pred_check_branch
    %37 = sbr.rel (0) target = $region17
  $region16: #{sirna_forward.1} parent=0 // pred_region
    _
  $region17: #{sirna_forward.1} parent=0 // pred_fallthru
    _
  // Predicated region
  $region18: #{sirna_forward.1} parent=0 // pred_check
    _
  $region19: #{sirna_forward.1} parent=0 // pred_check_branch
    %39 = sbr.rel (0) target = $region21
  $region20: #{sirna_forward.1} parent=0 // pred_region
    _
  $region21: #{sirna_forward.1} parent=0 // pred_fallthru
    _
  // Predicated region
  $region22: #{sirna_forward.1} parent=0 // pred_check
    _
  $region23: #{sirna_forward.1} parent=0 // pred_check_branch
    %41 = sbr.rel (0) target = $region25
  $region24: #{sirna_forward.1} parent=0 // pred_region
    _
  $region25: #{sirna_forward.1} parent=0 // pred_fallthru
    _
  // Predicated region
  $region26: #{sirna_forward.1} parent=0 // pred_check
    _
  $region27: #{sirna_forward.1} parent=0 // pred_check_branch
    %43 = sbr.rel (0) target = $region29
  $region28: #{sirna_forward.1} parent=0 // pred_region
    _
  $region29: #{sirna_forward.1} parent=0 // pred_fallthru
    _
  // Predicated region
  $region30: #{sirna_forward.1} parent=0 // pred_check
    _
  $region31: #{sirna_forward.1} parent=0 // pred_check_branch
    %45 = sbr.rel (0) target = $region33
  $region32: #{sirna_forward.1} parent=0 // pred_region
    _
  $region33: #{sirna_forward.1} parent=0 // pred_fallthru
    _
  // Predicated region
  $region34: #{sirna_forward.1} parent=0 // pred_check
    _
  $region35: #{sirna_forward.1} parent=0 // pred_check_branch
    %47 = sbr.rel (0) target = $region37
  $region36: #{sirna_forward.1} parent=0 // pred_region
    _
  $region37: #{sirna_forward.1} parent=0 // pred_fallthru
    _
  // Predicated region
  $region38: #{sirna_forward.1} parent=0 // pred_check
    _
  $region39: #{sirna_forward.1} parent=0 // pred_check_branch
    %49 = sbr.rel (0) target = $region41
  $region40: #{sirna_forward.1} parent=0 // pred_region
    _
  $region41: #{sirna_forward.1} parent=0 // pred_fallthru
    _
  // Predicated region
  $region42: #{sirna_forward.1} parent=0 // pred_check
    _
  $region43: #{sirna_forward.1} parent=0 // pred_check_branch
    %51 = sbr.rel (0) target = $region45
  $region44: #{sirna_forward.1} parent=0 // pred_region
    _
  $region45: #{sirna_forward.1} parent=0 // pred_fallthru
    _
  // Predicated region
  $region46: #{sirna_forward.1} parent=0 // pred_check
    _
  $region47: #{sirna_forward.1} parent=0 // pred_check_branch
    %53 = sbr.rel (0) target = $region49
  $region48: #{sirna_forward.1} parent=0 // pred_region
    _
  $region49: #{sirna_forward.1} parent=0 // pred_fallthru
    _
  // Predicated region
  $region50: #{sirna_forward.1} parent=0 // pred_check
    _
  $region51: #{sirna_forward.1} parent=0 // pred_check_branch
    %55 = sbr.rel (0) target = $region53
  $region52: #{sirna_forward.1} parent=0 // pred_region
    _
  $region53: #{sirna_forward.1} parent=0 // pred_fallthru
    _
  // Predicated region
  $region54: #{sirna_forward.1} parent=0 // pred_check
    _
  $region55: #{sirna_forward.1} parent=0 // pred_check_branch
    %57 = sbr.rel (0) target = $region57
  $region56: #{sirna_forward.1} parent=0 // pred_region
    _
  $region57: #{sirna_forward.1} parent=0 // pred_fallthru
    _
  // Predicated region
  $region58: #{sirna_forward.1} parent=0 // pred_check
    _
  $region59: #{sirna_forward.1} parent=0 // pred_check_branch
    %59 = sbr.rel (0) target = $region61
  $region60: #{sirna_forward.1} parent=0 // pred_region
    _
  $region61: #{sirna_forward.1} parent=0 // pred_fallthru
    _
  // Predicated region
  $region62: #{sirna_forward.1} parent=0 // pred_check
    _
  $region63: #{sirna_forward.1} parent=0 // pred_check_branch
    %61 = sbr.rel (0) target = $region65
  $region64: #{sirna_forward.1} parent=0 // pred_region
    _
  $region65: #{sirna_forward.1} parent=0 // pred_fallthru
    _
  // Predicated region
  $region66: #{sirna_forward.1} parent=0 // pred_check
    _
  $region67: #{sirna_forward.1} parent=0 // pred_check_branch
    %63 = sbr.rel (0) target = $region69
  $region68: #{sirna_forward.1} parent=0 // pred_region
    _
  $region69: #{sirna_forward.1} parent=0 // pred_fallthru
    _
  // Predicated region
  $region70: #{sirna_forward.1} parent=0 // pred_check
    _
  $region71: #{sirna_forward.1} parent=0 // pred_check_branch
    %65 = sbr.rel (0) target = $region73
  $region72: #{sirna_forward.1} parent=0 // pred_region
    _
  $region73: #{sirna_forward.1} parent=0 // pred_fallthru
    _
  // Predicated region
  $region74: #{sirna_forward.1} parent=0 // pred_check
    _
  $region75: #{sirna_forward.1} parent=0 // pred_check_branch
    %67 = sbr.rel (0) target = $region77
  $region76: #{sirna_forward.1} parent=0 // pred_region
    _
  $region77: #{sirna_forward.1} parent=0 // pred_fallthru
    _
  // Predicated region
  $region78: #{sirna_forward.1} parent=0 // pred_check
    _
  $region79: #{sirna_forward.1} parent=0 // pred_check_branch
    %69 = sbr.rel (0) target = $region81
  $region80: #{sirna_forward.1} parent=0 // pred_region
    _
  $region81: #{sirna_forward.1} parent=0 // pred_fallthru
    _
  // Predicated region
  $region82: #{sirna_forward.1} parent=0 // pred_check
    _
  $region83: #{sirna_forward.1} parent=0 // pred_check_branch
    %71 = sbr.rel (0) target = $region85
  $region84: #{sirna_forward.1} parent=0 // pred_region
    _
  $region85: #{sirna_forward.1} parent=0 // pred_fallthru
    _
  // Predicated region
  $region86: #{sirna_forward.1} parent=0 // pred_check
    _
  $region87: #{sirna_forward.1} parent=0 // pred_check_branch
    %73 = sbr.rel (0) target = $region89
  $region88: #{sirna_forward.1} parent=0 // pred_region
    _
  $region89: #{sirna_forward.1} parent=0 // pred_fallthru
    _
  // Predicated region
  $region90: #{sirna_forward.1} parent=0 // pred_check
    _
  $region91: #{sirna_forward.1} parent=0 // pred_check_branch
    %75 = sbr.rel (0) target = $region93
  $region92: #{sirna_forward.1} parent=0 // pred_region
    _
  $region93: #{sirna_forward.1} parent=0 // pred_fallthru
    _
  // Predicated region
  $region94: #{sirna_forward.1} parent=0 // pred_check
    _
  $region95: #{sirna_forward.1} parent=0 // pred_check_branch
    %77 = sbr.rel (0) target = $region97
  $region96: #{sirna_forward.1} parent=0 // pred_region
    _
  $region97: #{sirna_forward.1} parent=0 // pred_fallthru
    _
  // Predicated region
  $region98: #{sirna_forward.1} parent=0 // pred_check
    _
  $region99: #{sirna_forward.1} parent=0 // pred_check_branch
    %79 = sbr.rel (0) target = $region101
  $region100: #{sirna_forward.1} parent=0 // pred_region
    _
  $region101: #{sirna_forward.1} parent=0 // pred_fallthru
    _
  %v80 = vld [vmem:[%s0] sm:$0xff]
  %v81 = vld [vmem:[%s0 + $0x8] sm:$0xff]
  %v82 = vld [vmem:[%s0 + $0x10] sm:$0xff]
  %v83 = vld [vmem:[%s0 + $0x18] sm:$0xff]
  %v84 = vld [vmem:[%s0 + $0x20] sm:$0xff]
  %v85 = vld [vmem:[%s0 + $0x28] sm:$0xff]
  %v86 = vld [vmem:[%s0 + $0x30] sm:$0xff]
  %v87 = vld [vmem:[%s0 + $0x38] sm:$0xff]
  %v88 = vld [vmem:[%s1] sm:$0xff]
  %v89 = vld [vmem:[%s1 + $0x8] sm:$0xff]
  %v90 = vld [vmem:[%s1 + $0x10] sm:$0xff]
  %v91 = vld [vmem:[%s1 + $0x18] sm:$0xff]
  %v92 = vld [vmem:[%s2] sm:$0xff]
  %v93 = vld [vmem:[%s2 + $0x8] sm:$0xff]
  %v94 = vld [vmem:[%s2 + $0x10] sm:$0xff]
  %v95 = vld [vmem:[%s2 + $0x18] sm:$0xff]
  %v96 = vld [vmem:[%s3] sm:$0x1]
  %v97 = vld [vmem:[%s4] sm:$0x1]
  %v99 = vlaneseq
  %v100 = vshrl.u32 %v99, 7
  %v101 = vsub.s32 0, %v100
  %v102 = vrot.slane %v96, %v101
  %vm104 = vcmask 261120
  %v106 = vsel %vm104, %v80, 0
  %v109 = vsel %vm104, %v81, 0
  %v112 = vsel %vm104, %v82, 0
  %v115 = vsel %vm104, %v83, 0
  %v118 = vsel %vm104, %v84, 0
  %v121 = vsel %vm104, %v85, 0
  %v124 = vsel %vm104, %v86, 0
  %v127 = vsel %vm104, %v87, 0
  %129 = vmatprep.subr.mxu0 0.0
  %130 = vmatpush1.msra.mxu0 0.0
  %131 = vmatprep.subr.mxu0 0.0
  %132 = vmatpush1.msra.mxu0 0.0
  %133 = vmatprep.subr.mxu0 0.0
  %134 = vmatpush1.msra.mxu0 0.0
  %135 = vmatprep.subr.mxu0 0.0
  %136 = vmatpush1.msra.mxu0 0.0
  %137 = vmatprep.subr.mxu0 0.0
  %138 = vmatpush1.msra.mxu0 0.0
  %139 = vmatprep.subr.mxu0 0.0
  %140 = vmatpush1.msra.mxu0 0.0
  %141 = vmatprep.subr.mxu0 0.0
  %142 = vmatpush1.msra.mxu0 0.0
  %143 = vmatprep.subr.mxu0 0.0
  %144 = vmatpush1.msra.mxu0 0.0
  %145 = vmatprep.subr.mxu0 0.0
  %146 = vmatpush1.msra.mxu0 0.0
  %147 = vmatprep.subr.mxu0 0.0
  %148 = vmatpush1.msra.mxu0 0.0
  %149 = vmatprep.subr.mxu0 0.0
  %150 = vmatpush1.msra.mxu0 0.0
  %151 = vmatprep.subr.mxu0 0.0
  %152 = vmatpush1.msra.mxu0 0.0
  %153 = vmatprep.subr.mxu0 0.0
  %154 = vmatpush1.msra.mxu0 %v91
  %155 = vmatprep.subr.mxu0 0.0
  %156 = vmatpush1.msra.mxu0 %v90
  %157 = vmatprep.subr.mxu0 0.0
  %158 = vmatpush1.msra.mxu0 %v89
  %159 = vmatprep.subr.mxu0 0.0
  %160 = vmatpush1.msra.mxu0 %v88
  %161 = vmatprep.subr.mxu0 0.0
  %162 = vmatpush2.msra.mxu0 0.0
  %163 = vmatprep.subr.mxu0 0.0
  %164 = vmatpush2.msra.mxu0 0.0
  %165 = vmatprep.subr.mxu0 0.0
  %166 = vmatpush2.msra.mxu0 0.0
  %167 = vmatprep.subr.mxu0 0.0
  %168 = vmatpush2.msra.mxu0 0.0
  %169 = vmatprep.subr.mxu0 0.0
  %170 = vmatpush2.msra.mxu0 0.0
  %171 = vmatprep.subr.mxu0 0.0
  %172 = vmatpush2.msra.mxu0 0.0
  %173 = vmatprep.subr.mxu0 0.0
  %174 = vmatpush2.msra.mxu0 0.0
  %175 = vmatprep.subr.mxu0 0.0
  %176 = vmatpush2.msra.mxu0 0.0
  %177 = vmatprep.subr.mxu0 0.0
  %178 = vmatpush2.msra.mxu0 0.0
  %179 = vmatprep.subr.mxu0 0.0
  %180 = vmatpush2.msra.mxu0 0.0
  %181 = vmatprep.subr.mxu0 0.0
  %182 = vmatpush2.msra.mxu0 0.0
  %183 = vmatprep.subr.mxu0 0.0
  %184 = vmatpush2.msra.mxu0 0.0
  %185 = vmatprep.subr.mxu0 0.0
  %186 = vmatpush2.msra.mxu0 0.0
  %187 = vmatprep.subr.mxu0 0.0
  %188 = vmatpush2.msra.mxu0 0.0
  %189 = vmatprep.subr.mxu0 0.0
  %190 = vmatpush2.msra.mxu0 0.0
  %191 = vmatprep.subr.mxu0 0.0
  %192 = vmatpush2.msra.mxu0 0.0
  %193 = vmatprep.mubr.f32.mxu0 0.0
  %194 = vmatmul.mubr.f32.gmra.mxu0 %v106
  %v195 = vpop.f32.mrf.mxu0
  %v196 = vadd.f32 %v102, %v195
  %v197 = vpop.f32.mrf.mxu0
  %198 = vmatprep.mubr.f32.mxu0 0.0
  %199 = vmatmul.mubr.f32.gmra.mxu0 %v109
  %v200 = vpop.f32.mrf.mxu0
  %v201 = vadd.f32 %v102, %v200
  %v202 = vpop.f32.mrf.mxu0
  %203 = vmatprep.mubr.f32.mxu0 0.0
  %204 = vmatmul.mubr.f32.gmra.mxu0 %v112
  %v205 = vpop.f32.mrf.mxu0
  %v206 = vadd.f32 %v102, %v205
  %v207 = vpop.f32.mrf.mxu0
  %208 = vmatprep.mubr.f32.mxu0 0.0
  %209 = vmatmul.mubr.f32.gmra.mxu0 %v115
  %v210 = vpop.f32.mrf.mxu0
  %v211 = vadd.f32 %v102, %v210
  %v212 = vpop.f32.mrf.mxu0
  %213 = vmatprep.mubr.f32.mxu0 0.0
  %214 = vmatmul.mubr.f32.gmra.mxu0 %v118
  %v215 = vpop.f32.mrf.mxu0
  %v216 = vadd.f32 %v102, %v215
  %v217 = vpop.f32.mrf.mxu0
  %218 = vmatprep.mubr.f32.mxu0 0.0
  %219 = vmatmul.mubr.f32.gmra.mxu0 %v121
  %v220 = vpop.f32.mrf.mxu0
  %v221 = vadd.f32 %v102, %v220
  %v222 = vpop.f32.mrf.mxu0
  %223 = vmatprep.mubr.f32.mxu0 0.0
  %224 = vmatmul.mubr.f32.gmra.mxu0 %v124
  %v225 = vpop.f32.mrf.mxu0
  %v226 = vadd.f32 %v102, %v225
  %v227 = vpop.f32.mrf.mxu0
  %228 = vmatprep.mubr.f32.mxu0 0.0
  %229 = vmatmul.mubr.f32.gmra.mxu0 %v127
  %v230 = vpop.f32.mrf.mxu0
  %v231 = vadd.f32 %v102, %v230
  %v232 = vpop.f32.mrf.mxu0
  %233 = vdwg.mxu0
  %v235 = vlaneseq
  %v236 = vshrl.u32 %v235, 7
  %v237 = vsub.s32 0, %v236
  %v238 = vrot.slane %v97, %v237
  %v241 = vsel %vm104, 0.0, 0
  %243 = vmatprep.subr.mxu0 0.0
  %244 = vmatpush1.msra.mxu0 0.0
  %245 = vmatprep.subr.mxu0 0.0
  %246 = vmatpush1.msra.mxu0 0.0
  %247 = vmatprep.subr.mxu0 0.0
  %248 = vmatpush1.msra.mxu0 0.0
  %249 = vmatprep.subr.mxu0 0.0
  %250 = vmatpush1.msra.mxu0 0.0
  %251 = vmatprep.subr.mxu0 0.0
  %252 = vmatpush1.msra.mxu0 0.0
  %253 = vmatprep.subr.mxu0 0.0
  %254 = vmatpush1.msra.mxu0 0.0
  %255 = vmatprep.subr.mxu0 0.0
  %256 = vmatpush1.msra.mxu0 0.0
  %257 = vmatprep.subr.mxu0 0.0
  %258 = vmatpush1.msra.mxu0 0.0
  %259 = vmatprep.subr.mxu0 0.0
  %260 = vmatpush1.msra.mxu0 0.0
  %261 = vmatprep.subr.mxu0 0.0
  %262 = vmatpush1.msra.mxu0 0.0
  %263 = vmatprep.subr.mxu0 0.0
  %264 = vmatpush1.msra.mxu0 0.0
  %265 = vmatprep.subr.mxu0 0.0
  %266 = vmatpush1.msra.mxu0 0.0
  %267 = vmatprep.subr.mxu0 0.0
  %268 = vmatpush1.msra.mxu0 %v95
  %269 = vmatprep.subr.mxu0 0.0
  %270 = vmatpush1.msra.mxu0 %v94
  %271 = vmatprep.subr.mxu0 0.0
  %272 = vmatpush1.msra.mxu0 %v93
  %273 = vmatprep.subr.mxu0 0.0
  %274 = vmatpush1.msra.mxu0 %v92
  %275 = vmatprep.subr.mxu0 0.0
  %276 = vmatpush2.msra.mxu0 0.0
  %277 = vmatprep.subr.mxu0 0.0
  %278 = vmatpush2.msra.mxu0 0.0
  %279 = vmatprep.subr.mxu0 0.0
  %280 = vmatpush2.msra.mxu0 0.0
  %281 = vmatprep.subr.mxu0 0.0
  %282 = vmatpush2.msra.mxu0 0.0
  %283 = vmatprep.subr.mxu0 0.0
  %284 = vmatpush2.msra.mxu0 0.0
  %285 = vmatprep.subr.mxu0 0.0
  %286 = vmatpush2.msra.mxu0 0.0
  %287 = vmatprep.subr.mxu0 0.0
  %288 = vmatpush2.msra.mxu0 0.0
  %289 = vmatprep.subr.mxu0 0.0
  %290 = vmatpush2.msra.mxu0 0.0
  %291 = vmatprep.subr.mxu0 0.0
  %292 = vmatpush2.msra.mxu0 0.0
  %293 = vmatprep.subr.mxu0 0.0
  %294 = vmatpush2.msra.mxu0 0.0
  %295 = vmatprep.subr.mxu0 0.0
  %296 = vmatpush2.msra.mxu0 0.0
  %297 = vmatprep.subr.mxu0 0.0
  %298 = vmatpush2.msra.mxu0 0.0
  %299 = vmatprep.subr.mxu0 0.0
  %300 = vmatpush2.msra.mxu0 0.0
  %301 = vmatprep.subr.mxu0 0.0
  %302 = vmatpush2.msra.mxu0 0.0
  %303 = vmatprep.subr.mxu0 0.0
  %304 = vmatpush2.msra.mxu0 0.0
  %305 = vmatprep.subr.mxu0 0.0
  %306 = vmatpush2.msra.mxu0 0.0
  %307 = vmatprep.mubr.f32.mxu0 0.0
  %308 = vmatmul.mubr.f32.gmra.mxu0 %v241
  %v309 = vpop.f32.mrf.mxu0
  %v310 = vadd.f32 %v238, %v309
  %v311 = vpop.f32.mrf.mxu0
  %312 = vdwg.mxu0
  %v313 = vadd.f32 %v196, %v310
  %v314 = vxor.u32 %v313, 2147483648
  %v315 = vmul.f32 %v314, 1.442695
  %v316 = vpow.pop %v315
  %v317 = vadd.f32 %v316, 1.0
  %v318 = vrcp.pop %v317
  %v319 = vmul.f32 1.0, %v318
  %321 = vrot.lane.b32.xlu0 %v310, 64
  %v322 = vpop.permute.xlu0 %321
  %v324 = vmul.f32 %v319, %v322
  %326 = vrot.lane.b32.xlu0 %v324, 64
  %v327 = vpop.permute.xlu0 %326
  %v329 = vadd.f32 %v196, %v327
  %v330 = vtanh.pop %v329
  %v331 = vsub.f32 1.0, %v319
  %333 = vrot.lane.b32.xlu0 %v330, 96
  %v334 = vpop.permute.xlu0 %333
  %v336 = vmul.f32 %v331, %v334
  %v337 = vmul.f32 %v319, 0.0
  %v338 = vadd.f32 %v336, %v337
  %340 = vrot.lane.b32.xlu0 %v338, 96
  %v341 = vpop.permute.xlu0 %340
  %343 = vst.msk [vmem:[#allocation2] sm:$0xff] %vm104, %v341
  %v344 = vsel %vm104, %v341, 0
  %346 = vmatprep.subr.mxu0 0.0
  %347 = vmatpush1.msra.mxu0 0.0
  %348 = vmatprep.subr.mxu0 0.0
  %349 = vmatpush1.msra.mxu0 0.0
  %350 = vmatprep.subr.mxu0 0.0
  %351 = vmatpush1.msra.mxu0 0.0
  %352 = vmatprep.subr.mxu0 0.0
  %353 = vmatpush1.msra.mxu0 0.0
  %354 = vmatprep.subr.mxu0 0.0
  %355 = vmatpush1.msra.mxu0 0.0
  %356 = vmatprep.subr.mxu0 0.0
  %357 = vmatpush1.msra.mxu0 0.0
  %358 = vmatprep.subr.mxu0 0.0
  %359 = vmatpush1.msra.mxu0 0.0
  %360 = vmatprep.subr.mxu0 0.0
  %361 = vmatpush1.msra.mxu0 0.0
  %362 = vmatprep.subr.mxu0 0.0
  %363 = vmatpush1.msra.mxu0 0.0
  %364 = vmatprep.subr.mxu0 0.0
  %365 = vmatpush1.msra.mxu0 0.0
  %366 = vmatprep.subr.mxu0 0.0
  %367 = vmatpush1.msra.mxu0 0.0
  %368 = vmatprep.subr.mxu0 0.0
  %369 = vmatpush1.msra.mxu0 0.0
  %370 = vmatprep.subr.mxu0 0.0
  %371 = vmatpush1.msra.mxu0 %v95
  %372 = vmatprep.subr.mxu0 0.0
  %373 = vmatpush1.msra.mxu0 %v94
  %374 = vmatprep.subr.mxu0 0.0
  %375 = vmatpush1.msra.mxu0 %v93
  %376 = vmatprep.subr.mxu0 0.0
  %377 = vmatpush1.msra.mxu0 %v92
  %378 = vmatprep.subr.mxu0 0.0
  %379 = vmatpush2.msra.mxu0 0.0
  %380 = vmatprep.subr.mxu0 0.0
  %381 = vmatpush2.msra.mxu0 0.0
  %382 = vmatprep.subr.mxu0 0.0
  %383 = vmatpush2.msra.mxu0 0.0
  %384 = vmatprep.subr.mxu0 0.0
  %385 = vmatpush2.msra.mxu0 0.0
  %386 = vmatprep.subr.mxu0 0.0
  %387 = vmatpush2.msra.mxu0 0.0
  %388 = vmatprep.subr.mxu0 0.0
  %389 = vmatpush2.msra.mxu0 0.0
  %390 = vmatprep.subr.mxu0 0.0
  %391 = vmatpush2.msra.mxu0 0.0
  %392 = vmatprep.subr.mxu0 0.0
  %393 = vmatpush2.msra.mxu0 0.0
  %394 = vmatprep.subr.mxu0 0.0
  %395 = vmatpush2.msra.mxu0 0.0
  %396 = vmatprep.subr.mxu0 0.0
  %397 = vmatpush2.msra.mxu0 0.0
  %398 = vmatprep.subr.mxu0 0.0
  %399 = vmatpush2.msra.mxu0 0.0
  %400 = vmatprep.subr.mxu0 0.0
  %401 = vmatpush2.msra.mxu0 0.0
  %402 = vmatprep.subr.mxu0 0.0
  %403 = vmatpush2.msra.mxu0 0.0
  %404 = vmatprep.subr.mxu0 0.0
  %405 = vmatpush2.msra.mxu0 0.0
  %406 = vmatprep.subr.mxu0 0.0
  %407 = vmatpush2.msra.mxu0 0.0
  %408 = vmatprep.subr.mxu0 0.0
  %409 = vmatpush2.msra.mxu0 0.0
  %410 = vmatprep.mubr.f32.mxu0 0.0
  %411 = vmatmul.mubr.f32.gmra.mxu0 %v344
  %v412 = vpop.f32.mrf.mxu0
  %v413 = vadd.f32 %v238, %v412
  %v414 = vpop.f32.mrf.mxu0
  %415 = vdwg.mxu0
  %v416 = vadd.f32 %v201, %v413
  %v417 = vxor.u32 %v416, 2147483648
  %v418 = vmul.f32 %v417, 1.442695
  %v419 = vpow.pop %v418
  %v420 = vadd.f32 %v419, 1.0
  %v421 = vrcp.pop %v420
  %v422 = vmul.f32 1.0, %v421
  %424 = vrot.lane.b32.xlu0 %v413, 64
  %v425 = vpop.permute.xlu0 %424
  %v427 = vmul.f32 %v422, %v425
  %429 = vrot.lane.b32.xlu0 %v427, 64
  %v430 = vpop.permute.xlu0 %429
  %v432 = vadd.f32 %v201, %v430
  %v433 = vtanh.pop %v432
  %v434 = vsub.f32 1.0, %v422
  %436 = vrot.lane.b32.xlu0 %v433, 96
  %v437 = vpop.permute.xlu0 %436
  %v439 = vmul.f32 %v434, %v437
  %v440 = vmul.f32 %v422, %v338
  %v441 = vadd.f32 %v439, %v440
  %443 = vrot.lane.b32.xlu0 %v441, 96
  %v444 = vpop.permute.xlu0 %443
  %446 = vst.msk [vmem:[#allocation2 + $0x8] sm:$0xff] %vm104, %v444
  %v447 = vsel %vm104, %v444, 0
  %449 = vmatprep.subr.mxu0 0.0
  %450 = vmatpush1.msra.mxu0 0.0
  %451 = vmatprep.subr.mxu0 0.0
  %452 = vmatpush1.msra.mxu0 0.0
  %453 = vmatprep.subr.mxu0 0.0
  %454 = vmatpush1.msra.mxu0 0.0
  %455 = vmatprep.subr.mxu0 0.0
  %456 = vmatpush1.msra.mxu0 0.0
  %457 = vmatprep.subr.mxu0 0.0
  %458 = vmatpush1.msra.mxu0 0.0
  %459 = vmatprep.subr.mxu0 0.0
  %460 = vmatpush1.msra.mxu0 0.0
  %461 = vmatprep.subr.mxu0 0.0
  %462 = vmatpush1.msra.mxu0 0.0
  %463 = vmatprep.subr.mxu0 0.0
  %464 = vmatpush1.msra.mxu0 0.0
  %465 = vmatprep.subr.mxu0 0.0
  %466 = vmatpush1.msra.mxu0 0.0
  %467 = vmatprep.subr.mxu0 0.0
  %468 = vmatpush1.msra.mxu0 0.0
  %469 = vmatprep.subr.mxu0 0.0
  %470 = vmatpush1.msra.mxu0 0.0
  %471 = vmatprep.subr.mxu0 0.0
  %472 = vmatpush1.msra.mxu0 0.0
  %473 = vmatprep.subr.mxu0 0.0
  %474 = vmatpush1.msra.mxu0 %v95
  %475 = vmatprep.subr.mxu0 0.0
  %476 = vmatpush1.msra.mxu0 %v94
  %477 = vmatprep.subr.mxu0 0.0
  %478 = vmatpush1.msra.mxu0 %v93
  %479 = vmatprep.subr.mxu0 0.0
  %480 = vmatpush1.msra.mxu0 %v92
  %481 = vmatprep.subr.mxu0 0.0
  %482 = vmatpush2.msra.mxu0 0.0
  %483 = vmatprep.subr.mxu0 0.0
  %484 = vmatpush2.msra.mxu0 0.0
  %485 = vmatprep.subr.mxu0 0.0
  %486 = vmatpush2.msra.mxu0 0.0
  %487 = vmatprep.subr.mxu0 0.0
  %488 = vmatpush2.msra.mxu0 0.0
  %489 = vmatprep.subr.mxu0 0.0
  %490 = vmatpush2.msra.mxu0 0.0
  %491 = vmatprep.subr.mxu0 0.0
  %492 = vmatpush2.msra.mxu0 0.0
  %493 = vmatprep.subr.mxu0 0.0
  %494 = vmatpush2.msra.mxu0 0.0
  %495 = vmatprep.subr.mxu0 0.0
  %496 = vmatpush2.msra.mxu0 0.0
  %497 = vmatprep.subr.mxu0 0.0
  %498 = vmatpush2.msra.mxu0 0.0
  %499 = vmatprep.subr.mxu0 0.0
  %500 = vmatpush2.msra.mxu0 0.0
  %501 = vmatprep.subr.mxu0 0.0
  %502 = vmatpush2.msra.mxu0 0.0
  %503 = vmatprep.subr.mxu0 0.0
  %504 = vmatpush2.msra.mxu0 0.0
  %505 = vmatprep.subr.mxu0 0.0
  %506 = vmatpush2.msra.mxu0 0.0
  %507 = vmatprep.subr.mxu0 0.0
  %508 = vmatpush2.msra.mxu0 0.0
  %509 = vmatprep.subr.mxu0 0.0
  %510 = vmatpush2.msra.mxu0 0.0
  %511 = vmatprep.subr.mxu0 0.0
  %512 = vmatpush2.msra.mxu0 0.0
  %513 = vmatprep.mubr.f32.mxu0 0.0
  %514 = vmatmul.mubr.f32.gmra.mxu0 %v447
  %v515 = vpop.f32.mrf.mxu0
  %v516 = vadd.f32 %v238, %v515
  %v517 = vpop.f32.mrf.mxu0
  %518 = vdwg.mxu0
  %v519 = vadd.f32 %v206, %v516
  %v520 = vxor.u32 %v519, 2147483648
  %v521 = vmul.f32 %v520, 1.442695
  %v522 = vpow.pop %v521
  %v523 = vadd.f32 %v522, 1.0
  %v524 = vrcp.pop %v523
  %v525 = vmul.f32 1.0, %v524
  %527 = vrot.lane.b32.xlu0 %v516, 64
  %v528 = vpop.permute.xlu0 %527
  %v530 = vmul.f32 %v525, %v528
  %532 = vrot.lane.b32.xlu0 %v530, 64
  %v533 = vpop.permute.xlu0 %532
  %v535 = vadd.f32 %v206, %v533
  %v536 = vtanh.pop %v535
  %v537 = vsub.f32 1.0, %v525
  %539 = vrot.lane.b32.xlu0 %v536, 96
  %v540 = vpop.permute.xlu0 %539
  %v542 = vmul.f32 %v537, %v540
  %v543 = vmul.f32 %v525, %v441
  %v544 = vadd.f32 %v542, %v543
  %546 = vrot.lane.b32.xlu0 %v544, 96
  %v547 = vpop.permute.xlu0 %546
  %549 = vst.msk [vmem:[#allocation2 + $0x10] sm:$0xff] %vm104, %v547
  %v550 = vsel %vm104, %v547, 0
  %552 = vmatprep.subr.mxu0 0.0
  %553 = vmatpush1.msra.mxu0 0.0
  %554 = vmatprep.subr.mxu0 0.0
  %555 = vmatpush1.msra.mxu0 0.0
  %556 = vmatprep.subr.mxu0 0.0
  %557 = vmatpush1.msra.mxu0 0.0
  %558 = vmatprep.subr.mxu0 0.0
  %559 = vmatpush1.msra.mxu0 0.0
  %560 = vmatprep.subr.mxu0 0.0
  %561 = vmatpush1.msra.mxu0 0.0
  %562 = vmatprep.subr.mxu0 0.0
  %563 = vmatpush1.msra.mxu0 0.0
  %564 = vmatprep.subr.mxu0 0.0
  %565 = vmatpush1.msra.mxu0 0.0
  %566 = vmatprep.subr.mxu0 0.0
  %567 = vmatpush1.msra.mxu0 0.0
  %568 = vmatprep.subr.mxu0 0.0
  %569 = vmatpush1.msra.mxu0 0.0
  %570 = vmatprep.subr.mxu0 0.0
  %571 = vmatpush1.msra.mxu0 0.0
  %572 = vmatprep.subr.mxu0 0.0
  %573 = vmatpush1.msra.mxu0 0.0
  %574 = vmatprep.subr.mxu0 0.0
  %575 = vmatpush1.msra.mxu0 0.0
  %576 = vmatprep.subr.mxu0 0.0
  %577 = vmatpush1.msra.mxu0 %v95
  %578 = vmatprep.subr.mxu0 0.0
  %579 = vmatpush1.msra.mxu0 %v94
  %580 = vmatprep.subr.mxu0 0.0
  %581 = vmatpush1.msra.mxu0 %v93
  %582 = vmatprep.subr.mxu0 0.0
  %583 = vmatpush1.msra.mxu0 %v92
  %584 = vmatprep.subr.mxu0 0.0
  %585 = vmatpush2.msra.mxu0 0.0
  %586 = vmatprep.subr.mxu0 0.0
  %587 = vmatpush2.msra.mxu0 0.0
  %588 = vmatprep.subr.mxu0 0.0
  %589 = vmatpush2.msra.mxu0 0.0
  %590 = vmatprep.subr.mxu0 0.0
  %591 = vmatpush2.msra.mxu0 0.0
  %592 = vmatprep.subr.mxu0 0.0
  %593 = vmatpush2.msra.mxu0 0.0
  %594 = vmatprep.subr.mxu0 0.0
  %595 = vmatpush2.msra.mxu0 0.0
  %596 = vmatprep.subr.mxu0 0.0
  %597 = vmatpush2.msra.mxu0 0.0
  %598 = vmatprep.subr.mxu0 0.0
  %599 = vmatpush2.msra.mxu0 0.0
  %600 = vmatprep.subr.mxu0 0.0
  %601 = vmatpush2.msra.mxu0 0.0
  %602 = vmatprep.subr.mxu0 0.0
  %603 = vmatpush2.msra.mxu0 0.0
  %604 = vmatprep.subr.mxu0 0.0
  %605 = vmatpush2.msra.mxu0 0.0
  %606 = vmatprep.subr.mxu0 0.0
  %607 = vmatpush2.msra.mxu0 0.0
  %608 = vmatprep.subr.mxu0 0.0
  %609 = vmatpush2.msra.mxu0 0.0
  %610 = vmatprep.subr.mxu0 0.0
  %611 = vmatpush2.msra.mxu0 0.0
  %612 = vmatprep.subr.mxu0 0.0
  %613 = vmatpush2.msra.mxu0 0.0
  %614 = vmatprep.subr.mxu0 0.0
  %615 = vmatpush2.msra.mxu0 0.0
  %616 = vmatprep.mubr.f32.mxu0 0.0
  %617 = vmatmul.mubr.f32.gmra.mxu0 %v550
  %v618 = vpop.f32.mrf.mxu0
  %v619 = vadd.f32 %v238, %v618
  %v620 = vpop.f32.mrf.mxu0
  %621 = vdwg.mxu0
  %v622 = vadd.f32 %v211, %v619
  %v623 = vxor.u32 %v622, 2147483648
  %v624 = vmul.f32 %v623, 1.442695
  %v625 = vpow.pop %v624
  %v626 = vadd.f32 %v625, 1.0
  %v627 = vrcp.pop %v626
  %v628 = vmul.f32 1.0, %v627
  %630 = vrot.lane.b32.xlu0 %v619, 64
  %v631 = vpop.permute.xlu0 %630
  %v633 = vmul.f32 %v628, %v631
  %635 = vrot.lane.b32.xlu0 %v633, 64
  %v636 = vpop.permute.xlu0 %635
  %v638 = vadd.f32 %v211, %v636
  %v639 = vtanh.pop %v638
  %v640 = vsub.f32 1.0, %v628
  %642 = vrot.lane.b32.xlu0 %v639, 96
  %v643 = vpop.permute.xlu0 %642
  %v645 = vmul.f32 %v640, %v643
  %v646 = vmul.f32 %v628, %v544
  %v647 = vadd.f32 %v645, %v646
  %649 = vrot.lane.b32.xlu0 %v647, 96
  %v650 = vpop.permute.xlu0 %649
  %652 = vst.msk [vmem:[#allocation2 + $0x18] sm:$0xff] %vm104, %v650
  %v653 = vsel %vm104, %v650, 0
  %655 = vmatprep.subr.mxu0 0.0
  %656 = vmatpush1.msra.mxu0 0.0
  %657 = vmatprep.subr.mxu0 0.0
  %658 = vmatpush1.msra.mxu0 0.0
  %659 = vmatprep.subr.mxu0 0.0
  %660 = vmatpush1.msra.mxu0 0.0
  %661 = vmatprep.subr.mxu0 0.0
  %662 = vmatpush1.msra.mxu0 0.0
  %663 = vmatprep.subr.mxu0 0.0
  %664 = vmatpush1.msra.mxu0 0.0
  %665 = vmatprep.subr.mxu0 0.0
  %666 = vmatpush1.msra.mxu0 0.0
  %667 = vmatprep.subr.mxu0 0.0
  %668 = vmatpush1.msra.mxu0 0.0
  %669 = vmatprep.subr.mxu0 0.0
  %670 = vmatpush1.msra.mxu0 0.0
  %671 = vmatprep.subr.mxu0 0.0
  %672 = vmatpush1.msra.mxu0 0.0
  %673 = vmatprep.subr.mxu0 0.0
  %674 = vmatpush1.msra.mxu0 0.0
  %675 = vmatprep.subr.mxu0 0.0
  %676 = vmatpush1.msra.mxu0 0.0
  %677 = vmatprep.subr.mxu0 0.0
  %678 = vmatpush1.msra.mxu0 0.0
  %679 = vmatprep.subr.mxu0 0.0
  %680 = vmatpush1.msra.mxu0 %v95
  %681 = vmatprep.subr.mxu0 0.0
  %682 = vmatpush1.msra.mxu0 %v94
  %683 = vmatprep.subr.mxu0 0.0
  %684 = vmatpush1.msra.mxu0 %v93
  %685 = vmatprep.subr.mxu0 0.0
  %686 = vmatpush1.msra.mxu0 %v92
  %687 = vmatprep.subr.mxu0 0.0
  %688 = vmatpush2.msra.mxu0 0.0
  %689 = vmatprep.subr.mxu0 0.0
  %690 = vmatpush2.msra.mxu0 0.0
  %691 = vmatprep.subr.mxu0 0.0
  %692 = vmatpush2.msra.mxu0 0.0
  %693 = vmatprep.subr.mxu0 0.0
  %694 = vmatpush2.msra.mxu0 0.0
  %695 = vmatprep.subr.mxu0 0.0
  %696 = vmatpush2.msra.mxu0 0.0
  %697 = vmatprep.subr.mxu0 0.0
  %698 = vmatpush2.msra.mxu0 0.0
  %699 = vmatprep.subr.mxu0 0.0
  %700 = vmatpush2.msra.mxu0 0.0
  %701 = vmatprep.subr.mxu0 0.0
  %702 = vmatpush2.msra.mxu0 0.0
  %703 = vmatprep.subr.mxu0 0.0
  %704 = vmatpush2.msra.mxu0 0.0
  %705 = vmatprep.subr.mxu0 0.0
  %706 = vmatpush2.msra.mxu0 0.0
  %707 = vmatprep.subr.mxu0 0.0
  %708 = vmatpush2.msra.mxu0 0.0
  %709 = vmatprep.subr.mxu0 0.0
  %710 = vmatpush2.msra.mxu0 0.0
  %711 = vmatprep.subr.mxu0 0.0
  %712 = vmatpush2.msra.mxu0 0.0
  %713 = vmatprep.subr.mxu0 0.0
  %714 = vmatpush2.msra.mxu0 0.0
  %715 = vmatprep.subr.mxu0 0.0
  %716 = vmatpush2.msra.mxu0 0.0
  %717 = vmatprep.subr.mxu0 0.0
  %718 = vmatpush2.msra.mxu0 0.0
  %719 = vmatprep.mubr.f32.mxu0 0.0
  %720 = vmatmul.mubr.f32.gmra.mxu0 %v653
  %v721 = vpop.f32.mrf.mxu0
  %v722 = vadd.f32 %v238, %v721
  %v723 = vpop.f32.mrf.mxu0
  %724 = vdwg.mxu0
  %v725 = vadd.f32 %v216, %v722
  %v726 = vxor.u32 %v725, 2147483648
  %v727 = vmul.f32 %v726, 1.442695
  %v728 = vpow.pop %v727
  %v729 = vadd.f32 %v728, 1.0
  %v730 = vrcp.pop %v729
  %v731 = vmul.f32 1.0, %v730
  %733 = vrot.lane.b32.xlu0 %v722, 64
  %v734 = vpop.permute.xlu0 %733
  %v736 = vmul.f32 %v731, %v734
  %738 = vrot.lane.b32.xlu0 %v736, 64
  %v739 = vpop.permute.xlu0 %738
  %v741 = vadd.f32 %v216, %v739
  %v742 = vtanh.pop %v741
  %v743 = vsub.f32 1.0, %v731
  %745 = vrot.lane.b32.xlu0 %v742, 96
  %v746 = vpop.permute.xlu0 %745
  %v748 = vmul.f32 %v743, %v746
  %v749 = vmul.f32 %v731, %v647
  %v750 = vadd.f32 %v748, %v749
  %752 = vrot.lane.b32.xlu0 %v750, 96
  %v753 = vpop.permute.xlu0 %752
  %755 = vst.msk [vmem:[#allocation2 + $0x20] sm:$0xff] %vm104, %v753
  %v756 = vsel %vm104, %v753, 0
  %758 = vmatprep.subr.mxu0 0.0
  %759 = vmatpush1.msra.mxu0 0.0
  %760 = vmatprep.subr.mxu0 0.0
  %761 = vmatpush1.msra.mxu0 0.0
  %762 = vmatprep.subr.mxu0 0.0
  %763 = vmatpush1.msra.mxu0 0.0
  %764 = vmatprep.subr.mxu0 0.0
  %765 = vmatpush1.msra.mxu0 0.0
  %766 = vmatprep.subr.mxu0 0.0
  %767 = vmatpush1.msra.mxu0 0.0
  %768 = vmatprep.subr.mxu0 0.0
  %769 = vmatpush1.msra.mxu0 0.0
  %770 = vmatprep.subr.mxu0 0.0
  %771 = vmatpush1.msra.mxu0 0.0
  %772 = vmatprep.subr.mxu0 0.0
  %773 = vmatpush1.msra.mxu0 0.0
  %774 = vmatprep.subr.mxu0 0.0
  %775 = vmatpush1.msra.mxu0 0.0
  %776 = vmatprep.subr.mxu0 0.0
  %777 = vmatpush1.msra.mxu0 0.0
  %778 = vmatprep.subr.mxu0 0.0
  %779 = vmatpush1.msra.mxu0 0.0
  %780 = vmatprep.subr.mxu0 0.0
  %781 = vmatpush1.msra.mxu0 0.0
  %782 = vmatprep.subr.mxu0 0.0
  %783 = vmatpush1.msra.mxu0 %v95
  %784 = vmatprep.subr.mxu0 0.0
  %785 = vmatpush1.msra.mxu0 %v94
  %786 = vmatprep.subr.mxu0 0.0
  %787 = vmatpush1.msra.mxu0 %v93
  %788 = vmatprep.subr.mxu0 0.0
  %789 = vmatpush1.msra.mxu0 %v92
  %790 = vmatprep.subr.mxu0 0.0
  %791 = vmatpush2.msra.mxu0 0.0
  %792 = vmatprep.subr.mxu0 0.0
  %793 = vmatpush2.msra.mxu0 0.0
  %794 = vmatprep.subr.mxu0 0.0
  %795 = vmatpush2.msra.mxu0 0.0
  %796 = vmatprep.subr.mxu0 0.0
  %797 = vmatpush2.msra.mxu0 0.0
  %798 = vmatprep.subr.mxu0 0.0
  %799 = vmatpush2.msra.mxu0 0.0
  %800 = vmatprep.subr.mxu0 0.0
  %801 = vmatpush2.msra.mxu0 0.0
  %802 = vmatprep.subr.mxu0 0.0
  %803 = vmatpush2.msra.mxu0 0.0
  %804 = vmatprep.subr.mxu0 0.0
  %805 = vmatpush2.msra.mxu0 0.0
  %806 = vmatprep.subr.mxu0 0.0
  %807 = vmatpush2.msra.mxu0 0.0
  %808 = vmatprep.subr.mxu0 0.0
  %809 = vmatpush2.msra.mxu0 0.0
  %810 = vmatprep.subr.mxu0 0.0
  %811 = vmatpush2.msra.mxu0 0.0
  %812 = vmatprep.subr.mxu0 0.0
  %813 = vmatpush2.msra.mxu0 0.0
  %814 = vmatprep.subr.mxu0 0.0
  %815 = vmatpush2.msra.mxu0 0.0
  %816 = vmatprep.subr.mxu0 0.0
  %817 = vmatpush2.msra.mxu0 0.0
  %818 = vmatprep.subr.mxu0 0.0
  %819 = vmatpush2.msra.mxu0 0.0
  %820 = vmatprep.subr.mxu0 0.0
  %821 = vmatpush2.msra.mxu0 0.0
  %822 = vmatprep.mubr.f32.mxu0 0.0
  %823 = vmatmul.mubr.f32.gmra.mxu0 %v756
  %v824 = vpop.f32.mrf.mxu0
  %v825 = vadd.f32 %v238, %v824
  %v826 = vpop.f32.mrf.mxu0
  %827 = vdwg.mxu0
  %v828 = vadd.f32 %v221, %v825
  %v829 = vxor.u32 %v828, 2147483648
  %v830 = vmul.f32 %v829, 1.442695
  %v831 = vpow.pop %v830
  %v832 = vadd.f32 %v831, 1.0
  %v833 = vrcp.pop %v832
  %v834 = vmul.f32 1.0, %v833
  %836 = vrot.lane.b32.xlu0 %v825, 64
  %v837 = vpop.permute.xlu0 %836
  %v839 = vmul.f32 %v834, %v837
  %841 = vrot.lane.b32.xlu0 %v839, 64
  %v842 = vpop.permute.xlu0 %841
  %v844 = vadd.f32 %v221, %v842
  %v845 = vtanh.pop %v844
  %v846 = vsub.f32 1.0, %v834
  %848 = vrot.lane.b32.xlu0 %v845, 96
  %v849 = vpop.permute.xlu0 %848
  %v851 = vmul.f32 %v846, %v849
  %v852 = vmul.f32 %v834, %v750
  %v853 = vadd.f32 %v851, %v852
  %855 = vrot.lane.b32.xlu0 %v853, 96
  %v856 = vpop.permute.xlu0 %855
  %858 = vst.msk [vmem:[#allocation2 + $0x28] sm:$0xff] %vm104, %v856
  %v859 = vsel %vm104, %v856, 0
  %861 = vmatprep.subr.mxu0 0.0
  %862 = vmatpush1.msra.mxu0 0.0
  %863 = vmatprep.subr.mxu0 0.0
  %864 = vmatpush1.msra.mxu0 0.0
  %865 = vmatprep.subr.mxu0 0.0
  %866 = vmatpush1.msra.mxu0 0.0
  %867 = vmatprep.subr.mxu0 0.0
  %868 = vmatpush1.msra.mxu0 0.0
  %869 = vmatprep.subr.mxu0 0.0
  %870 = vmatpush1.msra.mxu0 0.0
  %871 = vmatprep.subr.mxu0 0.0
  %872 = vmatpush1.msra.mxu0 0.0
  %873 = vmatprep.subr.mxu0 0.0
  %874 = vmatpush1.msra.mxu0 0.0
  %875 = vmatprep.subr.mxu0 0.0
  %876 = vmatpush1.msra.mxu0 0.0
  %877 = vmatprep.subr.mxu0 0.0
  %878 = vmatpush1.msra.mxu0 0.0
  %879 = vmatprep.subr.mxu0 0.0
  %880 = vmatpush1.msra.mxu0 0.0
  %881 = vmatprep.subr.mxu0 0.0
  %882 = vmatpush1.msra.mxu0 0.0
  %883 = vmatprep.subr.mxu0 0.0
  %884 = vmatpush1.msra.mxu0 0.0
  %885 = vmatprep.subr.mxu0 0.0
  %886 = vmatpush1.msra.mxu0 %v95
  %887 = vmatprep.subr.mxu0 0.0
  %888 = vmatpush1.msra.mxu0 %v94
  %889 = vmatprep.subr.mxu0 0.0
  %890 = vmatpush1.msra.mxu0 %v93
  %891 = vmatprep.subr.mxu0 0.0
  %892 = vmatpush1.msra.mxu0 %v92
  %893 = vmatprep.subr.mxu0 0.0
  %894 = vmatpush2.msra.mxu0 0.0
  %895 = vmatprep.subr.mxu0 0.0
  %896 = vmatpush2.msra.mxu0 0.0
  %897 = vmatprep.subr.mxu0 0.0
  %898 = vmatpush2.msra.mxu0 0.0
  %899 = vmatprep.subr.mxu0 0.0
  %900 = vmatpush2.msra.mxu0 0.0
  %901 = vmatprep.subr.mxu0 0.0
  %902 = vmatpush2.msra.mxu0 0.0
  %903 = vmatprep.subr.mxu0 0.0
  %904 = vmatpush2.msra.mxu0 0.0
  %905 = vmatprep.subr.mxu0 0.0
  %906 = vmatpush2.msra.mxu0 0.0
  %907 = vmatprep.subr.mxu0 0.0
  %908 = vmatpush2.msra.mxu0 0.0
  %909 = vmatprep.subr.mxu0 0.0
  %910 = vmatpush2.msra.mxu0 0.0
  %911 = vmatprep.subr.mxu0 0.0
  %912 = vmatpush2.msra.mxu0 0.0
  %913 = vmatprep.subr.mxu0 0.0
  %914 = vmatpush2.msra.mxu0 0.0
  %915 = vmatprep.subr.mxu0 0.0
  %916 = vmatpush2.msra.mxu0 0.0
  %917 = vmatprep.subr.mxu0 0.0
  %918 = vmatpush2.msra.mxu0 0.0
  %919 = vmatprep.subr.mxu0 0.0
  %920 = vmatpush2.msra.mxu0 0.0
  %921 = vmatprep.subr.mxu0 0.0
  %922 = vmatpush2.msra.mxu0 0.0
  %923 = vmatprep.subr.mxu0 0.0
  %924 = vmatpush2.msra.mxu0 0.0
  %925 = vmatprep.mubr.f32.mxu0 0.0
  %926 = vmatmul.mubr.f32.gmra.mxu0 %v859
  %v927 = vpop.f32.mrf.mxu0
  %v928 = vadd.f32 %v238, %v927
  %v929 = vpop.f32.mrf.mxu0
  %930 = vdwg.mxu0
  %v931 = vadd.f32 %v226, %v928
  %v932 = vxor.u32 %v931, 2147483648
  %v933 = vmul.f32 %v932, 1.442695
  %v934 = vpow.pop %v933
  %v935 = vadd.f32 %v934, 1.0
  %v936 = vrcp.pop %v935
  %v937 = vmul.f32 1.0, %v936
  %939 = vrot.lane.b32.xlu0 %v928, 64
  %v940 = vpop.permute.xlu0 %939
  %v942 = vmul.f32 %v937, %v940
  %944 = vrot.lane.b32.xlu0 %v942, 64
  %v945 = vpop.permute.xlu0 %944
  %v947 = vadd.f32 %v226, %v945
  %v948 = vtanh.pop %v947
  %v949 = vsub.f32 1.0, %v937
  %951 = vrot.lane.b32.xlu0 %v948, 96
  %v952 = vpop.permute.xlu0 %951
  %v954 = vmul.f32 %v949, %v952
  %v955 = vmul.f32 %v937, %v853
  %v956 = vadd.f32 %v954, %v955
  %958 = vrot.lane.b32.xlu0 %v956, 96
  %v959 = vpop.permute.xlu0 %958
  %961 = vst.msk [vmem:[#allocation2 + $0x30] sm:$0xff] %vm104, %v959
  %v962 = vsel %vm104, %v959, 0
  %964 = vmatprep.subr.mxu0 0.0
  %965 = vmatpush1.msra.mxu0 0.0
  %966 = vmatprep.subr.mxu0 0.0
  %967 = vmatpush1.msra.mxu0 0.0
  %968 = vmatprep.subr.mxu0 0.0
  %969 = vmatpush1.msra.mxu0 0.0
  %970 = vmatprep.subr.mxu0 0.0
  %971 = vmatpush1.msra.mxu0 0.0
  %972 = vmatprep.subr.mxu0 0.0
  %973 = vmatpush1.msra.mxu0 0.0
  %974 = vmatprep.subr.mxu0 0.0
  %975 = vmatpush1.msra.mxu0 0.0
  %976 = vmatprep.subr.mxu0 0.0
  %977 = vmatpush1.msra.mxu0 0.0
  %978 = vmatprep.subr.mxu0 0.0
  %979 = vmatpush1.msra.mxu0 0.0
  %980 = vmatprep.subr.mxu0 0.0
  %981 = vmatpush1.msra.mxu0 0.0
  %982 = vmatprep.subr.mxu0 0.0
  %983 = vmatpush1.msra.mxu0 0.0
  %984 = vmatprep.subr.mxu0 0.0
  %985 = vmatpush1.msra.mxu0 0.0
  %986 = vmatprep.subr.mxu0 0.0
  %987 = vmatpush1.msra.mxu0 0.0
  %988 = vmatprep.subr.mxu0 0.0
  %989 = vmatpush1.msra.mxu0 %v95
  %990 = vmatprep.subr.mxu0 0.0
  %991 = vmatpush1.msra.mxu0 %v94
  %992 = vmatprep.subr.mxu0 0.0
  %993 = vmatpush1.msra.mxu0 %v93
  %994 = vmatprep.subr.mxu0 0.0
  %995 = vmatpush1.msra.mxu0 %v92
  %996 = vmatprep.subr.mxu0 0.0
  %997 = vmatpush2.msra.mxu0 0.0
  %998 = vmatprep.subr.mxu0 0.0
  %999 = vmatpush2.msra.mxu0 0.0
  %1000 = vmatprep.subr.mxu0 0.0
  %1001 = vmatpush2.msra.mxu0 0.0
  %1002 = vmatprep.subr.mxu0 0.0
  %1003 = vmatpush2.msra.mxu0 0.0
  %1004 = vmatprep.subr.mxu0 0.0
  %1005 = vmatpush2.msra.mxu0 0.0
  %1006 = vmatprep.subr.mxu0 0.0
  %1007 = vmatpush2.msra.mxu0 0.0
  %1008 = vmatprep.subr.mxu0 0.0
  %1009 = vmatpush2.msra.mxu0 0.0
  %1010 = vmatprep.subr.mxu0 0.0
  %1011 = vmatpush2.msra.mxu0 0.0
  %1012 = vmatprep.subr.mxu0 0.0
  %1013 = vmatpush2.msra.mxu0 0.0
  %1014 = vmatprep.subr.mxu0 0.0
  %1015 = vmatpush2.msra.mxu0 0.0
  %1016 = vmatprep.subr.mxu0 0.0
  %1017 = vmatpush2.msra.mxu0 0.0
  %1018 = vmatprep.subr.mxu0 0.0
  %1019 = vmatpush2.msra.mxu0 0.0
  %1020 = vmatprep.subr.mxu0 0.0
  %1021 = vmatpush2.msra.mxu0 0.0
  %1022 = vmatprep.subr.mxu0 0.0
  %1023 = vmatpush2.msra.mxu0 0.0
  %1024 = vmatprep.subr.mxu0 0.0
  %1025 = vmatpush2.msra.mxu0 0.0
  %1026 = vmatprep.subr.mxu0 0.0
  %1027 = vmatpush2.msra.mxu0 0.0
  %1028 = vmatprep.mubr.f32.mxu0 0.0
  %1029 = vmatmul.mubr.f32.gmra.mxu0 %v962
  %v1030 = vpop.f32.mrf.mxu0
  %v1031 = vadd.f32 %v238, %v1030
  %v1032 = vpop.f32.mrf.mxu0
  %1033 = vdwg.mxu0
  %v1034 = vadd.f32 %v231, %v1031
  %v1035 = vxor.u32 %v1034, 2147483648
  %v1036 = vmul.f32 %v1035, 1.442695
  %v1037 = vpow.pop %v1036
  %v1038 = vadd.f32 %v1037, 1.0
  %v1039 = vrcp.pop %v1038
  %v1040 = vmul.f32 1.0, %v1039
  %1042 = vrot.lane.b32.xlu0 %v1031, 64
  %v1043 = vpop.permute.xlu0 %1042
  %v1045 = vmul.f32 %v1040, %v1043
  %1047 = vrot.lane.b32.xlu0 %v1045, 64
  %v1048 = vpop.permute.xlu0 %1047
  %v1050 = vadd.f32 %v231, %v1048
  %v1051 = vtanh.pop %v1050
  %v1052 = vsub.f32 1.0, %v1040
  %1054 = vrot.lane.b32.xlu0 %v1051, 96
  %v1055 = vpop.permute.xlu0 %1054
  %v1057 = vmul.f32 %v1052, %v1055
  %v1058 = vmul.f32 %v1040, %v956
  %v1059 = vadd.f32 %v1057, %v1058
  %1061 = vrot.lane.b32.xlu0 %v1059, 96
  %v1062 = vpop.permute.xlu0 %1061
  %1064 = vst.msk [vmem:[#allocation2 + $0x38] sm:$0xff] %vm104, %v1062
  %v1065 = vld [vmem:[%s5] sm:$0xff]
  %v1066 = vld [vmem:[%s5 + $0x8] sm:$0xff]
  %v1067 = vld [vmem:[%s5 + $0x10] sm:$0xff]
  %v1068 = vld [vmem:[%s5 + $0x18] sm:$0xff]
  %v1069 = vld [vmem:[%s6] sm:$0xff]
  %v1070 = vld [vmem:[%s6 + $0x8] sm:$0xff]
  %v1071 = vld [vmem:[%s6 + $0x10] sm:$0xff]
  %v1072 = vld [vmem:[%s6 + $0x18] sm:$0xff]
  %v1073 = vld [vmem:[%s7] sm:$0x1]
  %v1074 = vld [vmem:[%s8] sm:$0x1]
  %v1076 = vlaneseq
  %v1077 = vshrl.u32 %v1076, 7
  %v1078 = vsub.s32 0, %v1077
  %v1079 = vrot.slane %v1073, %v1078
  %1081 = vmatprep.subr.mxu0 0.0
  %1082 = vmatpush1.msra.mxu0 0.0
  %1083 = vmatprep.subr.mxu0 0.0
  %1084 = vmatpush1.msra.mxu0 0.0
  %1085 = vmatprep.subr.mxu0 0.0
  %1086 = vmatpush1.msra.mxu0 0.0
  %1087 = vmatprep.subr.mxu0 0.0
  %1088 = vmatpush1.msra.mxu0 0.0
  %1089 = vmatprep.subr.mxu0 0.0
  %1090 = vmatpush1.msra.mxu0 0.0
  %1091 = vmatprep.subr.mxu0 0.0
  %1092 = vmatpush1.msra.mxu0 0.0
  %1093 = vmatprep.subr.mxu0 0.0
  %1094 = vmatpush1.msra.mxu0 0.0
  %1095 = vmatprep.subr.mxu0 0.0
  %1096 = vmatpush1.msra.mxu0 0.0
  %1097 = vmatprep.subr.mxu0 0.0
  %1098 = vmatpush1.msra.mxu0 0.0
  %1099 = vmatprep.subr.mxu0 0.0
  %1100 = vmatpush1.msra.mxu0 0.0
  %1101 = vmatprep.subr.mxu0 0.0
  %1102 = vmatpush1.msra.mxu0 0.0
  %1103 = vmatprep.subr.mxu0 0.0
  %1104 = vmatpush1.msra.mxu0 0.0
  %1105 = vmatprep.subr.mxu0 0.0
  %1106 = vmatpush1.msra.mxu0 %v1068
  %1107 = vmatprep.subr.mxu0 0.0
  %1108 = vmatpush1.msra.mxu0 %v1067
  %1109 = vmatprep.subr.mxu0 0.0
  %1110 = vmatpush1.msra.mxu0 %v1066
  %1111 = vmatprep.subr.mxu0 0.0
  %1112 = vmatpush1.msra.mxu0 %v1065
  %1113 = vmatprep.subr.mxu0 0.0
  %1114 = vmatpush2.msra.mxu0 0.0
  %1115 = vmatprep.subr.mxu0 0.0
  %1116 = vmatpush2.msra.mxu0 0.0
  %1117 = vmatprep.subr.mxu0 0.0
  %1118 = vmatpush2.msra.mxu0 0.0
  %1119 = vmatprep.subr.mxu0 0.0
  %1120 = vmatpush2.msra.mxu0 0.0
  %1121 = vmatprep.subr.mxu0 0.0
  %1122 = vmatpush2.msra.mxu0 0.0
  %1123 = vmatprep.subr.mxu0 0.0
  %1124 = vmatpush2.msra.mxu0 0.0
  %1125 = vmatprep.subr.mxu0 0.0
  %1126 = vmatpush2.msra.mxu0 0.0
  %1127 = vmatprep.subr.mxu0 0.0
  %1128 = vmatpush2.msra.mxu0 0.0
  %1129 = vmatprep.subr.mxu0 0.0
  %1130 = vmatpush2.msra.mxu0 0.0
  %1131 = vmatprep.subr.mxu0 0.0
  %1132 = vmatpush2.msra.mxu0 0.0
  %1133 = vmatprep.subr.mxu0 0.0
  %1134 = vmatpush2.msra.mxu0 0.0
  %1135 = vmatprep.subr.mxu0 0.0
  %1136 = vmatpush2.msra.mxu0 0.0
  %1137 = vmatprep.subr.mxu0 0.0
  %1138 = vmatpush2.msra.mxu0 0.0
  %1139 = vmatprep.subr.mxu0 0.0
  %1140 = vmatpush2.msra.mxu0 0.0
  %1141 = vmatprep.subr.mxu0 0.0
  %1142 = vmatpush2.msra.mxu0 0.0
  %1143 = vmatprep.subr.mxu0 0.0
  %1144 = vmatpush2.msra.mxu0 0.0
  %1145 = vmatprep.mubr.f32.mxu0 0.0
  %1146 = vmatmul.mubr.f32.gmra.mxu0 %v106
  %v1147 = vpop.f32.mrf.mxu0
  %v1148 = vadd.f32 %v1079, %v1147
  %v1149 = vpop.f32.mrf.mxu0
  %1150 = vmatprep.mubr.f32.mxu0 0.0
  %1151 = vmatmul.mubr.f32.gmra.mxu0 %v109
  %v1152 = vpop.f32.mrf.mxu0
  %v1153 = vadd.f32 %v1079, %v1152
  %v1154 = vpop.f32.mrf.mxu0
  %1155 = vmatprep.mubr.f32.mxu0 0.0
  %1156 = vmatmul.mubr.f32.gmra.mxu0 %v112
  %v1157 = vpop.f32.mrf.mxu0
  %v1158 = vadd.f32 %v1079, %v1157
  %v1159 = vpop.f32.mrf.mxu0
  %1160 = vmatprep.mubr.f32.mxu0 0.0
  %1161 = vmatmul.mubr.f32.gmra.mxu0 %v115
  %v1162 = vpop.f32.mrf.mxu0
  %v1163 = vadd.f32 %v1079, %v1162
  %v1164 = vpop.f32.mrf.mxu0
  %1165 = vmatprep.mubr.f32.mxu0 0.0
  %1166 = vmatmul.mubr.f32.gmra.mxu0 %v118
  %v1167 = vpop.f32.mrf.mxu0
  %v1168 = vadd.f32 %v1079, %v1167
  %v1169 = vpop.f32.mrf.mxu0
  %1170 = vmatprep.mubr.f32.mxu0 0.0
  %1171 = vmatmul.mubr.f32.gmra.mxu0 %v121
  %v1172 = vpop.f32.mrf.mxu0
  %v1173 = vadd.f32 %v1079, %v1172
  %v1174 = vpop.f32.mrf.mxu0
  %1175 = vmatprep.mubr.f32.mxu0 0.0
  %1176 = vmatmul.mubr.f32.gmra.mxu0 %v124
  %v1177 = vpop.f32.mrf.mxu0
  %v1178 = vadd.f32 %v1079, %v1177
  %v1179 = vpop.f32.mrf.mxu0
  %1180 = vmatprep.mubr.f32.mxu0 0.0
  %1181 = vmatmul.mubr.f32.gmra.mxu0 %v127
  %v1182 = vpop.f32.mrf.mxu0
  %v1183 = vadd.f32 %v1079, %v1182
  %v1184 = vpop.f32.mrf.mxu0
  %1185 = vdwg.mxu0
  %v1187 = vlaneseq
  %v1188 = vshrl.u32 %v1187, 7
  %v1189 = vsub.s32 0, %v1188
  %v1190 = vrot.slane %v1074, %v1189
  %1192 = vmatprep.subr.mxu0 0.0
  %1193 = vmatpush1.msra.mxu0 0.0
  %1194 = vmatprep.subr.mxu0 0.0
  %1195 = vmatpush1.msra.mxu0 0.0
  %1196 = vmatprep.subr.mxu0 0.0
  %1197 = vmatpush1.msra.mxu0 0.0
  %1198 = vmatprep.subr.mxu0 0.0
  %1199 = vmatpush1.msra.mxu0 0.0
  %1200 = vmatprep.subr.mxu0 0.0
  %1201 = vmatpush1.msra.mxu0 0.0
  %1202 = vmatprep.subr.mxu0 0.0
  %1203 = vmatpush1.msra.mxu0 0.0
  %1204 = vmatprep.subr.mxu0 0.0
  %1205 = vmatpush1.msra.mxu0 0.0
  %1206 = vmatprep.subr.mxu0 0.0
  %1207 = vmatpush1.msra.mxu0 0.0
  %1208 = vmatprep.subr.mxu0 0.0
  %1209 = vmatpush1.msra.mxu0 0.0
  %1210 = vmatprep.subr.mxu0 0.0
  %1211 = vmatpush1.msra.mxu0 0.0
  %1212 = vmatprep.subr.mxu0 0.0
  %1213 = vmatpush1.msra.mxu0 0.0
  %1214 = vmatprep.subr.mxu0 0.0
  %1215 = vmatpush1.msra.mxu0 0.0
  %1216 = vmatprep.subr.mxu0 0.0
  %1217 = vmatpush1.msra.mxu0 %v1072
  %1218 = vmatprep.subr.mxu0 0.0
  %1219 = vmatpush1.msra.mxu0 %v1071
  %1220 = vmatprep.subr.mxu0 0.0
  %1221 = vmatpush1.msra.mxu0 %v1070
  %1222 = vmatprep.subr.mxu0 0.0
  %1223 = vmatpush1.msra.mxu0 %v1069
  %1224 = vmatprep.subr.mxu0 0.0
  %1225 = vmatpush2.msra.mxu0 0.0
  %1226 = vmatprep.subr.mxu0 0.0
  %1227 = vmatpush2.msra.mxu0 0.0
  %1228 = vmatprep.subr.mxu0 0.0
  %1229 = vmatpush2.msra.mxu0 0.0
  %1230 = vmatprep.subr.mxu0 0.0
  %1231 = vmatpush2.msra.mxu0 0.0
  %1232 = vmatprep.subr.mxu0 0.0
  %1233 = vmatpush2.msra.mxu0 0.0
  %1234 = vmatprep.subr.mxu0 0.0
  %1235 = vmatpush2.msra.mxu0 0.0
  %1236 = vmatprep.subr.mxu0 0.0
  %1237 = vmatpush2.msra.mxu0 0.0
  %1238 = vmatprep.subr.mxu0 0.0
  %1239 = vmatpush2.msra.mxu0 0.0
  %1240 = vmatprep.subr.mxu0 0.0
  %1241 = vmatpush2.msra.mxu0 0.0
  %1242 = vmatprep.subr.mxu0 0.0
  %1243 = vmatpush2.msra.mxu0 0.0
  %1244 = vmatprep.subr.mxu0 0.0
  %1245 = vmatpush2.msra.mxu0 0.0
  %1246 = vmatprep.subr.mxu0 0.0
  %1247 = vmatpush2.msra.mxu0 0.0
  %1248 = vmatprep.subr.mxu0 0.0
  %1249 = vmatpush2.msra.mxu0 0.0
  %1250 = vmatprep.subr.mxu0 0.0
  %1251 = vmatpush2.msra.mxu0 0.0
  %1252 = vmatprep.subr.mxu0 0.0
  %1253 = vmatpush2.msra.mxu0 0.0
  %1254 = vmatprep.subr.mxu0 0.0
  %1255 = vmatpush2.msra.mxu0 0.0
  %1256 = vmatprep.mubr.f32.mxu0 0.0
  %1257 = vmatmul.mubr.f32.gmra.mxu0 %v241
  %v1258 = vpop.f32.mrf.mxu0
  %v1259 = vadd.f32 %v1190, %v1258
  %v1260 = vpop.f32.mrf.mxu0
  %1261 = vdwg.mxu0
  %v1262 = vadd.f32 %v1183, %v1259
  %v1263 = vxor.u32 %v1262, 2147483648
  %v1264 = vmul.f32 %v1263, 1.442695
  %v1265 = vpow.pop %v1264
  %v1266 = vadd.f32 %v1265, 1.0
  %v1267 = vrcp.pop %v1266
  %v1268 = vmul.f32 1.0, %v1267
  %1270 = vrot.lane.b32.xlu0 %v1259, 64
  %v1271 = vpop.permute.xlu0 %1270
  %v1273 = vmul.f32 %v1268, %v1271
  %1275 = vrot.lane.b32.xlu0 %v1273, 64
  %v1276 = vpop.permute.xlu0 %1275
  %v1278 = vadd.f32 %v1183, %v1276
  %v1279 = vtanh.pop %v1278
  %v1280 = vsub.f32 1.0, %v1268
  %1282 = vrot.lane.b32.xlu0 %v1279, 96
  %v1283 = vpop.permute.xlu0 %1282
  %v1285 = vmul.f32 %v1280, %v1283
  %v1286 = vmul.f32 %v1268, 0.0
  %v1287 = vadd.f32 %v1285, %v1286
  %vm1288 = vcmask 523520
  %1289 = vst.msk [vmem:[#allocation2 + $0x38] sm:$0xff] %vm1288, %v1287
  %1291 = vrot.lane.b32.xlu0 %v1287, 96
  %v1292 = vpop.permute.xlu0 %1291
  %v1293 = vsel %vm104, %v1292, 0
  %1295 = vmatprep.subr.mxu0 0.0
  %1296 = vmatpush1.msra.mxu0 0.0
  %1297 = vmatprep.subr.mxu0 0.0
  %1298 = vmatpush1.msra.mxu0 0.0
  %1299 = vmatprep.subr.mxu0 0.0
  %1300 = vmatpush1.msra.mxu0 0.0
  %1301 = vmatprep.subr.mxu0 0.0
  %1302 = vmatpush1.msra.mxu0 0.0
  %1303 = vmatprep.subr.mxu0 0.0
  %1304 = vmatpush1.msra.mxu0 0.0
  %1305 = vmatprep.subr.mxu0 0.0
  %1306 = vmatpush1.msra.mxu0 0.0
  %1307 = vmatprep.subr.mxu0 0.0
  %1308 = vmatpush1.msra.mxu0 0.0
  %1309 = vmatprep.subr.mxu0 0.0
  %1310 = vmatpush1.msra.mxu0 0.0
  %1311 = vmatprep.subr.mxu0 0.0
  %1312 = vmatpush1.msra.mxu0 0.0
  %1313 = vmatprep.subr.mxu0 0.0
  %1314 = vmatpush1.msra.mxu0 0.0
  %1315 = vmatprep.subr.mxu0 0.0
  %1316 = vmatpush1.msra.mxu0 0.0
  %1317 = vmatprep.subr.mxu0 0.0
  %1318 = vmatpush1.msra.mxu0 0.0
  %1319 = vmatprep.subr.mxu0 0.0
  %1320 = vmatpush1.msra.mxu0 %v1072
  %1321 = vmatprep.subr.mxu0 0.0
  %1322 = vmatpush1.msra.mxu0 %v1071
  %1323 = vmatprep.subr.mxu0 0.0
  %1324 = vmatpush1.msra.mxu0 %v1070
  %1325 = vmatprep.subr.mxu0 0.0
  %1326 = vmatpush1.msra.mxu0 %v1069
  %1327 = vmatprep.subr.mxu0 0.0
  %1328 = vmatpush2.msra.mxu0 0.0
  %1329 = vmatprep.subr.mxu0 0.0
  %1330 = vmatpush2.msra.mxu0 0.0
  %1331 = vmatprep.subr.mxu0 0.0
  %1332 = vmatpush2.msra.mxu0 0.0
  %1333 = vmatprep.subr.mxu0 0.0
  %1334 = vmatpush2.msra.mxu0 0.0
  %1335 = vmatprep.subr.mxu0 0.0
  %1336 = vmatpush2.msra.mxu0 0.0
  %1337 = vmatprep.subr.mxu0 0.0
  %1338 = vmatpush2.msra.mxu0 0.0
  %1339 = vmatprep.subr.mxu0 0.0
  %1340 = vmatpush2.msra.mxu0 0.0
  %1341 = vmatprep.subr.mxu0 0.0
  %1342 = vmatpush2.msra.mxu0 0.0
  %1343 = vmatprep.subr.mxu0 0.0
  %1344 = vmatpush2.msra.mxu0 0.0
  %1345 = vmatprep.subr.mxu0 0.0
  %1346 = vmatpush2.msra.mxu0 0.0
  %1347 = vmatprep.subr.mxu0 0.0
  %1348 = vmatpush2.msra.mxu0 0.0
  %1349 = vmatprep.subr.mxu0 0.0
  %1350 = vmatpush2.msra.mxu0 0.0
  %1351 = vmatprep.subr.mxu0 0.0
  %1352 = vmatpush2.msra.mxu0 0.0
  %1353 = vmatprep.subr.mxu0 0.0
  %1354 = vmatpush2.msra.mxu0 0.0
  %1355 = vmatprep.subr.mxu0 0.0
  %1356 = vmatpush2.msra.mxu0 0.0
  %1357 = vmatprep.subr.mxu0 0.0
  %1358 = vmatpush2.msra.mxu0 0.0
  %1359 = vmatprep.mubr.f32.mxu0 0.0
  %1360 = vmatmul.mubr.f32.gmra.mxu0 %v1293
  %v1361 = vpop.f32.mrf.mxu0
  %v1362 = vadd.f32 %v1190, %v1361
  %v1363 = vpop.f32.mrf.mxu0
  %1364 = vdwg.mxu0
  %v1365 = vadd.f32 %v1178, %v1362
  %v1366 = vxor.u32 %v1365, 2147483648
  %v1367 = vmul.f32 %v1366, 1.442695
  %v1368 = vpow.pop %v1367
  %v1369 = vadd.f32 %v1368, 1.0
  %v1370 = vrcp.pop %v1369
  %v1371 = vmul.f32 1.0, %v1370
  %1373 = vrot.lane.b32.xlu0 %v1362, 64
  %v1374 = vpop.permute.xlu0 %1373
  %v1376 = vmul.f32 %v1371, %v1374
  %1378 = vrot.lane.b32.xlu0 %v1376, 64
  %v1379 = vpop.permute.xlu0 %1378
  %v1381 = vadd.f32 %v1178, %v1379
  %v1382 = vtanh.pop %v1381
  %v1383 = vsub.f32 1.0, %v1371
  %1385 = vrot.lane.b32.xlu0 %v1382, 96
  %v1386 = vpop.permute.xlu0 %1385
  %v1388 = vmul.f32 %v1383, %v1386
  %v1389 = vmul.f32 %v1371, %v1287
  %v1390 = vadd.f32 %v1388, %v1389
  %1391 = vst.msk [vmem:[#allocation2 + $0x30] sm:$0xff] %vm1288, %v1390
  %1393 = vrot.lane.b32.xlu0 %v1390, 96
  %v1394 = vpop.permute.xlu0 %1393
  %v1395 = vsel %vm104, %v1394, 0
  %1397 = vmatprep.subr.mxu0 0.0
  %1398 = vmatpush1.msra.mxu0 0.0
  %1399 = vmatprep.subr.mxu0 0.0
  %1400 = vmatpush1.msra.mxu0 0.0
  %1401 = vmatprep.subr.mxu0 0.0
  %1402 = vmatpush1.msra.mxu0 0.0
  %1403 = vmatprep.subr.mxu0 0.0
  %1404 = vmatpush1.msra.mxu0 0.0
  %1405 = vmatprep.subr.mxu0 0.0
  %1406 = vmatpush1.msra.mxu0 0.0
  %1407 = vmatprep.subr.mxu0 0.0
  %1408 = vmatpush1.msra.mxu0 0.0
  %1409 = vmatprep.subr.mxu0 0.0
  %1410 = vmatpush1.msra.mxu0 0.0
  %1411 = vmatprep.subr.mxu0 0.0
  %1412 = vmatpush1.msra.mxu0 0.0
  %1413 = vmatprep.subr.mxu0 0.0
  %1414 = vmatpush1.msra.mxu0 0.0
  %1415 = vmatprep.subr.mxu0 0.0
  %1416 = vmatpush1.msra.mxu0 0.0
  %1417 = vmatprep.subr.mxu0 0.0
  %1418 = vmatpush1.msra.mxu0 0.0
  %1419 = vmatprep.subr.mxu0 0.0
  %1420 = vmatpush1.msra.mxu0 0.0
  %1421 = vmatprep.subr.mxu0 0.0
  %1422 = vmatpush1.msra.mxu0 %v1072
  %1423 = vmatprep.subr.mxu0 0.0
  %1424 = vmatpush1.msra.mxu0 %v1071
  %1425 = vmatprep.subr.mxu0 0.0
  %1426 = vmatpush1.msra.mxu0 %v1070
  %1427 = vmatprep.subr.mxu0 0.0
  %1428 = vmatpush1.msra.mxu0 %v1069
  %1429 = vmatprep.subr.mxu0 0.0
  %1430 = vmatpush2.msra.mxu0 0.0
  %1431 = vmatprep.subr.mxu0 0.0
  %1432 = vmatpush2.msra.mxu0 0.0
  %1433 = vmatprep.subr.mxu0 0.0
  %1434 = vmatpush2.msra.mxu0 0.0
  %1435 = vmatprep.subr.mxu0 0.0
  %1436 = vmatpush2.msra.mxu0 0.0
  %1437 = vmatprep.subr.mxu0 0.0
  %1438 = vmatpush2.msra.mxu0 0.0
  %1439 = vmatprep.subr.mxu0 0.0
  %1440 = vmatpush2.msra.mxu0 0.0
  %1441 = vmatprep.subr.mxu0 0.0
  %1442 = vmatpush2.msra.mxu0 0.0
  %1443 = vmatprep.subr.mxu0 0.0
  %1444 = vmatpush2.msra.mxu0 0.0
  %1445 = vmatprep.subr.mxu0 0.0
  %1446 = vmatpush2.msra.mxu0 0.0
  %1447 = vmatprep.subr.mxu0 0.0
  %1448 = vmatpush2.msra.mxu0 0.0
  %1449 = vmatprep.subr.mxu0 0.0
  %1450 = vmatpush2.msra.mxu0 0.0
  %1451 = vmatprep.subr.mxu0 0.0
  %1452 = vmatpush2.msra.mxu0 0.0
  %1453 = vmatprep.subr.mxu0 0.0
  %1454 = vmatpush2.msra.mxu0 0.0
  %1455 = vmatprep.subr.mxu0 0.0
  %1456 = vmatpush2.msra.mxu0 0.0
  %1457 = vmatprep.subr.mxu0 0.0
  %1458 = vmatpush2.msra.mxu0 0.0
  %1459 = vmatprep.subr.mxu0 0.0
  %1460 = vmatpush2.msra.mxu0 0.0
  %1461 = vmatprep.mubr.f32.mxu0 0.0
  %1462 = vmatmul.mubr.f32.gmra.mxu0 %v1395
  %v1463 = vpop.f32.mrf.mxu0
  %v1464 = vadd.f32 %v1190, %v1463
  %v1465 = vpop.f32.mrf.mxu0
  %1466 = vdwg.mxu0
  %v1467 = vadd.f32 %v1173, %v1464
  %v1468 = vxor.u32 %v1467, 2147483648
  %v1469 = vmul.f32 %v1468, 1.442695
  %v1470 = vpow.pop %v1469
  %v1471 = vadd.f32 %v1470, 1.0
  %v1472 = vrcp.pop %v1471
  %v1473 = vmul.f32 1.0, %v1472
  %1475 = vrot.lane.b32.xlu0 %v1464, 64
  %v1476 = vpop.permute.xlu0 %1475
  %v1478 = vmul.f32 %v1473, %v1476
  %1480 = vrot.lane.b32.xlu0 %v1478, 64
  %v1481 = vpop.permute.xlu0 %1480
  %v1483 = vadd.f32 %v1173, %v1481
  %v1484 = vtanh.pop %v1483
  %v1485 = vsub.f32 1.0, %v1473
  %1487 = vrot.lane.b32.xlu0 %v1484, 96
  %v1488 = vpop.permute.xlu0 %1487
  %v1490 = vmul.f32 %v1485, %v1488
  %v1491 = vmul.f32 %v1473, %v1390
  %v1492 = vadd.f32 %v1490, %v1491
  %1493 = vst.msk [vmem:[#allocation2 + $0x28] sm:$0xff] %vm1288, %v1492
  %1495 = vrot.lane.b32.xlu0 %v1492, 96
  %v1496 = vpop.permute.xlu0 %1495
  %v1497 = vsel %vm104, %v1496, 0
  %1499 = vmatprep.subr.mxu0 0.0
  %1500 = vmatpush1.msra.mxu0 0.0
  %1501 = vmatprep.subr.mxu0 0.0
  %1502 = vmatpush1.msra.mxu0 0.0
  %1503 = vmatprep.subr.mxu0 0.0
  %1504 = vmatpush1.msra.mxu0 0.0
  %1505 = vmatprep.subr.mxu0 0.0
  %1506 = vmatpush1.msra.mxu0 0.0
  %1507 = vmatprep.subr.mxu0 0.0
  %1508 = vmatpush1.msra.mxu0 0.0
  %1509 = vmatprep.subr.mxu0 0.0
  %1510 = vmatpush1.msra.mxu0 0.0
  %1511 = vmatprep.subr.mxu0 0.0
  %1512 = vmatpush1.msra.mxu0 0.0
  %1513 = vmatprep.subr.mxu0 0.0
  %1514 = vmatpush1.msra.mxu0 0.0
  %1515 = vmatprep.subr.mxu0 0.0
  %1516 = vmatpush1.msra.mxu0 0.0
  %1517 = vmatprep.subr.mxu0 0.0
  %1518 = vmatpush1.msra.mxu0 0.0
  %1519 = vmatprep.subr.mxu0 0.0
  %1520 = vmatpush1.msra.mxu0 0.0
  %1521 = vmatprep.subr.mxu0 0.0
  %1522 = vmatpush1.msra.mxu0 0.0
  %1523 = vmatprep.subr.mxu0 0.0
  %1524 = vmatpush1.msra.mxu0 %v1072
  %1525 = vmatprep.subr.mxu0 0.0
  %1526 = vmatpush1.msra.mxu0 %v1071
  %1527 = vmatprep.subr.mxu0 0.0
  %1528 = vmatpush1.msra.mxu0 %v1070
  %1529 = vmatprep.subr.mxu0 0.0
  %1530 = vmatpush1.msra.mxu0 %v1069
  %1531 = vmatprep.subr.mxu0 0.0
  %1532 = vmatpush2.msra.mxu0 0.0
  %1533 = vmatprep.subr.mxu0 0.0
  %1534 = vmatpush2.msra.mxu0 0.0
  %1535 = vmatprep.subr.mxu0 0.0
  %1536 = vmatpush2.msra.mxu0 0.0
  %1537 = vmatprep.subr.mxu0 0.0
  %1538 = vmatpush2.msra.mxu0 0.0
  %1539 = vmatprep.subr.mxu0 0.0
  %1540 = vmatpush2.msra.mxu0 0.0
  %1541 = vmatprep.subr.mxu0 0.0
  %1542 = vmatpush2.msra.mxu0 0.0
  %1543 = vmatprep.subr.mxu0 0.0
  %1544 = vmatpush2.msra.mxu0 0.0
  %1545 = vmatprep.subr.mxu0 0.0
  %1546 = vmatpush2.msra.mxu0 0.0
  %1547 = vmatprep.subr.mxu0 0.0
  %1548 = vmatpush2.msra.mxu0 0.0
  %1549 = vmatprep.subr.mxu0 0.0
  %1550 = vmatpush2.msra.mxu0 0.0
  %1551 = vmatprep.subr.mxu0 0.0
  %1552 = vmatpush2.msra.mxu0 0.0
  %1553 = vmatprep.subr.mxu0 0.0
  %1554 = vmatpush2.msra.mxu0 0.0
  %1555 = vmatprep.subr.mxu0 0.0
  %1556 = vmatpush2.msra.mxu0 0.0
  %1557 = vmatprep.subr.mxu0 0.0
  %1558 = vmatpush2.msra.mxu0 0.0
  %1559 = vmatprep.subr.mxu0 0.0
  %1560 = vmatpush2.msra.mxu0 0.0
  %1561 = vmatprep.subr.mxu0 0.0
  %1562 = vmatpush2.msra.mxu0 0.0
  %1563 = vmatprep.mubr.f32.mxu0 0.0
  %1564 = vmatmul.mubr.f32.gmra.mxu0 %v1497
  %v1565 = vpop.f32.mrf.mxu0
  %v1566 = vadd.f32 %v1190, %v1565
  %v1567 = vpop.f32.mrf.mxu0
  %1568 = vdwg.mxu0
  %v1569 = vadd.f32 %v1168, %v1566
  %v1570 = vxor.u32 %v1569, 2147483648
  %v1571 = vmul.f32 %v1570, 1.442695
  %v1572 = vpow.pop %v1571
  %v1573 = vadd.f32 %v1572, 1.0
  %v1574 = vrcp.pop %v1573
  %v1575 = vmul.f32 1.0, %v1574
  %1577 = vrot.lane.b32.xlu0 %v1566, 64
  %v1578 = vpop.permute.xlu0 %1577
  %v1580 = vmul.f32 %v1575, %v1578
  %1582 = vrot.lane.b32.xlu0 %v1580, 64
  %v1583 = vpop.permute.xlu0 %1582
  %v1585 = vadd.f32 %v1168, %v1583
  %v1586 = vtanh.pop %v1585
  %v1587 = vsub.f32 1.0, %v1575
  %1589 = vrot.lane.b32.xlu0 %v1586, 96
  %v1590 = vpop.permute.xlu0 %1589
  %v1592 = vmul.f32 %v1587, %v1590
  %v1593 = vmul.f32 %v1575, %v1492
  %v1594 = vadd.f32 %v1592, %v1593
  %1595 = vst.msk [vmem:[#allocation2 + $0x20] sm:$0xff] %vm1288, %v1594
  %1597 = vrot.lane.b32.xlu0 %v1594, 96
  %v1598 = vpop.permute.xlu0 %1597
  %v1599 = vsel %vm104, %v1598, 0
  %1601 = vmatprep.subr.mxu0 0.0
  %1602 = vmatpush1.msra.mxu0 0.0
  %1603 = vmatprep.subr.mxu0 0.0
  %1604 = vmatpush1.msra.mxu0 0.0
  %1605 = vmatprep.subr.mxu0 0.0
  %1606 = vmatpush1.msra.mxu0 0.0
  %1607 = vmatprep.subr.mxu0 0.0
  %1608 = vmatpush1.msra.mxu0 0.0
  %1609 = vmatprep.subr.mxu0 0.0
  %1610 = vmatpush1.msra.mxu0 0.0
  %1611 = vmatprep.subr.mxu0 0.0
  %1612 = vmatpush1.msra.mxu0 0.0
  %1613 = vmatprep.subr.mxu0 0.0
  %1614 = vmatpush1.msra.mxu0 0.0
  %1615 = vmatprep.subr.mxu0 0.0
  %1616 = vmatpush1.msra.mxu0 0.0
  %1617 = vmatprep.subr.mxu0 0.0
  %1618 = vmatpush1.msra.mxu0 0.0
  %1619 = vmatprep.subr.mxu0 0.0
  %1620 = vmatpush1.msra.mxu0 0.0
  %1621 = vmatprep.subr.mxu0 0.0
  %1622 = vmatpush1.msra.mxu0 0.0
  %1623 = vmatprep.subr.mxu0 0.0
  %1624 = vmatpush1.msra.mxu0 0.0
  %1625 = vmatprep.subr.mxu0 0.0
  %1626 = vmatpush1.msra.mxu0 %v1072
  %1627 = vmatprep.subr.mxu0 0.0
  %1628 = vmatpush1.msra.mxu0 %v1071
  %1629 = vmatprep.subr.mxu0 0.0
  %1630 = vmatpush1.msra.mxu0 %v1070
  %1631 = vmatprep.subr.mxu0 0.0
  %1632 = vmatpush1.msra.mxu0 %v1069
  %1633 = vmatprep.subr.mxu0 0.0
  %1634 = vmatpush2.msra.mxu0 0.0
  %1635 = vmatprep.subr.mxu0 0.0
  %1636 = vmatpush2.msra.mxu0 0.0
  %1637 = vmatprep.subr.mxu0 0.0
  %1638 = vmatpush2.msra.mxu0 0.0
  %1639 = vmatprep.subr.mxu0 0.0
  %1640 = vmatpush2.msra.mxu0 0.0
  %1641 = vmatprep.subr.mxu0 0.0
  %1642 = vmatpush2.msra.mxu0 0.0
  %1643 = vmatprep.subr.mxu0 0.0
  %1644 = vmatpush2.msra.mxu0 0.0
  %1645 = vmatprep.subr.mxu0 0.0
  %1646 = vmatpush2.msra.mxu0 0.0
  %1647 = vmatprep.subr.mxu0 0.0
  %1648 = vmatpush2.msra.mxu0 0.0
  %1649 = vmatprep.subr.mxu0 0.0
  %1650 = vmatpush2.msra.mxu0 0.0
  %1651 = vmatprep.subr.mxu0 0.0
  %1652 = vmatpush2.msra.mxu0 0.0
  %1653 = vmatprep.subr.mxu0 0.0
  %1654 = vmatpush2.msra.mxu0 0.0
  %1655 = vmatprep.subr.mxu0 0.0
  %1656 = vmatpush2.msra.mxu0 0.0
  %1657 = vmatprep.subr.mxu0 0.0
  %1658 = vmatpush2.msra.mxu0 0.0
  %1659 = vmatprep.subr.mxu0 0.0
  %1660 = vmatpush2.msra.mxu0 0.0
  %1661 = vmatprep.subr.mxu0 0.0
  %1662 = vmatpush2.msra.mxu0 0.0
  %1663 = vmatprep.subr.mxu0 0.0
  %1664 = vmatpush2.msra.mxu0 0.0
  %1665 = vmatprep.mubr.f32.mxu0 0.0
  %1666 = vmatmul.mubr.f32.gmra.mxu0 %v1599
  %v1667 = vpop.f32.mrf.mxu0
  %v1668 = vadd.f32 %v1190, %v1667
  %v1669 = vpop.f32.mrf.mxu0
  %1670 = vdwg.mxu0
  %v1671 = vadd.f32 %v1163, %v1668
  %v1672 = vxor.u32 %v1671, 2147483648
  %v1673 = vmul.f32 %v1672, 1.442695
  %v1674 = vpow.pop %v1673
  %v1675 = vadd.f32 %v1674, 1.0
  %v1676 = vrcp.pop %v1675
  %v1677 = vmul.f32 1.0, %v1676
  %1679 = vrot.lane.b32.xlu0 %v1668, 64
  %v1680 = vpop.permute.xlu0 %1679
  %v1682 = vmul.f32 %v1677, %v1680
  %1684 = vrot.lane.b32.xlu0 %v1682, 64
  %v1685 = vpop.permute.xlu0 %1684
  %v1687 = vadd.f32 %v1163, %v1685
  %v1688 = vtanh.pop %v1687
  %v1689 = vsub.f32 1.0, %v1677
  %1691 = vrot.lane.b32.xlu0 %v1688, 96
  %v1692 = vpop.permute.xlu0 %1691
  %v1694 = vmul.f32 %v1689, %v1692
  %v1695 = vmul.f32 %v1677, %v1594
  %v1696 = vadd.f32 %v1694, %v1695
  %1697 = vst.msk [vmem:[#allocation2 + $0x18] sm:$0xff] %vm1288, %v1696
  %1699 = vrot.lane.b32.xlu0 %v1696, 96
  %v1700 = vpop.permute.xlu0 %1699
  %v1701 = vsel %vm104, %v1700, 0
  %1703 = vmatprep.subr.mxu0 0.0
  %1704 = vmatpush1.msra.mxu0 0.0
  %1705 = vmatprep.subr.mxu0 0.0
  %1706 = vmatpush1.msra.mxu0 0.0
  %1707 = vmatprep.subr.mxu0 0.0
  %1708 = vmatpush1.msra.mxu0 0.0
  %1709 = vmatprep.subr.mxu0 0.0
  %1710 = vmatpush1.msra.mxu0 0.0
  %1711 = vmatprep.subr.mxu0 0.0
  %1712 = vmatpush1.msra.mxu0 0.0
  %1713 = vmatprep.subr.mxu0 0.0
  %1714 = vmatpush1.msra.mxu0 0.0
  %1715 = vmatprep.subr.mxu0 0.0
  %1716 = vmatpush1.msra.mxu0 0.0
  %1717 = vmatprep.subr.mxu0 0.0
  %1718 = vmatpush1.msra.mxu0 0.0
  %1719 = vmatprep.subr.mxu0 0.0
  %1720 = vmatpush1.msra.mxu0 0.0
  %1721 = vmatprep.subr.mxu0 0.0
  %1722 = vmatpush1.msra.mxu0 0.0
  %1723 = vmatprep.subr.mxu0 0.0
  %1724 = vmatpush1.msra.mxu0 0.0
  %1725 = vmatprep.subr.mxu0 0.0
  %1726 = vmatpush1.msra.mxu0 0.0
  %1727 = vmatprep.subr.mxu0 0.0
  %1728 = vmatpush1.msra.mxu0 %v1072
  %1729 = vmatprep.subr.mxu0 0.0
  %1730 = vmatpush1.msra.mxu0 %v1071
  %1731 = vmatprep.subr.mxu0 0.0
  %1732 = vmatpush1.msra.mxu0 %v1070
  %1733 = vmatprep.subr.mxu0 0.0
  %1734 = vmatpush1.msra.mxu0 %v1069
  %1735 = vmatprep.subr.mxu0 0.0
  %1736 = vmatpush2.msra.mxu0 0.0
  %1737 = vmatprep.subr.mxu0 0.0
  %1738 = vmatpush2.msra.mxu0 0.0
  %1739 = vmatprep.subr.mxu0 0.0
  %1740 = vmatpush2.msra.mxu0 0.0
  %1741 = vmatprep.subr.mxu0 0.0
  %1742 = vmatpush2.msra.mxu0 0.0
  %1743 = vmatprep.subr.mxu0 0.0
  %1744 = vmatpush2.msra.mxu0 0.0
  %1745 = vmatprep.subr.mxu0 0.0
  %1746 = vmatpush2.msra.mxu0 0.0
  %1747 = vmatprep.subr.mxu0 0.0
  %1748 = vmatpush2.msra.mxu0 0.0
  %1749 = vmatprep.subr.mxu0 0.0
  %1750 = vmatpush2.msra.mxu0 0.0
  %1751 = vmatprep.subr.mxu0 0.0
  %1752 = vmatpush2.msra.mxu0 0.0
  %1753 = vmatprep.subr.mxu0 0.0
  %1754 = vmatpush2.msra.mxu0 0.0
  %1755 = vmatprep.subr.mxu0 0.0
  %1756 = vmatpush2.msra.mxu0 0.0
  %1757 = vmatprep.subr.mxu0 0.0
  %1758 = vmatpush2.msra.mxu0 0.0
  %1759 = vmatprep.subr.mxu0 0.0
  %1760 = vmatpush2.msra.mxu0 0.0
  %1761 = vmatprep.subr.mxu0 0.0
  %1762 = vmatpush2.msra.mxu0 0.0
  %1763 = vmatprep.subr.mxu0 0.0
  %1764 = vmatpush2.msra.mxu0 0.0
  %1765 = vmatprep.subr.mxu0 0.0
  %1766 = vmatpush2.msra.mxu0 0.0
  %1767 = vmatprep.mubr.f32.mxu0 0.0
  %1768 = vmatmul.mubr.f32.gmra.mxu0 %v1701
  %v1769 = vpop.f32.mrf.mxu0
  %v1770 = vadd.f32 %v1190, %v1769
  %v1771 = vpop.f32.mrf.mxu0
  %1772 = vdwg.mxu0
  %v1773 = vadd.f32 %v1158, %v1770
  %v1774 = vxor.u32 %v1773, 2147483648
  %v1775 = vmul.f32 %v1774, 1.442695
  %v1776 = vpow.pop %v1775
  %v1777 = vadd.f32 %v1776, 1.0
  %v1778 = vrcp.pop %v1777
  %v1779 = vmul.f32 1.0, %v1778
  %1781 = vrot.lane.b32.xlu0 %v1770, 64
  %v1782 = vpop.permute.xlu0 %1781
  %v1784 = vmul.f32 %v1779, %v1782
  %1786 = vrot.lane.b32.xlu0 %v1784, 64
  %v1787 = vpop.permute.xlu0 %1786
  %v1789 = vadd.f32 %v1158, %v1787
  %v1790 = vtanh.pop %v1789
  %v1791 = vsub.f32 1.0, %v1779
  %1793 = vrot.lane.b32.xlu0 %v1790, 96
  %v1794 = vpop.permute.xlu0 %1793
  %v1796 = vmul.f32 %v1791, %v1794
  %v1797 = vmul.f32 %v1779, %v1696
  %v1798 = vadd.f32 %v1796, %v1797
  %1799 = vst.msk [vmem:[#allocation2 + $0x10] sm:$0xff] %vm1288, %v1798
  %1801 = vrot.lane.b32.xlu0 %v1798, 96
  %v1802 = vpop.permute.xlu0 %1801
  %v1803 = vsel %vm104, %v1802, 0
  %1805 = vmatprep.subr.mxu0 0.0
  %1806 = vmatpush1.msra.mxu0 0.0
  %1807 = vmatprep.subr.mxu0 0.0
  %1808 = vmatpush1.msra.mxu0 0.0
  %1809 = vmatprep.subr.mxu0 0.0
  %1810 = vmatpush1.msra.mxu0 0.0
  %1811 = vmatprep.subr.mxu0 0.0
  %1812 = vmatpush1.msra.mxu0 0.0
  %1813 = vmatprep.subr.mxu0 0.0
  %1814 = vmatpush1.msra.mxu0 0.0
  %1815 = vmatprep.subr.mxu0 0.0
  %1816 = vmatpush1.msra.mxu0 0.0
  %1817 = vmatprep.subr.mxu0 0.0
  %1818 = vmatpush1.msra.mxu0 0.0
  %1819 = vmatprep.subr.mxu0 0.0
  %1820 = vmatpush1.msra.mxu0 0.0
  %1821 = vmatprep.subr.mxu0 0.0
  %1822 = vmatpush1.msra.mxu0 0.0
  %1823 = vmatprep.subr.mxu0 0.0
  %1824 = vmatpush1.msra.mxu0 0.0
  %1825 = vmatprep.subr.mxu0 0.0
  %1826 = vmatpush1.msra.mxu0 0.0
  %1827 = vmatprep.subr.mxu0 0.0
  %1828 = vmatpush1.msra.mxu0 0.0
  %1829 = vmatprep.subr.mxu0 0.0
  %1830 = vmatpush1.msra.mxu0 %v1072
  %1831 = vmatprep.subr.mxu0 0.0
  %1832 = vmatpush1.msra.mxu0 %v1071
  %1833 = vmatprep.subr.mxu0 0.0
  %1834 = vmatpush1.msra.mxu0 %v1070
  %1835 = vmatprep.subr.mxu0 0.0
  %1836 = vmatpush1.msra.mxu0 %v1069
  %1837 = vmatprep.subr.mxu0 0.0
  %1838 = vmatpush2.msra.mxu0 0.0
  %1839 = vmatprep.subr.mxu0 0.0
  %1840 = vmatpush2.msra.mxu0 0.0
  %1841 = vmatprep.subr.mxu0 0.0
  %1842 = vmatpush2.msra.mxu0 0.0
  %1843 = vmatprep.subr.mxu0 0.0
  %1844 = vmatpush2.msra.mxu0 0.0
  %1845 = vmatprep.subr.mxu0 0.0
  %1846 = vmatpush2.msra.mxu0 0.0
  %1847 = vmatprep.subr.mxu0 0.0
  %1848 = vmatpush2.msra.mxu0 0.0
  %1849 = vmatprep.subr.mxu0 0.0
  %1850 = vmatpush2.msra.mxu0 0.0
  %1851 = vmatprep.subr.mxu0 0.0
  %1852 = vmatpush2.msra.mxu0 0.0
  %1853 = vmatprep.subr.mxu0 0.0
  %1854 = vmatpush2.msra.mxu0 0.0
  %1855 = vmatprep.subr.mxu0 0.0
  %1856 = vmatpush2.msra.mxu0 0.0
  %1857 = vmatprep.subr.mxu0 0.0
  %1858 = vmatpush2.msra.mxu0 0.0
  %1859 = vmatprep.subr.mxu0 0.0
  %1860 = vmatpush2.msra.mxu0 0.0
  %1861 = vmatprep.subr.mxu0 0.0
  %1862 = vmatpush2.msra.mxu0 0.0
  %1863 = vmatprep.subr.mxu0 0.0
  %1864 = vmatpush2.msra.mxu0 0.0
  %1865 = vmatprep.subr.mxu0 0.0
  %1866 = vmatpush2.msra.mxu0 0.0
  %1867 = vmatprep.subr.mxu0 0.0
  %1868 = vmatpush2.msra.mxu0 0.0
  %1869 = vmatprep.mubr.f32.mxu0 0.0
  %1870 = vmatmul.mubr.f32.gmra.mxu0 %v1803
  %v1871 = vpop.f32.mrf.mxu0
  %v1872 = vadd.f32 %v1190, %v1871
  %v1873 = vpop.f32.mrf.mxu0
  %1874 = vdwg.mxu0
  %v1875 = vadd.f32 %v1153, %v1872
  %v1876 = vxor.u32 %v1875, 2147483648
  %v1877 = vmul.f32 %v1876, 1.442695
  %v1878 = vpow.pop %v1877
  %v1879 = vadd.f32 %v1878, 1.0
  %v1880 = vrcp.pop %v1879
  %v1881 = vmul.f32 1.0, %v1880
  %1883 = vrot.lane.b32.xlu0 %v1872, 64
  %v1884 = vpop.permute.xlu0 %1883
  %v1886 = vmul.f32 %v1881, %v1884
  %1888 = vrot.lane.b32.xlu0 %v1886, 64
  %v1889 = vpop.permute.xlu0 %1888
  %v1891 = vadd.f32 %v1153, %v1889
  %v1892 = vtanh.pop %v1891
  %v1893 = vsub.f32 1.0, %v1881
  %1895 = vrot.lane.b32.xlu0 %v1892, 96
  %v1896 = vpop.permute.xlu0 %1895
  %v1898 = vmul.f32 %v1893, %v1896
  %v1899 = vmul.f32 %v1881, %v1798
  %v1900 = vadd.f32 %v1898, %v1899
  %1901 = vst.msk [vmem:[#allocation2 + $0x8] sm:$0xff] %vm1288, %v1900
  %1903 = vrot.lane.b32.xlu0 %v1900, 96
  %v1904 = vpop.permute.xlu0 %1903
  %v1905 = vsel %vm104, %v1904, 0
  %1907 = vmatprep.subr.mxu0 0.0
  %1908 = vmatpush1.msra.mxu0 0.0
  %1909 = vmatprep.subr.mxu0 0.0
  %1910 = vmatpush1.msra.mxu0 0.0
  %1911 = vmatprep.subr.mxu0 0.0
  %1912 = vmatpush1.msra.mxu0 0.0
  %1913 = vmatprep.subr.mxu0 0.0
  %1914 = vmatpush1.msra.mxu0 0.0
  %1915 = vmatprep.subr.mxu0 0.0
  %1916 = vmatpush1.msra.mxu0 0.0
  %1917 = vmatprep.subr.mxu0 0.0
  %1918 = vmatpush1.msra.mxu0 0.0
  %1919 = vmatprep.subr.mxu0 0.0
  %1920 = vmatpush1.msra.mxu0 0.0
  %1921 = vmatprep.subr.mxu0 0.0
  %1922 = vmatpush1.msra.mxu0 0.0
  %1923 = vmatprep.subr.mxu0 0.0
  %1924 = vmatpush1.msra.mxu0 0.0
  %1925 = vmatprep.subr.mxu0 0.0
  %1926 = vmatpush1.msra.mxu0 0.0
  %1927 = vmatprep.subr.mxu0 0.0
  %1928 = vmatpush1.msra.mxu0 0.0
  %1929 = vmatprep.subr.mxu0 0.0
  %1930 = vmatpush1.msra.mxu0 0.0
  %1931 = vmatprep.subr.mxu0 0.0
  %1932 = vmatpush1.msra.mxu0 %v1072
  %1933 = vmatprep.subr.mxu0 0.0
  %1934 = vmatpush1.msra.mxu0 %v1071
  %1935 = vmatprep.subr.mxu0 0.0
  %1936 = vmatpush1.msra.mxu0 %v1070
  %1937 = vmatprep.subr.mxu0 0.0
  %1938 = vmatpush1.msra.mxu0 %v1069
  %1939 = vmatprep.subr.mxu0 0.0
  %1940 = vmatpush2.msra.mxu0 0.0
  %1941 = vmatprep.subr.mxu0 0.0
  %1942 = vmatpush2.msra.mxu0 0.0
  %1943 = vmatprep.subr.mxu0 0.0
  %1944 = vmatpush2.msra.mxu0 0.0
  %1945 = vmatprep.subr.mxu0 0.0
  %1946 = vmatpush2.msra.mxu0 0.0
  %1947 = vmatprep.subr.mxu0 0.0
  %1948 = vmatpush2.msra.mxu0 0.0
  %1949 = vmatprep.subr.mxu0 0.0
  %1950 = vmatpush2.msra.mxu0 0.0
  %1951 = vmatprep.subr.mxu0 0.0
  %1952 = vmatpush2.msra.mxu0 0.0
  %1953 = vmatprep.subr.mxu0 0.0
  %1954 = vmatpush2.msra.mxu0 0.0
  %1955 = vmatprep.subr.mxu0 0.0
  %1956 = vmatpush2.msra.mxu0 0.0
  %1957 = vmatprep.subr.mxu0 0.0
  %1958 = vmatpush2.msra.mxu0 0.0
  %1959 = vmatprep.subr.mxu0 0.0
  %1960 = vmatpush2.msra.mxu0 0.0
  %1961 = vmatprep.subr.mxu0 0.0
  %1962 = vmatpush2.msra.mxu0 0.0
  %1963 = vmatprep.subr.mxu0 0.0
  %1964 = vmatpush2.msra.mxu0 0.0
  %1965 = vmatprep.subr.mxu0 0.0
  %1966 = vmatpush2.msra.mxu0 0.0
  %1967 = vmatprep.subr.mxu0 0.0
  %1968 = vmatpush2.msra.mxu0 0.0
  %1969 = vmatprep.subr.mxu0 0.0
  %1970 = vmatpush2.msra.mxu0 0.0
  %1971 = vmatprep.mubr.f32.mxu0 0.0
  %1972 = vmatmul.mubr.f32.gmra.mxu0 %v1905
  %v1973 = vpop.f32.mrf.mxu0
  %v1974 = vadd.f32 %v1190, %v1973
  %v1975 = vpop.f32.mrf.mxu0
  %1976 = vdwg.mxu0
  %v1977 = vadd.f32 %v1148, %v1974
  %v1978 = vxor.u32 %v1977, 2147483648
  %v1979 = vmul.f32 %v1978, 1.442695
  %v1980 = vpow.pop %v1979
  %v1981 = vadd.f32 %v1980, 1.0
  %v1982 = vrcp.pop %v1981
  %v1983 = vmul.f32 1.0, %v1982
  %1985 = vrot.lane.b32.xlu0 %v1974, 64
  %v1986 = vpop.permute.xlu0 %1985
  %v1988 = vmul.f32 %v1983, %v1986
  %1990 = vrot.lane.b32.xlu0 %v1988, 64
  %v1991 = vpop.permute.xlu0 %1990
  %v1993 = vadd.f32 %v1148, %v1991
  %v1994 = vtanh.pop %v1993
  %v1995 = vsub.f32 1.0, %v1983
  %1997 = vrot.lane.b32.xlu0 %v1994, 96
  %v1998 = vpop.permute.xlu0 %1997
  %v2000 = vmul.f32 %v1995, %v1998
  %v2001 = vmul.f32 %v1983, %v1900
  %v2002 = vadd.f32 %v2000, %v2001
  %2003 = vst.msk [vmem:[#allocation2] sm:$0xff] %vm1288, %v2002
  %v2004 = vld [vmem:[#allocation2] sm:$0xff]
  %v2005 = vld [vmem:[#allocation2 + $0x8] sm:$0xff]
  %v2006 = vld [vmem:[#allocation2 + $0x10] sm:$0xff]
  %v2007 = vld [vmem:[#allocation2 + $0x18] sm:$0xff]
  %v2008 = vld [vmem:[#allocation2 + $0x20] sm:$0xff]
  %v2009 = vld [vmem:[#allocation2 + $0x28] sm:$0xff]
  %v2010 = vld [vmem:[#allocation2 + $0x30] sm:$0xff]
  %v2011 = vld [vmem:[#allocation2 + $0x38] sm:$0xff]
  %v2012 = vld [vmem:[%s9] sm:$0xff]
  %v2013 = vld [vmem:[%s9 + $0x8] sm:$0xff]
  %v2014 = vld [vmem:[%s9 + $0x10] sm:$0xff]
  %v2015 = vld [vmem:[%s9 + $0x18] sm:$0xff]
  %v2016 = vld [vmem:[%s9 + $0x20] sm:$0xff]
  %v2017 = vld [vmem:[%s9 + $0x28] sm:$0xff]
  %v2018 = vld [vmem:[%s9 + $0x30] sm:$0xff]
  %v2019 = vld [vmem:[%s9 + $0x38] sm:$0xff]
  %v2020 = vld [vmem:[%s10] sm:$0xff]
  %v2021 = vld [vmem:[%s10 + $0x8] sm:$0xff]
  %v2022 = vld [vmem:[%s10 + $0x10] sm:$0xff]
  %v2023 = vld [vmem:[%s10 + $0x18] sm:$0xff]
  %v2024 = vld [vmem:[%s11] sm:$0x1]
  %v2025 = vld [vmem:[%s12] sm:$0x1]
  %v2027 = vlaneseq
  %v2028 = vshrl.u32 %v2027, 7
  %v2029 = vsub.s32 0, %v2028
  %v2030 = vrot.slane %v2024, %v2029
  %vm2032 = vcmask 523264
  %v2034 = vsel %vm2032, %v2004, 0
  %v2037 = vsel %vm2032, %v2005, 0
  %v2040 = vsel %vm2032, %v2006, 0
  %v2043 = vsel %vm2032, %v2007, 0
  %v2046 = vsel %vm2032, %v2008, 0
  %v2049 = vsel %vm2032, %v2009, 0
  %v2052 = vsel %vm2032, %v2010, 0
  %v2055 = vsel %vm2032, %v2011, 0
  %2057 = vmatprep.subr.mxu0 0.0
  %2058 = vmatpush1.msra.mxu0 0.0
  %2059 = vmatprep.subr.mxu0 0.0
  %2060 = vmatpush1.msra.mxu0 0.0
  %2061 = vmatprep.subr.mxu0 0.0
  %2062 = vmatpush1.msra.mxu0 0.0
  %2063 = vmatprep.subr.mxu0 0.0
  %2064 = vmatpush1.msra.mxu0 0.0
  %2065 = vmatprep.subr.mxu0 0.0
  %2066 = vmatpush1.msra.mxu0 0.0
  %2067 = vmatprep.subr.mxu0 0.0
  %2068 = vmatpush1.msra.mxu0 0.0
  %2069 = vmatprep.subr.mxu0 0.0
  %2070 = vmatpush1.msra.mxu0 0.0
  %2071 = vmatprep.subr.mxu0 0.0
  %2072 = vmatpush1.msra.mxu0 0.0
  %2073 = vmatprep.subr.mxu0 0.0
  %2074 = vmatpush1.msra.mxu0 %v2019
  %2075 = vmatprep.subr.mxu0 0.0
  %2076 = vmatpush1.msra.mxu0 %v2018
  %2077 = vmatprep.subr.mxu0 0.0
  %2078 = vmatpush1.msra.mxu0 %v2017
  %2079 = vmatprep.subr.mxu0 0.0
  %2080 = vmatpush1.msra.mxu0 %v2016
  %2081 = vmatprep.subr.mxu0 0.0
  %2082 = vmatpush1.msra.mxu0 %v2015
  %2083 = vmatprep.subr.mxu0 0.0
  %2084 = vmatpush1.msra.mxu0 %v2014
  %2085 = vmatprep.subr.mxu0 0.0
  %2086 = vmatpush1.msra.mxu0 %v2013
  %2087 = vmatprep.subr.mxu0 0.0
  %2088 = vmatpush1.msra.mxu0 %v2012
  %2089 = vmatprep.subr.mxu0 0.0
  %2090 = vmatpush2.msra.mxu0 0.0
  %2091 = vmatprep.subr.mxu0 0.0
  %2092 = vmatpush2.msra.mxu0 0.0
  %2093 = vmatprep.subr.mxu0 0.0
  %2094 = vmatpush2.msra.mxu0 0.0
  %2095 = vmatprep.subr.mxu0 0.0
  %2096 = vmatpush2.msra.mxu0 0.0
  %2097 = vmatprep.subr.mxu0 0.0
  %2098 = vmatpush2.msra.mxu0 0.0
  %2099 = vmatprep.subr.mxu0 0.0
  %2100 = vmatpush2.msra.mxu0 0.0
  %2101 = vmatprep.subr.mxu0 0.0
  %2102 = vmatpush2.msra.mxu0 0.0
  %2103 = vmatprep.subr.mxu0 0.0
  %2104 = vmatpush2.msra.mxu0 0.0
  %2105 = vmatprep.subr.mxu0 0.0
  %2106 = vmatpush2.msra.mxu0 0.0
  %2107 = vmatprep.subr.mxu0 0.0
  %2108 = vmatpush2.msra.mxu0 0.0
  %2109 = vmatprep.subr.mxu0 0.0
  %2110 = vmatpush2.msra.mxu0 0.0
  %2111 = vmatprep.subr.mxu0 0.0
  %2112 = vmatpush2.msra.mxu0 0.0
  %2113 = vmatprep.subr.mxu0 0.0
  %2114 = vmatpush2.msra.mxu0 0.0
  %2115 = vmatprep.subr.mxu0 0.0
  %2116 = vmatpush2.msra.mxu0 0.0
  %2117 = vmatprep.subr.mxu0 0.0
  %2118 = vmatpush2.msra.mxu0 0.0
  %2119 = vmatprep.subr.mxu0 0.0
  %2120 = vmatpush2.msra.mxu0 0.0
  %2121 = vmatprep.mubr.f32.mxu0 0.0
  %2122 = vmatmul.mubr.f32.gmra.mxu0 %v2034
  %v2123 = vpop.f32.mrf.mxu0
  %v2124 = vadd.f32 %v2030, %v2123
  %v2125 = vpop.f32.mrf.mxu0
  %2126 = vmatprep.mubr.f32.mxu0 0.0
  %2127 = vmatmul.mubr.f32.gmra.mxu0 %v2037
  %v2128 = vpop.f32.mrf.mxu0
  %v2129 = vadd.f32 %v2030, %v2128
  %v2130 = vpop.f32.mrf.mxu0
  %2131 = vmatprep.mubr.f32.mxu0 0.0
  %2132 = vmatmul.mubr.f32.gmra.mxu0 %v2040
  %v2133 = vpop.f32.mrf.mxu0
  %v2134 = vadd.f32 %v2030, %v2133
  %v2135 = vpop.f32.mrf.mxu0
  %2136 = vmatprep.mubr.f32.mxu0 0.0
  %2137 = vmatmul.mubr.f32.gmra.mxu0 %v2043
  %v2138 = vpop.f32.mrf.mxu0
  %v2139 = vadd.f32 %v2030, %v2138
  %v2140 = vpop.f32.mrf.mxu0
  %2141 = vmatprep.mubr.f32.mxu0 0.0
  %2142 = vmatmul.mubr.f32.gmra.mxu0 %v2046
  %v2143 = vpop.f32.mrf.mxu0
  %v2144 = vadd.f32 %v2030, %v2143
  %v2145 = vpop.f32.mrf.mxu0
  %2146 = vmatprep.mubr.f32.mxu0 0.0
  %2147 = vmatmul.mubr.f32.gmra.mxu0 %v2049
  %v2148 = vpop.f32.mrf.mxu0
  %v2149 = vadd.f32 %v2030, %v2148
  %v2150 = vpop.f32.mrf.mxu0
  %2151 = vmatprep.mubr.f32.mxu0 0.0
  %2152 = vmatmul.mubr.f32.gmra.mxu0 %v2052
  %v2153 = vpop.f32.mrf.mxu0
  %v2154 = vadd.f32 %v2030, %v2153
  %v2155 = vpop.f32.mrf.mxu0
  %2156 = vmatprep.mubr.f32.mxu0 0.0
  %2157 = vmatmul.mubr.f32.gmra.mxu0 %v2055
  %v2158 = vpop.f32.mrf.mxu0
  %v2159 = vadd.f32 %v2030, %v2158
  %v2160 = vpop.f32.mrf.mxu0
  %2161 = vdwg.mxu0
  %v2163 = vlaneseq
  %v2164 = vshrl.u32 %v2163, 7
  %v2165 = vsub.s32 0, %v2164
  %v2166 = vrot.slane %v2025, %v2165
  %2168 = vmatprep.subr.mxu0 0.0
  %2169 = vmatpush1.msra.mxu0 0.0
  %2170 = vmatprep.subr.mxu0 0.0
  %2171 = vmatpush1.msra.mxu0 0.0
  %2172 = vmatprep.subr.mxu0 0.0
  %2173 = vmatpush1.msra.mxu0 0.0
  %2174 = vmatprep.subr.mxu0 0.0
  %2175 = vmatpush1.msra.mxu0 0.0
  %2176 = vmatprep.subr.mxu0 0.0
  %2177 = vmatpush1.msra.mxu0 0.0
  %2178 = vmatprep.subr.mxu0 0.0
  %2179 = vmatpush1.msra.mxu0 0.0
  %2180 = vmatprep.subr.mxu0 0.0
  %2181 = vmatpush1.msra.mxu0 0.0
  %2182 = vmatprep.subr.mxu0 0.0
  %2183 = vmatpush1.msra.mxu0 0.0
  %2184 = vmatprep.subr.mxu0 0.0
  %2185 = vmatpush1.msra.mxu0 0.0
  %2186 = vmatprep.subr.mxu0 0.0
  %2187 = vmatpush1.msra.mxu0 0.0
  %2188 = vmatprep.subr.mxu0 0.0
  %2189 = vmatpush1.msra.mxu0 0.0
  %2190 = vmatprep.subr.mxu0 0.0
  %2191 = vmatpush1.msra.mxu0 0.0
  %2192 = vmatprep.subr.mxu0 0.0
  %2193 = vmatpush1.msra.mxu0 %v2023
  %2194 = vmatprep.subr.mxu0 0.0
  %2195 = vmatpush1.msra.mxu0 %v2022
  %2196 = vmatprep.subr.mxu0 0.0
  %2197 = vmatpush1.msra.mxu0 %v2021
  %2198 = vmatprep.subr.mxu0 0.0
  %2199 = vmatpush1.msra.mxu0 %v2020
  %2200 = vmatprep.subr.mxu0 0.0
  %2201 = vmatpush2.msra.mxu0 0.0
  %2202 = vmatprep.subr.mxu0 0.0
  %2203 = vmatpush2.msra.mxu0 0.0
  %2204 = vmatprep.subr.mxu0 0.0
  %2205 = vmatpush2.msra.mxu0 0.0
  %2206 = vmatprep.subr.mxu0 0.0
  %2207 = vmatpush2.msra.mxu0 0.0
  %2208 = vmatprep.subr.mxu0 0.0
  %2209 = vmatpush2.msra.mxu0 0.0
  %2210 = vmatprep.subr.mxu0 0.0
  %2211 = vmatpush2.msra.mxu0 0.0
  %2212 = vmatprep.subr.mxu0 0.0
  %2213 = vmatpush2.msra.mxu0 0.0
  %2214 = vmatprep.subr.mxu0 0.0
  %2215 = vmatpush2.msra.mxu0 0.0
  %2216 = vmatprep.subr.mxu0 0.0
  %2217 = vmatpush2.msra.mxu0 0.0
  %2218 = vmatprep.subr.mxu0 0.0
  %2219 = vmatpush2.msra.mxu0 0.0
  %2220 = vmatprep.subr.mxu0 0.0
  %2221 = vmatpush2.msra.mxu0 0.0
  %2222 = vmatprep.subr.mxu0 0.0
  %2223 = vmatpush2.msra.mxu0 0.0
  %2224 = vmatprep.subr.mxu0 0.0
  %2225 = vmatpush2.msra.mxu0 0.0
  %2226 = vmatprep.subr.mxu0 0.0
  %2227 = vmatpush2.msra.mxu0 0.0
  %2228 = vmatprep.subr.mxu0 0.0
  %2229 = vmatpush2.msra.mxu0 0.0
  %2230 = vmatprep.subr.mxu0 0.0
  %2231 = vmatpush2.msra.mxu0 0.0
  %2232 = vmatprep.mubr.f32.mxu0 0.0
  %2233 = vmatmul.mubr.f32.gmra.mxu0 %v241
  %v2234 = vpop.f32.mrf.mxu0
  %v2235 = vadd.f32 %v2166, %v2234
  %v2236 = vpop.f32.mrf.mxu0
  %2237 = vdwg.mxu0
  %v2238 = vadd.f32 %v2124, %v2235
  %v2239 = vxor.u32 %v2238, 2147483648
  %v2240 = vmul.f32 %v2239, 1.442695
  %v2241 = vpow.pop %v2240
  %v2242 = vadd.f32 %v2241, 1.0
  %v2243 = vrcp.pop %v2242
  %v2244 = vmul.f32 1.0, %v2243
  %2246 = vrot.lane.b32.xlu0 %v2235, 64
  %v2247 = vpop.permute.xlu0 %2246
  %v2249 = vmul.f32 %v2244, %v2247
  %2251 = vrot.lane.b32.xlu0 %v2249, 64
  %v2252 = vpop.permute.xlu0 %2251
  %v2254 = vadd.f32 %v2124, %v2252
  %v2255 = vtanh.pop %v2254
  %v2256 = vsub.f32 1.0, %v2244
  %2258 = vrot.lane.b32.xlu0 %v2255, 96
  %v2259 = vpop.permute.xlu0 %2258
  %v2261 = vmul.f32 %v2256, %v2259
  %v2262 = vmul.f32 %v2244, 0.0
  %v2263 = vadd.f32 %v2261, %v2262
  %2265 = vrot.lane.b32.xlu0 %v2263, 96
  %v2266 = vpop.permute.xlu0 %2265
  %2268 = vst.msk [vmem:[#allocation3] sm:$0xff] %vm104, %v2266
  %v2269 = vsel %vm104, %v2266, 0
  %2271 = vmatprep.subr.mxu0 0.0
  %2272 = vmatpush1.msra.mxu0 0.0
  %2273 = vmatprep.subr.mxu0 0.0
  %2274 = vmatpush1.msra.mxu0 0.0
  %2275 = vmatprep.subr.mxu0 0.0
  %2276 = vmatpush1.msra.mxu0 0.0
  %2277 = vmatprep.subr.mxu0 0.0
  %2278 = vmatpush1.msra.mxu0 0.0
  %2279 = vmatprep.subr.mxu0 0.0
  %2280 = vmatpush1.msra.mxu0 0.0
  %2281 = vmatprep.subr.mxu0 0.0
  %2282 = vmatpush1.msra.mxu0 0.0
  %2283 = vmatprep.subr.mxu0 0.0
  %2284 = vmatpush1.msra.mxu0 0.0
  %2285 = vmatprep.subr.mxu0 0.0
  %2286 = vmatpush1.msra.mxu0 0.0
  %2287 = vmatprep.subr.mxu0 0.0
  %2288 = vmatpush1.msra.mxu0 0.0
  %2289 = vmatprep.subr.mxu0 0.0
  %2290 = vmatpush1.msra.mxu0 0.0
  %2291 = vmatprep.subr.mxu0 0.0
  %2292 = vmatpush1.msra.mxu0 0.0
  %2293 = vmatprep.subr.mxu0 0.0
  %2294 = vmatpush1.msra.mxu0 0.0
  %2295 = vmatprep.subr.mxu0 0.0
  %2296 = vmatpush1.msra.mxu0 %v2023
  %2297 = vmatprep.subr.mxu0 0.0
  %2298 = vmatpush1.msra.mxu0 %v2022
  %2299 = vmatprep.subr.mxu0 0.0
  %2300 = vmatpush1.msra.mxu0 %v2021
  %2301 = vmatprep.subr.mxu0 0.0
  %2302 = vmatpush1.msra.mxu0 %v2020
  %2303 = vmatprep.subr.mxu0 0.0
  %2304 = vmatpush2.msra.mxu0 0.0
  %2305 = vmatprep.subr.mxu0 0.0
  %2306 = vmatpush2.msra.mxu0 0.0
  %2307 = vmatprep.subr.mxu0 0.0
  %2308 = vmatpush2.msra.mxu0 0.0
  %2309 = vmatprep.subr.mxu0 0.0
  %2310 = vmatpush2.msra.mxu0 0.0
  %2311 = vmatprep.subr.mxu0 0.0
  %2312 = vmatpush2.msra.mxu0 0.0
  %2313 = vmatprep.subr.mxu0 0.0
  %2314 = vmatpush2.msra.mxu0 0.0
  %2315 = vmatprep.subr.mxu0 0.0
  %2316 = vmatpush2.msra.mxu0 0.0
  %2317 = vmatprep.subr.mxu0 0.0
  %2318 = vmatpush2.msra.mxu0 0.0
  %2319 = vmatprep.subr.mxu0 0.0
  %2320 = vmatpush2.msra.mxu0 0.0
  %2321 = vmatprep.subr.mxu0 0.0
  %2322 = vmatpush2.msra.mxu0 0.0
  %2323 = vmatprep.subr.mxu0 0.0
  %2324 = vmatpush2.msra.mxu0 0.0
  %2325 = vmatprep.subr.mxu0 0.0
  %2326 = vmatpush2.msra.mxu0 0.0
  %2327 = vmatprep.subr.mxu0 0.0
  %2328 = vmatpush2.msra.mxu0 0.0
  %2329 = vmatprep.subr.mxu0 0.0
  %2330 = vmatpush2.msra.mxu0 0.0
  %2331 = vmatprep.subr.mxu0 0.0
  %2332 = vmatpush2.msra.mxu0 0.0
  %2333 = vmatprep.subr.mxu0 0.0
  %2334 = vmatpush2.msra.mxu0 0.0
  %2335 = vmatprep.mubr.f32.mxu0 0.0
  %2336 = vmatmul.mubr.f32.gmra.mxu0 %v2269
  %v2337 = vpop.f32.mrf.mxu0
  %v2338 = vadd.f32 %v2166, %v2337
  %v2339 = vpop.f32.mrf.mxu0
  %2340 = vdwg.mxu0
  %v2341 = vadd.f32 %v2129, %v2338
  %v2342 = vxor.u32 %v2341, 2147483648
  %v2343 = vmul.f32 %v2342, 1.442695
  %v2344 = vpow.pop %v2343
  %v2345 = vadd.f32 %v2344, 1.0
  %v2346 = vrcp.pop %v2345
  %v2347 = vmul.f32 1.0, %v2346
  %2349 = vrot.lane.b32.xlu0 %v2338, 64
  %v2350 = vpop.permute.xlu0 %2349
  %v2352 = vmul.f32 %v2347, %v2350
  %2354 = vrot.lane.b32.xlu0 %v2352, 64
  %v2355 = vpop.permute.xlu0 %2354
  %v2357 = vadd.f32 %v2129, %v2355
  %v2358 = vtanh.pop %v2357
  %v2359 = vsub.f32 1.0, %v2347
  %2361 = vrot.lane.b32.xlu0 %v2358, 96
  %v2362 = vpop.permute.xlu0 %2361
  %v2364 = vmul.f32 %v2359, %v2362
  %v2365 = vmul.f32 %v2347, %v2263
  %v2366 = vadd.f32 %v2364, %v2365
  %2368 = vrot.lane.b32.xlu0 %v2366, 96
  %v2369 = vpop.permute.xlu0 %2368
  %2371 = vst.msk [vmem:[#allocation3 + $0x8] sm:$0xff] %vm104, %v2369
  %v2372 = vsel %vm104, %v2369, 0
  %2374 = vmatprep.subr.mxu0 0.0
  %2375 = vmatpush1.msra.mxu0 0.0
  %2376 = vmatprep.subr.mxu0 0.0
  %2377 = vmatpush1.msra.mxu0 0.0
  %2378 = vmatprep.subr.mxu0 0.0
  %2379 = vmatpush1.msra.mxu0 0.0
  %2380 = vmatprep.subr.mxu0 0.0
  %2381 = vmatpush1.msra.mxu0 0.0
  %2382 = vmatprep.subr.mxu0 0.0
  %2383 = vmatpush1.msra.mxu0 0.0
  %2384 = vmatprep.subr.mxu0 0.0
  %2385 = vmatpush1.msra.mxu0 0.0
  %2386 = vmatprep.subr.mxu0 0.0
  %2387 = vmatpush1.msra.mxu0 0.0
  %2388 = vmatprep.subr.mxu0 0.0
  %2389 = vmatpush1.msra.mxu0 0.0
  %2390 = vmatprep.subr.mxu0 0.0
  %2391 = vmatpush1.msra.mxu0 0.0
  %2392 = vmatprep.subr.mxu0 0.0
  %2393 = vmatpush1.msra.mxu0 0.0
  %2394 = vmatprep.subr.mxu0 0.0
  %2395 = vmatpush1.msra.mxu0 0.0
  %2396 = vmatprep.subr.mxu0 0.0
  %2397 = vmatpush1.msra.mxu0 0.0
  %2398 = vmatprep.subr.mxu0 0.0
  %2399 = vmatpush1.msra.mxu0 %v2023
  %2400 = vmatprep.subr.mxu0 0.0
  %2401 = vmatpush1.msra.mxu0 %v2022
  %2402 = vmatprep.subr.mxu0 0.0
  %2403 = vmatpush1.msra.mxu0 %v2021
  %2404 = vmatprep.subr.mxu0 0.0
  %2405 = vmatpush1.msra.mxu0 %v2020
  %2406 = vmatprep.subr.mxu0 0.0
  %2407 = vmatpush2.msra.mxu0 0.0
  %2408 = vmatprep.subr.mxu0 0.0
  %2409 = vmatpush2.msra.mxu0 0.0
  %2410 = vmatprep.subr.mxu0 0.0
  %2411 = vmatpush2.msra.mxu0 0.0
  %2412 = vmatprep.subr.mxu0 0.0
  %2413 = vmatpush2.msra.mxu0 0.0
  %2414 = vmatprep.subr.mxu0 0.0
  %2415 = vmatpush2.msra.mxu0 0.0
  %2416 = vmatprep.subr.mxu0 0.0
  %2417 = vmatpush2.msra.mxu0 0.0
  %2418 = vmatprep.subr.mxu0 0.0
  %2419 = vmatpush2.msra.mxu0 0.0
  %2420 = vmatprep.subr.mxu0 0.0
  %2421 = vmatpush2.msra.mxu0 0.0
  %2422 = vmatprep.subr.mxu0 0.0
  %2423 = vmatpush2.msra.mxu0 0.0
  %2424 = vmatprep.subr.mxu0 0.0
  %2425 = vmatpush2.msra.mxu0 0.0
  %2426 = vmatprep.subr.mxu0 0.0
  %2427 = vmatpush2.msra.mxu0 0.0
  %2428 = vmatprep.subr.mxu0 0.0
  %2429 = vmatpush2.msra.mxu0 0.0
  %2430 = vmatprep.subr.mxu0 0.0
  %2431 = vmatpush2.msra.mxu0 0.0
  %2432 = vmatprep.subr.mxu0 0.0
  %2433 = vmatpush2.msra.mxu0 0.0
  %2434 = vmatprep.subr.mxu0 0.0
  %2435 = vmatpush2.msra.mxu0 0.0
  %2436 = vmatprep.subr.mxu0 0.0
  %2437 = vmatpush2.msra.mxu0 0.0
  %2438 = vmatprep.mubr.f32.mxu0 0.0
  %2439 = vmatmul.mubr.f32.gmra.mxu0 %v2372
  %v2440 = vpop.f32.mrf.mxu0
  %v2441 = vadd.f32 %v2166, %v2440
  %v2442 = vpop.f32.mrf.mxu0
  %2443 = vdwg.mxu0
  %v2444 = vadd.f32 %v2134, %v2441
  %v2445 = vxor.u32 %v2444, 2147483648
  %v2446 = vmul.f32 %v2445, 1.442695
  %v2447 = vpow.pop %v2446
  %v2448 = vadd.f32 %v2447, 1.0
  %v2449 = vrcp.pop %v2448
  %v2450 = vmul.f32 1.0, %v2449
  %2452 = vrot.lane.b32.xlu0 %v2441, 64
  %v2453 = vpop.permute.xlu0 %2452
  %v2455 = vmul.f32 %v2450, %v2453
  %2457 = vrot.lane.b32.xlu0 %v2455, 64
  %v2458 = vpop.permute.xlu0 %2457
  %v2460 = vadd.f32 %v2134, %v2458
  %v2461 = vtanh.pop %v2460
  %v2462 = vsub.f32 1.0, %v2450
  %2464 = vrot.lane.b32.xlu0 %v2461, 96
  %v2465 = vpop.permute.xlu0 %2464
  %v2467 = vmul.f32 %v2462, %v2465
  %v2468 = vmul.f32 %v2450, %v2366
  %v2469 = vadd.f32 %v2467, %v2468
  %2471 = vrot.lane.b32.xlu0 %v2469, 96
  %v2472 = vpop.permute.xlu0 %2471
  %2474 = vst.msk [vmem:[#allocation3 + $0x10] sm:$0xff] %vm104, %v2472
  %v2475 = vsel %vm104, %v2472, 0
  %2477 = vmatprep.subr.mxu0 0.0
  %2478 = vmatpush1.msra.mxu0 0.0
  %2479 = vmatprep.subr.mxu0 0.0
  %2480 = vmatpush1.msra.mxu0 0.0
  %2481 = vmatprep.subr.mxu0 0.0
  %2482 = vmatpush1.msra.mxu0 0.0
  %2483 = vmatprep.subr.mxu0 0.0
  %2484 = vmatpush1.msra.mxu0 0.0
  %2485 = vmatprep.subr.mxu0 0.0
  %2486 = vmatpush1.msra.mxu0 0.0
  %2487 = vmatprep.subr.mxu0 0.0
  %2488 = vmatpush1.msra.mxu0 0.0
  %2489 = vmatprep.subr.mxu0 0.0
  %2490 = vmatpush1.msra.mxu0 0.0
  %2491 = vmatprep.subr.mxu0 0.0
  %2492 = vmatpush1.msra.mxu0 0.0
  %2493 = vmatprep.subr.mxu0 0.0
  %2494 = vmatpush1.msra.mxu0 0.0
  %2495 = vmatprep.subr.mxu0 0.0
  %2496 = vmatpush1.msra.mxu0 0.0
  %2497 = vmatprep.subr.mxu0 0.0
  %2498 = vmatpush1.msra.mxu0 0.0
  %2499 = vmatprep.subr.mxu0 0.0
  %2500 = vmatpush1.msra.mxu0 0.0
  %2501 = vmatprep.subr.mxu0 0.0
  %2502 = vmatpush1.msra.mxu0 %v2023
  %2503 = vmatprep.subr.mxu0 0.0
  %2504 = vmatpush1.msra.mxu0 %v2022
  %2505 = vmatprep.subr.mxu0 0.0
  %2506 = vmatpush1.msra.mxu0 %v2021
  %2507 = vmatprep.subr.mxu0 0.0
  %2508 = vmatpush1.msra.mxu0 %v2020
  %2509 = vmatprep.subr.mxu0 0.0
  %2510 = vmatpush2.msra.mxu0 0.0
  %2511 = vmatprep.subr.mxu0 0.0
  %2512 = vmatpush2.msra.mxu0 0.0
  %2513 = vmatprep.subr.mxu0 0.0
  %2514 = vmatpush2.msra.mxu0 0.0
  %2515 = vmatprep.subr.mxu0 0.0
  %2516 = vmatpush2.msra.mxu0 0.0
  %2517 = vmatprep.subr.mxu0 0.0
  %2518 = vmatpush2.msra.mxu0 0.0
  %2519 = vmatprep.subr.mxu0 0.0
  %2520 = vmatpush2.msra.mxu0 0.0
  %2521 = vmatprep.subr.mxu0 0.0
  %2522 = vmatpush2.msra.mxu0 0.0
  %2523 = vmatprep.subr.mxu0 0.0
  %2524 = vmatpush2.msra.mxu0 0.0
  %2525 = vmatprep.subr.mxu0 0.0
  %2526 = vmatpush2.msra.mxu0 0.0
  %2527 = vmatprep.subr.mxu0 0.0
  %2528 = vmatpush2.msra.mxu0 0.0
  %2529 = vmatprep.subr.mxu0 0.0
  %2530 = vmatpush2.msra.mxu0 0.0
  %2531 = vmatprep.subr.mxu0 0.0
  %2532 = vmatpush2.msra.mxu0 0.0
  %2533 = vmatprep.subr.mxu0 0.0
  %2534 = vmatpush2.msra.mxu0 0.0
  %2535 = vmatprep.subr.mxu0 0.0
  %2536 = vmatpush2.msra.mxu0 0.0
  %2537 = vmatprep.subr.mxu0 0.0
  %2538 = vmatpush2.msra.mxu0 0.0
  %2539 = vmatprep.subr.mxu0 0.0
  %2540 = vmatpush2.msra.mxu0 0.0
  %2541 = vmatprep.mubr.f32.mxu0 0.0
  %2542 = vmatmul.mubr.f32.gmra.mxu0 %v2475
  %v2543 = vpop.f32.mrf.mxu0
  %v2544 = vadd.f32 %v2166, %v2543
  %v2545 = vpop.f32.mrf.mxu0
  %2546 = vdwg.mxu0
  %v2547 = vadd.f32 %v2139, %v2544
  %v2548 = vxor.u32 %v2547, 2147483648
  %v2549 = vmul.f32 %v2548, 1.442695
  %v2550 = vpow.pop %v2549
  %v2551 = vadd.f32 %v2550, 1.0
  %v2552 = vrcp.pop %v2551
  %v2553 = vmul.f32 1.0, %v2552
  %2555 = vrot.lane.b32.xlu0 %v2544, 64
  %v2556 = vpop.permute.xlu0 %2555
  %v2558 = vmul.f32 %v2553, %v2556
  %2560 = vrot.lane.b32.xlu0 %v2558, 64
  %v2561 = vpop.permute.xlu0 %2560
  %v2563 = vadd.f32 %v2139, %v2561
  %v2564 = vtanh.pop %v2563
  %v2565 = vsub.f32 1.0, %v2553
  %2567 = vrot.lane.b32.xlu0 %v2564, 96
  %v2568 = vpop.permute.xlu0 %2567
  %v2570 = vmul.f32 %v2565, %v2568
  %v2571 = vmul.f32 %v2553, %v2469
  %v2572 = vadd.f32 %v2570, %v2571
  %2574 = vrot.lane.b32.xlu0 %v2572, 96
  %v2575 = vpop.permute.xlu0 %2574
  %2577 = vst.msk [vmem:[#allocation3 + $0x18] sm:$0xff] %vm104, %v2575
  %v2578 = vsel %vm104, %v2575, 0
  %2580 = vmatprep.subr.mxu0 0.0
  %2581 = vmatpush1.msra.mxu0 0.0
  %2582 = vmatprep.subr.mxu0 0.0
  %2583 = vmatpush1.msra.mxu0 0.0
  %2584 = vmatprep.subr.mxu0 0.0
  %2585 = vmatpush1.msra.mxu0 0.0
  %2586 = vmatprep.subr.mxu0 0.0
  %2587 = vmatpush1.msra.mxu0 0.0
  %2588 = vmatprep.subr.mxu0 0.0
  %2589 = vmatpush1.msra.mxu0 0.0
  %2590 = vmatprep.subr.mxu0 0.0
  %2591 = vmatpush1.msra.mxu0 0.0
  %2592 = vmatprep.subr.mxu0 0.0
  %2593 = vmatpush1.msra.mxu0 0.0
  %2594 = vmatprep.subr.mxu0 0.0
  %2595 = vmatpush1.msra.mxu0 0.0
  %2596 = vmatprep.subr.mxu0 0.0
  %2597 = vmatpush1.msra.mxu0 0.0
  %2598 = vmatprep.subr.mxu0 0.0
  %2599 = vmatpush1.msra.mxu0 0.0
  %2600 = vmatprep.subr.mxu0 0.0
  %2601 = vmatpush1.msra.mxu0 0.0
  %2602 = vmatprep.subr.mxu0 0.0
  %2603 = vmatpush1.msra.mxu0 0.0
  %2604 = vmatprep.subr.mxu0 0.0
  %2605 = vmatpush1.msra.mxu0 %v2023
  %2606 = vmatprep.subr.mxu0 0.0
  %2607 = vmatpush1.msra.mxu0 %v2022
  %2608 = vmatprep.subr.mxu0 0.0
  %2609 = vmatpush1.msra.mxu0 %v2021
  %2610 = vmatprep.subr.mxu0 0.0
  %2611 = vmatpush1.msra.mxu0 %v2020
  %2612 = vmatprep.subr.mxu0 0.0
  %2613 = vmatpush2.msra.mxu0 0.0
  %2614 = vmatprep.subr.mxu0 0.0
  %2615 = vmatpush2.msra.mxu0 0.0
  %2616 = vmatprep.subr.mxu0 0.0
  %2617 = vmatpush2.msra.mxu0 0.0
  %2618 = vmatprep.subr.mxu0 0.0
  %2619 = vmatpush2.msra.mxu0 0.0
  %2620 = vmatprep.subr.mxu0 0.0
  %2621 = vmatpush2.msra.mxu0 0.0
  %2622 = vmatprep.subr.mxu0 0.0
  %2623 = vmatpush2.msra.mxu0 0.0
  %2624 = vmatprep.subr.mxu0 0.0
  %2625 = vmatpush2.msra.mxu0 0.0
  %2626 = vmatprep.subr.mxu0 0.0
  %2627 = vmatpush2.msra.mxu0 0.0
  %2628 = vmatprep.subr.mxu0 0.0
  %2629 = vmatpush2.msra.mxu0 0.0
  %2630 = vmatprep.subr.mxu0 0.0
  %2631 = vmatpush2.msra.mxu0 0.0
  %2632 = vmatprep.subr.mxu0 0.0
  %2633 = vmatpush2.msra.mxu0 0.0
  %2634 = vmatprep.subr.mxu0 0.0
  %2635 = vmatpush2.msra.mxu0 0.0
  %2636 = vmatprep.subr.mxu0 0.0
  %2637 = vmatpush2.msra.mxu0 0.0
  %2638 = vmatprep.subr.mxu0 0.0
  %2639 = vmatpush2.msra.mxu0 0.0
  %2640 = vmatprep.subr.mxu0 0.0
  %2641 = vmatpush2.msra.mxu0 0.0
  %2642 = vmatprep.subr.mxu0 0.0
  %2643 = vmatpush2.msra.mxu0 0.0
  %2644 = vmatprep.mubr.f32.mxu0 0.0
  %2645 = vmatmul.mubr.f32.gmra.mxu0 %v2578
  %v2646 = vpop.f32.mrf.mxu0
  %v2647 = vadd.f32 %v2166, %v2646
  %v2648 = vpop.f32.mrf.mxu0
  %2649 = vdwg.mxu0
  %v2650 = vadd.f32 %v2144, %v2647
  %v2651 = vxor.u32 %v2650, 2147483648
  %v2652 = vmul.f32 %v2651, 1.442695
  %v2653 = vpow.pop %v2652
  %v2654 = vadd.f32 %v2653, 1.0
  %v2655 = vrcp.pop %v2654
  %v2656 = vmul.f32 1.0, %v2655
  %2658 = vrot.lane.b32.xlu0 %v2647, 64
  %v2659 = vpop.permute.xlu0 %2658
  %v2661 = vmul.f32 %v2656, %v2659
  %2663 = vrot.lane.b32.xlu0 %v2661, 64
  %v2664 = vpop.permute.xlu0 %2663
  %v2666 = vadd.f32 %v2144, %v2664
  %v2667 = vtanh.pop %v2666
  %v2668 = vsub.f32 1.0, %v2656
  %2670 = vrot.lane.b32.xlu0 %v2667, 96
  %v2671 = vpop.permute.xlu0 %2670
  %v2673 = vmul.f32 %v2668, %v2671
  %v2674 = vmul.f32 %v2656, %v2572
  %v2675 = vadd.f32 %v2673, %v2674
  %2677 = vrot.lane.b32.xlu0 %v2675, 96
  %v2678 = vpop.permute.xlu0 %2677
  %2680 = vst.msk [vmem:[#allocation3 + $0x20] sm:$0xff] %vm104, %v2678
  %v2681 = vsel %vm104, %v2678, 0
  %2683 = vmatprep.subr.mxu0 0.0
  %2684 = vmatpush1.msra.mxu0 0.0
  %2685 = vmatprep.subr.mxu0 0.0
  %2686 = vmatpush1.msra.mxu0 0.0
  %2687 = vmatprep.subr.mxu0 0.0
  %2688 = vmatpush1.msra.mxu0 0.0
  %2689 = vmatprep.subr.mxu0 0.0
  %2690 = vmatpush1.msra.mxu0 0.0
  %2691 = vmatprep.subr.mxu0 0.0
  %2692 = vmatpush1.msra.mxu0 0.0
  %2693 = vmatprep.subr.mxu0 0.0
  %2694 = vmatpush1.msra.mxu0 0.0
  %2695 = vmatprep.subr.mxu0 0.0
  %2696 = vmatpush1.msra.mxu0 0.0
  %2697 = vmatprep.subr.mxu0 0.0
  %2698 = vmatpush1.msra.mxu0 0.0
  %2699 = vmatprep.subr.mxu0 0.0
  %2700 = vmatpush1.msra.mxu0 0.0
  %2701 = vmatprep.subr.mxu0 0.0
  %2702 = vmatpush1.msra.mxu0 0.0
  %2703 = vmatprep.subr.mxu0 0.0
  %2704 = vmatpush1.msra.mxu0 0.0
  %2705 = vmatprep.subr.mxu0 0.0
  %2706 = vmatpush1.msra.mxu0 0.0
  %2707 = vmatprep.subr.mxu0 0.0
  %2708 = vmatpush1.msra.mxu0 %v2023
  %2709 = vmatprep.subr.mxu0 0.0
  %2710 = vmatpush1.msra.mxu0 %v2022
  %2711 = vmatprep.subr.mxu0 0.0
  %2712 = vmatpush1.msra.mxu0 %v2021
  %2713 = vmatprep.subr.mxu0 0.0
  %2714 = vmatpush1.msra.mxu0 %v2020
  %2715 = vmatprep.subr.mxu0 0.0
  %2716 = vmatpush2.msra.mxu0 0.0
  %2717 = vmatprep.subr.mxu0 0.0
  %2718 = vmatpush2.msra.mxu0 0.0
  %2719 = vmatprep.subr.mxu0 0.0
  %2720 = vmatpush2.msra.mxu0 0.0
  %2721 = vmatprep.subr.mxu0 0.0
  %2722 = vmatpush2.msra.mxu0 0.0
  %2723 = vmatprep.subr.mxu0 0.0
  %2724 = vmatpush2.msra.mxu0 0.0
  %2725 = vmatprep.subr.mxu0 0.0
  %2726 = vmatpush2.msra.mxu0 0.0
  %2727 = vmatprep.subr.mxu0 0.0
  %2728 = vmatpush2.msra.mxu0 0.0
  %2729 = vmatprep.subr.mxu0 0.0
  %2730 = vmatpush2.msra.mxu0 0.0
  %2731 = vmatprep.subr.mxu0 0.0
  %2732 = vmatpush2.msra.mxu0 0.0
  %2733 = vmatprep.subr.mxu0 0.0
  %2734 = vmatpush2.msra.mxu0 0.0
  %2735 = vmatprep.subr.mxu0 0.0
  %2736 = vmatpush2.msra.mxu0 0.0
  %2737 = vmatprep.subr.mxu0 0.0
  %2738 = vmatpush2.msra.mxu0 0.0
  %2739 = vmatprep.subr.mxu0 0.0
  %2740 = vmatpush2.msra.mxu0 0.0
  %2741 = vmatprep.subr.mxu0 0.0
  %2742 = vmatpush2.msra.mxu0 0.0
  %2743 = vmatprep.subr.mxu0 0.0
  %2744 = vmatpush2.msra.mxu0 0.0
  %2745 = vmatprep.subr.mxu0 0.0
  %2746 = vmatpush2.msra.mxu0 0.0
  %2747 = vmatprep.mubr.f32.mxu0 0.0
  %2748 = vmatmul.mubr.f32.gmra.mxu0 %v2681
  %v2749 = vpop.f32.mrf.mxu0
  %v2750 = vadd.f32 %v2166, %v2749
  %v2751 = vpop.f32.mrf.mxu0
  %2752 = vdwg.mxu0
  %v2753 = vadd.f32 %v2149, %v2750
  %v2754 = vxor.u32 %v2753, 2147483648
  %v2755 = vmul.f32 %v2754, 1.442695
  %v2756 = vpow.pop %v2755
  %v2757 = vadd.f32 %v2756, 1.0
  %v2758 = vrcp.pop %v2757
  %v2759 = vmul.f32 1.0, %v2758
  %2761 = vrot.lane.b32.xlu0 %v2750, 64
  %v2762 = vpop.permute.xlu0 %2761
  %v2764 = vmul.f32 %v2759, %v2762
  %2766 = vrot.lane.b32.xlu0 %v2764, 64
  %v2767 = vpop.permute.xlu0 %2766
  %v2769 = vadd.f32 %v2149, %v2767
  %v2770 = vtanh.pop %v2769
  %v2771 = vsub.f32 1.0, %v2759
  %2773 = vrot.lane.b32.xlu0 %v2770, 96
  %v2774 = vpop.permute.xlu0 %2773
  %v2776 = vmul.f32 %v2771, %v2774
  %v2777 = vmul.f32 %v2759, %v2675
  %v2778 = vadd.f32 %v2776, %v2777
  %2780 = vrot.lane.b32.xlu0 %v2778, 96
  %v2781 = vpop.permute.xlu0 %2780
  %2783 = vst.msk [vmem:[#allocation3 + $0x28] sm:$0xff] %vm104, %v2781
  %v2784 = vsel %vm104, %v2781, 0
  %2786 = vmatprep.subr.mxu0 0.0
  %2787 = vmatpush1.msra.mxu0 0.0
  %2788 = vmatprep.subr.mxu0 0.0
  %2789 = vmatpush1.msra.mxu0 0.0
  %2790 = vmatprep.subr.mxu0 0.0
  %2791 = vmatpush1.msra.mxu0 0.0
  %2792 = vmatprep.subr.mxu0 0.0
  %2793 = vmatpush1.msra.mxu0 0.0
  %2794 = vmatprep.subr.mxu0 0.0
  %2795 = vmatpush1.msra.mxu0 0.0
  %2796 = vmatprep.subr.mxu0 0.0
  %2797 = vmatpush1.msra.mxu0 0.0
  %2798 = vmatprep.subr.mxu0 0.0
  %2799 = vmatpush1.msra.mxu0 0.0
  %2800 = vmatprep.subr.mxu0 0.0
  %2801 = vmatpush1.msra.mxu0 0.0
  %2802 = vmatprep.subr.mxu0 0.0
  %2803 = vmatpush1.msra.mxu0 0.0
  %2804 = vmatprep.subr.mxu0 0.0
  %2805 = vmatpush1.msra.mxu0 0.0
  %2806 = vmatprep.subr.mxu0 0.0
  %2807 = vmatpush1.msra.mxu0 0.0
  %2808 = vmatprep.subr.mxu0 0.0
  %2809 = vmatpush1.msra.mxu0 0.0
  %2810 = vmatprep.subr.mxu0 0.0
  %2811 = vmatpush1.msra.mxu0 %v2023
  %2812 = vmatprep.subr.mxu0 0.0
  %2813 = vmatpush1.msra.mxu0 %v2022
  %2814 = vmatprep.subr.mxu0 0.0
  %2815 = vmatpush1.msra.mxu0 %v2021
  %2816 = vmatprep.subr.mxu0 0.0
  %2817 = vmatpush1.msra.mxu0 %v2020
  %2818 = vmatprep.subr.mxu0 0.0
  %2819 = vmatpush2.msra.mxu0 0.0
  %2820 = vmatprep.subr.mxu0 0.0
  %2821 = vmatpush2.msra.mxu0 0.0
  %2822 = vmatprep.subr.mxu0 0.0
  %2823 = vmatpush2.msra.mxu0 0.0
  %2824 = vmatprep.subr.mxu0 0.0
  %2825 = vmatpush2.msra.mxu0 0.0
  %2826 = vmatprep.subr.mxu0 0.0
  %2827 = vmatpush2.msra.mxu0 0.0
  %2828 = vmatprep.subr.mxu0 0.0
  %2829 = vmatpush2.msra.mxu0 0.0
  %2830 = vmatprep.subr.mxu0 0.0
  %2831 = vmatpush2.msra.mxu0 0.0
  %2832 = vmatprep.subr.mxu0 0.0
  %2833 = vmatpush2.msra.mxu0 0.0
  %2834 = vmatprep.subr.mxu0 0.0
  %2835 = vmatpush2.msra.mxu0 0.0
  %2836 = vmatprep.subr.mxu0 0.0
  %2837 = vmatpush2.msra.mxu0 0.0
  %2838 = vmatprep.subr.mxu0 0.0
  %2839 = vmatpush2.msra.mxu0 0.0
  %2840 = vmatprep.subr.mxu0 0.0
  %2841 = vmatpush2.msra.mxu0 0.0
  %2842 = vmatprep.subr.mxu0 0.0
  %2843 = vmatpush2.msra.mxu0 0.0
  %2844 = vmatprep.subr.mxu0 0.0
  %2845 = vmatpush2.msra.mxu0 0.0
  %2846 = vmatprep.subr.mxu0 0.0
  %2847 = vmatpush2.msra.mxu0 0.0
  %2848 = vmatprep.subr.mxu0 0.0
  %2849 = vmatpush2.msra.mxu0 0.0
  %2850 = vmatprep.mubr.f32.mxu0 0.0
  %2851 = vmatmul.mubr.f32.gmra.mxu0 %v2784
  %v2852 = vpop.f32.mrf.mxu0
  %v2853 = vadd.f32 %v2166, %v2852
  %v2854 = vpop.f32.mrf.mxu0
  %2855 = vdwg.mxu0
  %v2856 = vadd.f32 %v2154, %v2853
  %v2857 = vxor.u32 %v2856, 2147483648
  %v2858 = vmul.f32 %v2857, 1.442695
  %v2859 = vpow.pop %v2858
  %v2860 = vadd.f32 %v2859, 1.0
  %v2861 = vrcp.pop %v2860
  %v2862 = vmul.f32 1.0, %v2861
  %2864 = vrot.lane.b32.xlu0 %v2853, 64
  %v2865 = vpop.permute.xlu0 %2864
  %v2867 = vmul.f32 %v2862, %v2865
  %2869 = vrot.lane.b32.xlu0 %v2867, 64
  %v2870 = vpop.permute.xlu0 %2869
  %v2872 = vadd.f32 %v2154, %v2870
  %v2873 = vtanh.pop %v2872
  %v2874 = vsub.f32 1.0, %v2862
  %2876 = vrot.lane.b32.xlu0 %v2873, 96
  %v2877 = vpop.permute.xlu0 %2876
  %v2879 = vmul.f32 %v2874, %v2877
  %v2880 = vmul.f32 %v2862, %v2778
  %v2881 = vadd.f32 %v2879, %v2880
  %2883 = vrot.lane.b32.xlu0 %v2881, 96
  %v2884 = vpop.permute.xlu0 %2883
  %2886 = vst.msk [vmem:[#allocation3 + $0x30] sm:$0xff] %vm104, %v2884
  %v2887 = vsel %vm104, %v2884, 0
  %2889 = vmatprep.subr.mxu0 0.0
  %2890 = vmatpush1.msra.mxu0 0.0
  %2891 = vmatprep.subr.mxu0 0.0
  %2892 = vmatpush1.msra.mxu0 0.0
  %2893 = vmatprep.subr.mxu0 0.0
  %2894 = vmatpush1.msra.mxu0 0.0
  %2895 = vmatprep.subr.mxu0 0.0
  %2896 = vmatpush1.msra.mxu0 0.0
  %2897 = vmatprep.subr.mxu0 0.0
  %2898 = vmatpush1.msra.mxu0 0.0
  %2899 = vmatprep.subr.mxu0 0.0
  %2900 = vmatpush1.msra.mxu0 0.0
  %2901 = vmatprep.subr.mxu0 0.0
  %2902 = vmatpush1.msra.mxu0 0.0
  %2903 = vmatprep.subr.mxu0 0.0
  %2904 = vmatpush1.msra.mxu0 0.0
  %2905 = vmatprep.subr.mxu0 0.0
  %2906 = vmatpush1.msra.mxu0 0.0
  %2907 = vmatprep.subr.mxu0 0.0
  %2908 = vmatpush1.msra.mxu0 0.0
  %2909 = vmatprep.subr.mxu0 0.0
  %2910 = vmatpush1.msra.mxu0 0.0
  %2911 = vmatprep.subr.mxu0 0.0
  %2912 = vmatpush1.msra.mxu0 0.0
  %2913 = vmatprep.subr.mxu0 0.0
  %2914 = vmatpush1.msra.mxu0 %v2023
  %2915 = vmatprep.subr.mxu0 0.0
  %2916 = vmatpush1.msra.mxu0 %v2022
  %2917 = vmatprep.subr.mxu0 0.0
  %2918 = vmatpush1.msra.mxu0 %v2021
  %2919 = vmatprep.subr.mxu0 0.0
  %2920 = vmatpush1.msra.mxu0 %v2020
  %2921 = vmatprep.subr.mxu0 0.0
  %2922 = vmatpush2.msra.mxu0 0.0
  %2923 = vmatprep.subr.mxu0 0.0
  %2924 = vmatpush2.msra.mxu0 0.0
  %2925 = vmatprep.subr.mxu0 0.0
  %2926 = vmatpush2.msra.mxu0 0.0
  %2927 = vmatprep.subr.mxu0 0.0
  %2928 = vmatpush2.msra.mxu0 0.0
  %2929 = vmatprep.subr.mxu0 0.0
  %2930 = vmatpush2.msra.mxu0 0.0
  %2931 = vmatprep.subr.mxu0 0.0
  %2932 = vmatpush2.msra.mxu0 0.0
  %2933 = vmatprep.subr.mxu0 0.0
  %2934 = vmatpush2.msra.mxu0 0.0
  %2935 = vmatprep.subr.mxu0 0.0
  %2936 = vmatpush2.msra.mxu0 0.0
  %2937 = vmatprep.subr.mxu0 0.0
  %2938 = vmatpush2.msra.mxu0 0.0
  %2939 = vmatprep.subr.mxu0 0.0
  %2940 = vmatpush2.msra.mxu0 0.0
  %2941 = vmatprep.subr.mxu0 0.0
  %2942 = vmatpush2.msra.mxu0 0.0
  %2943 = vmatprep.subr.mxu0 0.0
  %2944 = vmatpush2.msra.mxu0 0.0
  %2945 = vmatprep.subr.mxu0 0.0
  %2946 = vmatpush2.msra.mxu0 0.0
  %2947 = vmatprep.subr.mxu0 0.0
  %2948 = vmatpush2.msra.mxu0 0.0
  %2949 = vmatprep.subr.mxu0 0.0
  %2950 = vmatpush2.msra.mxu0 0.0
  %2951 = vmatprep.subr.mxu0 0.0
  %2952 = vmatpush2.msra.mxu0 0.0
  %2953 = vmatprep.mubr.f32.mxu0 0.0
  %2954 = vmatmul.mubr.f32.gmra.mxu0 %v2887
  %v2955 = vpop.f32.mrf.mxu0
  %v2956 = vadd.f32 %v2166, %v2955
  %v2957 = vpop.f32.mrf.mxu0
  %2958 = vdwg.mxu0
  %v2959 = vadd.f32 %v2159, %v2956
  %v2960 = vxor.u32 %v2959, 2147483648
  %v2961 = vmul.f32 %v2960, 1.442695
  %v2962 = vpow.pop %v2961
  %v2963 = vadd.f32 %v2962, 1.0
  %v2964 = vrcp.pop %v2963
  %v2965 = vmul.f32 1.0, %v2964
  %2967 = vrot.lane.b32.xlu0 %v2956, 64
  %v2968 = vpop.permute.xlu0 %2967
  %v2970 = vmul.f32 %v2965, %v2968
  %2972 = vrot.lane.b32.xlu0 %v2970, 64
  %v2973 = vpop.permute.xlu0 %2972
  %v2975 = vadd.f32 %v2159, %v2973
  %v2976 = vtanh.pop %v2975
  %v2977 = vsub.f32 1.0, %v2965
  %2979 = vrot.lane.b32.xlu0 %v2976, 96
  %v2980 = vpop.permute.xlu0 %2979
  %v2982 = vmul.f32 %v2977, %v2980
  %v2983 = vmul.f32 %v2965, %v2881
  %v2984 = vadd.f32 %v2982, %v2983
  %2986 = vrot.lane.b32.xlu0 %v2984, 96
  %v2987 = vpop.permute.xlu0 %2986
  %2989 = vst.msk [vmem:[#allocation3 + $0x38] sm:$0xff] %vm104, %v2987
  %v2990 = vld [vmem:[%s13] sm:$0xff]
  %v2991 = vld [vmem:[%s13 + $0x8] sm:$0xff]
  %v2992 = vld [vmem:[%s13 + $0x10] sm:$0xff]
  %v2993 = vld [vmem:[%s13 + $0x18] sm:$0xff]
  %v2994 = vld [vmem:[%s13 + $0x20] sm:$0xff]
  %v2995 = vld [vmem:[%s13 + $0x28] sm:$0xff]
  %v2996 = vld [vmem:[%s13 + $0x30] sm:$0xff]
  %v2997 = vld [vmem:[%s13 + $0x38] sm:$0xff]
  %v2998 = vld [vmem:[%s14] sm:$0xff]
  %v2999 = vld [vmem:[%s14 + $0x8] sm:$0xff]
  %v3000 = vld [vmem:[%s14 + $0x10] sm:$0xff]
  %v3001 = vld [vmem:[%s14 + $0x18] sm:$0xff]
  %v3002 = vld [vmem:[%s15] sm:$0x1]
  %v3003 = vld [vmem:[%s16] sm:$0x1]
  %v3005 = vlaneseq
  %v3006 = vshrl.u32 %v3005, 7
  %v3007 = vsub.s32 0, %v3006
  %v3008 = vrot.slane %v3002, %v3007
  %3010 = vmatprep.subr.mxu0 0.0
  %3011 = vmatpush1.msra.mxu0 0.0
  %3012 = vmatprep.subr.mxu0 0.0
  %3013 = vmatpush1.msra.mxu0 0.0
  %3014 = vmatprep.subr.mxu0 0.0
  %3015 = vmatpush1.msra.mxu0 0.0
  %3016 = vmatprep.subr.mxu0 0.0
  %3017 = vmatpush1.msra.mxu0 0.0
  %3018 = vmatprep.subr.mxu0 0.0
  %3019 = vmatpush1.msra.mxu0 0.0
  %3020 = vmatprep.subr.mxu0 0.0
  %3021 = vmatpush1.msra.mxu0 0.0
  %3022 = vmatprep.subr.mxu0 0.0
  %3023 = vmatpush1.msra.mxu0 0.0
  %3024 = vmatprep.subr.mxu0 0.0
  %3025 = vmatpush1.msra.mxu0 0.0
  %3026 = vmatprep.subr.mxu0 0.0
  %3027 = vmatpush1.msra.mxu0 %v2997
  %3028 = vmatprep.subr.mxu0 0.0
  %3029 = vmatpush1.msra.mxu0 %v2996
  %3030 = vmatprep.subr.mxu0 0.0
  %3031 = vmatpush1.msra.mxu0 %v2995
  %3032 = vmatprep.subr.mxu0 0.0
  %3033 = vmatpush1.msra.mxu0 %v2994
  %3034 = vmatprep.subr.mxu0 0.0
  %3035 = vmatpush1.msra.mxu0 %v2993
  %3036 = vmatprep.subr.mxu0 0.0
  %3037 = vmatpush1.msra.mxu0 %v2992
  %3038 = vmatprep.subr.mxu0 0.0
  %3039 = vmatpush1.msra.mxu0 %v2991
  %3040 = vmatprep.subr.mxu0 0.0
  %3041 = vmatpush1.msra.mxu0 %v2990
  %3042 = vmatprep.subr.mxu0 0.0
  %3043 = vmatpush2.msra.mxu0 0.0
  %3044 = vmatprep.subr.mxu0 0.0
  %3045 = vmatpush2.msra.mxu0 0.0
  %3046 = vmatprep.subr.mxu0 0.0
  %3047 = vmatpush2.msra.mxu0 0.0
  %3048 = vmatprep.subr.mxu0 0.0
  %3049 = vmatpush2.msra.mxu0 0.0
  %3050 = vmatprep.subr.mxu0 0.0
  %3051 = vmatpush2.msra.mxu0 0.0
  %3052 = vmatprep.subr.mxu0 0.0
  %3053 = vmatpush2.msra.mxu0 0.0
  %3054 = vmatprep.subr.mxu0 0.0
  %3055 = vmatpush2.msra.mxu0 0.0
  %3056 = vmatprep.subr.mxu0 0.0
  %3057 = vmatpush2.msra.mxu0 0.0
  %3058 = vmatprep.subr.mxu0 0.0
  %3059 = vmatpush2.msra.mxu0 0.0
  %3060 = vmatprep.subr.mxu0 0.0
  %3061 = vmatpush2.msra.mxu0 0.0
  %3062 = vmatprep.subr.mxu0 0.0
  %3063 = vmatpush2.msra.mxu0 0.0
  %3064 = vmatprep.subr.mxu0 0.0
  %3065 = vmatpush2.msra.mxu0 0.0
  %3066 = vmatprep.subr.mxu0 0.0
  %3067 = vmatpush2.msra.mxu0 0.0
  %3068 = vmatprep.subr.mxu0 0.0
  %3069 = vmatpush2.msra.mxu0 0.0
  %3070 = vmatprep.subr.mxu0 0.0
  %3071 = vmatpush2.msra.mxu0 0.0
  %3072 = vmatprep.subr.mxu0 0.0
  %3073 = vmatpush2.msra.mxu0 0.0
  %3074 = vmatprep.mubr.f32.mxu0 0.0
  %3075 = vmatmul.mubr.f32.gmra.mxu0 %v2034
  %v3076 = vpop.f32.mrf.mxu0
  %v3077 = vadd.f32 %v3008, %v3076
  %v3078 = vpop.f32.mrf.mxu0
  %3079 = vmatprep.mubr.f32.mxu0 0.0
  %3080 = vmatmul.mubr.f32.gmra.mxu0 %v2037
  %v3081 = vpop.f32.mrf.mxu0
  %v3082 = vadd.f32 %v3008, %v3081
  %v3083 = vpop.f32.mrf.mxu0
  %3084 = vmatprep.mubr.f32.mxu0 0.0
  %3085 = vmatmul.mubr.f32.gmra.mxu0 %v2040
  %v3086 = vpop.f32.mrf.mxu0
  %v3087 = vadd.f32 %v3008, %v3086
  %v3088 = vpop.f32.mrf.mxu0
  %3089 = vmatprep.mubr.f32.mxu0 0.0
  %3090 = vmatmul.mubr.f32.gmra.mxu0 %v2043
  %v3091 = vpop.f32.mrf.mxu0
  %v3092 = vadd.f32 %v3008, %v3091
  %v3093 = vpop.f32.mrf.mxu0
  %3094 = vmatprep.mubr.f32.mxu0 0.0
  %3095 = vmatmul.mubr.f32.gmra.mxu0 %v2046
  %v3096 = vpop.f32.mrf.mxu0
  %v3097 = vadd.f32 %v3008, %v3096
  %v3098 = vpop.f32.mrf.mxu0
  %3099 = vmatprep.mubr.f32.mxu0 0.0
  %3100 = vmatmul.mubr.f32.gmra.mxu0 %v2049
  %v3101 = vpop.f32.mrf.mxu0
  %v3102 = vadd.f32 %v3008, %v3101
  %v3103 = vpop.f32.mrf.mxu0
  %3104 = vmatprep.mubr.f32.mxu0 0.0
  %3105 = vmatmul.mubr.f32.gmra.mxu0 %v2052
  %v3106 = vpop.f32.mrf.mxu0
  %v3107 = vadd.f32 %v3008, %v3106
  %v3108 = vpop.f32.mrf.mxu0
  %3109 = vmatprep.mubr.f32.mxu0 0.0
  %3110 = vmatmul.mubr.f32.gmra.mxu0 %v2055
  %v3111 = vpop.f32.mrf.mxu0
  %v3112 = vadd.f32 %v3008, %v3111
  %v3113 = vpop.f32.mrf.mxu0
  %3114 = vdwg.mxu0
  %v3116 = vlaneseq
  %v3117 = vshrl.u32 %v3116, 7
  %v3118 = vsub.s32 0, %v3117
  %v3119 = vrot.slane %v3003, %v3118
  %3121 = vmatprep.subr.mxu0 0.0
  %3122 = vmatpush1.msra.mxu0 0.0
  %3123 = vmatprep.subr.mxu0 0.0
  %3124 = vmatpush1.msra.mxu0 0.0
  %3125 = vmatprep.subr.mxu0 0.0
  %3126 = vmatpush1.msra.mxu0 0.0
  %3127 = vmatprep.subr.mxu0 0.0
  %3128 = vmatpush1.msra.mxu0 0.0
  %3129 = vmatprep.subr.mxu0 0.0
  %3130 = vmatpush1.msra.mxu0 0.0
  %3131 = vmatprep.subr.mxu0 0.0
  %3132 = vmatpush1.msra.mxu0 0.0
  %3133 = vmatprep.subr.mxu0 0.0
  %3134 = vmatpush1.msra.mxu0 0.0
  %3135 = vmatprep.subr.mxu0 0.0
  %3136 = vmatpush1.msra.mxu0 0.0
  %3137 = vmatprep.subr.mxu0 0.0
  %3138 = vmatpush1.msra.mxu0 0.0
  %3139 = vmatprep.subr.mxu0 0.0
  %3140 = vmatpush1.msra.mxu0 0.0
  %3141 = vmatprep.subr.mxu0 0.0
  %3142 = vmatpush1.msra.mxu0 0.0
  %3143 = vmatprep.subr.mxu0 0.0
  %3144 = vmatpush1.msra.mxu0 0.0
  %3145 = vmatprep.subr.mxu0 0.0
  %3146 = vmatpush1.msra.mxu0 %v3001
  %3147 = vmatprep.subr.mxu0 0.0
  %3148 = vmatpush1.msra.mxu0 %v3000
  %3149 = vmatprep.subr.mxu0 0.0
  %3150 = vmatpush1.msra.mxu0 %v2999
  %3151 = vmatprep.subr.mxu0 0.0
  %3152 = vmatpush1.msra.mxu0 %v2998
  %3153 = vmatprep.subr.mxu0 0.0
  %3154 = vmatpush2.msra.mxu0 0.0
  %3155 = vmatprep.subr.mxu0 0.0
  %3156 = vmatpush2.msra.mxu0 0.0
  %3157 = vmatprep.subr.mxu0 0.0
  %3158 = vmatpush2.msra.mxu0 0.0
  %3159 = vmatprep.subr.mxu0 0.0
  %3160 = vmatpush2.msra.mxu0 0.0
  %3161 = vmatprep.subr.mxu0 0.0
  %3162 = vmatpush2.msra.mxu0 0.0
  %3163 = vmatprep.subr.mxu0 0.0
  %3164 = vmatpush2.msra.mxu0 0.0
  %3165 = vmatprep.subr.mxu0 0.0
  %3166 = vmatpush2.msra.mxu0 0.0
  %3167 = vmatprep.subr.mxu0 0.0
  %3168 = vmatpush2.msra.mxu0 0.0
  %3169 = vmatprep.subr.mxu0 0.0
  %3170 = vmatpush2.msra.mxu0 0.0
  %3171 = vmatprep.subr.mxu0 0.0
  %3172 = vmatpush2.msra.mxu0 0.0
  %3173 = vmatprep.subr.mxu0 0.0
  %3174 = vmatpush2.msra.mxu0 0.0
  %3175 = vmatprep.subr.mxu0 0.0
  %3176 = vmatpush2.msra.mxu0 0.0
  %3177 = vmatprep.subr.mxu0 0.0
  %3178 = vmatpush2.msra.mxu0 0.0
  %3179 = vmatprep.subr.mxu0 0.0
  %3180 = vmatpush2.msra.mxu0 0.0
  %3181 = vmatprep.subr.mxu0 0.0
  %3182 = vmatpush2.msra.mxu0 0.0
  %3183 = vmatprep.subr.mxu0 0.0
  %3184 = vmatpush2.msra.mxu0 0.0
  %3185 = vmatprep.mubr.f32.mxu0 0.0
  %3186 = vmatmul.mubr.f32.gmra.mxu0 %v241
  %v3187 = vpop.f32.mrf.mxu0
  %v3188 = vadd.f32 %v3119, %v3187
  %v3189 = vpop.f32.mrf.mxu0
  %3190 = vdwg.mxu0
  %v3191 = vadd.f32 %v3112, %v3188
  %v3192 = vxor.u32 %v3191, 2147483648
  %v3193 = vmul.f32 %v3192, 1.442695
  %v3194 = vpow.pop %v3193
  %v3195 = vadd.f32 %v3194, 1.0
  %v3196 = vrcp.pop %v3195
  %v3197 = vmul.f32 1.0, %v3196
  %3199 = vrot.lane.b32.xlu0 %v3188, 64
  %v3200 = vpop.permute.xlu0 %3199
  %v3202 = vmul.f32 %v3197, %v3200
  %3204 = vrot.lane.b32.xlu0 %v3202, 64
  %v3205 = vpop.permute.xlu0 %3204
  %v3207 = vadd.f32 %v3112, %v3205
  %v3208 = vtanh.pop %v3207
  %v3209 = vsub.f32 1.0, %v3197
  %3211 = vrot.lane.b32.xlu0 %v3208, 96
  %v3212 = vpop.permute.xlu0 %3211
  %v3214 = vmul.f32 %v3209, %v3212
  %v3215 = vmul.f32 %v3197, 0.0
  %v3216 = vadd.f32 %v3214, %v3215
  %3217 = vst.msk [vmem:[#allocation3 + $0x38] sm:$0xff] %vm1288, %v3216
  %3219 = vrot.lane.b32.xlu0 %v3216, 96
  %v3220 = vpop.permute.xlu0 %3219
  %v3221 = vsel %vm104, %v3220, 0
  %3223 = vmatprep.subr.mxu0 0.0
  %3224 = vmatpush1.msra.mxu0 0.0
  %3225 = vmatprep.subr.mxu0 0.0
  %3226 = vmatpush1.msra.mxu0 0.0
  %3227 = vmatprep.subr.mxu0 0.0
  %3228 = vmatpush1.msra.mxu0 0.0
  %3229 = vmatprep.subr.mxu0 0.0
  %3230 = vmatpush1.msra.mxu0 0.0
  %3231 = vmatprep.subr.mxu0 0.0
  %3232 = vmatpush1.msra.mxu0 0.0
  %3233 = vmatprep.subr.mxu0 0.0
  %3234 = vmatpush1.msra.mxu0 0.0
  %3235 = vmatprep.subr.mxu0 0.0
  %3236 = vmatpush1.msra.mxu0 0.0
  %3237 = vmatprep.subr.mxu0 0.0
  %3238 = vmatpush1.msra.mxu0 0.0
  %3239 = vmatprep.subr.mxu0 0.0
  %3240 = vmatpush1.msra.mxu0 0.0
  %3241 = vmatprep.subr.mxu0 0.0
  %3242 = vmatpush1.msra.mxu0 0.0
  %3243 = vmatprep.subr.mxu0 0.0
  %3244 = vmatpush1.msra.mxu0 0.0
  %3245 = vmatprep.subr.mxu0 0.0
  %3246 = vmatpush1.msra.mxu0 0.0
  %3247 = vmatprep.subr.mxu0 0.0
  %3248 = vmatpush1.msra.mxu0 %v3001
  %3249 = vmatprep.subr.mxu0 0.0
  %3250 = vmatpush1.msra.mxu0 %v3000
  %3251 = vmatprep.subr.mxu0 0.0
  %3252 = vmatpush1.msra.mxu0 %v2999
  %3253 = vmatprep.subr.mxu0 0.0
  %3254 = vmatpush1.msra.mxu0 %v2998
  %3255 = vmatprep.subr.mxu0 0.0
  %3256 = vmatpush2.msra.mxu0 0.0
  %3257 = vmatprep.subr.mxu0 0.0
  %3258 = vmatpush2.msra.mxu0 0.0
  %3259 = vmatprep.subr.mxu0 0.0
  %3260 = vmatpush2.msra.mxu0 0.0
  %3261 = vmatprep.subr.mxu0 0.0
  %3262 = vmatpush2.msra.mxu0 0.0
  %3263 = vmatprep.subr.mxu0 0.0
  %3264 = vmatpush2.msra.mxu0 0.0
  %3265 = vmatprep.subr.mxu0 0.0
  %3266 = vmatpush2.msra.mxu0 0.0
  %3267 = vmatprep.subr.mxu0 0.0
  %3268 = vmatpush2.msra.mxu0 0.0
  %3269 = vmatprep.subr.mxu0 0.0
  %3270 = vmatpush2.msra.mxu0 0.0
  %3271 = vmatprep.subr.mxu0 0.0
  %3272 = vmatpush2.msra.mxu0 0.0
  %3273 = vmatprep.subr.mxu0 0.0
  %3274 = vmatpush2.msra.mxu0 0.0
  %3275 = vmatprep.subr.mxu0 0.0
  %3276 = vmatpush2.msra.mxu0 0.0
  %3277 = vmatprep.subr.mxu0 0.0
  %3278 = vmatpush2.msra.mxu0 0.0
  %3279 = vmatprep.subr.mxu0 0.0
  %3280 = vmatpush2.msra.mxu0 0.0
  %3281 = vmatprep.subr.mxu0 0.0
  %3282 = vmatpush2.msra.mxu0 0.0
  %3283 = vmatprep.subr.mxu0 0.0
  %3284 = vmatpush2.msra.mxu0 0.0
  %3285 = vmatprep.subr.mxu0 0.0
  %3286 = vmatpush2.msra.mxu0 0.0
  %3287 = vmatprep.mubr.f32.mxu0 0.0
  %3288 = vmatmul.mubr.f32.gmra.mxu0 %v3221
  %v3289 = vpop.f32.mrf.mxu0
  %v3290 = vadd.f32 %v3119, %v3289
  %v3291 = vpop.f32.mrf.mxu0
  %3292 = vdwg.mxu0
  %v3293 = vadd.f32 %v3107, %v3290
  %v3294 = vxor.u32 %v3293, 2147483648
  %v3295 = vmul.f32 %v3294, 1.442695
  %v3296 = vpow.pop %v3295
  %v3297 = vadd.f32 %v3296, 1.0
  %v3298 = vrcp.pop %v3297
  %v3299 = vmul.f32 1.0, %v3298
  %3301 = vrot.lane.b32.xlu0 %v3290, 64
  %v3302 = vpop.permute.xlu0 %3301
  %v3304 = vmul.f32 %v3299, %v3302
  %3306 = vrot.lane.b32.xlu0 %v3304, 64
  %v3307 = vpop.permute.xlu0 %3306
  %v3309 = vadd.f32 %v3107, %v3307
  %v3310 = vtanh.pop %v3309
  %v3311 = vsub.f32 1.0, %v3299
  %3313 = vrot.lane.b32.xlu0 %v3310, 96
  %v3314 = vpop.permute.xlu0 %3313
  %v3316 = vmul.f32 %v3311, %v3314
  %v3317 = vmul.f32 %v3299, %v3216
  %v3318 = vadd.f32 %v3316, %v3317
  %3319 = vst.msk [vmem:[#allocation3 + $0x30] sm:$0xff] %vm1288, %v3318
  %3321 = vrot.lane.b32.xlu0 %v3318, 96
  %v3322 = vpop.permute.xlu0 %3321
  %v3323 = vsel %vm104, %v3322, 0
  %3325 = vmatprep.subr.mxu0 0.0
  %3326 = vmatpush1.msra.mxu0 0.0
  %3327 = vmatprep.subr.mxu0 0.0
  %3328 = vmatpush1.msra.mxu0 0.0
  %3329 = vmatprep.subr.mxu0 0.0
  %3330 = vmatpush1.msra.mxu0 0.0
  %3331 = vmatprep.subr.mxu0 0.0
  %3332 = vmatpush1.msra.mxu0 0.0
  %3333 = vmatprep.subr.mxu0 0.0
  %3334 = vmatpush1.msra.mxu0 0.0
  %3335 = vmatprep.subr.mxu0 0.0
  %3336 = vmatpush1.msra.mxu0 0.0
  %3337 = vmatprep.subr.mxu0 0.0
  %3338 = vmatpush1.msra.mxu0 0.0
  %3339 = vmatprep.subr.mxu0 0.0
  %3340 = vmatpush1.msra.mxu0 0.0
  %3341 = vmatprep.subr.mxu0 0.0
  %3342 = vmatpush1.msra.mxu0 0.0
  %3343 = vmatprep.subr.mxu0 0.0
  %3344 = vmatpush1.msra.mxu0 0.0
  %3345 = vmatprep.subr.mxu0 0.0
  %3346 = vmatpush1.msra.mxu0 0.0
  %3347 = vmatprep.subr.mxu0 0.0
  %3348 = vmatpush1.msra.mxu0 0.0
  %3349 = vmatprep.subr.mxu0 0.0
  %3350 = vmatpush1.msra.mxu0 %v3001
  %3351 = vmatprep.subr.mxu0 0.0
  %3352 = vmatpush1.msra.mxu0 %v3000
  %3353 = vmatprep.subr.mxu0 0.0
  %3354 = vmatpush1.msra.mxu0 %v2999
  %3355 = vmatprep.subr.mxu0 0.0
  %3356 = vmatpush1.msra.mxu0 %v2998
  %3357 = vmatprep.subr.mxu0 0.0
  %3358 = vmatpush2.msra.mxu0 0.0
  %3359 = vmatprep.subr.mxu0 0.0
  %3360 = vmatpush2.msra.mxu0 0.0
  %3361 = vmatprep.subr.mxu0 0.0
  %3362 = vmatpush2.msra.mxu0 0.0
  %3363 = vmatprep.subr.mxu0 0.0
  %3364 = vmatpush2.msra.mxu0 0.0
  %3365 = vmatprep.subr.mxu0 0.0
  %3366 = vmatpush2.msra.mxu0 0.0
  %3367 = vmatprep.subr.mxu0 0.0
  %3368 = vmatpush2.msra.mxu0 0.0
  %3369 = vmatprep.subr.mxu0 0.0
  %3370 = vmatpush2.msra.mxu0 0.0
  %3371 = vmatprep.subr.mxu0 0.0
  %3372 = vmatpush2.msra.mxu0 0.0
  %3373 = vmatprep.subr.mxu0 0.0
  %3374 = vmatpush2.msra.mxu0 0.0
  %3375 = vmatprep.subr.mxu0 0.0
  %3376 = vmatpush2.msra.mxu0 0.0
  %3377 = vmatprep.subr.mxu0 0.0
  %3378 = vmatpush2.msra.mxu0 0.0
  %3379 = vmatprep.subr.mxu0 0.0
  %3380 = vmatpush2.msra.mxu0 0.0
  %3381 = vmatprep.subr.mxu0 0.0
  %3382 = vmatpush2.msra.mxu0 0.0
  %3383 = vmatprep.subr.mxu0 0.0
  %3384 = vmatpush2.msra.mxu0 0.0
  %3385 = vmatprep.subr.mxu0 0.0
  %3386 = vmatpush2.msra.mxu0 0.0
  %3387 = vmatprep.subr.mxu0 0.0
  %3388 = vmatpush2.msra.mxu0 0.0
  %3389 = vmatprep.mubr.f32.mxu0 0.0
  %3390 = vmatmul.mubr.f32.gmra.mxu0 %v3323
  %v3391 = vpop.f32.mrf.mxu0
  %v3392 = vadd.f32 %v3119, %v3391
  %v3393 = vpop.f32.mrf.mxu0
  %3394 = vdwg.mxu0
  %v3395 = vadd.f32 %v3102, %v3392
  %v3396 = vxor.u32 %v3395, 2147483648
  %v3397 = vmul.f32 %v3396, 1.442695
  %v3398 = vpow.pop %v3397
  %v3399 = vadd.f32 %v3398, 1.0
  %v3400 = vrcp.pop %v3399
  %v3401 = vmul.f32 1.0, %v3400
  %3403 = vrot.lane.b32.xlu0 %v3392, 64
  %v3404 = vpop.permute.xlu0 %3403
  %v3406 = vmul.f32 %v3401, %v3404
  %3408 = vrot.lane.b32.xlu0 %v3406, 64
  %v3409 = vpop.permute.xlu0 %3408
  %v3411 = vadd.f32 %v3102, %v3409
  %v3412 = vtanh.pop %v3411
  %v3413 = vsub.f32 1.0, %v3401
  %3415 = vrot.lane.b32.xlu0 %v3412, 96
  %v3416 = vpop.permute.xlu0 %3415
  %v3418 = vmul.f32 %v3413, %v3416
  %v3419 = vmul.f32 %v3401, %v3318
  %v3420 = vadd.f32 %v3418, %v3419
  %3421 = vst.msk [vmem:[#allocation3 + $0x28] sm:$0xff] %vm1288, %v3420
  %3423 = vrot.lane.b32.xlu0 %v3420, 96
  %v3424 = vpop.permute.xlu0 %3423
  %v3425 = vsel %vm104, %v3424, 0
  %3427 = vmatprep.subr.mxu0 0.0
  %3428 = vmatpush1.msra.mxu0 0.0
  %3429 = vmatprep.subr.mxu0 0.0
  %3430 = vmatpush1.msra.mxu0 0.0
  %3431 = vmatprep.subr.mxu0 0.0
  %3432 = vmatpush1.msra.mxu0 0.0
  %3433 = vmatprep.subr.mxu0 0.0
  %3434 = vmatpush1.msra.mxu0 0.0
  %3435 = vmatprep.subr.mxu0 0.0
  %3436 = vmatpush1.msra.mxu0 0.0
  %3437 = vmatprep.subr.mxu0 0.0
  %3438 = vmatpush1.msra.mxu0 0.0
  %3439 = vmatprep.subr.mxu0 0.0
  %3440 = vmatpush1.msra.mxu0 0.0
  %3441 = vmatprep.subr.mxu0 0.0
  %3442 = vmatpush1.msra.mxu0 0.0
  %3443 = vmatprep.subr.mxu0 0.0
  %3444 = vmatpush1.msra.mxu0 0.0
  %3445 = vmatprep.subr.mxu0 0.0
  %3446 = vmatpush1.msra.mxu0 0.0
  %3447 = vmatprep.subr.mxu0 0.0
  %3448 = vmatpush1.msra.mxu0 0.0
  %3449 = vmatprep.subr.mxu0 0.0
  %3450 = vmatpush1.msra.mxu0 0.0
  %3451 = vmatprep.subr.mxu0 0.0
  %3452 = vmatpush1.msra.mxu0 %v3001
  %3453 = vmatprep.subr.mxu0 0.0
  %3454 = vmatpush1.msra.mxu0 %v3000
  %3455 = vmatprep.subr.mxu0 0.0
  %3456 = vmatpush1.msra.mxu0 %v2999
  %3457 = vmatprep.subr.mxu0 0.0
  %3458 = vmatpush1.msra.mxu0 %v2998
  %3459 = vmatprep.subr.mxu0 0.0
  %3460 = vmatpush2.msra.mxu0 0.0
  %3461 = vmatprep.subr.mxu0 0.0
  %3462 = vmatpush2.msra.mxu0 0.0
  %3463 = vmatprep.subr.mxu0 0.0
  %3464 = vmatpush2.msra.mxu0 0.0
  %3465 = vmatprep.subr.mxu0 0.0
  %3466 = vmatpush2.msra.mxu0 0.0
  %3467 = vmatprep.subr.mxu0 0.0
  %3468 = vmatpush2.msra.mxu0 0.0
  %3469 = vmatprep.subr.mxu0 0.0
  %3470 = vmatpush2.msra.mxu0 0.0
  %3471 = vmatprep.subr.mxu0 0.0
  %3472 = vmatpush2.msra.mxu0 0.0
  %3473 = vmatprep.subr.mxu0 0.0
  %3474 = vmatpush2.msra.mxu0 0.0
  %3475 = vmatprep.subr.mxu0 0.0
  %3476 = vmatpush2.msra.mxu0 0.0
  %3477 = vmatprep.subr.mxu0 0.0
  %3478 = vmatpush2.msra.mxu0 0.0
  %3479 = vmatprep.subr.mxu0 0.0
  %3480 = vmatpush2.msra.mxu0 0.0
  %3481 = vmatprep.subr.mxu0 0.0
  %3482 = vmatpush2.msra.mxu0 0.0
  %3483 = vmatprep.subr.mxu0 0.0
  %3484 = vmatpush2.msra.mxu0 0.0
  %3485 = vmatprep.subr.mxu0 0.0
  %3486 = vmatpush2.msra.mxu0 0.0
  %3487 = vmatprep.subr.mxu0 0.0
  %3488 = vmatpush2.msra.mxu0 0.0
  %3489 = vmatprep.subr.mxu0 0.0
  %3490 = vmatpush2.msra.mxu0 0.0
  %3491 = vmatprep.mubr.f32.mxu0 0.0
  %3492 = vmatmul.mubr.f32.gmra.mxu0 %v3425
  %v3493 = vpop.f32.mrf.mxu0
  %v3494 = vadd.f32 %v3119, %v3493
  %v3495 = vpop.f32.mrf.mxu0
  %3496 = vdwg.mxu0
  %v3497 = vadd.f32 %v3097, %v3494
  %v3498 = vxor.u32 %v3497, 2147483648
  %v3499 = vmul.f32 %v3498, 1.442695
  %v3500 = vpow.pop %v3499
  %v3501 = vadd.f32 %v3500, 1.0
  %v3502 = vrcp.pop %v3501
  %v3503 = vmul.f32 1.0, %v3502
  %3505 = vrot.lane.b32.xlu0 %v3494, 64
  %v3506 = vpop.permute.xlu0 %3505
  %v3508 = vmul.f32 %v3503, %v3506
  %3510 = vrot.lane.b32.xlu0 %v3508, 64
  %v3511 = vpop.permute.xlu0 %3510
  %v3513 = vadd.f32 %v3097, %v3511
  %v3514 = vtanh.pop %v3513
  %v3515 = vsub.f32 1.0, %v3503
  %3517 = vrot.lane.b32.xlu0 %v3514, 96
  %v3518 = vpop.permute.xlu0 %3517
  %v3520 = vmul.f32 %v3515, %v3518
  %v3521 = vmul.f32 %v3503, %v3420
  %v3522 = vadd.f32 %v3520, %v3521
  %3523 = vst.msk [vmem:[#allocation3 + $0x20] sm:$0xff] %vm1288, %v3522
  %3525 = vrot.lane.b32.xlu0 %v3522, 96
  %v3526 = vpop.permute.xlu0 %3525
  %v3527 = vsel %vm104, %v3526, 0
  %3529 = vmatprep.subr.mxu0 0.0
  %3530 = vmatpush1.msra.mxu0 0.0
  %3531 = vmatprep.subr.mxu0 0.0
  %3532 = vmatpush1.msra.mxu0 0.0
  %3533 = vmatprep.subr.mxu0 0.0
  %3534 = vmatpush1.msra.mxu0 0.0
  %3535 = vmatprep.subr.mxu0 0.0
  %3536 = vmatpush1.msra.mxu0 0.0
  %3537 = vmatprep.subr.mxu0 0.0
  %3538 = vmatpush1.msra.mxu0 0.0
  %3539 = vmatprep.subr.mxu0 0.0
  %3540 = vmatpush1.msra.mxu0 0.0
  %3541 = vmatprep.subr.mxu0 0.0
  %3542 = vmatpush1.msra.mxu0 0.0
  %3543 = vmatprep.subr.mxu0 0.0
  %3544 = vmatpush1.msra.mxu0 0.0
  %3545 = vmatprep.subr.mxu0 0.0
  %3546 = vmatpush1.msra.mxu0 0.0
  %3547 = vmatprep.subr.mxu0 0.0
  %3548 = vmatpush1.msra.mxu0 0.0
  %3549 = vmatprep.subr.mxu0 0.0
  %3550 = vmatpush1.msra.mxu0 0.0
  %3551 = vmatprep.subr.mxu0 0.0
  %3552 = vmatpush1.msra.mxu0 0.0
  %3553 = vmatprep.subr.mxu0 0.0
  %3554 = vmatpush1.msra.mxu0 %v3001
  %3555 = vmatprep.subr.mxu0 0.0
  %3556 = vmatpush1.msra.mxu0 %v3000
  %3557 = vmatprep.subr.mxu0 0.0
  %3558 = vmatpush1.msra.mxu0 %v2999
  %3559 = vmatprep.subr.mxu0 0.0
  %3560 = vmatpush1.msra.mxu0 %v2998
  %3561 = vmatprep.subr.mxu0 0.0
  %3562 = vmatpush2.msra.mxu0 0.0
  %3563 = vmatprep.subr.mxu0 0.0
  %3564 = vmatpush2.msra.mxu0 0.0
  %3565 = vmatprep.subr.mxu0 0.0
  %3566 = vmatpush2.msra.mxu0 0.0
  %3567 = vmatprep.subr.mxu0 0.0
  %3568 = vmatpush2.msra.mxu0 0.0
  %3569 = vmatprep.subr.mxu0 0.0
  %3570 = vmatpush2.msra.mxu0 0.0
  %3571 = vmatprep.subr.mxu0 0.0
  %3572 = vmatpush2.msra.mxu0 0.0
  %3573 = vmatprep.subr.mxu0 0.0
  %3574 = vmatpush2.msra.mxu0 0.0
  %3575 = vmatprep.subr.mxu0 0.0
  %3576 = vmatpush2.msra.mxu0 0.0
  %3577 = vmatprep.subr.mxu0 0.0
  %3578 = vmatpush2.msra.mxu0 0.0
  %3579 = vmatprep.subr.mxu0 0.0
  %3580 = vmatpush2.msra.mxu0 0.0
  %3581 = vmatprep.subr.mxu0 0.0
  %3582 = vmatpush2.msra.mxu0 0.0
  %3583 = vmatprep.subr.mxu0 0.0
  %3584 = vmatpush2.msra.mxu0 0.0
  %3585 = vmatprep.subr.mxu0 0.0
  %3586 = vmatpush2.msra.mxu0 0.0
  %3587 = vmatprep.subr.mxu0 0.0
  %3588 = vmatpush2.msra.mxu0 0.0
  %3589 = vmatprep.subr.mxu0 0.0
  %3590 = vmatpush2.msra.mxu0 0.0
  %3591 = vmatprep.subr.mxu0 0.0
  %3592 = vmatpush2.msra.mxu0 0.0
  %3593 = vmatprep.mubr.f32.mxu0 0.0
  %3594 = vmatmul.mubr.f32.gmra.mxu0 %v3527
  %v3595 = vpop.f32.mrf.mxu0
  %v3596 = vadd.f32 %v3119, %v3595
  %v3597 = vpop.f32.mrf.mxu0
  %3598 = vdwg.mxu0
  %v3599 = vadd.f32 %v3092, %v3596
  %v3600 = vxor.u32 %v3599, 2147483648
  %v3601 = vmul.f32 %v3600, 1.442695
  %v3602 = vpow.pop %v3601
  %v3603 = vadd.f32 %v3602, 1.0
  %v3604 = vrcp.pop %v3603
  %v3605 = vmul.f32 1.0, %v3604
  %3607 = vrot.lane.b32.xlu0 %v3596, 64
  %v3608 = vpop.permute.xlu0 %3607
  %v3610 = vmul.f32 %v3605, %v3608
  %3612 = vrot.lane.b32.xlu0 %v3610, 64
  %v3613 = vpop.permute.xlu0 %3612
  %v3615 = vadd.f32 %v3092, %v3613
  %v3616 = vtanh.pop %v3615
  %v3617 = vsub.f32 1.0, %v3605
  %3619 = vrot.lane.b32.xlu0 %v3616, 96
  %v3620 = vpop.permute.xlu0 %3619
  %v3622 = vmul.f32 %v3617, %v3620
  %v3623 = vmul.f32 %v3605, %v3522
  %v3624 = vadd.f32 %v3622, %v3623
  %3625 = vst.msk [vmem:[#allocation3 + $0x18] sm:$0xff] %vm1288, %v3624
  %3627 = vrot.lane.b32.xlu0 %v3624, 96
  %v3628 = vpop.permute.xlu0 %3627
  %v3629 = vsel %vm104, %v3628, 0
  %3631 = vmatprep.subr.mxu0 0.0
  %3632 = vmatpush1.msra.mxu0 0.0
  %3633 = vmatprep.subr.mxu0 0.0
  %3634 = vmatpush1.msra.mxu0 0.0
  %3635 = vmatprep.subr.mxu0 0.0
  %3636 = vmatpush1.msra.mxu0 0.0
  %3637 = vmatprep.subr.mxu0 0.0
  %3638 = vmatpush1.msra.mxu0 0.0
  %3639 = vmatprep.subr.mxu0 0.0
  %3640 = vmatpush1.msra.mxu0 0.0
  %3641 = vmatprep.subr.mxu0 0.0
  %3642 = vmatpush1.msra.mxu0 0.0
  %3643 = vmatprep.subr.mxu0 0.0
  %3644 = vmatpush1.msra.mxu0 0.0
  %3645 = vmatprep.subr.mxu0 0.0
  %3646 = vmatpush1.msra.mxu0 0.0
  %3647 = vmatprep.subr.mxu0 0.0
  %3648 = vmatpush1.msra.mxu0 0.0
  %3649 = vmatprep.subr.mxu0 0.0
  %3650 = vmatpush1.msra.mxu0 0.0
  %3651 = vmatprep.subr.mxu0 0.0
  %3652 = vmatpush1.msra.mxu0 0.0
  %3653 = vmatprep.subr.mxu0 0.0
  %3654 = vmatpush1.msra.mxu0 0.0
  %3655 = vmatprep.subr.mxu0 0.0
  %3656 = vmatpush1.msra.mxu0 %v3001
  %3657 = vmatprep.subr.mxu0 0.0
  %3658 = vmatpush1.msra.mxu0 %v3000
  %3659 = vmatprep.subr.mxu0 0.0
  %3660 = vmatpush1.msra.mxu0 %v2999
  %3661 = vmatprep.subr.mxu0 0.0
  %3662 = vmatpush1.msra.mxu0 %v2998
  %3663 = vmatprep.subr.mxu0 0.0
  %3664 = vmatpush2.msra.mxu0 0.0
  %3665 = vmatprep.subr.mxu0 0.0
  %3666 = vmatpush2.msra.mxu0 0.0
  %3667 = vmatprep.subr.mxu0 0.0
  %3668 = vmatpush2.msra.mxu0 0.0
  %3669 = vmatprep.subr.mxu0 0.0
  %3670 = vmatpush2.msra.mxu0 0.0
  %3671 = vmatprep.subr.mxu0 0.0
  %3672 = vmatpush2.msra.mxu0 0.0
  %3673 = vmatprep.subr.mxu0 0.0
  %3674 = vmatpush2.msra.mxu0 0.0
  %3675 = vmatprep.subr.mxu0 0.0
  %3676 = vmatpush2.msra.mxu0 0.0
  %3677 = vmatprep.subr.mxu0 0.0
  %3678 = vmatpush2.msra.mxu0 0.0
  %3679 = vmatprep.subr.mxu0 0.0
  %3680 = vmatpush2.msra.mxu0 0.0
  %3681 = vmatprep.subr.mxu0 0.0
  %3682 = vmatpush2.msra.mxu0 0.0
  %3683 = vmatprep.subr.mxu0 0.0
  %3684 = vmatpush2.msra.mxu0 0.0
  %3685 = vmatprep.subr.mxu0 0.0
  %3686 = vmatpush2.msra.mxu0 0.0
  %3687 = vmatprep.subr.mxu0 0.0
  %3688 = vmatpush2.msra.mxu0 0.0
  %3689 = vmatprep.subr.mxu0 0.0
  %3690 = vmatpush2.msra.mxu0 0.0
  %3691 = vmatprep.subr.mxu0 0.0
  %3692 = vmatpush2.msra.mxu0 0.0
  %3693 = vmatprep.subr.mxu0 0.0
  %3694 = vmatpush2.msra.mxu0 0.0
  %3695 = vmatprep.mubr.f32.mxu0 0.0
  %3696 = vmatmul.mubr.f32.gmra.mxu0 %v3629
  %v3697 = vpop.f32.mrf.mxu0
  %v3698 = vadd.f32 %v3119, %v3697
  %v3699 = vpop.f32.mrf.mxu0
  %3700 = vdwg.mxu0
  %v3701 = vadd.f32 %v3087, %v3698
  %v3702 = vxor.u32 %v3701, 2147483648
  %v3703 = vmul.f32 %v3702, 1.442695
  %v3704 = vpow.pop %v3703
  %v3705 = vadd.f32 %v3704, 1.0
  %v3706 = vrcp.pop %v3705
  %v3707 = vmul.f32 1.0, %v3706
  %3709 = vrot.lane.b32.xlu0 %v3698, 64
  %v3710 = vpop.permute.xlu0 %3709
  %v3712 = vmul.f32 %v3707, %v3710
  %3714 = vrot.lane.b32.xlu0 %v3712, 64
  %v3715 = vpop.permute.xlu0 %3714
  %v3717 = vadd.f32 %v3087, %v3715
  %v3718 = vtanh.pop %v3717
  %v3719 = vsub.f32 1.0, %v3707
  %3721 = vrot.lane.b32.xlu0 %v3718, 96
  %v3722 = vpop.permute.xlu0 %3721
  %v3724 = vmul.f32 %v3719, %v3722
  %v3725 = vmul.f32 %v3707, %v3624
  %v3726 = vadd.f32 %v3724, %v3725
  %3727 = vst.msk [vmem:[#allocation3 + $0x10] sm:$0xff] %vm1288, %v3726
  %3729 = vrot.lane.b32.xlu0 %v3726, 96
  %v3730 = vpop.permute.xlu0 %3729
  %v3731 = vsel %vm104, %v3730, 0
  %3733 = vmatprep.subr.mxu0 0.0
  %3734 = vmatpush1.msra.mxu0 0.0
  %3735 = vmatprep.subr.mxu0 0.0
  %3736 = vmatpush1.msra.mxu0 0.0
  %3737 = vmatprep.subr.mxu0 0.0
  %3738 = vmatpush1.msra.mxu0 0.0
  %3739 = vmatprep.subr.mxu0 0.0
  %3740 = vmatpush1.msra.mxu0 0.0
  %3741 = vmatprep.subr.mxu0 0.0
  %3742 = vmatpush1.msra.mxu0 0.0
  %3743 = vmatprep.subr.mxu0 0.0
  %3744 = vmatpush1.msra.mxu0 0.0
  %3745 = vmatprep.subr.mxu0 0.0
  %3746 = vmatpush1.msra.mxu0 0.0
  %3747 = vmatprep.subr.mxu0 0.0
  %3748 = vmatpush1.msra.mxu0 0.0
  %3749 = vmatprep.subr.mxu0 0.0
  %3750 = vmatpush1.msra.mxu0 0.0
  %3751 = vmatprep.subr.mxu0 0.0
  %3752 = vmatpush1.msra.mxu0 0.0
  %3753 = vmatprep.subr.mxu0 0.0
  %3754 = vmatpush1.msra.mxu0 0.0
  %3755 = vmatprep.subr.mxu0 0.0
  %3756 = vmatpush1.msra.mxu0 0.0
  %3757 = vmatprep.subr.mxu0 0.0
  %3758 = vmatpush1.msra.mxu0 %v3001
  %3759 = vmatprep.subr.mxu0 0.0
  %3760 = vmatpush1.msra.mxu0 %v3000
  %3761 = vmatprep.subr.mxu0 0.0
  %3762 = vmatpush1.msra.mxu0 %v2999
  %3763 = vmatprep.subr.mxu0 0.0
  %3764 = vmatpush1.msra.mxu0 %v2998
  %3765 = vmatprep.subr.mxu0 0.0
  %3766 = vmatpush2.msra.mxu0 0.0
  %3767 = vmatprep.subr.mxu0 0.0
  %3768 = vmatpush2.msra.mxu0 0.0
  %3769 = vmatprep.subr.mxu0 0.0
  %3770 = vmatpush2.msra.mxu0 0.0
  %3771 = vmatprep.subr.mxu0 0.0
  %3772 = vmatpush2.msra.mxu0 0.0
  %3773 = vmatprep.subr.mxu0 0.0
  %3774 = vmatpush2.msra.mxu0 0.0
  %3775 = vmatprep.subr.mxu0 0.0
  %3776 = vmatpush2.msra.mxu0 0.0
  %3777 = vmatprep.subr.mxu0 0.0
  %3778 = vmatpush2.msra.mxu0 0.0
  %3779 = vmatprep.subr.mxu0 0.0
  %3780 = vmatpush2.msra.mxu0 0.0
  %3781 = vmatprep.subr.mxu0 0.0
  %3782 = vmatpush2.msra.mxu0 0.0
  %3783 = vmatprep.subr.mxu0 0.0
  %3784 = vmatpush2.msra.mxu0 0.0
  %3785 = vmatprep.subr.mxu0 0.0
  %3786 = vmatpush2.msra.mxu0 0.0
  %3787 = vmatprep.subr.mxu0 0.0
  %3788 = vmatpush2.msra.mxu0 0.0
  %3789 = vmatprep.subr.mxu0 0.0
  %3790 = vmatpush2.msra.mxu0 0.0
  %3791 = vmatprep.subr.mxu0 0.0
  %3792 = vmatpush2.msra.mxu0 0.0
  %3793 = vmatprep.subr.mxu0 0.0
  %3794 = vmatpush2.msra.mxu0 0.0
  %3795 = vmatprep.subr.mxu0 0.0
  %3796 = vmatpush2.msra.mxu0 0.0
  %3797 = vmatprep.mubr.f32.mxu0 0.0
  %3798 = vmatmul.mubr.f32.gmra.mxu0 %v3731
  %v3799 = vpop.f32.mrf.mxu0
  %v3800 = vadd.f32 %v3119, %v3799
  %v3801 = vpop.f32.mrf.mxu0
  %3802 = vdwg.mxu0
  %v3803 = vadd.f32 %v3082, %v3800
  %v3804 = vxor.u32 %v3803, 2147483648
  %v3805 = vmul.f32 %v3804, 1.442695
  %v3806 = vpow.pop %v3805
  %v3807 = vadd.f32 %v3806, 1.0
  %v3808 = vrcp.pop %v3807
  %v3809 = vmul.f32 1.0, %v3808
  %3811 = vrot.lane.b32.xlu0 %v3800, 64
  %v3812 = vpop.permute.xlu0 %3811
  %v3814 = vmul.f32 %v3809, %v3812
  %3816 = vrot.lane.b32.xlu0 %v3814, 64
  %v3817 = vpop.permute.xlu0 %3816
  %v3819 = vadd.f32 %v3082, %v3817
  %v3820 = vtanh.pop %v3819
  %v3821 = vsub.f32 1.0, %v3809
  %3823 = vrot.lane.b32.xlu0 %v3820, 96
  %v3824 = vpop.permute.xlu0 %3823
  %v3826 = vmul.f32 %v3821, %v3824
  %v3827 = vmul.f32 %v3809, %v3726
  %v3828 = vadd.f32 %v3826, %v3827
  %3829 = vst.msk [vmem:[#allocation3 + $0x8] sm:$0xff] %vm1288, %v3828
  %3831 = vrot.lane.b32.xlu0 %v3828, 96
  %v3832 = vpop.permute.xlu0 %3831
  %v3833 = vsel %vm104, %v3832, 0
  %3835 = vmatprep.subr.mxu0 0.0
  %3836 = vmatpush1.msra.mxu0 0.0
  %3837 = vmatprep.subr.mxu0 0.0
  %3838 = vmatpush1.msra.mxu0 0.0
  %3839 = vmatprep.subr.mxu0 0.0
  %3840 = vmatpush1.msra.mxu0 0.0
  %3841 = vmatprep.subr.mxu0 0.0
  %3842 = vmatpush1.msra.mxu0 0.0
  %3843 = vmatprep.subr.mxu0 0.0
  %3844 = vmatpush1.msra.mxu0 0.0
  %3845 = vmatprep.subr.mxu0 0.0
  %3846 = vmatpush1.msra.mxu0 0.0
  %3847 = vmatprep.subr.mxu0 0.0
  %3848 = vmatpush1.msra.mxu0 0.0
  %3849 = vmatprep.subr.mxu0 0.0
  %3850 = vmatpush1.msra.mxu0 0.0
  %3851 = vmatprep.subr.mxu0 0.0
  %3852 = vmatpush1.msra.mxu0 0.0
  %3853 = vmatprep.subr.mxu0 0.0
  %3854 = vmatpush1.msra.mxu0 0.0
  %3855 = vmatprep.subr.mxu0 0.0
  %3856 = vmatpush1.msra.mxu0 0.0
  %3857 = vmatprep.subr.mxu0 0.0
  %3858 = vmatpush1.msra.mxu0 0.0
  %3859 = vmatprep.subr.mxu0 0.0
  %3860 = vmatpush1.msra.mxu0 %v3001
  %3861 = vmatprep.subr.mxu0 0.0
  %3862 = vmatpush1.msra.mxu0 %v3000
  %3863 = vmatprep.subr.mxu0 0.0
  %3864 = vmatpush1.msra.mxu0 %v2999
  %3865 = vmatprep.subr.mxu0 0.0
  %3866 = vmatpush1.msra.mxu0 %v2998
  %3867 = vmatprep.subr.mxu0 0.0
  %3868 = vmatpush2.msra.mxu0 0.0
  %3869 = vmatprep.subr.mxu0 0.0
  %3870 = vmatpush2.msra.mxu0 0.0
  %3871 = vmatprep.subr.mxu0 0.0
  %3872 = vmatpush2.msra.mxu0 0.0
  %3873 = vmatprep.subr.mxu0 0.0
  %3874 = vmatpush2.msra.mxu0 0.0
  %3875 = vmatprep.subr.mxu0 0.0
  %3876 = vmatpush2.msra.mxu0 0.0
  %3877 = vmatprep.subr.mxu0 0.0
  %3878 = vmatpush2.msra.mxu0 0.0
  %3879 = vmatprep.subr.mxu0 0.0
  %3880 = vmatpush2.msra.mxu0 0.0
  %3881 = vmatprep.subr.mxu0 0.0
  %3882 = vmatpush2.msra.mxu0 0.0
  %3883 = vmatprep.subr.mxu0 0.0
  %3884 = vmatpush2.msra.mxu0 0.0
  %3885 = vmatprep.subr.mxu0 0.0
  %3886 = vmatpush2.msra.mxu0 0.0
  %3887 = vmatprep.subr.mxu0 0.0
  %3888 = vmatpush2.msra.mxu0 0.0
  %3889 = vmatprep.subr.mxu0 0.0
  %3890 = vmatpush2.msra.mxu0 0.0
  %3891 = vmatprep.subr.mxu0 0.0
  %3892 = vmatpush2.msra.mxu0 0.0
  %3893 = vmatprep.subr.mxu0 0.0
  %3894 = vmatpush2.msra.mxu0 0.0
  %3895 = vmatprep.subr.mxu0 0.0
  %3896 = vmatpush2.msra.mxu0 0.0
  %3897 = vmatprep.subr.mxu0 0.0
  %3898 = vmatpush2.msra.mxu0 0.0
  %3899 = vmatprep.mubr.f32.mxu0 0.0
  %3900 = vmatmul.mubr.f32.gmra.mxu0 %v3833
  %v3901 = vpop.f32.mrf.mxu0
  %v3902 = vadd.f32 %v3119, %v3901
  %v3903 = vpop.f32.mrf.mxu0
  %3904 = vdwg.mxu0
  %v3905 = vadd.f32 %v3077, %v3902
  %v3906 = vxor.u32 %v3905, 2147483648
  %v3907 = vmul.f32 %v3906, 1.442695
  %v3908 = vpow.pop %v3907
  %v3909 = vadd.f32 %v3908, 1.0
  %v3910 = vrcp.pop %v3909
  %v3911 = vmul.f32 1.0, %v3910
  %3913 = vrot.lane.b32.xlu0 %v3902, 64
  %v3914 = vpop.permute.xlu0 %3913
  %v3916 = vmul.f32 %v3911, %v3914
  %3918 = vrot.lane.b32.xlu0 %v3916, 64
  %v3919 = vpop.permute.xlu0 %3918
  %v3921 = vadd.f32 %v3077, %v3919
  %v3922 = vtanh.pop %v3921
  %v3923 = vsub.f32 1.0, %v3911
  %3925 = vrot.lane.b32.xlu0 %v3922, 96
  %v3926 = vpop.permute.xlu0 %3925
  %v3928 = vmul.f32 %v3923, %v3926
  %v3929 = vmul.f32 %v3911, %v3828
  %v3930 = vadd.f32 %v3928, %v3929
  %3931 = vst.msk [vmem:[#allocation3] sm:$0xff] %vm1288, %v3930
  %v3932 = vld [vmem:[#allocation3] sm:$0xff]
  %v3933 = vld [vmem:[#allocation3 + $0x8] sm:$0xff]
  %v3934 = vld [vmem:[#allocation3 + $0x10] sm:$0xff]
  %v3935 = vld [vmem:[#allocation3 + $0x18] sm:$0xff]
  %v3936 = vld [vmem:[#allocation3 + $0x20] sm:$0xff]
  %v3937 = vld [vmem:[#allocation3 + $0x28] sm:$0xff]
  %v3938 = vld [vmem:[#allocation3 + $0x30] sm:$0xff]
  %v3939 = vld [vmem:[#allocation3 + $0x38] sm:$0xff]
  %v3940 = vld [vmem:[%s17] sm:$0xff]
  %v3941 = vld [vmem:[%s17 + $0x8] sm:$0xff]
  %v3942 = vld [vmem:[%s17 + $0x10] sm:$0xff]
  %v3943 = vld [vmem:[%s17 + $0x18] sm:$0xff]
  %v3944 = vld [vmem:[%s17 + $0x20] sm:$0xff]
  %v3945 = vld [vmem:[%s17 + $0x28] sm:$0xff]
  %v3946 = vld [vmem:[%s17 + $0x30] sm:$0xff]
  %v3947 = vld [vmem:[%s17 + $0x38] sm:$0xff]
  %v3948 = vld [vmem:[%s18] sm:$0xff]
  %v3949 = vld [vmem:[%s18 + $0x8] sm:$0xff]
  %v3950 = vld [vmem:[%s18 + $0x10] sm:$0xff]
  %v3951 = vld [vmem:[%s18 + $0x18] sm:$0xff]
  %v3952 = vld [vmem:[%s19] sm:$0x1]
  %v3953 = vld [vmem:[%s20] sm:$0x1]
  %v3955 = vlaneseq
  %v3956 = vshrl.u32 %v3955, 7
  %v3957 = vsub.s32 0, %v3956
  %v3958 = vrot.slane %v3952, %v3957
  %v3961 = vsel %vm2032, %v3932, 0
  %v3964 = vsel %vm2032, %v3933, 0
  %v3967 = vsel %vm2032, %v3934, 0
  %v3970 = vsel %vm2032, %v3935, 0
  %v3973 = vsel %vm2032, %v3936, 0
  %v3976 = vsel %vm2032, %v3937, 0
  %v3979 = vsel %vm2032, %v3938, 0
  %v3982 = vsel %vm2032, %v3939, 0
  %3984 = vmatprep.subr.mxu0 0.0
  %3985 = vmatpush1.msra.mxu0 0.0
  %3986 = vmatprep.subr.mxu0 0.0
  %3987 = vmatpush1.msra.mxu0 0.0
  %3988 = vmatprep.subr.mxu0 0.0
  %3989 = vmatpush1.msra.mxu0 0.0
  %3990 = vmatprep.subr.mxu0 0.0
  %3991 = vmatpush1.msra.mxu0 0.0
  %3992 = vmatprep.subr.mxu0 0.0
  %3993 = vmatpush1.msra.mxu0 0.0
  %3994 = vmatprep.subr.mxu0 0.0
  %3995 = vmatpush1.msra.mxu0 0.0
  %3996 = vmatprep.subr.mxu0 0.0
  %3997 = vmatpush1.msra.mxu0 0.0
  %3998 = vmatprep.subr.mxu0 0.0
  %3999 = vmatpush1.msra.mxu0 0.0
  %4000 = vmatprep.subr.mxu0 0.0
  %4001 = vmatpush1.msra.mxu0 %v3947
  %4002 = vmatprep.subr.mxu0 0.0
  %4003 = vmatpush1.msra.mxu0 %v3946
  %4004 = vmatprep.subr.mxu0 0.0
  %4005 = vmatpush1.msra.mxu0 %v3945
  %4006 = vmatprep.subr.mxu0 0.0
  %4007 = vmatpush1.msra.mxu0 %v3944
  %4008 = vmatprep.subr.mxu0 0.0
  %4009 = vmatpush1.msra.mxu0 %v3943
  %4010 = vmatprep.subr.mxu0 0.0
  %4011 = vmatpush1.msra.mxu0 %v3942
  %4012 = vmatprep.subr.mxu0 0.0
  %4013 = vmatpush1.msra.mxu0 %v3941
  %4014 = vmatprep.subr.mxu0 0.0
  %4015 = vmatpush1.msra.mxu0 %v3940
  %4016 = vmatprep.subr.mxu0 0.0
  %4017 = vmatpush2.msra.mxu0 0.0
  %4018 = vmatprep.subr.mxu0 0.0
  %4019 = vmatpush2.msra.mxu0 0.0
  %4020 = vmatprep.subr.mxu0 0.0
  %4021 = vmatpush2.msra.mxu0 0.0
  %4022 = vmatprep.subr.mxu0 0.0
  %4023 = vmatpush2.msra.mxu0 0.0
  %4024 = vmatprep.subr.mxu0 0.0
  %4025 = vmatpush2.msra.mxu0 0.0
  %4026 = vmatprep.subr.mxu0 0.0
  %4027 = vmatpush2.msra.mxu0 0.0
  %4028 = vmatprep.subr.mxu0 0.0
  %4029 = vmatpush2.msra.mxu0 0.0
  %4030 = vmatprep.subr.mxu0 0.0
  %4031 = vmatpush2.msra.mxu0 0.0
  %4032 = vmatprep.subr.mxu0 0.0
  %4033 = vmatpush2.msra.mxu0 0.0
  %4034 = vmatprep.subr.mxu0 0.0
  %4035 = vmatpush2.msra.mxu0 0.0
  %4036 = vmatprep.subr.mxu0 0.0
  %4037 = vmatpush2.msra.mxu0 0.0
  %4038 = vmatprep.subr.mxu0 0.0
  %4039 = vmatpush2.msra.mxu0 0.0
  %4040 = vmatprep.subr.mxu0 0.0
  %4041 = vmatpush2.msra.mxu0 0.0
  %4042 = vmatprep.subr.mxu0 0.0
  %4043 = vmatpush2.msra.mxu0 0.0
  %4044 = vmatprep.subr.mxu0 0.0
  %4045 = vmatpush2.msra.mxu0 0.0
  %4046 = vmatprep.subr.mxu0 0.0
  %4047 = vmatpush2.msra.mxu0 0.0
  %4048 = vmatprep.mubr.f32.mxu0 0.0
  %4049 = vmatmul.mubr.f32.gmra.mxu0 %v3961
  %v4050 = vpop.f32.mrf.mxu0
  %v4051 = vadd.f32 %v3958, %v4050
  %v4052 = vpop.f32.mrf.mxu0
  %4053 = vmatprep.mubr.f32.mxu0 0.0
  %4054 = vmatmul.mubr.f32.gmra.mxu0 %v3964
  %v4055 = vpop.f32.mrf.mxu0
  %v4056 = vadd.f32 %v3958, %v4055
  %v4057 = vpop.f32.mrf.mxu0
  %4058 = vmatprep.mubr.f32.mxu0 0.0
  %4059 = vmatmul.mubr.f32.gmra.mxu0 %v3967
  %v4060 = vpop.f32.mrf.mxu0
  %v4061 = vadd.f32 %v3958, %v4060
  %v4062 = vpop.f32.mrf.mxu0
  %4063 = vmatprep.mubr.f32.mxu0 0.0
  %4064 = vmatmul.mubr.f32.gmra.mxu0 %v3970
  %v4065 = vpop.f32.mrf.mxu0
  %v4066 = vadd.f32 %v3958, %v4065
  %v4067 = vpop.f32.mrf.mxu0
  %4068 = vmatprep.mubr.f32.mxu0 0.0
  %4069 = vmatmul.mubr.f32.gmra.mxu0 %v3973
  %v4070 = vpop.f32.mrf.mxu0
  %v4071 = vadd.f32 %v3958, %v4070
  %v4072 = vpop.f32.mrf.mxu0
  %4073 = vmatprep.mubr.f32.mxu0 0.0
  %4074 = vmatmul.mubr.f32.gmra.mxu0 %v3976
  %v4075 = vpop.f32.mrf.mxu0
  %v4076 = vadd.f32 %v3958, %v4075
  %v4077 = vpop.f32.mrf.mxu0
  %4078 = vmatprep.mubr.f32.mxu0 0.0
  %4079 = vmatmul.mubr.f32.gmra.mxu0 %v3979
  %v4080 = vpop.f32.mrf.mxu0
  %v4081 = vadd.f32 %v3958, %v4080
  %v4082 = vpop.f32.mrf.mxu0
  %4083 = vmatprep.mubr.f32.mxu0 0.0
  %4084 = vmatmul.mubr.f32.gmra.mxu0 %v3982
  %v4085 = vpop.f32.mrf.mxu0
  %v4086 = vadd.f32 %v3958, %v4085
  %v4087 = vpop.f32.mrf.mxu0
  %4088 = vdwg.mxu0
  %v4090 = vlaneseq
  %v4091 = vshrl.u32 %v4090, 7
  %v4092 = vsub.s32 0, %v4091
  %v4093 = vrot.slane %v3953, %v4092
  %4095 = vmatprep.subr.mxu0 0.0
  %4096 = vmatpush1.msra.mxu0 0.0
  %4097 = vmatprep.subr.mxu0 0.0
  %4098 = vmatpush1.msra.mxu0 0.0
  %4099 = vmatprep.subr.mxu0 0.0
  %4100 = vmatpush1.msra.mxu0 0.0
  %4101 = vmatprep.subr.mxu0 0.0
  %4102 = vmatpush1.msra.mxu0 0.0
  %4103 = vmatprep.subr.mxu0 0.0
  %4104 = vmatpush1.msra.mxu0 0.0
  %4105 = vmatprep.subr.mxu0 0.0
  %4106 = vmatpush1.msra.mxu0 0.0
  %4107 = vmatprep.subr.mxu0 0.0
  %4108 = vmatpush1.msra.mxu0 0.0
  %4109 = vmatprep.subr.mxu0 0.0
  %4110 = vmatpush1.msra.mxu0 0.0
  %4111 = vmatprep.subr.mxu0 0.0
  %4112 = vmatpush1.msra.mxu0 0.0
  %4113 = vmatprep.subr.mxu0 0.0
  %4114 = vmatpush1.msra.mxu0 0.0
  %4115 = vmatprep.subr.mxu0 0.0
  %4116 = vmatpush1.msra.mxu0 0.0
  %4117 = vmatprep.subr.mxu0 0.0
  %4118 = vmatpush1.msra.mxu0 0.0
  %4119 = vmatprep.subr.mxu0 0.0
  %4120 = vmatpush1.msra.mxu0 %v3951
  %4121 = vmatprep.subr.mxu0 0.0
  %4122 = vmatpush1.msra.mxu0 %v3950
  %4123 = vmatprep.subr.mxu0 0.0
  %4124 = vmatpush1.msra.mxu0 %v3949
  %4125 = vmatprep.subr.mxu0 0.0
  %4126 = vmatpush1.msra.mxu0 %v3948
  %4127 = vmatprep.subr.mxu0 0.0
  %4128 = vmatpush2.msra.mxu0 0.0
  %4129 = vmatprep.subr.mxu0 0.0
  %4130 = vmatpush2.msra.mxu0 0.0
  %4131 = vmatprep.subr.mxu0 0.0
  %4132 = vmatpush2.msra.mxu0 0.0
  %4133 = vmatprep.subr.mxu0 0.0
  %4134 = vmatpush2.msra.mxu0 0.0
  %4135 = vmatprep.subr.mxu0 0.0
  %4136 = vmatpush2.msra.mxu0 0.0
  %4137 = vmatprep.subr.mxu0 0.0
  %4138 = vmatpush2.msra.mxu0 0.0
  %4139 = vmatprep.subr.mxu0 0.0
  %4140 = vmatpush2.msra.mxu0 0.0
  %4141 = vmatprep.subr.mxu0 0.0
  %4142 = vmatpush2.msra.mxu0 0.0
  %4143 = vmatprep.subr.mxu0 0.0
  %4144 = vmatpush2.msra.mxu0 0.0
  %4145 = vmatprep.subr.mxu0 0.0
  %4146 = vmatpush2.msra.mxu0 0.0
  %4147 = vmatprep.subr.mxu0 0.0
  %4148 = vmatpush2.msra.mxu0 0.0
  %4149 = vmatprep.subr.mxu0 0.0
  %4150 = vmatpush2.msra.mxu0 0.0
  %4151 = vmatprep.subr.mxu0 0.0
  %4152 = vmatpush2.msra.mxu0 0.0
  %4153 = vmatprep.subr.mxu0 0.0
  %4154 = vmatpush2.msra.mxu0 0.0
  %4155 = vmatprep.subr.mxu0 0.0
  %4156 = vmatpush2.msra.mxu0 0.0
  %4157 = vmatprep.subr.mxu0 0.0
  %4158 = vmatpush2.msra.mxu0 0.0
  %4159 = vmatprep.mubr.f32.mxu0 0.0
  %4160 = vmatmul.mubr.f32.gmra.mxu0 %v241
  %v4161 = vpop.f32.mrf.mxu0
  %v4162 = vadd.f32 %v4093, %v4161
  %v4163 = vpop.f32.mrf.mxu0
  %4164 = vdwg.mxu0
  %v4165 = vadd.f32 %v4051, %v4162
  %v4166 = vxor.u32 %v4165, 2147483648
  %v4167 = vmul.f32 %v4166, 1.442695
  %v4168 = vpow.pop %v4167
  %v4169 = vadd.f32 %v4168, 1.0
  %v4170 = vrcp.pop %v4169
  %v4171 = vmul.f32 1.0, %v4170
  %4173 = vrot.lane.b32.xlu0 %v4162, 64
  %v4174 = vpop.permute.xlu0 %4173
  %v4176 = vmul.f32 %v4171, %v4174
  %4178 = vrot.lane.b32.xlu0 %v4176, 64
  %v4179 = vpop.permute.xlu0 %4178
  %v4181 = vadd.f32 %v4051, %v4179
  %v4182 = vtanh.pop %v4181
  %v4183 = vsub.f32 1.0, %v4171
  %4185 = vrot.lane.b32.xlu0 %v4182, 96
  %v4186 = vpop.permute.xlu0 %4185
  %v4188 = vmul.f32 %v4183, %v4186
  %v4189 = vmul.f32 %v4171, 0.0
  %v4190 = vadd.f32 %v4188, %v4189
  %4192 = vrot.lane.b32.xlu0 %v4190, 96
  %v4193 = vpop.permute.xlu0 %4192
  %v4194 = vsel %vm104, %v4193, 0
  %4196 = vmatprep.subr.mxu0 0.0
  %4197 = vmatpush1.msra.mxu0 0.0
  %4198 = vmatprep.subr.mxu0 0.0
  %4199 = vmatpush1.msra.mxu0 0.0
  %4200 = vmatprep.subr.mxu0 0.0
  %4201 = vmatpush1.msra.mxu0 0.0
  %4202 = vmatprep.subr.mxu0 0.0
  %4203 = vmatpush1.msra.mxu0 0.0
  %4204 = vmatprep.subr.mxu0 0.0
  %4205 = vmatpush1.msra.mxu0 0.0
  %4206 = vmatprep.subr.mxu0 0.0
  %4207 = vmatpush1.msra.mxu0 0.0
  %4208 = vmatprep.subr.mxu0 0.0
  %4209 = vmatpush1.msra.mxu0 0.0
  %4210 = vmatprep.subr.mxu0 0.0
  %4211 = vmatpush1.msra.mxu0 0.0
  %4212 = vmatprep.subr.mxu0 0.0
  %4213 = vmatpush1.msra.mxu0 0.0
  %4214 = vmatprep.subr.mxu0 0.0
  %4215 = vmatpush1.msra.mxu0 0.0
  %4216 = vmatprep.subr.mxu0 0.0
  %4217 = vmatpush1.msra.mxu0 0.0
  %4218 = vmatprep.subr.mxu0 0.0
  %4219 = vmatpush1.msra.mxu0 0.0
  %4220 = vmatprep.subr.mxu0 0.0
  %4221 = vmatpush1.msra.mxu0 %v3951
  %4222 = vmatprep.subr.mxu0 0.0
  %4223 = vmatpush1.msra.mxu0 %v3950
  %4224 = vmatprep.subr.mxu0 0.0
  %4225 = vmatpush1.msra.mxu0 %v3949
  %4226 = vmatprep.subr.mxu0 0.0
  %4227 = vmatpush1.msra.mxu0 %v3948
  %4228 = vmatprep.subr.mxu0 0.0
  %4229 = vmatpush2.msra.mxu0 0.0
  %4230 = vmatprep.subr.mxu0 0.0
  %4231 = vmatpush2.msra.mxu0 0.0
  %4232 = vmatprep.subr.mxu0 0.0
  %4233 = vmatpush2.msra.mxu0 0.0
  %4234 = vmatprep.subr.mxu0 0.0
  %4235 = vmatpush2.msra.mxu0 0.0
  %4236 = vmatprep.subr.mxu0 0.0
  %4237 = vmatpush2.msra.mxu0 0.0
  %4238 = vmatprep.subr.mxu0 0.0
  %4239 = vmatpush2.msra.mxu0 0.0
  %4240 = vmatprep.subr.mxu0 0.0
  %4241 = vmatpush2.msra.mxu0 0.0
  %4242 = vmatprep.subr.mxu0 0.0
  %4243 = vmatpush2.msra.mxu0 0.0
  %4244 = vmatprep.subr.mxu0 0.0
  %4245 = vmatpush2.msra.mxu0 0.0
  %4246 = vmatprep.subr.mxu0 0.0
  %4247 = vmatpush2.msra.mxu0 0.0
  %4248 = vmatprep.subr.mxu0 0.0
  %4249 = vmatpush2.msra.mxu0 0.0
  %4250 = vmatprep.subr.mxu0 0.0
  %4251 = vmatpush2.msra.mxu0 0.0
  %4252 = vmatprep.subr.mxu0 0.0
  %4253 = vmatpush2.msra.mxu0 0.0
  %4254 = vmatprep.subr.mxu0 0.0
  %4255 = vmatpush2.msra.mxu0 0.0
  %4256 = vmatprep.subr.mxu0 0.0
  %4257 = vmatpush2.msra.mxu0 0.0
  %4258 = vmatprep.subr.mxu0 0.0
  %4259 = vmatpush2.msra.mxu0 0.0
  %4260 = vmatprep.mubr.f32.mxu0 0.0
  %4261 = vmatmul.mubr.f32.gmra.mxu0 %v4194
  %v4262 = vpop.f32.mrf.mxu0
  %v4263 = vadd.f32 %v4093, %v4262
  %v4264 = vpop.f32.mrf.mxu0
  %4265 = vdwg.mxu0
  %v4266 = vadd.f32 %v4056, %v4263
  %v4267 = vxor.u32 %v4266, 2147483648
  %v4268 = vmul.f32 %v4267, 1.442695
  %v4269 = vpow.pop %v4268
  %v4270 = vadd.f32 %v4269, 1.0
  %v4271 = vrcp.pop %v4270
  %v4272 = vmul.f32 1.0, %v4271
  %4274 = vrot.lane.b32.xlu0 %v4263, 64
  %v4275 = vpop.permute.xlu0 %4274
  %v4277 = vmul.f32 %v4272, %v4275
  %4279 = vrot.lane.b32.xlu0 %v4277, 64
  %v4280 = vpop.permute.xlu0 %4279
  %v4282 = vadd.f32 %v4056, %v4280
  %v4283 = vtanh.pop %v4282
  %v4284 = vsub.f32 1.0, %v4272
  %4286 = vrot.lane.b32.xlu0 %v4283, 96
  %v4287 = vpop.permute.xlu0 %4286
  %v4289 = vmul.f32 %v4284, %v4287
  %v4290 = vmul.f32 %v4272, %v4190
  %v4291 = vadd.f32 %v4289, %v4290
  %4293 = vrot.lane.b32.xlu0 %v4291, 96
  %v4294 = vpop.permute.xlu0 %4293
  %v4295 = vsel %vm104, %v4294, 0
  %4297 = vmatprep.subr.mxu0 0.0
  %4298 = vmatpush1.msra.mxu0 0.0
  %4299 = vmatprep.subr.mxu0 0.0
  %4300 = vmatpush1.msra.mxu0 0.0
  %4301 = vmatprep.subr.mxu0 0.0
  %4302 = vmatpush1.msra.mxu0 0.0
  %4303 = vmatprep.subr.mxu0 0.0
  %4304 = vmatpush1.msra.mxu0 0.0
  %4305 = vmatprep.subr.mxu0 0.0
  %4306 = vmatpush1.msra.mxu0 0.0
  %4307 = vmatprep.subr.mxu0 0.0
  %4308 = vmatpush1.msra.mxu0 0.0
  %4309 = vmatprep.subr.mxu0 0.0
  %4310 = vmatpush1.msra.mxu0 0.0
  %4311 = vmatprep.subr.mxu0 0.0
  %4312 = vmatpush1.msra.mxu0 0.0
  %4313 = vmatprep.subr.mxu0 0.0
  %4314 = vmatpush1.msra.mxu0 0.0
  %4315 = vmatprep.subr.mxu0 0.0
  %4316 = vmatpush1.msra.mxu0 0.0
  %4317 = vmatprep.subr.mxu0 0.0
  %4318 = vmatpush1.msra.mxu0 0.0
  %4319 = vmatprep.subr.mxu0 0.0
  %4320 = vmatpush1.msra.mxu0 0.0
  %4321 = vmatprep.subr.mxu0 0.0
  %4322 = vmatpush1.msra.mxu0 %v3951
  %4323 = vmatprep.subr.mxu0 0.0
  %4324 = vmatpush1.msra.mxu0 %v3950
  %4325 = vmatprep.subr.mxu0 0.0
  %4326 = vmatpush1.msra.mxu0 %v3949
  %4327 = vmatprep.subr.mxu0 0.0
  %4328 = vmatpush1.msra.mxu0 %v3948
  %4329 = vmatprep.subr.mxu0 0.0
  %4330 = vmatpush2.msra.mxu0 0.0
  %4331 = vmatprep.subr.mxu0 0.0
  %4332 = vmatpush2.msra.mxu0 0.0
  %4333 = vmatprep.subr.mxu0 0.0
  %4334 = vmatpush2.msra.mxu0 0.0
  %4335 = vmatprep.subr.mxu0 0.0
  %4336 = vmatpush2.msra.mxu0 0.0
  %4337 = vmatprep.subr.mxu0 0.0
  %4338 = vmatpush2.msra.mxu0 0.0
  %4339 = vmatprep.subr.mxu0 0.0
  %4340 = vmatpush2.msra.mxu0 0.0
  %4341 = vmatprep.subr.mxu0 0.0
  %4342 = vmatpush2.msra.mxu0 0.0
  %4343 = vmatprep.subr.mxu0 0.0
  %4344 = vmatpush2.msra.mxu0 0.0
  %4345 = vmatprep.subr.mxu0 0.0
  %4346 = vmatpush2.msra.mxu0 0.0
  %4347 = vmatprep.subr.mxu0 0.0
  %4348 = vmatpush2.msra.mxu0 0.0
  %4349 = vmatprep.subr.mxu0 0.0
  %4350 = vmatpush2.msra.mxu0 0.0
  %4351 = vmatprep.subr.mxu0 0.0
  %4352 = vmatpush2.msra.mxu0 0.0
  %4353 = vmatprep.subr.mxu0 0.0
  %4354 = vmatpush2.msra.mxu0 0.0
  %4355 = vmatprep.subr.mxu0 0.0
  %4356 = vmatpush2.msra.mxu0 0.0
  %4357 = vmatprep.subr.mxu0 0.0
  %4358 = vmatpush2.msra.mxu0 0.0
  %4359 = vmatprep.subr.mxu0 0.0
  %4360 = vmatpush2.msra.mxu0 0.0
  %4361 = vmatprep.mubr.f32.mxu0 0.0
  %4362 = vmatmul.mubr.f32.gmra.mxu0 %v4295
  %v4363 = vpop.f32.mrf.mxu0
  %v4364 = vadd.f32 %v4093, %v4363
  %v4365 = vpop.f32.mrf.mxu0
  %4366 = vdwg.mxu0
  %v4367 = vadd.f32 %v4061, %v4364
  %v4368 = vxor.u32 %v4367, 2147483648
  %v4369 = vmul.f32 %v4368, 1.442695
  %v4370 = vpow.pop %v4369
  %v4371 = vadd.f32 %v4370, 1.0
  %v4372 = vrcp.pop %v4371
  %v4373 = vmul.f32 1.0, %v4372
  %4375 = vrot.lane.b32.xlu0 %v4364, 64
  %v4376 = vpop.permute.xlu0 %4375
  %v4378 = vmul.f32 %v4373, %v4376
  %4380 = vrot.lane.b32.xlu0 %v4378, 64
  %v4381 = vpop.permute.xlu0 %4380
  %v4383 = vadd.f32 %v4061, %v4381
  %v4384 = vtanh.pop %v4383
  %v4385 = vsub.f32 1.0, %v4373
  %4387 = vrot.lane.b32.xlu0 %v4384, 96
  %v4388 = vpop.permute.xlu0 %4387
  %v4390 = vmul.f32 %v4385, %v4388
  %v4391 = vmul.f32 %v4373, %v4291
  %v4392 = vadd.f32 %v4390, %v4391
  %4394 = vrot.lane.b32.xlu0 %v4392, 96
  %v4395 = vpop.permute.xlu0 %4394
  %v4396 = vsel %vm104, %v4395, 0
  %4398 = vmatprep.subr.mxu0 0.0
  %4399 = vmatpush1.msra.mxu0 0.0
  %4400 = vmatprep.subr.mxu0 0.0
  %4401 = vmatpush1.msra.mxu0 0.0
  %4402 = vmatprep.subr.mxu0 0.0
  %4403 = vmatpush1.msra.mxu0 0.0
  %4404 = vmatprep.subr.mxu0 0.0
  %4405 = vmatpush1.msra.mxu0 0.0
  %4406 = vmatprep.subr.mxu0 0.0
  %4407 = vmatpush1.msra.mxu0 0.0
  %4408 = vmatprep.subr.mxu0 0.0
  %4409 = vmatpush1.msra.mxu0 0.0
  %4410 = vmatprep.subr.mxu0 0.0
  %4411 = vmatpush1.msra.mxu0 0.0
  %4412 = vmatprep.subr.mxu0 0.0
  %4413 = vmatpush1.msra.mxu0 0.0
  %4414 = vmatprep.subr.mxu0 0.0
  %4415 = vmatpush1.msra.mxu0 0.0
  %4416 = vmatprep.subr.mxu0 0.0
  %4417 = vmatpush1.msra.mxu0 0.0
  %4418 = vmatprep.subr.mxu0 0.0
  %4419 = vmatpush1.msra.mxu0 0.0
  %4420 = vmatprep.subr.mxu0 0.0
  %4421 = vmatpush1.msra.mxu0 0.0
  %4422 = vmatprep.subr.mxu0 0.0
  %4423 = vmatpush1.msra.mxu0 %v3951
  %4424 = vmatprep.subr.mxu0 0.0
  %4425 = vmatpush1.msra.mxu0 %v3950
  %4426 = vmatprep.subr.mxu0 0.0
  %4427 = vmatpush1.msra.mxu0 %v3949
  %4428 = vmatprep.subr.mxu0 0.0
  %4429 = vmatpush1.msra.mxu0 %v3948
  %4430 = vmatprep.subr.mxu0 0.0
  %4431 = vmatpush2.msra.mxu0 0.0
  %4432 = vmatprep.subr.mxu0 0.0
  %4433 = vmatpush2.msra.mxu0 0.0
  %4434 = vmatprep.subr.mxu0 0.0
  %4435 = vmatpush2.msra.mxu0 0.0
  %4436 = vmatprep.subr.mxu0 0.0
  %4437 = vmatpush2.msra.mxu0 0.0
  %4438 = vmatprep.subr.mxu0 0.0
  %4439 = vmatpush2.msra.mxu0 0.0
  %4440 = vmatprep.subr.mxu0 0.0
  %4441 = vmatpush2.msra.mxu0 0.0
  %4442 = vmatprep.subr.mxu0 0.0
  %4443 = vmatpush2.msra.mxu0 0.0
  %4444 = vmatprep.subr.mxu0 0.0
  %4445 = vmatpush2.msra.mxu0 0.0
  %4446 = vmatprep.subr.mxu0 0.0
  %4447 = vmatpush2.msra.mxu0 0.0
  %4448 = vmatprep.subr.mxu0 0.0
  %4449 = vmatpush2.msra.mxu0 0.0
  %4450 = vmatprep.subr.mxu0 0.0
  %4451 = vmatpush2.msra.mxu0 0.0
  %4452 = vmatprep.subr.mxu0 0.0
  %4453 = vmatpush2.msra.mxu0 0.0
  %4454 = vmatprep.subr.mxu0 0.0
  %4455 = vmatpush2.msra.mxu0 0.0
  %4456 = vmatprep.subr.mxu0 0.0
  %4457 = vmatpush2.msra.mxu0 0.0
  %4458 = vmatprep.subr.mxu0 0.0
  %4459 = vmatpush2.msra.mxu0 0.0
  %4460 = vmatprep.subr.mxu0 0.0
  %4461 = vmatpush2.msra.mxu0 0.0
  %4462 = vmatprep.mubr.f32.mxu0 0.0
  %4463 = vmatmul.mubr.f32.gmra.mxu0 %v4396
  %v4464 = vpop.f32.mrf.mxu0
  %v4465 = vadd.f32 %v4093, %v4464
  %v4466 = vpop.f32.mrf.mxu0
  %4467 = vdwg.mxu0
  %v4468 = vadd.f32 %v4066, %v4465
  %v4469 = vxor.u32 %v4468, 2147483648
  %v4470 = vmul.f32 %v4469, 1.442695
  %v4471 = vpow.pop %v4470
  %v4472 = vadd.f32 %v4471, 1.0
  %v4473 = vrcp.pop %v4472
  %v4474 = vmul.f32 1.0, %v4473
  %4476 = vrot.lane.b32.xlu0 %v4465, 64
  %v4477 = vpop.permute.xlu0 %4476
  %v4479 = vmul.f32 %v4474, %v4477
  %4481 = vrot.lane.b32.xlu0 %v4479, 64
  %v4482 = vpop.permute.xlu0 %4481
  %v4484 = vadd.f32 %v4066, %v4482
  %v4485 = vtanh.pop %v4484
  %v4486 = vsub.f32 1.0, %v4474
  %4488 = vrot.lane.b32.xlu0 %v4485, 96
  %v4489 = vpop.permute.xlu0 %4488
  %v4491 = vmul.f32 %v4486, %v4489
  %v4492 = vmul.f32 %v4474, %v4392
  %v4493 = vadd.f32 %v4491, %v4492
  %4495 = vrot.lane.b32.xlu0 %v4493, 96
  %v4496 = vpop.permute.xlu0 %4495
  %v4497 = vsel %vm104, %v4496, 0
  %4499 = vmatprep.subr.mxu0 0.0
  %4500 = vmatpush1.msra.mxu0 0.0
  %4501 = vmatprep.subr.mxu0 0.0
  %4502 = vmatpush1.msra.mxu0 0.0
  %4503 = vmatprep.subr.mxu0 0.0
  %4504 = vmatpush1.msra.mxu0 0.0
  %4505 = vmatprep.subr.mxu0 0.0
  %4506 = vmatpush1.msra.mxu0 0.0
  %4507 = vmatprep.subr.mxu0 0.0
  %4508 = vmatpush1.msra.mxu0 0.0
  %4509 = vmatprep.subr.mxu0 0.0
  %4510 = vmatpush1.msra.mxu0 0.0
  %4511 = vmatprep.subr.mxu0 0.0
  %4512 = vmatpush1.msra.mxu0 0.0
  %4513 = vmatprep.subr.mxu0 0.0
  %4514 = vmatpush1.msra.mxu0 0.0
  %4515 = vmatprep.subr.mxu0 0.0
  %4516 = vmatpush1.msra.mxu0 0.0
  %4517 = vmatprep.subr.mxu0 0.0
  %4518 = vmatpush1.msra.mxu0 0.0
  %4519 = vmatprep.subr.mxu0 0.0
  %4520 = vmatpush1.msra.mxu0 0.0
  %4521 = vmatprep.subr.mxu0 0.0
  %4522 = vmatpush1.msra.mxu0 0.0
  %4523 = vmatprep.subr.mxu0 0.0
  %4524 = vmatpush1.msra.mxu0 %v3951
  %4525 = vmatprep.subr.mxu0 0.0
  %4526 = vmatpush1.msra.mxu0 %v3950
  %4527 = vmatprep.subr.mxu0 0.0
  %4528 = vmatpush1.msra.mxu0 %v3949
  %4529 = vmatprep.subr.mxu0 0.0
  %4530 = vmatpush1.msra.mxu0 %v3948
  %4531 = vmatprep.subr.mxu0 0.0
  %4532 = vmatpush2.msra.mxu0 0.0
  %4533 = vmatprep.subr.mxu0 0.0
  %4534 = vmatpush2.msra.mxu0 0.0
  %4535 = vmatprep.subr.mxu0 0.0
  %4536 = vmatpush2.msra.mxu0 0.0
  %4537 = vmatprep.subr.mxu0 0.0
  %4538 = vmatpush2.msra.mxu0 0.0
  %4539 = vmatprep.subr.mxu0 0.0
  %4540 = vmatpush2.msra.mxu0 0.0
  %4541 = vmatprep.subr.mxu0 0.0
  %4542 = vmatpush2.msra.mxu0 0.0
  %4543 = vmatprep.subr.mxu0 0.0
  %4544 = vmatpush2.msra.mxu0 0.0
  %4545 = vmatprep.subr.mxu0 0.0
  %4546 = vmatpush2.msra.mxu0 0.0
  %4547 = vmatprep.subr.mxu0 0.0
  %4548 = vmatpush2.msra.mxu0 0.0
  %4549 = vmatprep.subr.mxu0 0.0
  %4550 = vmatpush2.msra.mxu0 0.0
  %4551 = vmatprep.subr.mxu0 0.0
  %4552 = vmatpush2.msra.mxu0 0.0
  %4553 = vmatprep.subr.mxu0 0.0
  %4554 = vmatpush2.msra.mxu0 0.0
  %4555 = vmatprep.subr.mxu0 0.0
  %4556 = vmatpush2.msra.mxu0 0.0
  %4557 = vmatprep.subr.mxu0 0.0
  %4558 = vmatpush2.msra.mxu0 0.0
  %4559 = vmatprep.subr.mxu0 0.0
  %4560 = vmatpush2.msra.mxu0 0.0
  %4561 = vmatprep.subr.mxu0 0.0
  %4562 = vmatpush2.msra.mxu0 0.0
  %4563 = vmatprep.mubr.f32.mxu0 0.0
  %4564 = vmatmul.mubr.f32.gmra.mxu0 %v4497
  %v4565 = vpop.f32.mrf.mxu0
  %v4566 = vadd.f32 %v4093, %v4565
  %v4567 = vpop.f32.mrf.mxu0
  %4568 = vdwg.mxu0
  %v4569 = vadd.f32 %v4071, %v4566
  %v4570 = vxor.u32 %v4569, 2147483648
  %v4571 = vmul.f32 %v4570, 1.442695
  %v4572 = vpow.pop %v4571
  %v4573 = vadd.f32 %v4572, 1.0
  %v4574 = vrcp.pop %v4573
  %v4575 = vmul.f32 1.0, %v4574
  %4577 = vrot.lane.b32.xlu0 %v4566, 64
  %v4578 = vpop.permute.xlu0 %4577
  %v4580 = vmul.f32 %v4575, %v4578
  %4582 = vrot.lane.b32.xlu0 %v4580, 64
  %v4583 = vpop.permute.xlu0 %4582
  %v4585 = vadd.f32 %v4071, %v4583
  %v4586 = vtanh.pop %v4585
  %v4587 = vsub.f32 1.0, %v4575
  %4589 = vrot.lane.b32.xlu0 %v4586, 96
  %v4590 = vpop.permute.xlu0 %4589
  %v4592 = vmul.f32 %v4587, %v4590
  %v4593 = vmul.f32 %v4575, %v4493
  %v4594 = vadd.f32 %v4592, %v4593
  %4596 = vrot.lane.b32.xlu0 %v4594, 96
  %v4597 = vpop.permute.xlu0 %4596
  %v4598 = vsel %vm104, %v4597, 0
  %4600 = vmatprep.subr.mxu0 0.0
  %4601 = vmatpush1.msra.mxu0 0.0
  %4602 = vmatprep.subr.mxu0 0.0
  %4603 = vmatpush1.msra.mxu0 0.0
  %4604 = vmatprep.subr.mxu0 0.0
  %4605 = vmatpush1.msra.mxu0 0.0
  %4606 = vmatprep.subr.mxu0 0.0
  %4607 = vmatpush1.msra.mxu0 0.0
  %4608 = vmatprep.subr.mxu0 0.0
  %4609 = vmatpush1.msra.mxu0 0.0
  %4610 = vmatprep.subr.mxu0 0.0
  %4611 = vmatpush1.msra.mxu0 0.0
  %4612 = vmatprep.subr.mxu0 0.0
  %4613 = vmatpush1.msra.mxu0 0.0
  %4614 = vmatprep.subr.mxu0 0.0
  %4615 = vmatpush1.msra.mxu0 0.0
  %4616 = vmatprep.subr.mxu0 0.0
  %4617 = vmatpush1.msra.mxu0 0.0
  %4618 = vmatprep.subr.mxu0 0.0
  %4619 = vmatpush1.msra.mxu0 0.0
  %4620 = vmatprep.subr.mxu0 0.0
  %4621 = vmatpush1.msra.mxu0 0.0
  %4622 = vmatprep.subr.mxu0 0.0
  %4623 = vmatpush1.msra.mxu0 0.0
  %4624 = vmatprep.subr.mxu0 0.0
  %4625 = vmatpush1.msra.mxu0 %v3951
  %4626 = vmatprep.subr.mxu0 0.0
  %4627 = vmatpush1.msra.mxu0 %v3950
  %4628 = vmatprep.subr.mxu0 0.0
  %4629 = vmatpush1.msra.mxu0 %v3949
  %4630 = vmatprep.subr.mxu0 0.0
  %4631 = vmatpush1.msra.mxu0 %v3948
  %4632 = vmatprep.subr.mxu0 0.0
  %4633 = vmatpush2.msra.mxu0 0.0
  %4634 = vmatprep.subr.mxu0 0.0
  %4635 = vmatpush2.msra.mxu0 0.0
  %4636 = vmatprep.subr.mxu0 0.0
  %4637 = vmatpush2.msra.mxu0 0.0
  %4638 = vmatprep.subr.mxu0 0.0
  %4639 = vmatpush2.msra.mxu0 0.0
  %4640 = vmatprep.subr.mxu0 0.0
  %4641 = vmatpush2.msra.mxu0 0.0
  %4642 = vmatprep.subr.mxu0 0.0
  %4643 = vmatpush2.msra.mxu0 0.0
  %4644 = vmatprep.subr.mxu0 0.0
  %4645 = vmatpush2.msra.mxu0 0.0
  %4646 = vmatprep.subr.mxu0 0.0
  %4647 = vmatpush2.msra.mxu0 0.0
  %4648 = vmatprep.subr.mxu0 0.0
  %4649 = vmatpush2.msra.mxu0 0.0
  %4650 = vmatprep.subr.mxu0 0.0
  %4651 = vmatpush2.msra.mxu0 0.0
  %4652 = vmatprep.subr.mxu0 0.0
  %4653 = vmatpush2.msra.mxu0 0.0
  %4654 = vmatprep.subr.mxu0 0.0
  %4655 = vmatpush2.msra.mxu0 0.0
  %4656 = vmatprep.subr.mxu0 0.0
  %4657 = vmatpush2.msra.mxu0 0.0
  %4658 = vmatprep.subr.mxu0 0.0
  %4659 = vmatpush2.msra.mxu0 0.0
  %4660 = vmatprep.subr.mxu0 0.0
  %4661 = vmatpush2.msra.mxu0 0.0
  %4662 = vmatprep.subr.mxu0 0.0
  %4663 = vmatpush2.msra.mxu0 0.0
  %4664 = vmatprep.mubr.f32.mxu0 0.0
  %4665 = vmatmul.mubr.f32.gmra.mxu0 %v4598
  %v4666 = vpop.f32.mrf.mxu0
  %v4667 = vadd.f32 %v4093, %v4666
  %v4668 = vpop.f32.mrf.mxu0
  %4669 = vdwg.mxu0
  %v4670 = vadd.f32 %v4076, %v4667
  %v4671 = vxor.u32 %v4670, 2147483648
  %v4672 = vmul.f32 %v4671, 1.442695
  %v4673 = vpow.pop %v4672
  %v4674 = vadd.f32 %v4673, 1.0
  %v4675 = vrcp.pop %v4674
  %v4676 = vmul.f32 1.0, %v4675
  %4678 = vrot.lane.b32.xlu0 %v4667, 64
  %v4679 = vpop.permute.xlu0 %4678
  %v4681 = vmul.f32 %v4676, %v4679
  %4683 = vrot.lane.b32.xlu0 %v4681, 64
  %v4684 = vpop.permute.xlu0 %4683
  %v4686 = vadd.f32 %v4076, %v4684
  %v4687 = vtanh.pop %v4686
  %v4688 = vsub.f32 1.0, %v4676
  %4690 = vrot.lane.b32.xlu0 %v4687, 96
  %v4691 = vpop.permute.xlu0 %4690
  %v4693 = vmul.f32 %v4688, %v4691
  %v4694 = vmul.f32 %v4676, %v4594
  %v4695 = vadd.f32 %v4693, %v4694
  %4697 = vrot.lane.b32.xlu0 %v4695, 96
  %v4698 = vpop.permute.xlu0 %4697
  %v4699 = vsel %vm104, %v4698, 0
  %4701 = vmatprep.subr.mxu0 0.0
  %4702 = vmatpush1.msra.mxu0 0.0
  %4703 = vmatprep.subr.mxu0 0.0
  %4704 = vmatpush1.msra.mxu0 0.0
  %4705 = vmatprep.subr.mxu0 0.0
  %4706 = vmatpush1.msra.mxu0 0.0
  %4707 = vmatprep.subr.mxu0 0.0
  %4708 = vmatpush1.msra.mxu0 0.0
  %4709 = vmatprep.subr.mxu0 0.0
  %4710 = vmatpush1.msra.mxu0 0.0
  %4711 = vmatprep.subr.mxu0 0.0
  %4712 = vmatpush1.msra.mxu0 0.0
  %4713 = vmatprep.subr.mxu0 0.0
  %4714 = vmatpush1.msra.mxu0 0.0
  %4715 = vmatprep.subr.mxu0 0.0
  %4716 = vmatpush1.msra.mxu0 0.0
  %4717 = vmatprep.subr.mxu0 0.0
  %4718 = vmatpush1.msra.mxu0 0.0
  %4719 = vmatprep.subr.mxu0 0.0
  %4720 = vmatpush1.msra.mxu0 0.0
  %4721 = vmatprep.subr.mxu0 0.0
  %4722 = vmatpush1.msra.mxu0 0.0
  %4723 = vmatprep.subr.mxu0 0.0
  %4724 = vmatpush1.msra.mxu0 0.0
  %4725 = vmatprep.subr.mxu0 0.0
  %4726 = vmatpush1.msra.mxu0 %v3951
  %4727 = vmatprep.subr.mxu0 0.0
  %4728 = vmatpush1.msra.mxu0 %v3950
  %4729 = vmatprep.subr.mxu0 0.0
  %4730 = vmatpush1.msra.mxu0 %v3949
  %4731 = vmatprep.subr.mxu0 0.0
  %4732 = vmatpush1.msra.mxu0 %v3948
  %4733 = vmatprep.subr.mxu0 0.0
  %4734 = vmatpush2.msra.mxu0 0.0
  %4735 = vmatprep.subr.mxu0 0.0
  %4736 = vmatpush2.msra.mxu0 0.0
  %4737 = vmatprep.subr.mxu0 0.0
  %4738 = vmatpush2.msra.mxu0 0.0
  %4739 = vmatprep.subr.mxu0 0.0
  %4740 = vmatpush2.msra.mxu0 0.0
  %4741 = vmatprep.subr.mxu0 0.0
  %4742 = vmatpush2.msra.mxu0 0.0
  %4743 = vmatprep.subr.mxu0 0.0
  %4744 = vmatpush2.msra.mxu0 0.0
  %4745 = vmatprep.subr.mxu0 0.0
  %4746 = vmatpush2.msra.mxu0 0.0
  %4747 = vmatprep.subr.mxu0 0.0
  %4748 = vmatpush2.msra.mxu0 0.0
  %4749 = vmatprep.subr.mxu0 0.0
  %4750 = vmatpush2.msra.mxu0 0.0
  %4751 = vmatprep.subr.mxu0 0.0
  %4752 = vmatpush2.msra.mxu0 0.0
  %4753 = vmatprep.subr.mxu0 0.0
  %4754 = vmatpush2.msra.mxu0 0.0
  %4755 = vmatprep.subr.mxu0 0.0
  %4756 = vmatpush2.msra.mxu0 0.0
  %4757 = vmatprep.subr.mxu0 0.0
  %4758 = vmatpush2.msra.mxu0 0.0
  %4759 = vmatprep.subr.mxu0 0.0
  %4760 = vmatpush2.msra.mxu0 0.0
  %4761 = vmatprep.subr.mxu0 0.0
  %4762 = vmatpush2.msra.mxu0 0.0
  %4763 = vmatprep.subr.mxu0 0.0
  %4764 = vmatpush2.msra.mxu0 0.0
  %4765 = vmatprep.mubr.f32.mxu0 0.0
  %4766 = vmatmul.mubr.f32.gmra.mxu0 %v4699
  %v4767 = vpop.f32.mrf.mxu0
  %v4768 = vadd.f32 %v4093, %v4767
  %v4769 = vpop.f32.mrf.mxu0
  %4770 = vdwg.mxu0
  %v4771 = vadd.f32 %v4081, %v4768
  %v4772 = vxor.u32 %v4771, 2147483648
  %v4773 = vmul.f32 %v4772, 1.442695
  %v4774 = vpow.pop %v4773
  %v4775 = vadd.f32 %v4774, 1.0
  %v4776 = vrcp.pop %v4775
  %v4777 = vmul.f32 1.0, %v4776
  %4779 = vrot.lane.b32.xlu0 %v4768, 64
  %v4780 = vpop.permute.xlu0 %4779
  %v4782 = vmul.f32 %v4777, %v4780
  %4784 = vrot.lane.b32.xlu0 %v4782, 64
  %v4785 = vpop.permute.xlu0 %4784
  %v4787 = vadd.f32 %v4081, %v4785
  %v4788 = vtanh.pop %v4787
  %v4789 = vsub.f32 1.0, %v4777
  %4791 = vrot.lane.b32.xlu0 %v4788, 96
  %v4792 = vpop.permute.xlu0 %4791
  %v4794 = vmul.f32 %v4789, %v4792
  %v4795 = vmul.f32 %v4777, %v4695
  %v4796 = vadd.f32 %v4794, %v4795
  %4798 = vrot.lane.b32.xlu0 %v4796, 96
  %v4799 = vpop.permute.xlu0 %4798
  %v4800 = vsel %vm104, %v4799, 0
  %4802 = vmatprep.subr.mxu0 0.0
  %4803 = vmatpush1.msra.mxu0 0.0
  %4804 = vmatprep.subr.mxu0 0.0
  %4805 = vmatpush1.msra.mxu0 0.0
  %4806 = vmatprep.subr.mxu0 0.0
  %4807 = vmatpush1.msra.mxu0 0.0
  %4808 = vmatprep.subr.mxu0 0.0
  %4809 = vmatpush1.msra.mxu0 0.0
  %4810 = vmatprep.subr.mxu0 0.0
  %4811 = vmatpush1.msra.mxu0 0.0
  %4812 = vmatprep.subr.mxu0 0.0
  %4813 = vmatpush1.msra.mxu0 0.0
  %4814 = vmatprep.subr.mxu0 0.0
  %4815 = vmatpush1.msra.mxu0 0.0
  %4816 = vmatprep.subr.mxu0 0.0
  %4817 = vmatpush1.msra.mxu0 0.0
  %4818 = vmatprep.subr.mxu0 0.0
  %4819 = vmatpush1.msra.mxu0 0.0
  %4820 = vmatprep.subr.mxu0 0.0
  %4821 = vmatpush1.msra.mxu0 0.0
  %4822 = vmatprep.subr.mxu0 0.0
  %4823 = vmatpush1.msra.mxu0 0.0
  %4824 = vmatprep.subr.mxu0 0.0
  %4825 = vmatpush1.msra.mxu0 0.0
  %4826 = vmatprep.subr.mxu0 0.0
  %4827 = vmatpush1.msra.mxu0 %v3951
  %4828 = vmatprep.subr.mxu0 0.0
  %4829 = vmatpush1.msra.mxu0 %v3950
  %4830 = vmatprep.subr.mxu0 0.0
  %4831 = vmatpush1.msra.mxu0 %v3949
  %4832 = vmatprep.subr.mxu0 0.0
  %4833 = vmatpush1.msra.mxu0 %v3948
  %4834 = vmatprep.subr.mxu0 0.0
  %4835 = vmatpush2.msra.mxu0 0.0
  %4836 = vmatprep.subr.mxu0 0.0
  %4837 = vmatpush2.msra.mxu0 0.0
  %4838 = vmatprep.subr.mxu0 0.0
  %4839 = vmatpush2.msra.mxu0 0.0
  %4840 = vmatprep.subr.mxu0 0.0
  %4841 = vmatpush2.msra.mxu0 0.0
  %4842 = vmatprep.subr.mxu0 0.0
  %4843 = vmatpush2.msra.mxu0 0.0
  %4844 = vmatprep.subr.mxu0 0.0
  %4845 = vmatpush2.msra.mxu0 0.0
  %4846 = vmatprep.subr.mxu0 0.0
  %4847 = vmatpush2.msra.mxu0 0.0
  %4848 = vmatprep.subr.mxu0 0.0
  %4849 = vmatpush2.msra.mxu0 0.0
  %4850 = vmatprep.subr.mxu0 0.0
  %4851 = vmatpush2.msra.mxu0 0.0
  %4852 = vmatprep.subr.mxu0 0.0
  %4853 = vmatpush2.msra.mxu0 0.0
  %4854 = vmatprep.subr.mxu0 0.0
  %4855 = vmatpush2.msra.mxu0 0.0
  %4856 = vmatprep.subr.mxu0 0.0
  %4857 = vmatpush2.msra.mxu0 0.0
  %4858 = vmatprep.subr.mxu0 0.0
  %4859 = vmatpush2.msra.mxu0 0.0
  %4860 = vmatprep.subr.mxu0 0.0
  %4861 = vmatpush2.msra.mxu0 0.0
  %4862 = vmatprep.subr.mxu0 0.0
  %4863 = vmatpush2.msra.mxu0 0.0
  %4864 = vmatprep.subr.mxu0 0.0
  %4865 = vmatpush2.msra.mxu0 0.0
  %4866 = vmatprep.mubr.f32.mxu0 0.0
  %4867 = vmatmul.mubr.f32.gmra.mxu0 %v4800
  %v4868 = vpop.f32.mrf.mxu0
  %v4869 = vadd.f32 %v4093, %v4868
  %v4870 = vpop.f32.mrf.mxu0
  %4871 = vdwg.mxu0
  %v4872 = vadd.f32 %v4086, %v4869
  %v4873 = vxor.u32 %v4872, 2147483648
  %v4874 = vmul.f32 %v4873, 1.442695
  %v4875 = vpow.pop %v4874
  %v4876 = vadd.f32 %v4875, 1.0
  %v4877 = vrcp.pop %v4876
  %v4878 = vmul.f32 1.0, %v4877
  %4880 = vrot.lane.b32.xlu0 %v4869, 64
  %v4881 = vpop.permute.xlu0 %4880
  %v4883 = vmul.f32 %v4878, %v4881
  %4885 = vrot.lane.b32.xlu0 %v4883, 64
  %v4886 = vpop.permute.xlu0 %4885
  %v4888 = vadd.f32 %v4086, %v4886
  %v4889 = vtanh.pop %v4888
  %v4890 = vsub.f32 1.0, %v4878
  %4892 = vrot.lane.b32.xlu0 %v4889, 96
  %v4893 = vpop.permute.xlu0 %4892
  %v4895 = vmul.f32 %v4890, %v4893
  %v4896 = vmul.f32 %v4878, %v4796
  %v4897 = vadd.f32 %v4895, %v4896
  %v4898 = vld [vmem:[%s21] sm:$0xff]
  %v4899 = vld [vmem:[%s21 + $0x8] sm:$0xff]
  %v4900 = vld [vmem:[%s21 + $0x10] sm:$0xff]
  %v4901 = vld [vmem:[%s21 + $0x18] sm:$0xff]
  %v4902 = vld [vmem:[%s21 + $0x20] sm:$0xff]
  %v4903 = vld [vmem:[%s21 + $0x28] sm:$0xff]
  %v4904 = vld [vmem:[%s21 + $0x30] sm:$0xff]
  %v4905 = vld [vmem:[%s21 + $0x38] sm:$0xff]
  %v4906 = vld [vmem:[%s22] sm:$0xff]
  %v4907 = vld [vmem:[%s22 + $0x8] sm:$0xff]
  %v4908 = vld [vmem:[%s22 + $0x10] sm:$0xff]
  %v4909 = vld [vmem:[%s22 + $0x18] sm:$0xff]
  %v4910 = vld [vmem:[%s23] sm:$0x1]
  %v4911 = vld [vmem:[%s24] sm:$0x1]
  %v4913 = vlaneseq
  %v4914 = vshrl.u32 %v4913, 7
  %v4915 = vsub.s32 0, %v4914
  %v4916 = vrot.slane %v4910, %v4915
  %4918 = vmatprep.subr.mxu0 0.0
  %4919 = vmatpush1.msra.mxu0 0.0
  %4920 = vmatprep.subr.mxu0 0.0
  %4921 = vmatpush1.msra.mxu0 0.0
  %4922 = vmatprep.subr.mxu0 0.0
  %4923 = vmatpush1.msra.mxu0 0.0
  %4924 = vmatprep.subr.mxu0 0.0
  %4925 = vmatpush1.msra.mxu0 0.0
  %4926 = vmatprep.subr.mxu0 0.0
  %4927 = vmatpush1.msra.mxu0 0.0
  %4928 = vmatprep.subr.mxu0 0.0
  %4929 = vmatpush1.msra.mxu0 0.0
  %4930 = vmatprep.subr.mxu0 0.0
  %4931 = vmatpush1.msra.mxu0 0.0
  %4932 = vmatprep.subr.mxu0 0.0
  %4933 = vmatpush1.msra.mxu0 0.0
  %4934 = vmatprep.subr.mxu0 0.0
  %4935 = vmatpush1.msra.mxu0 %v4905
  %4936 = vmatprep.subr.mxu0 0.0
  %4937 = vmatpush1.msra.mxu0 %v4904
  %4938 = vmatprep.subr.mxu0 0.0
  %4939 = vmatpush1.msra.mxu0 %v4903
  %4940 = vmatprep.subr.mxu0 0.0
  %4941 = vmatpush1.msra.mxu0 %v4902
  %4942 = vmatprep.subr.mxu0 0.0
  %4943 = vmatpush1.msra.mxu0 %v4901
  %4944 = vmatprep.subr.mxu0 0.0
  %4945 = vmatpush1.msra.mxu0 %v4900
  %4946 = vmatprep.subr.mxu0 0.0
  %4947 = vmatpush1.msra.mxu0 %v4899
  %4948 = vmatprep.subr.mxu0 0.0
  %4949 = vmatpush1.msra.mxu0 %v4898
  %4950 = vmatprep.subr.mxu0 0.0
  %4951 = vmatpush2.msra.mxu0 0.0
  %4952 = vmatprep.subr.mxu0 0.0
  %4953 = vmatpush2.msra.mxu0 0.0
  %4954 = vmatprep.subr.mxu0 0.0
  %4955 = vmatpush2.msra.mxu0 0.0
  %4956 = vmatprep.subr.mxu0 0.0
  %4957 = vmatpush2.msra.mxu0 0.0
  %4958 = vmatprep.subr.mxu0 0.0
  %4959 = vmatpush2.msra.mxu0 0.0
  %4960 = vmatprep.subr.mxu0 0.0
  %4961 = vmatpush2.msra.mxu0 0.0
  %4962 = vmatprep.subr.mxu0 0.0
  %4963 = vmatpush2.msra.mxu0 0.0
  %4964 = vmatprep.subr.mxu0 0.0
  %4965 = vmatpush2.msra.mxu0 0.0
  %4966 = vmatprep.subr.mxu0 0.0
  %4967 = vmatpush2.msra.mxu0 0.0
  %4968 = vmatprep.subr.mxu0 0.0
  %4969 = vmatpush2.msra.mxu0 0.0
  %4970 = vmatprep.subr.mxu0 0.0
  %4971 = vmatpush2.msra.mxu0 0.0
  %4972 = vmatprep.subr.mxu0 0.0
  %4973 = vmatpush2.msra.mxu0 0.0
  %4974 = vmatprep.subr.mxu0 0.0
  %4975 = vmatpush2.msra.mxu0 0.0
  %4976 = vmatprep.subr.mxu0 0.0
  %4977 = vmatpush2.msra.mxu0 0.0
  %4978 = vmatprep.subr.mxu0 0.0
  %4979 = vmatpush2.msra.mxu0 0.0
  %4980 = vmatprep.subr.mxu0 0.0
  %4981 = vmatpush2.msra.mxu0 0.0
  %4982 = vmatprep.mubr.f32.mxu0 0.0
  %4983 = vmatmul.mubr.f32.gmra.mxu0 %v3982
  %v4984 = vpop.f32.mrf.mxu0
  %v4985 = vadd.f32 %v4916, %v4984
  %v4986 = vpop.f32.mrf.mxu0
  %4987 = vdwg.mxu0
  %v4989 = vlaneseq
  %v4990 = vshrl.u32 %v4989, 7
  %v4991 = vsub.s32 0, %v4990
  %v4992 = vrot.slane %v4911, %v4991
  %4994 = vmatprep.subr.mxu0 0.0
  %4995 = vmatpush1.msra.mxu0 0.0
  %4996 = vmatprep.subr.mxu0 0.0
  %4997 = vmatpush1.msra.mxu0 0.0
  %4998 = vmatprep.subr.mxu0 0.0
  %4999 = vmatpush1.msra.mxu0 0.0
  %5000 = vmatprep.subr.mxu0 0.0
  %5001 = vmatpush1.msra.mxu0 0.0
  %5002 = vmatprep.subr.mxu0 0.0
  %5003 = vmatpush1.msra.mxu0 0.0
  %5004 = vmatprep.subr.mxu0 0.0
  %5005 = vmatpush1.msra.mxu0 0.0
  %5006 = vmatprep.subr.mxu0 0.0
  %5007 = vmatpush1.msra.mxu0 0.0
  %5008 = vmatprep.subr.mxu0 0.0
  %5009 = vmatpush1.msra.mxu0 0.0
  %5010 = vmatprep.subr.mxu0 0.0
  %5011 = vmatpush1.msra.mxu0 0.0
  %5012 = vmatprep.subr.mxu0 0.0
  %5013 = vmatpush1.msra.mxu0 0.0
  %5014 = vmatprep.subr.mxu0 0.0
  %5015 = vmatpush1.msra.mxu0 0.0
  %5016 = vmatprep.subr.mxu0 0.0
  %5017 = vmatpush1.msra.mxu0 0.0
  %5018 = vmatprep.subr.mxu0 0.0
  %5019 = vmatpush1.msra.mxu0 %v4909
  %5020 = vmatprep.subr.mxu0 0.0
  %5021 = vmatpush1.msra.mxu0 %v4908
  %5022 = vmatprep.subr.mxu0 0.0
  %5023 = vmatpush1.msra.mxu0 %v4907
  %5024 = vmatprep.subr.mxu0 0.0
  %5025 = vmatpush1.msra.mxu0 %v4906
  %5026 = vmatprep.subr.mxu0 0.0
  %5027 = vmatpush2.msra.mxu0 0.0
  %5028 = vmatprep.subr.mxu0 0.0
  %5029 = vmatpush2.msra.mxu0 0.0
  %5030 = vmatprep.subr.mxu0 0.0
  %5031 = vmatpush2.msra.mxu0 0.0
  %5032 = vmatprep.subr.mxu0 0.0
  %5033 = vmatpush2.msra.mxu0 0.0
  %5034 = vmatprep.subr.mxu0 0.0
  %5035 = vmatpush2.msra.mxu0 0.0
  %5036 = vmatprep.subr.mxu0 0.0
  %5037 = vmatpush2.msra.mxu0 0.0
  %5038 = vmatprep.subr.mxu0 0.0
  %5039 = vmatpush2.msra.mxu0 0.0
  %5040 = vmatprep.subr.mxu0 0.0
  %5041 = vmatpush2.msra.mxu0 0.0
  %5042 = vmatprep.subr.mxu0 0.0
  %5043 = vmatpush2.msra.mxu0 0.0
  %5044 = vmatprep.subr.mxu0 0.0
  %5045 = vmatpush2.msra.mxu0 0.0
  %5046 = vmatprep.subr.mxu0 0.0
  %5047 = vmatpush2.msra.mxu0 0.0
  %5048 = vmatprep.subr.mxu0 0.0
  %5049 = vmatpush2.msra.mxu0 0.0
  %5050 = vmatprep.subr.mxu0 0.0
  %5051 = vmatpush2.msra.mxu0 0.0
  %5052 = vmatprep.subr.mxu0 0.0
  %5053 = vmatpush2.msra.mxu0 0.0
  %5054 = vmatprep.subr.mxu0 0.0
  %5055 = vmatpush2.msra.mxu0 0.0
  %5056 = vmatprep.subr.mxu0 0.0
  %5057 = vmatpush2.msra.mxu0 0.0
  %5058 = vmatprep.mubr.f32.mxu0 0.0
  %5059 = vmatmul.mubr.f32.gmra.mxu0 %v241
  %v5060 = vpop.f32.mrf.mxu0
  %v5061 = vadd.f32 %v4992, %v5060
  %v5062 = vpop.f32.mrf.mxu0
  %5063 = vdwg.mxu0
  %v5064 = vadd.f32 %v4985, %v5061
  %v5065 = vxor.u32 %v5064, 2147483648
  %v5066 = vmul.f32 %v5065, 1.442695
  %v5067 = vpow.pop %v5066
  %v5068 = vadd.f32 %v5067, 1.0
  %v5069 = vrcp.pop %v5068
  %v5070 = vmul.f32 1.0, %v5069
  %5072 = vrot.lane.b32.xlu0 %v5061, 64
  %v5073 = vpop.permute.xlu0 %5072
  %v5075 = vmul.f32 %v5070, %v5073
  %5077 = vrot.lane.b32.xlu0 %v5075, 64
  %v5078 = vpop.permute.xlu0 %5077
  %v5080 = vadd.f32 %v4985, %v5078
  %v5081 = vtanh.pop %v5080
  %v5082 = vsub.f32 1.0, %v5070
  %5084 = vrot.lane.b32.xlu0 %v5081, 96
  %v5085 = vpop.permute.xlu0 %5084
  %v5087 = vmul.f32 %v5082, %v5085
  %v5088 = vmul.f32 %v5070, 0.0
  %v5089 = vadd.f32 %v5087, %v5088
  %5091 = vrot.lane.b32.xlu0 %v4897, 96
  %v5092 = vpop.permute.xlu0 %5091
  %v5094 = vsel %vm104, %v5092, %v5089
  %5095 = vst.msk [vmem:[%s25] sm:$0xff] %vm2032, %v5094
  // Predicated region
  $region102: #{sirna_forward.1} parent=0 // pred_check
    _
  $region103: #{sirna_forward.1} parent=0 // pred_check_branch
    %5097 = sbr.rel (0) target = $region105
  $region104: #{sirna_forward.1} parent=0 // pred_region
    _
  $region105: #{sirna_forward.1} parent=0 // pred_fallthru
    _
  // Predicated region
  $region106: #{sirna_forward.1} parent=0 // pred_check
    _
  $region107: #{sirna_forward.1} parent=0 // pred_check_branch
    %5099 = sbr.rel (0) target = $region109
  $region108: #{sirna_forward.1} parent=0 // pred_region
    _
  $region109: #{sirna_forward.1} parent=0 // pred_fallthru
    _

</llo_original>
